<compile_context>
chip_gen: v5e
topology: v5e:2x2
jax: 0.10.0
libtpu: 0.0.40
codegen_flags: <defaults>
</compile_context>

<pallas_src>
import jax
import jax.numpy as jnp
from jax import lax
from jax.experimental import pallas as pl
from jax.experimental.pallas import tpu as pltpu


def _round_up(x, m):
    return (x + m - 1) // m * m


def basic_block_kernel(x_ref, w1_ref, w2_ref, b1_ref, b2_ref, out_ref):
    """One (batch, row-block) tile:
         out = relu( conv2(relu(conv1(x)*s1 + b1))*s2 + b2 + x )
    with the BN scales s1/s2 already folded into w1/w2.

    x_ref:  (1, 1, TH+4, W+4, Cp) bf16   input row block with 2-pixel halo,
                                         channels zero-padded to Cp (mult 128).
    w*_ref: (9*Cp, Cp)            bf16   HWIO weights (BN scale folded),
                                         flattened over (ky, kx, cin).
    b*_ref: (1, Cp)               f32    folded BatchNorm bias.
    out_ref:(1, TH, W, Cp)        bf16.
    """
    TH, W, Cp = out_ref.shape[1], out_ref.shape[2], out_ref.shape[3]
    Hh, Wh = TH + 2, W + 2                       # conv1 evaluated on halo grid

    x = x_ref[0, 0]                              # (TH+4, W+4, Cp) bf16

    # ---- conv1 (+ folded bn1 scale) + bias + relu on the (TH+2, W+2) grid ---
    # 9 accumulated MXU dots instead of a materialized im2col slab.
    acc1 = jnp.zeros((Hh * Wh, Cp), jnp.float32)
    for t in range(9):
        dy, dx = t // 3, t % 3
        tap = x[dy:dy + Hh, dx:dx + Wh, :].reshape(Hh * Wh, Cp)
        acc1 = acc1 + jnp.dot(tap, w1_ref[t * Cp:(t + 1) * Cp, :],
                              preferred_element_type=jnp.float32)
    h = jnp.maximum(acc1 + b1_ref[...], 0.0).reshape(Hh, Wh, Cp)

    # Zero the halo ring only where it lies on a TRUE image border (this is
    # conv2's zero padding); interior row-block boundaries keep the computed
    # neighbour values.  Mask is (Hh, Wh, 1) and broadcasts over channels.
    r = pl.program_id(1)
    last = pl.num_programs(1) - 1
    row = lax.broadcasted_iota(jnp.int32, (Hh, Wh, 1), 0)
    col = lax.broadcasted_iota(jnp.int32, (Hh, Wh, 1), 1)
    keep = ((col >= 1) & (col <= W)
            & ((row >= 1) | (r != 0))
            & ((row <= TH) | (r != last)))
    h = jnp.where(keep, h, 0.0).astype(jnp.bfloat16)

    # ---- conv2 (+ folded bn2 scale) + bias + identity add + relu ------------
    acc2 = jnp.zeros((TH * W, Cp), jnp.float32)
    for t in range(9):
        dy, dx = t // 3, t % 3
        tap = h[dy:dy + TH, dx:dx + W, :].reshape(TH * W, Cp)
        acc2 = acc2 + jnp.dot(tap, w2_ref[t * Cp:(t + 1) * Cp, :],
                              preferred_element_type=jnp.float32)

    # Identity = original (unpadded) x, reused from the resident input tile.
    # TODO(synk): feed an f32 identity stream if bit-parity with an f32
    #             residual is required (here inputs are bf16-representable).
    identity = x[2:TH + 2, 2:W + 2, :].astype(jnp.float32).reshape(TH * W, Cp)
    out = jnp.maximum(acc2 + b2_ref[...] + identity, 0.0)
    out_ref[0] = out.reshape(TH, W, Cp).astype(out_ref.dtype)


def _fold_bn(gamma, beta, mean, var, eps, c_pad):
    scale = (gamma / jnp.sqrt(var + eps)).astype(jnp.float32)
    bias = (beta - mean * scale).astype(jnp.float32)
    bias = jnp.pad(bias, (0, c_pad - bias.shape[0]))
    return scale, bias.reshape(1, c_pad)


def _prep_weight(w_oihw, scale, c_pad):
    # OIHW -> HWIO, fold the per-output-channel BN scale into the weight,
    # pad Cin/Cout to c_pad, flatten taps: (9*c_pad, c_pad) bf16.
    w = jnp.transpose(w_oihw, (2, 3, 1, 0)).astype(jnp.float32)
    w = w * scale[None, None, None, :]
    w = jnp.pad(w, ((0, 0), (0, 0),
                    (0, c_pad - w.shape[2]), (0, c_pad - w.shape[3])))
    return w.reshape(9 * c_pad, c_pad).astype(jnp.bfloat16)


def _pick_row_block(H, W, c_pad, budget_bytes=12 * 1024 * 1024):
    """Largest divisor of H whose per-step working set fits the budget."""
    weights = 2 * 2 * 9 * c_pad * c_pad * 2          # 2 weights, double-buffered
    best = 1
    for th in range(1, H + 1):
        if H % th:
            continue
        hh, wh = th + 2, W + 2
        est = (weights
               + 2 * (th + 4) * (W + 4) * c_pad * 2  # input double-buffer (bf16)
               + 2 * th * W * c_pad * 2              # output double-buffer (bf16)
               + hh * wh * c_pad * 4                 # conv1 f32 accumulator
               + hh * wh * c_pad * 2 * 2             # bf16 intermediate + tap temp
               + th * W * c_pad * 4 * 2)             # conv2 acc + f32 identity
        if est <= budget_bytes:
            best = th
    return best


def basic_block_nhwc(x_nhwc_padded, w1p, w2p, b1, b2, row_block=None):
    """Core fused BasicBlock.  NHWC, channel-padded bf16 in -> bf16 out.

    This is the interchange format for chained blocks (no NCHW<->NHWC
    transpose, channel pad, or slice between blocks)."""
    N, H, W, Cp = x_nhwc_padded.shape
    TH = _pick_row_block(H, W, Cp) if row_block is None else row_block
    assert H % TH == 0
    nrb = H // TH

    # 2-pixel spatial zero halo; row-block windows (with halo) materialized so
    # plain Blocked BlockSpecs index them (overlap duplicates only 4 rows/blk).
    xpad = jnp.pad(x_nhwc_padded, ((0, 0), (2, 2), (2, 2), (0, 0)))
    if nrb == 1:
        xblk = xpad[:, None]                          # (N, 1, H+4, W+4, Cp)
    else:
        xblk = jnp.stack(
            [xpad[:, r * TH:r * TH + TH + 4] for r in range(nrb)], axis=1)

    return pl.pallas_call(
        basic_block_kernel,
        out_shape=jax.ShapeDtypeStruct((N, H, W, Cp), jnp.bfloat16),
        grid_spec=pltpu.PrefetchScalarGridSpec(
            num_scalar_prefetch=0,
            grid=(N, nrb),
            in_specs=[
                pl.BlockSpec((1, 1, TH + 4, W + 4, Cp),
                             lambda n, r: (n, r, 0, 0, 0)),
                pl.BlockSpec((9 * Cp, Cp), lambda n, r: (0, 0)),
                pl.BlockSpec((9 * Cp, Cp), lambda n, r: (0, 0)),
                pl.BlockSpec((1, Cp), lambda n, r: (0, 0)),
                pl.BlockSpec((1, Cp), lambda n, r: (0, 0)),
            ],
            out_specs=pl.BlockSpec((1, TH, W, Cp), lambda n, r: (n, r, 0, 0)),
        ),
        compiler_params=pltpu.CompilerParams(
            dimension_semantics=("parallel", "parallel"),
            vmem_limit_bytes=32 * 1024 * 1024),
    )(xblk, w1p, w2p, b1, b2)


def basic_block_forward(x_nchw, w1, bn1, w2, bn2, eps=1e-5):
    """Convenience NCHW/f32 wrapper (PyTorch-layout in/out).

    x_nchw: (N, C, H, W) f32; w*: (Cout, Cin, 3, 3) OIHW;
    bn*: (gamma, beta, running_mean, running_var)."""
    N, C, H, W = x_nchw.shape
    c_out = w1.shape[0]
    assert w1.shape[1] == C and w2.shape == (c_out, c_out, 3, 3)
    assert C == c_out, "identity path requires inplanes == planes"
    # TODO(synk): stride>1 / downsample path of BasicBlock is not implemented.

    c_pad = _round_up(c_out, 128)                     # lane-dense channel dim

    s1, b1 = _fold_bn(*bn1, eps, c_pad)
    s2, b2 = _fold_bn(*bn2, eps, c_pad)
    w1p = _prep_weight(w1, s1, c_pad)
    w2p = _prep_weight(w2, s2, c_pad)

    x = jnp.transpose(x_nchw, (0, 2, 3, 1))           # NCHW -> NHWC
    x = jnp.pad(x, ((0, 0), (0, 0), (0, 0),
                    (0, c_pad - C))).astype(jnp.bfloat16)

    out = basic_block_nhwc(x, w1p, w2p, b1, b2)
    out = out[..., :c_out].astype(jnp.float32)        # drop channel padding
    return jnp.transpose(out, (0, 3, 1, 2))           # NHWC -> NCHW


# ------------------------- pure-JAX reference ------------------------------
def basic_block_reference(x, w1, bn1, w2, bn2, eps=1e-5):
    def conv(x, w):
        return lax.conv_general_dilated(
            x, w, window_strides=(1, 1), padding=((1, 1), (1, 1)),
            dimension_numbers=("NCHW", "OIHW", "NCHW"),
            precision=lax.Precision.HIGHEST)

    def bn(x, p):
        g, b, m, v = p
        inv = g / jnp.sqrt(v + eps)
        return x * inv[None, :, None, None] + (b - m * inv)[None, :, None, None]

    out = jax.nn.relu(bn(conv(x, w1), bn1))
    out = bn(conv(out, w2), bn2)
    return jax.nn.relu(out + x)


if __name__ == "__main__":
    key = jax.random.PRNGKey(0)
    N, C, H, W = 2, 4, 16, 16                    # inplanes = planes = 4, stride 1
    planes = C

    ks = jax.random.split(key, 12)

    # Pre-round activations/weights to bf16-representable values so the bf16
    # kernel path and the all-f32 reference differ only in the internal bf16
    # roundings (scaled weights, intermediate activation, bf16 output).
    def bf16_round(a):
        return a.astype(jnp.bfloat16).astype(jnp.float32)

    x = bf16_round(jax.random.normal(ks[0], (N, C, H, W), jnp.float32))
    w1 = bf16_round(jax.random.normal(ks[1], (planes, C, 3, 3), jnp.float32) * 0.1)
    w2 = bf16_round(jax.random.normal(ks[2], (planes, planes, 3, 3), jnp.float32) * 0.1)
    bn1 = (jax.random.uniform(ks[3], (planes,), minval=0.5, maxval=1.5),
           jax.random.normal(ks[4], (planes,)) * 0.1,
           jax.random.normal(ks[5], (planes,)) * 0.1,
           jax.random.uniform(ks[6], (planes,), minval=0.5, maxval=1.5))
    bn2 = (jax.random.uniform(ks[7], (planes,), minval=0.5, maxval=1.5),
           jax.random.normal(ks[8], (planes,)) * 0.1,
           jax.random.normal(ks[9], (planes,)) * 0.1,
           jax.random.uniform(ks[10], (planes,), minval=0.5, maxval=1.5))

    out = basic_block_forward(x, w1, bn1, w2, bn2)
    out = jax.block_until_ready(out)

    ref = basic_block_reference(x, w1, bn1, w2, bn2)
    assert out.shape == ref.shape == (N, C, H, W)
    # Intermediate activation, scaled weights and the output are bf16 inside
    # the fused kernel, so tolerance is loosened vs. the all-f32 reference.
    assert jnp.allclose(out, ref, rtol=2e-2, atol=2e-2), (
        float(jnp.max(jnp.abs(out - ref))))

    print("KERNEL_OK")
</pallas_src>

<mosaic_0001>
module attributes {stable_mosaic.version = 11 : i64} {
  func.func @basic_block_kernel(%arg0: i32, %arg1: i32, %arg2: memref<1x1x20x20x128xbf16, #tpu.memory_space<vmem>>, %arg3: memref<1152x128xbf16, #tpu.memory_space<vmem>>, %arg4: memref<1152x128xbf16, #tpu.memory_space<vmem>>, %arg5: memref<1x128xf32, #tpu.memory_space<vmem>>, %arg6: memref<1x128xf32, #tpu.memory_space<vmem>>, %arg7: memref<1x16x16x128xbf16, #tpu.memory_space<vmem>>) attributes {dimension_semantics = [#tpu.dimension_semantics<parallel>, #tpu.dimension_semantics<parallel>], iteration_bounds = array<i64: 2, 1>, scalar_prefetch = 0 : i64, scratch_operands = 0 : i64, tpu.core_type = #tpu.core_type<tc>, window_params = [{transform_indices = @transform_0, window_bounds = array<i64: 1, 1, 20, 20, 128>}, {pipeline_mode = #tpu.pipeline_mode<synchronous>, transform_indices = @transform_1, window_bounds = array<i64: 1152, 128>}, {pipeline_mode = #tpu.pipeline_mode<synchronous>, transform_indices = @transform_2, window_bounds = array<i64: 1152, 128>}, {pipeline_mode = #tpu.pipeline_mode<synchronous>, transform_indices = @transform_3, window_bounds = array<i64: 1, 128>}, {pipeline_mode = #tpu.pipeline_mode<synchronous>, transform_indices = @transform_4, window_bounds = array<i64: 1, 128>}, {transform_indices = @transform_5, window_bounds = array<i64: 1, 16, 16, 128>}]} {
    %c0 = arith.constant 0 : index
    %c0_0 = arith.constant 0 : index
    %c0_1 = arith.constant 0 : index
    %c0_2 = arith.constant 0 : index
    %c0_3 = arith.constant 0 : index
    %0 = vector.load %arg2[%c0, %c0_0, %c0_1, %c0_2, %c0_3] : memref<1x1x20x20x128xbf16, #tpu.memory_space<vmem>>, vector<1x1x20x20x128xbf16>
    %1 = vector.shape_cast %0 : vector<1x1x20x20x128xbf16> to vector<20x20x128xbf16>
    %cst = arith.constant 0.000000e+00 : f32
    %2 = vector.broadcast %cst : f32 to vector<324x128xf32>
    %3 = vector.extract_strided_slice %1 {offsets = [0, 0, 0], sizes = [18, 18, 128], strides = [1, 1, 1]} : vector<20x20x128xbf16> to vector<18x18x128xbf16>
    %4 = vector.shape_cast %3 : vector<18x18x128xbf16> to vector<324x128xbf16>
    %c0_4 = arith.constant 0 : index
    %c0_5 = arith.constant 0 : index
    %5 = vector.load %arg3[%c0_4, %c0_5] : memref<1152x128xbf16, #tpu.memory_space<vmem>>, vector<128x128xbf16>
    %cst_6 = arith.constant dense<0.000000e+00> : vector<324x128xf32>
    %6 = tpu.matmul %4, %5, %cst_6 {dimension_numbers = #tpu.dot_dimension_numbers<[1], [0], [0], [1], [0, 0, 1, 1], [], []>} : vector<324x128xbf16>, vector<128x128xbf16>, vector<324x128xf32> -> vector<324x128xf32>
    %7 = arith.addf %2, %6 : vector<324x128xf32>
    %8 = vector.extract_strided_slice %1 {offsets = [0, 1, 0], sizes = [18, 18, 128], strides = [1, 1, 1]} : vector<20x20x128xbf16> to vector<18x18x128xbf16>
    %9 = vector.shape_cast %8 : vector<18x18x128xbf16> to vector<324x128xbf16>
    %c128 = arith.constant 128 : index
    %c0_7 = arith.constant 0 : index
    %10 = vector.load %arg3[%c128, %c0_7] : memref<1152x128xbf16, #tpu.memory_space<vmem>>, vector<128x128xbf16>
    %cst_8 = arith.constant dense<0.000000e+00> : vector<324x128xf32>
    %11 = tpu.matmul %9, %10, %cst_8 {dimension_numbers = #tpu.dot_dimension_numbers<[1], [0], [0], [1], [0, 0, 1, 1], [], []>} : vector<324x128xbf16>, vector<128x128xbf16>, vector<324x128xf32> -> vector<324x128xf32>
    %12 = arith.addf %7, %11 : vector<324x128xf32>
    %13 = vector.extract_strided_slice %1 {offsets = [0, 2, 0], sizes = [18, 18, 128], strides = [1, 1, 1]} : vector<20x20x128xbf16> to vector<18x18x128xbf16>
    %14 = vector.shape_cast %13 : vector<18x18x128xbf16> to vector<324x128xbf16>
    %c256 = arith.constant 256 : index
    %c0_9 = arith.constant 0 : index
    %15 = vector.load %arg3[%c256, %c0_9] : memref<1152x128xbf16, #tpu.memory_space<vmem>>, vector<128x128xbf16>
    %cst_10 = arith.constant dense<0.000000e+00> : vector<324x128xf32>
    %16 = tpu.matmul %14, %15, %cst_10 {dimension_numbers = #tpu.dot_dimension_numbers<[1], [0], [0], [1], [0, 0, 1, 1], [], []>} : vector<324x128xbf16>, vector<128x128xbf16>, vector<324x128xf32> -> vector<324x128xf32>
    %17 = arith.addf %12, %16 : vector<324x128xf32>
    %18 = vector.extract_strided_slice %1 {offsets = [1, 0, 0], sizes = [18, 18, 128], strides = [1, 1, 1]} : vector<20x20x128xbf16> to vector<18x18x128xbf16>
    %19 = vector.shape_cast %18 : vector<18x18x128xbf16> to vector<324x128xbf16>
    %c384 = arith.constant 384 : index
    %c0_11 = arith.constant 0 : index
    %20 = vector.load %arg3[%c384, %c0_11] : memref<1152x128xbf16, #tpu.memory_space<vmem>>, vector<128x128xbf16>
    %cst_12 = arith.constant dense<0.000000e+00> : vector<324x128xf32>
    %21 = tpu.matmul %19, %20, %cst_12 {dimension_numbers = #tpu.dot_dimension_numbers<[1], [0], [0], [1], [0, 0, 1, 1], [], []>} : vector<324x128xbf16>, vector<128x128xbf16>, vector<324x128xf32> -> vector<324x128xf32>
    %22 = arith.addf %17, %21 : vector<324x128xf32>
    %23 = vector.extract_strided_slice %1 {offsets = [1, 1, 0], sizes = [18, 18, 128], strides = [1, 1, 1]} : vector<20x20x128xbf16> to vector<18x18x128xbf16>
    %24 = vector.shape_cast %23 : vector<18x18x128xbf16> to vector<324x128xbf16>
    %c512 = arith.constant 512 : index
    %c0_13 = arith.constant 0 : index
    %25 = vector.load %arg3[%c512, %c0_13] : memref<1152x128xbf16, #tpu.memory_space<vmem>>, vector<128x128xbf16>
    %cst_14 = arith.constant dense<0.000000e+00> : vector<324x128xf32>
    %26 = tpu.matmul %24, %25, %cst_14 {dimension_numbers = #tpu.dot_dimension_numbers<[1], [0], [0], [1], [0, 0, 1, 1], [], []>} : vector<324x128xbf16>, vector<128x128xbf16>, vector<324x128xf32> -> vector<324x128xf32>
    %27 = arith.addf %22, %26 : vector<324x128xf32>
    %28 = vector.extract_strided_slice %1 {offsets = [1, 2, 0], sizes = [18, 18, 128], strides = [1, 1, 1]} : vector<20x20x128xbf16> to vector<18x18x128xbf16>
    %29 = vector.shape_cast %28 : vector<18x18x128xbf16> to vector<324x128xbf16>
    %c640 = arith.constant 640 : index
    %c0_15 = arith.constant 0 : index
    %30 = vector.load %arg3[%c640, %c0_15] : memref<1152x128xbf16, #tpu.memory_space<vmem>>, vector<128x128xbf16>
    %cst_16 = arith.constant dense<0.000000e+00> : vector<324x128xf32>
    %31 = tpu.matmul %29, %30, %cst_16 {dimension_numbers = #tpu.dot_dimension_numbers<[1], [0], [0], [1], [0, 0, 1, 1], [], []>} : vector<324x128xbf16>, vector<128x128xbf16>, vector<324x128xf32> -> vector<324x128xf32>
    %32 = arith.addf %27, %31 : vector<324x128xf32>
    %33 = vector.extract_strided_slice %1 {offsets = [2, 0, 0], sizes = [18, 18, 128], strides = [1, 1, 1]} : vector<20x20x128xbf16> to vector<18x18x128xbf16>
    %34 = vector.shape_cast %33 : vector<18x18x128xbf16> to vector<324x128xbf16>
    %c768 = arith.constant 768 : index
    %c0_17 = arith.constant 0 : index
    %35 = vector.load %arg3[%c768, %c0_17] : memref<1152x128xbf16, #tpu.memory_space<vmem>>, vector<128x128xbf16>
    %cst_18 = arith.constant dense<0.000000e+00> : vector<324x128xf32>
    %36 = tpu.matmul %34, %35, %cst_18 {dimension_numbers = #tpu.dot_dimension_numbers<[1], [0], [0], [1], [0, 0, 1, 1], [], []>} : vector<324x128xbf16>, vector<128x128xbf16>, vector<324x128xf32> -> vector<324x128xf32>
    %37 = arith.addf %32, %36 : vector<324x128xf32>
    %38 = vector.extract_strided_slice %1 {offsets = [2, 1, 0], sizes = [18, 18, 128], strides = [1, 1, 1]} : vector<20x20x128xbf16> to vector<18x18x128xbf16>
    %39 = vector.shape_cast %38 : vector<18x18x128xbf16> to vector<324x128xbf16>
    %c896 = arith.constant 896 : index
    %c0_19 = arith.constant 0 : index
    %40 = vector.load %arg3[%c896, %c0_19] : memref<1152x128xbf16, #tpu.memory_space<vmem>>, vector<128x128xbf16>
    %cst_20 = arith.constant dense<0.000000e+00> : vector<324x128xf32>
    %41 = tpu.matmul %39, %40, %cst_20 {dimension_numbers = #tpu.dot_dimension_numbers<[1], [0], [0], [1], [0, 0, 1, 1], [], []>} : vector<324x128xbf16>, vector<128x128xbf16>, vector<324x128xf32> -> vector<324x128xf32>
    %42 = arith.addf %37, %41 : vector<324x128xf32>
    %43 = vector.extract_strided_slice %1 {offsets = [2, 2, 0], sizes = [18, 18, 128], strides = [1, 1, 1]} : vector<20x20x128xbf16> to vector<18x18x128xbf16>
    %44 = vector.shape_cast %43 : vector<18x18x128xbf16> to vector<324x128xbf16>
    %c1024 = arith.constant 1024 : index
    %c0_21 = arith.constant 0 : index
    %45 = vector.load %arg3[%c1024, %c0_21] : memref<1152x128xbf16, #tpu.memory_space<vmem>>, vector<128x128xbf16>
    %cst_22 = arith.constant dense<0.000000e+00> : vector<324x128xf32>
    %46 = tpu.matmul %44, %45, %cst_22 {dimension_numbers = #tpu.dot_dimension_numbers<[1], [0], [0], [1], [0, 0, 1, 1], [], []>} : vector<324x128xbf16>, vector<128x128xbf16>, vector<324x128xf32> -> vector<324x128xf32>
    %47 = arith.addf %42, %46 : vector<324x128xf32>
    %c0_23 = arith.constant 0 : index
    %c0_24 = arith.constant 0 : index
    %48 = vector.load %arg5[%c0_23, %c0_24] : memref<1x128xf32, #tpu.memory_space<vmem>>, vector<1x128xf32>
    %49 = vector.broadcast %48 : vector<1x128xf32> to vector<324x128xf32>
    %50 = arith.addf %47, %49 : vector<324x128xf32>
    %cst_25 = arith.constant 0.000000e+00 : f32
    %51 = vector.broadcast %cst_25 : f32 to vector<324x128xf32>
    %52 = arith.maximumf %50, %51 : vector<324x128xf32>
    %53 = vector.shape_cast %52 : vector<324x128xf32> to vector<18x18x128xf32>
    %54 = tpu.iota {dimensions = array<i32: 0>} : vector<18x18x1xi32>
    %55 = tpu.iota {dimensions = array<i32: 1>} : vector<18x18x1xi32>
    %c1_i32 = arith.constant 1 : i32
    %56 = vector.broadcast %c1_i32 : i32 to vector<18x18x1xi32>
    %57 = arith.cmpi sge, %55, %56 : vector<18x18x1xi32>
    %c16_i32 = arith.constant 16 : i32
    %58 = vector.broadcast %c16_i32 : i32 to vector<18x18x1xi32>
    %59 = arith.cmpi sle, %55, %58 : vector<18x18x1xi32>
    %60 = arith.andi %57, %59 : vector<18x18x1xi1>
    %c1_i32_26 = arith.constant 1 : i32
    %61 = vector.broadcast %c1_i32_26 : i32 to vector<18x18x1xi32>
    %62 = arith.cmpi sge, %54, %61 : vector<18x18x1xi32>
    %c0_i32 = arith.constant 0 : i32
    %63 = arith.cmpi ne, %arg1, %c0_i32 : i32
    %64 = vector.broadcast %63 : i1 to vector<18x18x1xi1>
    %65 = arith.ori %62, %64 : vector<18x18x1xi1>
    %66 = arith.andi %60, %65 : vector<18x18x1xi1>
    %c16_i32_27 = arith.constant 16 : i32
    %67 = vector.broadcast %c16_i32_27 : i32 to vector<18x18x1xi32>
    %68 = arith.cmpi sle, %54, %67 : vector<18x18x1xi32>
    %c0_i32_28 = arith.constant 0 : i32
    %69 = arith.cmpi ne, %arg1, %c0_i32_28 : i32
    %70 = vector.broadcast %69 : i1 to vector<18x18x1xi1>
    %71 = arith.ori %68, %70 : vector<18x18x1xi1>
    %72 = arith.andi %66, %71 : vector<18x18x1xi1>
    %cst_29 = arith.constant 0.000000e+00 : f32
    %73 = vector.shape_cast %72 : vector<18x18x1xi1> to vector<18x18x1xi1>
    %74 = vector.broadcast %73 : vector<18x18x1xi1> to vector<18x18x128xi1>
    %75 = vector.broadcast %cst_29 : f32 to vector<18x18x128xf32>
    %76 = arith.select %74, %53, %75 : vector<18x18x128xi1>, vector<18x18x128xf32>
    %77 = arith.truncf %76 : vector<18x18x128xf32> to vector<18x18x128xbf16>
    %cst_30 = arith.constant 0.000000e+00 : f32
    %78 = vector.broadcast %cst_30 : f32 to vector<256x128xf32>
    %79 = vector.extract_strided_slice %77 {offsets = [0, 0, 0], sizes = [16, 16, 128], strides = [1, 1, 1]} : vector<18x18x128xbf16> to vector<16x16x128xbf16>
    %80 = vector.shape_cast %79 : vector<16x16x128xbf16> to vector<256x128xbf16>
    %c0_31 = arith.constant 0 : index
    %c0_32 = arith.constant 0 : index
    %81 = vector.load %arg4[%c0_31, %c0_32] : memref<1152x128xbf16, #tpu.memory_space<vmem>>, vector<128x128xbf16>
    %cst_33 = arith.constant dense<0.000000e+00> : vector<256x128xf32>
    %82 = tpu.matmul %80, %81, %cst_33 {dimension_numbers = #tpu.dot_dimension_numbers<[1], [0], [0], [1], [0, 0, 1, 1], [], []>} : vector<256x128xbf16>, vector<128x128xbf16>, vector<256x128xf32> -> vector<256x128xf32>
    %83 = arith.addf %78, %82 : vector<256x128xf32>
    %84 = vector.extract_strided_slice %77 {offsets = [0, 1, 0], sizes = [16, 16, 128], strides = [1, 1, 1]} : vector<18x18x128xbf16> to vector<16x16x128xbf16>
    %85 = vector.shape_cast %84 : vector<16x16x128xbf16> to vector<256x128xbf16>
    %c128_34 = arith.constant 128 : index
    %c0_35 = arith.constant 0 : index
    %86 = vector.load %arg4[%c128_34, %c0_35] : memref<1152x128xbf16, #tpu.memory_space<vmem>>, vector<128x128xbf16>
    %cst_36 = arith.constant dense<0.000000e+00> : vector<256x128xf32>
    %87 = tpu.matmul %85, %86, %cst_36 {dimension_numbers = #tpu.dot_dimension_numbers<[1], [0], [0], [1], [0, 0, 1, 1], [], []>} : vector<256x128xbf16>, vector<128x128xbf16>, vector<256x128xf32> -> vector<256x128xf32>
    %88 = arith.addf %83, %87 : vector<256x128xf32>
    %89 = vector.extract_strided_slice %77 {offsets = [0, 2, 0], sizes = [16, 16, 128], strides = [1, 1, 1]} : vector<18x18x128xbf16> to vector<16x16x128xbf16>
    %90 = vector.shape_cast %89 : vector<16x16x128xbf16> to vector<256x128xbf16>
    %c256_37 = arith.constant 256 : index
    %c0_38 = arith.constant 0 : index
    %91 = vector.load %arg4[%c256_37, %c0_38] : memref<1152x128xbf16, #tpu.memory_space<vmem>>, vector<128x128xbf16>
    %cst_39 = arith.constant dense<0.000000e+00> : vector<256x128xf32>
    %92 = tpu.matmul %90, %91, %cst_39 {dimension_numbers = #tpu.dot_dimension_numbers<[1], [0], [0], [1], [0, 0, 1, 1], [], []>} : vector<256x128xbf16>, vector<128x128xbf16>, vector<256x128xf32> -> vector<256x128xf32>
    %93 = arith.addf %88, %92 : vector<256x128xf32>
    %94 = vector.extract_strided_slice %77 {offsets = [1, 0, 0], sizes = [16, 16, 128], strides = [1, 1, 1]} : vector<18x18x128xbf16> to vector<16x16x128xbf16>
    %95 = vector.shape_cast %94 : vector<16x16x128xbf16> to vector<256x128xbf16>
    %c384_40 = arith.constant 384 : index
    %c0_41 = arith.constant 0 : index
    %96 = vector.load %arg4[%c384_40, %c0_41] : memref<1152x128xbf16, #tpu.memory_space<vmem>>, vector<128x128xbf16>
    %cst_42 = arith.constant dense<0.000000e+00> : vector<256x128xf32>
    %97 = tpu.matmul %95, %96, %cst_42 {dimension_numbers = #tpu.dot_dimension_numbers<[1], [0], [0], [1], [0, 0, 1, 1], [], []>} : vector<256x128xbf16>, vector<128x128xbf16>, vector<256x128xf32> -> vector<256x128xf32>
    %98 = arith.addf %93, %97 : vector<256x128xf32>
    %99 = vector.extract_strided_slice %77 {offsets = [1, 1, 0], sizes = [16, 16, 128], strides = [1, 1, 1]} : vector<18x18x128xbf16> to vector<16x16x128xbf16>
    %100 = vector.shape_cast %99 : vector<16x16x128xbf16> to vector<256x128xbf16>
    %c512_43 = arith.constant 512 : index
    %c0_44 = arith.constant 0 : index
    %101 = vector.load %arg4[%c512_43, %c0_44] : memref<1152x128xbf16, #tpu.memory_space<vmem>>, vector<128x128xbf16>
    %cst_45 = arith.constant dense<0.000000e+00> : vector<256x128xf32>
    %102 = tpu.matmul %100, %101, %cst_45 {dimension_numbers = #tpu.dot_dimension_numbers<[1], [0], [0], [1], [0, 0, 1, 1], [], []>} : vector<256x128xbf16>, vector<128x128xbf16>, vector<256x128xf32> -> vector<256x128xf32>
    %103 = arith.addf %98, %102 : vector<256x128xf32>
    %104 = vector.extract_strided_slice %77 {offsets = [1, 2, 0], sizes = [16, 16, 128], strides = [1, 1, 1]} : vector<18x18x128xbf16> to vector<16x16x128xbf16>
    %105 = vector.shape_cast %104 : vector<16x16x128xbf16> to vector<256x128xbf16>
    %c640_46 = arith.constant 640 : index
    %c0_47 = arith.constant 0 : index
    %106 = vector.load %arg4[%c640_46, %c0_47] : memref<1152x128xbf16, #tpu.memory_space<vmem>>, vector<128x128xbf16>
    %cst_48 = arith.constant dense<0.000000e+00> : vector<256x128xf32>
    %107 = tpu.matmul %105, %106, %cst_48 {dimension_numbers = #tpu.dot_dimension_numbers<[1], [0], [0], [1], [0, 0, 1, 1], [], []>} : vector<256x128xbf16>, vector<128x128xbf16>, vector<256x128xf32> -> vector<256x128xf32>
    %108 = arith.addf %103, %107 : vector<256x128xf32>
    %109 = vector.extract_strided_slice %77 {offsets = [2, 0, 0], sizes = [16, 16, 128], strides = [1, 1, 1]} : vector<18x18x128xbf16> to vector<16x16x128xbf16>
    %110 = vector.shape_cast %109 : vector<16x16x128xbf16> to vector<256x128xbf16>
    %c768_49 = arith.constant 768 : index
    %c0_50 = arith.constant 0 : index
    %111 = vector.load %arg4[%c768_49, %c0_50] : memref<1152x128xbf16, #tpu.memory_space<vmem>>, vector<128x128xbf16>
    %cst_51 = arith.constant dense<0.000000e+00> : vector<256x128xf32>
    %112 = tpu.matmul %110, %111, %cst_51 {dimension_numbers = #tpu.dot_dimension_numbers<[1], [0], [0], [1], [0, 0, 1, 1], [], []>} : vector<256x128xbf16>, vector<128x128xbf16>, vector<256x128xf32> -> vector<256x128xf32>
    %113 = arith.addf %108, %112 : vector<256x128xf32>
    %114 = vector.extract_strided_slice %77 {offsets = [2, 1, 0], sizes = [16, 16, 128], strides = [1, 1, 1]} : vector<18x18x128xbf16> to vector<16x16x128xbf16>
    %115 = vector.shape_cast %114 : vector<16x16x128xbf16> to vector<256x128xbf16>
    %c896_52 = arith.constant 896 : index
    %c0_53 = arith.constant 0 : index
    %116 = vector.load %arg4[%c896_52, %c0_53] : memref<1152x128xbf16, #tpu.memory_space<vmem>>, vector<128x128xbf16>
    %cst_54 = arith.constant dense<0.000000e+00> : vector<256x128xf32>
    %117 = tpu.matmul %115, %116, %cst_54 {dimension_numbers = #tpu.dot_dimension_numbers<[1], [0], [0], [1], [0, 0, 1, 1], [], []>} : vector<256x128xbf16>, vector<128x128xbf16>, vector<256x128xf32> -> vector<256x128xf32>
    %118 = arith.addf %113, %117 : vector<256x128xf32>
    %119 = vector.extract_strided_slice %77 {offsets = [2, 2, 0], sizes = [16, 16, 128], strides = [1, 1, 1]} : vector<18x18x128xbf16> to vector<16x16x128xbf16>
    %120 = vector.shape_cast %119 : vector<16x16x128xbf16> to vector<256x128xbf16>
    %c1024_55 = arith.constant 1024 : index
    %c0_56 = arith.constant 0 : index
    %121 = vector.load %arg4[%c1024_55, %c0_56] : memref<1152x128xbf16, #tpu.memory_space<vmem>>, vector<128x128xbf16>
    %cst_57 = arith.constant dense<0.000000e+00> : vector<256x128xf32>
    %122 = tpu.matmul %120, %121, %cst_57 {dimension_numbers = #tpu.dot_dimension_numbers<[1], [0], [0], [1], [0, 0, 1, 1], [], []>} : vector<256x128xbf16>, vector<128x128xbf16>, vector<256x128xf32> -> vector<256x128xf32>
    %123 = arith.addf %118, %122 : vector<256x128xf32>
    %124 = vector.extract_strided_slice %1 {offsets = [2, 2, 0], sizes = [16, 16, 128], strides = [1, 1, 1]} : vector<20x20x128xbf16> to vector<16x16x128xbf16>
    %125 = arith.extf %124 : vector<16x16x128xbf16> to vector<16x16x128xf32>
    %126 = vector.shape_cast %125 : vector<16x16x128xf32> to vector<256x128xf32>
    %c0_58 = arith.constant 0 : index
    %c0_59 = arith.constant 0 : index
    %127 = vector.load %arg6[%c0_58, %c0_59] : memref<1x128xf32, #tpu.memory_space<vmem>>, vector<1x128xf32>
    %128 = vector.broadcast %127 : vector<1x128xf32> to vector<256x128xf32>
    %129 = arith.addf %123, %128 : vector<256x128xf32>
    %130 = arith.addf %129, %126 : vector<256x128xf32>
    %cst_60 = arith.constant 0.000000e+00 : f32
    %131 = vector.broadcast %cst_60 : f32 to vector<256x128xf32>
    %132 = arith.maximumf %130, %131 : vector<256x128xf32>
    %133 = vector.shape_cast %132 : vector<256x128xf32> to vector<16x16x128xf32>
    %134 = arith.truncf %133 : vector<16x16x128xf32> to vector<16x16x128xbf16>
    %c0_61 = arith.constant 0 : index
    %c0_62 = arith.constant 0 : index
    %c0_63 = arith.constant 0 : index
    %c0_64 = arith.constant 0 : index
    %135 = vector.load %arg7[%c0_61, %c0_62, %c0_63, %c0_64] : memref<1x16x16x128xbf16, #tpu.memory_space<vmem>>, vector<1x16x16x128xbf16>
    %136 = vector.shape_cast %135 : vector<1x16x16x128xbf16> to vector<16x16x128xbf16>
    %137 = vector.shape_cast %134 : vector<16x16x128xbf16> to vector<1x16x16x128xbf16>
    tpu.vector_store %arg7[%c0_61, %c0_62, %c0_63, %c0_64], %137 {strides = array<i32>} : memref<1x16x16x128xbf16, #tpu.memory_space<vmem>>, vector<1x16x16x128xbf16>,
    return
  }
  func.func @transform_0(%arg0: i32, %arg1: i32) -> (i32, i32, i32, i32, i32) {
    %c0_i32 = arith.constant 0 : i32
    %c0_i32_0 = arith.constant 0 : i32
    %c0_i32_1 = arith.constant 0 : i32
    %c0_i32_2 = arith.constant 0 : i32
    return %arg0, %arg1, %c0_i32, %c0_i32_0, %c0_i32_1 : i32, i32, i32, i32, i32
  }
  func.func @transform_1(%arg0: i32, %arg1: i32) -> (i32, i32) {
    %c0_i32 = arith.constant 0 : i32
    %c0_i32_0 = arith.constant 0 : i32
    %c0_i32_1 = arith.constant 0 : i32
    return %c0_i32, %c0_i32_0 : i32, i32
  }
  func.func @transform_2(%arg0: i32, %arg1: i32) -> (i32, i32) {
    %c0_i32 = arith.constant 0 : i32
    %c0_i32_0 = arith.constant 0 : i32
    %c0_i32_1 = arith.constant 0 : i32
    return %c0_i32, %c0_i32_0 : i32, i32
  }
  func.func @transform_3(%arg0: i32, %arg1: i32) -> (i32, i32) {
    %c0_i32 = arith.constant 0 : i32
    %c0_i32_0 = arith.constant 0 : i32
    %c0_i32_1 = arith.constant 0 : i32
    return %c0_i32, %c0_i32_0 : i32, i32
  }
  func.func @transform_4(%arg0: i32, %arg1: i32) -> (i32, i32) {
    %c0_i32 = arith.constant 0 : i32
    %c0_i32_0 = arith.constant 0 : i32
    %c0_i32_1 = arith.constant 0 : i32
    return %c0_i32, %c0_i32_0 : i32, i32
  }
  func.func @transform_5(%arg0: i32, %arg1: i32) -> (i32, i32, i32, i32) {
    %c0_i32 = arith.constant 0 : i32
    %c0_i32_0 = arith.constant 0 : i32
    %c0_i32_1 = arith.constant 0 : i32
    return %arg0, %arg1, %c0_i32, %c0_i32_0 : i32, i32, i32, i32
  }
}

</mosaic_0001>

<llo_original>
// kernel: tpu_custom_call.1
$region0: #{tpu_custom_call.1}
  #allocation0 [shape = 'u32[]', space=smem, size = 0x4, offset = 0x4, fixed_abs, tag = 'smem constant byte address 0x4 - core index']
  #allocation1 [shape = 'u32[72,128]{1,0:T(1,128)}', space=vmem, size = 0x9000, scoped, tag = 'internal scratch']
  %s0 = inlined_call_operand.vmem [shape: bf16[2,1,20,20,128], index: 0, kind: input, shape index: {}]
  %s1 = inlined_call_operand.vmem [shape: bf16[1152,128], index: 1, kind: input, shape index: {}]
  %s2 = inlined_call_operand.hbm [shape: bf16[1152,128], index: 2, kind: input, shape index: {}]
  %s3 = inlined_call_operand.vmem [shape: f32[1,128], index: 3, kind: input, shape index: {}]
  %s4 = inlined_call_operand.vmem [shape: f32[1,128], index: 4, kind: input, shape index: {}]
  %s5 = inlined_call_operand.hbm [shape: bf16[2,16,16,128], index: 5, kind: output, shape index: {}]
  %s6 = sld [smem:[#allocation0]]
  $region57: #{tpu_custom_call.1} parent=0
    _
  %s8 = ssub.s32 1, %s6
  %s9 = scalar_select 0, %s8, %s6
  $region1: #{tpu_custom_call.1} parent=0
    #allocation2 [shape = 'u8[294912]{0}', space=vmem, size = 0x48000, scoped, tag = 'input window, operand 2, single buffered']
    #allocation3 [shape = 's32[2]{0}', space=sflag, size = 0x8, scoped, tag = 'scoped memory for tpu_custom_call.1']
    #allocation4 [shape = 's32[2]{0}', space=sflag, size = 0x8, scoped, tag = 'scoped memory for tpu_custom_call.1']
    #allocation5 [shape = 'u8[131072]{0}', space=vmem, size = 0x20000, scoped, tag = 'output window, operand 0']
    %10 = vsyncpa [#allocation3], 0
    %11 = vsyncpa [#allocation4], 0
    %s12 = scalar_lea.sflag [#allocation4], 1
    %13 = vsyncpa %s12, 0
    loop: start=0, step=1, limit=4
    $region2: #{tpu_custom_call.1} parent=1 // loop_pre_header
      _
    $region3: #{tpu_custom_call.1} parent=1 // loop_header
      %s15 = sphi 0, %s19
      %p16 = scmp.ge.s32.totalorder %s15, 4
      %s22 = sphi 0, %s34
      %s23 = sphi 0, %s30
      %s24 = sphi 0, %s22
      %s25 = sphi 0, %s23
      %s26 = sphi 0, %s24
      %s27 = sphi 0, %s25
      %s39 = sphi 0, %s41
      %s42 = sphi 0, %s39
      %s43 = sphi 0, %s42
      %s59 = sphi 0, %s43
      %s63 = sphi 0, %s63
      %s65 = sphi 0, %s63
      %s66 = sphi 0, %s65
      %s80 = sphi 0, %s66
      %s84 = sphi 0, %s84
      %s86 = sphi 0, %s84
      %s87 = sphi 0, %s86
      %s101 = sphi 0, %s87
      %s105 = sphi 0, %s105
      %s107 = sphi 0, %s105
      %s108 = sphi 0, %s107
      %s122 = sphi 0, %s108
      %s126 = sphi 0, %s126
      %s128 = sphi 0, %s126
      %s129 = sphi 0, %s128
      %s143 = sphi 0, %s129
      %s151 = sphi 0, %s153
      %s154 = sphi 0, %s151
      %s155 = sphi 0, %s154
      %s171 = sphi 0, %s155
    $region4: #{tpu_custom_call.1} parent=1 // loop_header_branch
      %18 = sbr.rel (%p16) target = $region8
    $region5: #{tpu_custom_call.1} parent=1 // loop_body
      %s20 = ssub.s32 %s15, 1
      %s21 = ssub.s32 %s15, 2
      %s28 = sadd.s32 1, %s23
      %p29 = scmp.ge.s32.totalorder %s28, 1
      %s30 = scalar_select %p29, 0, %s28
      %s31 = sadd.s32 1, %s22
      %s32 = scalar_select %p29, %s31, %s22
      %p33 = scmp.ge.s32.totalorder %s32, 2
      %s34 = scalar_select %p33, 0, %s32
      %s35 = ssub.s32 %s22, %s34
      %s36 = ssub.s32 %s23, %s30
      %s37 = sor.u32 %s35, %s36
      %p38 = scmp.eq.s32.totalorder %s37, 0
      %s40 = sadd.s32 %s39, 1
      %s41 = scalar_select %p38, %s39, %s40
      %p44 = pneg %p38
      %p45 = scmp.eq.s32.totalorder %s15, 1
      %p46 = por %p44, %p45
      %p47 = scmp.ne.s32.totalorder %s39, %s42
      %p48 = scmp.eq.s32.totalorder %s15, 0
      %p49 = por %p47, %p48
      %p50 = scmp.ne.s32.totalorder %s39, %s42
      %p51 = scmp.eq.s32.totalorder %s20, 1
      %p52 = por %p50, %p51
      %p53 = scmp.ne.s32.totalorder %s42, %s43
      %p54 = scmp.eq.s32.totalorder %s20, 0
      %p55 = por %p53, %p54
      %p56 = scmp.ne.s32.totalorder %s42, %s43
      %p57 = scmp.eq.s32.totalorder %s21, 1
      %p58 = por %p56, %p57
      %p60 = scmp.ne.s32.totalorder %s43, %s59
      %p61 = scmp.eq.s32.totalorder %s21, 0
      %p62 = por %p60, %p61
      %s64 = sadd.s32 %s63, 1
      %p67 = scmp.eq.s32.totalorder %s15, 1
      %p68 = scmp.ne.s32.totalorder %s63, %s65
      %p69 = scmp.eq.s32.totalorder %s15, 0
      %p70 = por %p68, %p69
      %p71 = scmp.ne.s32.totalorder %s63, %s65
      %p72 = scmp.eq.s32.totalorder %s20, 1
      %p73 = por %p71, %p72
      %p74 = scmp.ne.s32.totalorder %s65, %s66
      %p75 = scmp.eq.s32.totalorder %s20, 0
      %p76 = por %p74, %p75
      %p77 = scmp.ne.s32.totalorder %s65, %s66
      %p78 = scmp.eq.s32.totalorder %s21, 1
      %p79 = por %p77, %p78
      %p81 = scmp.ne.s32.totalorder %s66, %s80
      %p82 = scmp.eq.s32.totalorder %s21, 0
      %p83 = por %p81, %p82
      %s85 = sadd.s32 %s84, 1
      %p88 = scmp.eq.s32.totalorder %s15, 1
      %p89 = scmp.ne.s32.totalorder %s84, %s86
      %p90 = scmp.eq.s32.totalorder %s15, 0
      %p91 = por %p89, %p90
      %p92 = scmp.ne.s32.totalorder %s84, %s86
      %p93 = scmp.eq.s32.totalorder %s20, 1
      %p94 = por %p92, %p93
      %p95 = scmp.ne.s32.totalorder %s86, %s87
      %p96 = scmp.eq.s32.totalorder %s20, 0
      %p97 = por %p95, %p96
      %p98 = scmp.ne.s32.totalorder %s86, %s87
      %p99 = scmp.eq.s32.totalorder %s21, 1
      %p100 = por %p98, %p99
      %p102 = scmp.ne.s32.totalorder %s87, %s101
      %p103 = scmp.eq.s32.totalorder %s21, 0
      %p104 = por %p102, %p103
      %s106 = sadd.s32 %s105, 1
      %p109 = scmp.eq.s32.totalorder %s15, 1
      %p110 = scmp.ne.s32.totalorder %s105, %s107
      %p111 = scmp.eq.s32.totalorder %s15, 0
      %p112 = por %p110, %p111
      %p113 = scmp.ne.s32.totalorder %s105, %s107
      %p114 = scmp.eq.s32.totalorder %s20, 1
      %p115 = por %p113, %p114
      %p116 = scmp.ne.s32.totalorder %s107, %s108
      %p117 = scmp.eq.s32.totalorder %s20, 0
      %p118 = por %p116, %p117
      %p119 = scmp.ne.s32.totalorder %s107, %s108
      %p120 = scmp.eq.s32.totalorder %s21, 1
      %p121 = por %p119, %p120
      %p123 = scmp.ne.s32.totalorder %s108, %s122
      %p124 = scmp.eq.s32.totalorder %s21, 0
      %p125 = por %p123, %p124
      %s127 = sadd.s32 %s126, 1
      %p130 = scmp.eq.s32.totalorder %s15, 1
      %p131 = scmp.ne.s32.totalorder %s126, %s128
      %p132 = scmp.eq.s32.totalorder %s15, 0
      %p133 = por %p131, %p132
      %p134 = scmp.ne.s32.totalorder %s126, %s128
      %p135 = scmp.eq.s32.totalorder %s20, 1
      %p136 = por %p134, %p135
      %p137 = scmp.ne.s32.totalorder %s128, %s129
      %p138 = scmp.eq.s32.totalorder %s20, 0
      %p139 = por %p137, %p138
      %p140 = scmp.ne.s32.totalorder %s128, %s129
      %p141 = scmp.eq.s32.totalorder %s21, 1
      %p142 = por %p140, %p141
      %p144 = scmp.ne.s32.totalorder %s129, %s143
      %p145 = scmp.eq.s32.totalorder %s21, 0
      %p146 = por %p144, %p145
      %s147 = ssub.s32 %s22, %s34
      %s148 = ssub.s32 %s23, %s30
      %s149 = sor.u32 %s147, %s148
      %p150 = scmp.eq.s32.totalorder %s149, 0
      %s152 = sadd.s32 %s151, 1
      %s153 = scalar_select %p150, %s151, %s152
      %p156 = pneg %p150
      %p157 = scmp.eq.s32.totalorder %s15, 1
      %p158 = por %p156, %p157
      %p159 = scmp.ne.s32.totalorder %s151, %s154
      %p160 = scmp.eq.s32.totalorder %s15, 0
      %p161 = por %p159, %p160
      %p162 = scmp.ne.s32.totalorder %s151, %s154
      %p163 = scmp.eq.s32.totalorder %s20, 1
      %p164 = por %p162, %p163
      %p165 = scmp.ne.s32.totalorder %s154, %s155
      %p166 = scmp.eq.s32.totalorder %s20, 0
      %p167 = por %p165, %p166
      %p168 = scmp.ne.s32.totalorder %s154, %s155
      %p169 = scmp.eq.s32.totalorder %s21, 1
      %p170 = por %p168, %p169
      %p172 = scmp.ne.s32.totalorder %s155, %s171
      %p173 = scmp.eq.s32.totalorder %s21, 0
      %p174 = por %p172, %p173
      %p175 = scmp.le.s32.totalorder 1, %s15
      %p176 = scmp.lt.s32.totalorder %s15, 3
      %p177 = pnand %p175, %p176
      %p178 = pneg %p177
      // Predicated region
      $region9: #{tpu_custom_call.1} parent=5 // pred_check
        _
      $region10: #{tpu_custom_call.1} parent=5 // pred_check_branch
        %180 = sbr.rel (%p177) target = $region12
      $region11: #{tpu_custom_call.1} parent=5 // pred_region
        %s181 = ssub.s32 %s15, 1
        // Predicated region
        $region13: #{tpu_custom_call.1} parent=11 // pred_check
          %p182 = pneg %p76
        $region14: #{tpu_custom_call.1} parent=11 // pred_check_branch
          %184 = sbr.rel (%p182) target = $region16
        $region15: #{tpu_custom_call.1} parent=11 // pred_region
          _
        $region16: #{tpu_custom_call.1} parent=11 // pred_fallthru
          _
        // Predicated region
        $region17: #{tpu_custom_call.1} parent=11 // pred_check
          %p185 = pneg %p97
        $region18: #{tpu_custom_call.1} parent=11 // pred_check_branch
          %187 = sbr.rel (%p185) target = $region20
        $region19: #{tpu_custom_call.1} parent=11 // pred_region
          %189 = vsyncadd [#allocation3], 0
          %s190 = sshll.u32 %s2, 4
          %s191 = int_to_ptr.hbm [resolvable:$true] %s190
          %s192 = sshll.u32 [#allocation2], 4
          %s193 = int_to_ptr.vmem [resolvable:$true] %s192
          %198 = dma.hbm_to_vmem [thread:$0]  %s191, 9216, %s193, [#allocation3], 64, 64, 4
        $region20: #{tpu_custom_call.1} parent=11 // pred_fallthru
          _
        // Predicated region
        $region21: #{tpu_custom_call.1} parent=11 // pred_check
          %p199 = pneg %p118
        $region22: #{tpu_custom_call.1} parent=11 // pred_check_branch
          %201 = sbr.rel (%p199) target = $region24
        $region23: #{tpu_custom_call.1} parent=11 // pred_region
          _
        $region24: #{tpu_custom_call.1} parent=11 // pred_fallthru
          _
        // Predicated region
        $region25: #{tpu_custom_call.1} parent=11 // pred_check
          %p202 = pneg %p139
        $region26: #{tpu_custom_call.1} parent=11 // pred_check_branch
          %204 = sbr.rel (%p202) target = $region28
        $region27: #{tpu_custom_call.1} parent=11 // pred_region
          _
        $region28: #{tpu_custom_call.1} parent=11 // pred_fallthru
          _
      $region12: #{tpu_custom_call.1} parent=5 // pred_fallthru
        _
      %p205 = scmp.lt.s32.totalorder %s15, 2
      // Predicated region
      $region29: #{tpu_custom_call.1} parent=5 // pred_check
        %p206 = pneg %p205
      $region30: #{tpu_custom_call.1} parent=5 // pred_check_branch
        %208 = sbr.rel (%p206) target = $region32
      $region31: #{tpu_custom_call.1} parent=5 // pred_region
        // Predicated region
        $region33: #{tpu_custom_call.1} parent=31 // pred_check
          %p209 = pneg %p49
        $region34: #{tpu_custom_call.1} parent=31 // pred_check_branch
          %211 = sbr.rel (%p209) target = $region36
        $region35: #{tpu_custom_call.1} parent=31 // pred_region
          %p212 = scmp.lt.s32.totalorder %s22, 1
          %s213 = scalar_select %p212, %s22, 1
          %p214 = scmp.lt.s32.totalorder %s23, 0
          %s215 = scalar_select %p214, %s23, 0
          %s216 = smul.addr %s215, 60
          %s217 = smul.addr %s213, 60
          %s218 = sadd.s32 %s216, %s217
          %s219 = smul.addr %s218, 4
          %s220 = scalar_lea.vmem %s0, %s219
        $region36: #{tpu_custom_call.1} parent=31 // pred_fallthru
          _
      $region32: #{tpu_custom_call.1} parent=5 // pred_fallthru
        _
      %p221 = scmp.le.s32.totalorder 1, %s15
      %p222 = scmp.lt.s32.totalorder %s15, 3
      %p223 = pnand %p221, %p222
      %p224 = pneg %p223
      // Predicated region
      $region37: #{tpu_custom_call.1} parent=5 // pred_check
        _
      $region38: #{tpu_custom_call.1} parent=5 // pred_check_branch
        %226 = sbr.rel (%p223) target = $region40
      $region39: #{tpu_custom_call.1} parent=5 // pred_region
        %s227 = ssub.s32 %s15, 1
        // Predicated region
        $region41: #{tpu_custom_call.1} parent=39 // pred_check
          %p228 = pneg %p97
        $region42: #{tpu_custom_call.1} parent=39 // pred_check_branch
          %230 = sbr.rel (%p228) target = $region44
        $region43: #{tpu_custom_call.1} parent=39 // pred_region
          %232 = dma.done [#allocation3], 9216
        $region44: #{tpu_custom_call.1} parent=39 // pred_fallthru
          _
        %p233 = scmp.lt.s32.totalorder %s24, 1
        %s234 = scalar_select %p233, %s24, 1
        %p235 = scmp.lt.s32.totalorder %s25, 0
        %s236 = scalar_select %p235, %s25, 0
        %s237 = smul.addr %s236, 60
        %s238 = smul.addr %s234, 60
        %s239 = sadd.s32 %s237, %s238
        %s240 = smul.addr %s239, 4
        %s241 = scalar_lea.vmem %s0, %s240
        %p242 = pneg %p55
        %p243 = pneg %p52
        %p244 = pneg %p76
        %p245 = pneg %p73
        %p246 = pneg %p97
        %p247 = pneg %p94
        %p248 = pneg %p118
        %p249 = pneg %p115
        %p250 = pneg %p139
        %p251 = pneg %p136
        %p252 = pneg %p167
        %p253 = pneg %p164
        %s254 = sand.u32 %s154, 1
        %s255 = scalar_lea.sflag [#allocation4], %s254
        %s256 = sand.u32 %s154, 1
        %s257 = smul.addr %s256, 128
        %s258 = scalar_lea.vmem [#allocation5], %s257
        %p259 = scmp.lt.s32.totalorder %s24, 1
        %s260 = scalar_select %p259, %s24, 1
        %p261 = scmp.lt.s32.totalorder %s25, 0
        %s262 = scalar_select %p261, %s25, 0
        %s263 = smul.addr %s262, 60
        %s264 = smul.addr %s260, 60
        %s265 = sadd.s32 %s263, %s264
        %s266 = smul.addr %s265, 4
        %s267 = scalar_lea.vmem %s0, %s266
        %s268 = smul.u32 16, %s25
        %v269 = vld [vmem:[%s267] sm:$0xf]
        %v270 = vld [vmem:[%s267 + $0x4] sm:$0xf]
        %v271 = vld [vmem:[%s267 + $0x8] sm:$0x3]
        %v272 = vld [vmem:[%s267 + $0xc] sm:$0xf]
        %v273 = vld [vmem:[%s267 + $0x10] sm:$0xf]
        %v274 = vld [vmem:[%s267 + $0x14] sm:$0x3]
        %v275 = vld [vmem:[%s267 + $0x18] sm:$0xf]
        %v276 = vld [vmem:[%s267 + $0x1c] sm:$0xf]
        %v277 = vld [vmem:[%s267 + $0x20] sm:$0x3]
        %v278 = vld [vmem:[%s267 + $0x24] sm:$0xf]
        %v279 = vld [vmem:[%s267 + $0x28] sm:$0xf]
        %v280 = vld [vmem:[%s267 + $0x2c] sm:$0x3]
        %v281 = vld [vmem:[%s267 + $0x30] sm:$0xf]
        %v282 = vld [vmem:[%s267 + $0x34] sm:$0xf]
        %v283 = vld [vmem:[%s267 + $0x38] sm:$0x3]
        %v284 = vld [vmem:[%s267 + $0x3c] sm:$0xf]
        %v285 = vld [vmem:[%s267 + $0x40] sm:$0xf]
        %v286 = vld [vmem:[%s267 + $0x44] sm:$0x3]
        %v287 = vld [vmem:[%s267 + $0x48] sm:$0xf]
        %v288 = vld [vmem:[%s267 + $0x4c] sm:$0xf]
        %v289 = vld [vmem:[%s267 + $0x50] sm:$0x3]
        %v290 = vld [vmem:[%s267 + $0x54] sm:$0xf]
        %v291 = vld [vmem:[%s267 + $0x58] sm:$0xf]
        %v292 = vld [vmem:[%s267 + $0x5c] sm:$0x3]
        %v293 = vld [vmem:[%s267 + $0x60] sm:$0xf]
        %v294 = vld [vmem:[%s267 + $0x64] sm:$0xf]
        %v295 = vld [vmem:[%s267 + $0x68] sm:$0x3]
        %v296 = vld [vmem:[%s267 + $0x6c] sm:$0xf]
        %v297 = vld [vmem:[%s267 + $0x70] sm:$0xf]
        %v298 = vld [vmem:[%s267 + $0x74] sm:$0x3]
        %v299 = vld [vmem:[%s267 + $0x78] sm:$0xf]
        %v300 = vld [vmem:[%s267 + $0x7c] sm:$0xf]
        %v301 = vld [vmem:[%s267 + $0x80] sm:$0x3]
        %v302 = vld [vmem:[%s267 + $0x84] sm:$0xf]
        %v303 = vld [vmem:[%s267 + $0x88] sm:$0xf]
        %v304 = vld [vmem:[%s267 + $0x8c] sm:$0x3]
        %v305 = vld [vmem:[%s267 + $0x90] sm:$0xf]
        %v306 = vld [vmem:[%s267 + $0x94] sm:$0xf]
        %v307 = vld [vmem:[%s267 + $0x98] sm:$0x3]
        %v308 = vld [vmem:[%s267 + $0x9c] sm:$0xf]
        %v309 = vld [vmem:[%s267 + $0xa0] sm:$0xf]
        %v310 = vld [vmem:[%s267 + $0xa4] sm:$0x3]
        %v311 = vld [vmem:[%s267 + $0xa8] sm:$0xf]
        %v312 = vld [vmem:[%s267 + $0xac] sm:$0xf]
        %v313 = vld [vmem:[%s267 + $0xb0] sm:$0x3]
        %v314 = vld [vmem:[%s267 + $0xb4] sm:$0xf]
        %v315 = vld [vmem:[%s267 + $0xb8] sm:$0xf]
        %v316 = vld [vmem:[%s267 + $0xbc] sm:$0x3]
        %v317 = vld [vmem:[%s267 + $0xc0] sm:$0xf]
        %v318 = vld [vmem:[%s267 + $0xc4] sm:$0xf]
        %v319 = vld [vmem:[%s267 + $0xc8] sm:$0x3]
        %v320 = vld [vmem:[%s267 + $0xcc] sm:$0xf]
        %v321 = vld [vmem:[%s267 + $0xd0] sm:$0xf]
        %v322 = vld [vmem:[%s267 + $0xd4] sm:$0x3]
        %v323 = vld [vmem:[%s267 + $0xd8] sm:$0xf]
        %v324 = vld [vmem:[%s267 + $0xdc] sm:$0xf]
        %v325 = vld [vmem:[%s267 + $0xe0] sm:$0x3]
        %v326 = vld [vmem:[%s267 + $0xe4] sm:$0xf]
        %v327 = vld [vmem:[%s267 + $0xe8] sm:$0xf]
        %v328 = vld [vmem:[%s267 + $0xec] sm:$0x3]
        %v383 = vrot.slane %v269, 3
        %v384 = vrot.slane %v270, 3
        %v385 = vrot.slane %v271, 3
        %v386 = vrot.slane %v272, 3
        %v387 = vrot.slane %v273, 3
        %v388 = vrot.slane %v274, 3
        %v389 = vrot.slane %v275, 3
        %v390 = vrot.slane %v276, 3
        %v391 = vrot.slane %v277, 3
        %v392 = vrot.slane %v278, 3
        %v393 = vrot.slane %v279, 3
        %v394 = vrot.slane %v280, 3
        %v395 = vrot.slane %v281, 3
        %v396 = vrot.slane %v282, 3
        %v397 = vrot.slane %v283, 3
        %v398 = vrot.slane %v284, 3
        %v399 = vrot.slane %v285, 3
        %v400 = vrot.slane %v286, 3
        %v401 = vrot.slane %v287, 3
        %v402 = vrot.slane %v288, 3
        %v403 = vrot.slane %v289, 3
        %v404 = vrot.slane %v290, 3
        %v405 = vrot.slane %v291, 3
        %v406 = vrot.slane %v292, 3
        %v407 = vrot.slane %v293, 3
        %v408 = vrot.slane %v294, 3
        %v409 = vrot.slane %v295, 3
        %v410 = vrot.slane %v296, 3
        %v411 = vrot.slane %v297, 3
        %v412 = vrot.slane %v298, 3
        %v413 = vrot.slane %v299, 3
        %v414 = vrot.slane %v300, 3
        %v415 = vrot.slane %v301, 3
        %v416 = vrot.slane %v302, 3
        %v417 = vrot.slane %v303, 3
        %v418 = vrot.slane %v304, 3
        %v419 = vrot.slane %v305, 3
        %v420 = vrot.slane %v306, 3
        %v421 = vrot.slane %v307, 3
        %v422 = vrot.slane %v308, 3
        %v423 = vrot.slane %v309, 3
        %v424 = vrot.slane %v310, 3
        %v425 = vrot.slane %v311, 3
        %v426 = vrot.slane %v312, 3
        %v427 = vrot.slane %v313, 3
        %v428 = vrot.slane %v314, 3
        %v429 = vrot.slane %v315, 3
        %v430 = vrot.slane %v316, 3
        %v431 = vrot.slane %v317, 3
        %v432 = vrot.slane %v318, 3
        %v433 = vrot.slane %v319, 3
        %v434 = vrot.slane %v320, 3
        %v435 = vrot.slane %v321, 3
        %v436 = vrot.slane %v322, 3
        %vm437 = vcmask 1040384
        %v440 = vsel %vm437, %v269, %v383
        %vm441 = vcmask 1041409
        %v442 = vsel %vm441, %v269, %v383
        %v444 = vrot.slane %v442, 1
        %vm445 = vcmask 1042434
        %v446 = vsel %vm445, %v269, %v383
        %v448 = vrot.slane %v446, 2
        %vm449 = vcmask 1043459
        %v450 = vsel %vm449, %v269, %v383
        %v452 = vrot.slane %v450, 3
        %v455 = vsel %vm437, %v270, %v384
        %v456 = vsel %vm441, %v270, %v384
        %v458 = vrot.slane %v456, 1
        %v459 = vsel %vm445, %v270, %v384
        %v461 = vrot.slane %v459, 2
        %v462 = vsel %vm449, %v270, %v384
        %v464 = vrot.slane %v462, 3
        %v467 = vsel %vm437, %v271, %v385
        %v470 = vsel %vm437, %v272, %v386
        %v471 = vsel %vm441, %v272, %v386
        %v473 = vrot.slane %v471, 1
        %v474 = vsel %vm445, %v272, %v386
        %v476 = vrot.slane %v474, 2
        %v477 = vsel %vm449, %v272, %v386
        %v479 = vrot.slane %v477, 3
        %v482 = vsel %vm437, %v273, %v387
        %v483 = vsel %vm441, %v273, %v387
        %v485 = vrot.slane %v483, 1
        %v486 = vsel %vm445, %v273, %v387
        %v488 = vrot.slane %v486, 2
        %v489 = vsel %vm449, %v273, %v387
        %v491 = vrot.slane %v489, 3
        %v494 = vsel %vm437, %v274, %v388
        %v497 = vsel %vm437, %v275, %v389
        %v498 = vsel %vm441, %v275, %v389
        %v500 = vrot.slane %v498, 1
        %v501 = vsel %vm445, %v275, %v389
        %v503 = vrot.slane %v501, 2
        %v504 = vsel %vm449, %v275, %v389
        %v506 = vrot.slane %v504, 3
        %v509 = vsel %vm437, %v276, %v390
        %v510 = vsel %vm441, %v276, %v390
        %v512 = vrot.slane %v510, 1
        %v513 = vsel %vm445, %v276, %v390
        %v515 = vrot.slane %v513, 2
        %v516 = vsel %vm449, %v276, %v390
        %v518 = vrot.slane %v516, 3
        %v521 = vsel %vm437, %v277, %v391
        %v524 = vsel %vm437, %v278, %v392
        %v525 = vsel %vm441, %v278, %v392
        %v527 = vrot.slane %v525, 1
        %v528 = vsel %vm445, %v278, %v392
        %v530 = vrot.slane %v528, 2
        %v531 = vsel %vm449, %v278, %v392
        %v533 = vrot.slane %v531, 3
        %v536 = vsel %vm437, %v279, %v393
        %v537 = vsel %vm441, %v279, %v393
        %v539 = vrot.slane %v537, 1
        %v540 = vsel %vm445, %v279, %v393
        %v542 = vrot.slane %v540, 2
        %v543 = vsel %vm449, %v279, %v393
        %v545 = vrot.slane %v543, 3
        %v548 = vsel %vm437, %v280, %v394
        %v551 = vsel %vm437, %v281, %v395
        %v552 = vsel %vm441, %v281, %v395
        %v554 = vrot.slane %v552, 1
        %v555 = vsel %vm445, %v281, %v395
        %v557 = vrot.slane %v555, 2
        %v558 = vsel %vm449, %v281, %v395
        %v560 = vrot.slane %v558, 3
        %v563 = vsel %vm437, %v282, %v396
        %v564 = vsel %vm441, %v282, %v396
        %v566 = vrot.slane %v564, 1
        %v567 = vsel %vm445, %v282, %v396
        %v569 = vrot.slane %v567, 2
        %v570 = vsel %vm449, %v282, %v396
        %v572 = vrot.slane %v570, 3
        %v575 = vsel %vm437, %v283, %v397
        %v578 = vsel %vm437, %v284, %v398
        %v579 = vsel %vm441, %v284, %v398
        %v581 = vrot.slane %v579, 1
        %v582 = vsel %vm445, %v284, %v398
        %v584 = vrot.slane %v582, 2
        %v585 = vsel %vm449, %v284, %v398
        %v587 = vrot.slane %v585, 3
        %v590 = vsel %vm437, %v285, %v399
        %v591 = vsel %vm441, %v285, %v399
        %v593 = vrot.slane %v591, 1
        %v594 = vsel %vm445, %v285, %v399
        %v596 = vrot.slane %v594, 2
        %v597 = vsel %vm449, %v285, %v399
        %v599 = vrot.slane %v597, 3
        %v602 = vsel %vm437, %v286, %v400
        %v605 = vsel %vm437, %v287, %v401
        %v606 = vsel %vm441, %v287, %v401
        %v608 = vrot.slane %v606, 1
        %v609 = vsel %vm445, %v287, %v401
        %v611 = vrot.slane %v609, 2
        %v612 = vsel %vm449, %v287, %v401
        %v614 = vrot.slane %v612, 3
        %v617 = vsel %vm437, %v288, %v402
        %v618 = vsel %vm441, %v288, %v402
        %v620 = vrot.slane %v618, 1
        %v621 = vsel %vm445, %v288, %v402
        %v623 = vrot.slane %v621, 2
        %v624 = vsel %vm449, %v288, %v402
        %v626 = vrot.slane %v624, 3
        %v629 = vsel %vm437, %v289, %v403
        %v632 = vsel %vm437, %v290, %v404
        %v633 = vsel %vm441, %v290, %v404
        %v635 = vrot.slane %v633, 1
        %v636 = vsel %vm445, %v290, %v404
        %v638 = vrot.slane %v636, 2
        %v639 = vsel %vm449, %v290, %v404
        %v641 = vrot.slane %v639, 3
        %v644 = vsel %vm437, %v291, %v405
        %v645 = vsel %vm441, %v291, %v405
        %v647 = vrot.slane %v645, 1
        %v648 = vsel %vm445, %v291, %v405
        %v650 = vrot.slane %v648, 2
        %v651 = vsel %vm449, %v291, %v405
        %v653 = vrot.slane %v651, 3
        %v656 = vsel %vm437, %v292, %v406
        %v659 = vsel %vm437, %v293, %v407
        %v660 = vsel %vm441, %v293, %v407
        %v662 = vrot.slane %v660, 1
        %v663 = vsel %vm445, %v293, %v407
        %v665 = vrot.slane %v663, 2
        %v666 = vsel %vm449, %v293, %v407
        %v668 = vrot.slane %v666, 3
        %v671 = vsel %vm437, %v294, %v408
        %v672 = vsel %vm441, %v294, %v408
        %v674 = vrot.slane %v672, 1
        %v675 = vsel %vm445, %v294, %v408
        %v677 = vrot.slane %v675, 2
        %v678 = vsel %vm449, %v294, %v408
        %v680 = vrot.slane %v678, 3
        %v683 = vsel %vm437, %v295, %v409
        %v686 = vsel %vm437, %v296, %v410
        %v687 = vsel %vm441, %v296, %v410
        %v689 = vrot.slane %v687, 1
        %v690 = vsel %vm445, %v296, %v410
        %v692 = vrot.slane %v690, 2
        %v693 = vsel %vm449, %v296, %v410
        %v695 = vrot.slane %v693, 3
        %v698 = vsel %vm437, %v297, %v411
        %v699 = vsel %vm441, %v297, %v411
        %v701 = vrot.slane %v699, 1
        %v702 = vsel %vm445, %v297, %v411
        %v704 = vrot.slane %v702, 2
        %v705 = vsel %vm449, %v297, %v411
        %v707 = vrot.slane %v705, 3
        %v710 = vsel %vm437, %v298, %v412
        %v713 = vsel %vm437, %v299, %v413
        %v714 = vsel %vm441, %v299, %v413
        %v716 = vrot.slane %v714, 1
        %v717 = vsel %vm445, %v299, %v413
        %v719 = vrot.slane %v717, 2
        %v720 = vsel %vm449, %v299, %v413
        %v722 = vrot.slane %v720, 3
        %v725 = vsel %vm437, %v300, %v414
        %v726 = vsel %vm441, %v300, %v414
        %v728 = vrot.slane %v726, 1
        %v729 = vsel %vm445, %v300, %v414
        %v731 = vrot.slane %v729, 2
        %v732 = vsel %vm449, %v300, %v414
        %v734 = vrot.slane %v732, 3
        %v737 = vsel %vm437, %v301, %v415
        %v740 = vsel %vm437, %v302, %v416
        %v741 = vsel %vm441, %v302, %v416
        %v743 = vrot.slane %v741, 1
        %v744 = vsel %vm445, %v302, %v416
        %v746 = vrot.slane %v744, 2
        %v747 = vsel %vm449, %v302, %v416
        %v749 = vrot.slane %v747, 3
        %v752 = vsel %vm437, %v303, %v417
        %v753 = vsel %vm441, %v303, %v417
        %v755 = vrot.slane %v753, 1
        %v756 = vsel %vm445, %v303, %v417
        %v758 = vrot.slane %v756, 2
        %v759 = vsel %vm449, %v303, %v417
        %v761 = vrot.slane %v759, 3
        %v764 = vsel %vm437, %v304, %v418
        %v767 = vsel %vm437, %v305, %v419
        %v768 = vsel %vm441, %v305, %v419
        %v770 = vrot.slane %v768, 1
        %v771 = vsel %vm445, %v305, %v419
        %v773 = vrot.slane %v771, 2
        %v774 = vsel %vm449, %v305, %v419
        %v776 = vrot.slane %v774, 3
        %v779 = vsel %vm437, %v306, %v420
        %v780 = vsel %vm441, %v306, %v420
        %v782 = vrot.slane %v780, 1
        %v783 = vsel %vm445, %v306, %v420
        %v785 = vrot.slane %v783, 2
        %v786 = vsel %vm449, %v306, %v420
        %v788 = vrot.slane %v786, 3
        %v791 = vsel %vm437, %v307, %v421
        %v794 = vsel %vm437, %v308, %v422
        %v795 = vsel %vm441, %v308, %v422
        %v797 = vrot.slane %v795, 1
        %v798 = vsel %vm445, %v308, %v422
        %v800 = vrot.slane %v798, 2
        %v801 = vsel %vm449, %v308, %v422
        %v803 = vrot.slane %v801, 3
        %v806 = vsel %vm437, %v309, %v423
        %v807 = vsel %vm441, %v309, %v423
        %v809 = vrot.slane %v807, 1
        %v810 = vsel %vm445, %v309, %v423
        %v812 = vrot.slane %v810, 2
        %v813 = vsel %vm449, %v309, %v423
        %v815 = vrot.slane %v813, 3
        %v818 = vsel %vm437, %v310, %v424
        %v821 = vsel %vm437, %v311, %v425
        %v822 = vsel %vm441, %v311, %v425
        %v824 = vrot.slane %v822, 1
        %v825 = vsel %vm445, %v311, %v425
        %v827 = vrot.slane %v825, 2
        %v828 = vsel %vm449, %v311, %v425
        %v830 = vrot.slane %v828, 3
        %v833 = vsel %vm437, %v312, %v426
        %v834 = vsel %vm441, %v312, %v426
        %v836 = vrot.slane %v834, 1
        %v837 = vsel %vm445, %v312, %v426
        %v839 = vrot.slane %v837, 2
        %v840 = vsel %vm449, %v312, %v426
        %v842 = vrot.slane %v840, 3
        %v845 = vsel %vm437, %v313, %v427
        %v848 = vsel %vm437, %v314, %v428
        %v849 = vsel %vm441, %v314, %v428
        %v851 = vrot.slane %v849, 1
        %v852 = vsel %vm445, %v314, %v428
        %v854 = vrot.slane %v852, 2
        %v855 = vsel %vm449, %v314, %v428
        %v857 = vrot.slane %v855, 3
        %v860 = vsel %vm437, %v315, %v429
        %v861 = vsel %vm441, %v315, %v429
        %v863 = vrot.slane %v861, 1
        %v864 = vsel %vm445, %v315, %v429
        %v866 = vrot.slane %v864, 2
        %v867 = vsel %vm449, %v315, %v429
        %v869 = vrot.slane %v867, 3
        %v872 = vsel %vm437, %v316, %v430
        %v875 = vsel %vm437, %v317, %v431
        %v876 = vsel %vm441, %v317, %v431
        %v878 = vrot.slane %v876, 1
        %v879 = vsel %vm445, %v317, %v431
        %v881 = vrot.slane %v879, 2
        %v882 = vsel %vm449, %v317, %v431
        %v884 = vrot.slane %v882, 3
        %v887 = vsel %vm437, %v318, %v432
        %v888 = vsel %vm441, %v318, %v432
        %v890 = vrot.slane %v888, 1
        %v891 = vsel %vm445, %v318, %v432
        %v893 = vrot.slane %v891, 2
        %v894 = vsel %vm449, %v318, %v432
        %v896 = vrot.slane %v894, 3
        %v899 = vsel %vm437, %v319, %v433
        %v902 = vsel %vm437, %v320, %v434
        %v903 = vsel %vm441, %v320, %v434
        %v905 = vrot.slane %v903, 1
        %v906 = vsel %vm445, %v320, %v434
        %v908 = vrot.slane %v906, 2
        %v909 = vsel %vm449, %v320, %v434
        %v911 = vrot.slane %v909, 3
        %v914 = vsel %vm437, %v321, %v435
        %v915 = vsel %vm441, %v321, %v435
        %v917 = vrot.slane %v915, 1
        %v918 = vsel %vm445, %v321, %v435
        %v920 = vrot.slane %v918, 2
        %v921 = vsel %vm449, %v321, %v435
        %v923 = vrot.slane %v921, 3
        %v926 = vsel %vm437, %v322, %v436
        %v927 = vld [vmem:[%s1] sm:$0xf]
        %v928 = vld [vmem:[%s1 + $0x4] sm:$0xf]
        %v929 = vld [vmem:[%s1 + $0x8] sm:$0xf]
        %v930 = vld [vmem:[%s1 + $0xc] sm:$0xf]
        %v931 = vld [vmem:[%s1 + $0x10] sm:$0xf]
        %v932 = vld [vmem:[%s1 + $0x14] sm:$0xf]
        %v933 = vld [vmem:[%s1 + $0x18] sm:$0xf]
        %v934 = vld [vmem:[%s1 + $0x1c] sm:$0xf]
        %v935 = vld [vmem:[%s1 + $0x20] sm:$0xf]
        %v936 = vld [vmem:[%s1 + $0x24] sm:$0xf]
        %v937 = vld [vmem:[%s1 + $0x28] sm:$0xf]
        %v938 = vld [vmem:[%s1 + $0x2c] sm:$0xf]
        %v939 = vld [vmem:[%s1 + $0x30] sm:$0xf]
        %v940 = vld [vmem:[%s1 + $0x34] sm:$0xf]
        %v941 = vld [vmem:[%s1 + $0x38] sm:$0xf]
        %v942 = vld [vmem:[%s1 + $0x3c] sm:$0xf]
        %v943 = vsel %vm441, %v271, %v385
        %v945 = vrot.slane %v943, 1
        %v946 = vsel %vm441, %v274, %v388
        %v948 = vrot.slane %v946, 1
        %v949 = vsel %vm441, %v277, %v391
        %v951 = vrot.slane %v949, 1
        %v952 = vsel %vm441, %v280, %v394
        %v954 = vrot.slane %v952, 1
        %v955 = vsel %vm441, %v283, %v397
        %v957 = vrot.slane %v955, 1
        %v958 = vsel %vm441, %v286, %v400
        %v960 = vrot.slane %v958, 1
        %v961 = vsel %vm441, %v289, %v403
        %v963 = vrot.slane %v961, 1
        %v964 = vsel %vm441, %v292, %v406
        %v966 = vrot.slane %v964, 1
        %v967 = vsel %vm441, %v295, %v409
        %v969 = vrot.slane %v967, 1
        %v970 = vsel %vm441, %v298, %v412
        %v972 = vrot.slane %v970, 1
        %v973 = vsel %vm441, %v301, %v415
        %v975 = vrot.slane %v973, 1
        %v976 = vsel %vm441, %v304, %v418
        %v978 = vrot.slane %v976, 1
        %v979 = vsel %vm441, %v307, %v421
        %v981 = vrot.slane %v979, 1
        %v982 = vsel %vm441, %v310, %v424
        %v984 = vrot.slane %v982, 1
        %v985 = vsel %vm441, %v313, %v427
        %v987 = vrot.slane %v985, 1
        %v988 = vsel %vm441, %v316, %v430
        %v990 = vrot.slane %v988, 1
        %v991 = vsel %vm441, %v319, %v433
        %v993 = vrot.slane %v991, 1
        %v994 = vsel %vm441, %v322, %v436
        %v996 = vrot.slane %v994, 1
        %vm997 = vsmask.f32 256
        %vm998 = vsmask.f32 1284
        %vm999 = vmor %vm997, %vm998
        %vm1000 = vsmask.f32 2312
        %vm1001 = vmor %vm999, %vm1000
        %vm1002 = vsmask.f32 3340
        %vm1003 = vmor %vm1001, %vm1002
        %vm1004 = vsmask.f32 4368
        %vm1005 = vmor %vm1003, %vm1004
        %vm1006 = vsmask.f32 5396
        %vm1007 = vmor %vm1005, %vm1006
        %vm1008 = vsmask.f32 6424
        %vm1009 = vmor %vm1007, %vm1008
        %vm1010 = vsmask.f32 7452
        %vm1011 = vmor %vm1009, %vm1010
        %v1012 = vshrl.u32 %v440, 16
        %v1014 = vrot.slane %v1012, 7
        %v1015 = vrot.slane %v1014, 1
        %v1017 = vshll.u32 %v444, 16
        %v1019 = vsel %vm1011, %v1015, %v1017
        %v1020 = vshrl.u32 %v444, 16
        %v1022 = vrot.slane %v1020, 7
        %v1023 = vrot.slane %v1022, 1
        %v1025 = vshll.u32 %v448, 16
        %v1027 = vsel %vm1011, %v1023, %v1025
        %v1028 = vshrl.u32 %v448, 16
        %v1030 = vrot.slane %v1028, 7
        %v1031 = vrot.slane %v1030, 1
        %v1033 = vshll.u32 %v452, 16
        %v1035 = vsel %vm1011, %v1031, %v1033
        %v1036 = vshrl.u32 %v452, 16
        %v1038 = vrot.slane %v1036, 7
        %v1039 = vrot.slane %v1038, 1
        %v1040 = vshll.u32 %v455, 16
        %v1042 = vsel %vm1011, %v1039, %v1040
        %v1043 = vshrl.u32 %v455, 16
        %v1045 = vrot.slane %v1043, 7
        %v1046 = vrot.slane %v1045, 1
        %v1048 = vshll.u32 %v458, 16
        %v1050 = vsel %vm1011, %v1046, %v1048
        %v1051 = vshrl.u32 %v458, 16
        %v1053 = vrot.slane %v1051, 7
        %v1054 = vrot.slane %v1053, 1
        %v1056 = vshll.u32 %v461, 16
        %v1058 = vsel %vm1011, %v1054, %v1056
        %v1059 = vshrl.u32 %v461, 16
        %v1061 = vrot.slane %v1059, 7
        %v1062 = vrot.slane %v1061, 1
        %v1064 = vshll.u32 %v464, 16
        %v1066 = vsel %vm1011, %v1062, %v1064
        %v1067 = vshrl.u32 %v464, 16
        %v1069 = vrot.slane %v1067, 7
        %v1070 = vrot.slane %v1069, 1
        %v1071 = vshll.u32 %v467, 16
        %v1073 = vsel %vm1011, %v1070, %v1071
        %v1074 = vshrl.u32 %v467, 16
        %v1076 = vrot.slane %v1074, 7
        %v1077 = vrot.slane %v1076, 1
        %v1079 = vshll.u32 %v945, 16
        %v1081 = vsel %vm1011, %v1077, %v1079
        %v1082 = vshrl.u32 %v470, 16
        %v1084 = vrot.slane %v1082, 7
        %v1085 = vrot.slane %v1084, 1
        %v1087 = vshll.u32 %v473, 16
        %v1089 = vsel %vm1011, %v1085, %v1087
        %v1090 = vshrl.u32 %v473, 16
        %v1092 = vrot.slane %v1090, 7
        %v1093 = vrot.slane %v1092, 1
        %v1095 = vshll.u32 %v476, 16
        %v1097 = vsel %vm1011, %v1093, %v1095
        %v1098 = vshrl.u32 %v476, 16
        %v1100 = vrot.slane %v1098, 7
        %v1101 = vrot.slane %v1100, 1
        %v1103 = vshll.u32 %v479, 16
        %v1105 = vsel %vm1011, %v1101, %v1103
        %v1106 = vshrl.u32 %v479, 16
        %v1108 = vrot.slane %v1106, 7
        %v1109 = vrot.slane %v1108, 1
        %v1110 = vshll.u32 %v482, 16
        %v1112 = vsel %vm1011, %v1109, %v1110
        %v1113 = vshrl.u32 %v482, 16
        %v1115 = vrot.slane %v1113, 7
        %v1116 = vrot.slane %v1115, 1
        %v1118 = vshll.u32 %v485, 16
        %v1120 = vsel %vm1011, %v1116, %v1118
        %v1121 = vshrl.u32 %v485, 16
        %v1123 = vrot.slane %v1121, 7
        %v1124 = vrot.slane %v1123, 1
        %v1126 = vshll.u32 %v488, 16
        %v1128 = vsel %vm1011, %v1124, %v1126
        %v1129 = vshrl.u32 %v488, 16
        %v1131 = vrot.slane %v1129, 7
        %v1132 = vrot.slane %v1131, 1
        %v1134 = vshll.u32 %v491, 16
        %v1136 = vsel %vm1011, %v1132, %v1134
        %v1137 = vshrl.u32 %v491, 16
        %v1139 = vrot.slane %v1137, 7
        %v1140 = vrot.slane %v1139, 1
        %v1141 = vshll.u32 %v494, 16
        %v1143 = vsel %vm1011, %v1140, %v1141
        %v1144 = vshrl.u32 %v494, 16
        %v1146 = vrot.slane %v1144, 7
        %v1147 = vrot.slane %v1146, 1
        %v1149 = vshll.u32 %v948, 16
        %v1151 = vsel %vm1011, %v1147, %v1149
        %v1152 = vshrl.u32 %v497, 16
        %v1154 = vrot.slane %v1152, 7
        %v1155 = vrot.slane %v1154, 1
        %v1157 = vshll.u32 %v500, 16
        %v1159 = vsel %vm1011, %v1155, %v1157
        %v1160 = vshrl.u32 %v500, 16
        %v1162 = vrot.slane %v1160, 7
        %v1163 = vrot.slane %v1162, 1
        %v1165 = vshll.u32 %v503, 16
        %v1167 = vsel %vm1011, %v1163, %v1165
        %v1168 = vshrl.u32 %v503, 16
        %v1170 = vrot.slane %v1168, 7
        %v1171 = vrot.slane %v1170, 1
        %v1173 = vshll.u32 %v506, 16
        %v1175 = vsel %vm1011, %v1171, %v1173
        %v1176 = vshrl.u32 %v506, 16
        %v1178 = vrot.slane %v1176, 7
        %v1179 = vrot.slane %v1178, 1
        %v1180 = vshll.u32 %v509, 16
        %v1182 = vsel %vm1011, %v1179, %v1180
        %v1183 = vshrl.u32 %v509, 16
        %v1185 = vrot.slane %v1183, 7
        %v1186 = vrot.slane %v1185, 1
        %v1188 = vshll.u32 %v512, 16
        %v1190 = vsel %vm1011, %v1186, %v1188
        %v1191 = vshrl.u32 %v512, 16
        %v1193 = vrot.slane %v1191, 7
        %v1194 = vrot.slane %v1193, 1
        %v1196 = vshll.u32 %v515, 16
        %v1198 = vsel %vm1011, %v1194, %v1196
        %v1199 = vshrl.u32 %v515, 16
        %v1201 = vrot.slane %v1199, 7
        %v1202 = vrot.slane %v1201, 1
        %v1204 = vshll.u32 %v518, 16
        %v1206 = vsel %vm1011, %v1202, %v1204
        %v1207 = vshrl.u32 %v518, 16
        %v1209 = vrot.slane %v1207, 7
        %v1210 = vrot.slane %v1209, 1
        %v1211 = vshll.u32 %v521, 16
        %v1213 = vsel %vm1011, %v1210, %v1211
        %v1214 = vshrl.u32 %v521, 16
        %v1216 = vrot.slane %v1214, 7
        %v1217 = vrot.slane %v1216, 1
        %v1219 = vshll.u32 %v951, 16
        %v1221 = vsel %vm1011, %v1217, %v1219
        %v1222 = vshrl.u32 %v524, 16
        %v1224 = vrot.slane %v1222, 7
        %v1225 = vrot.slane %v1224, 1
        %v1227 = vshll.u32 %v527, 16
        %v1229 = vsel %vm1011, %v1225, %v1227
        %v1230 = vshrl.u32 %v527, 16
        %v1232 = vrot.slane %v1230, 7
        %v1233 = vrot.slane %v1232, 1
        %v1235 = vshll.u32 %v530, 16
        %v1237 = vsel %vm1011, %v1233, %v1235
        %v1238 = vshrl.u32 %v530, 16
        %v1240 = vrot.slane %v1238, 7
        %v1241 = vrot.slane %v1240, 1
        %v1243 = vshll.u32 %v533, 16
        %v1245 = vsel %vm1011, %v1241, %v1243
        %v1246 = vshrl.u32 %v533, 16
        %v1248 = vrot.slane %v1246, 7
        %v1249 = vrot.slane %v1248, 1
        %v1250 = vshll.u32 %v536, 16
        %v1252 = vsel %vm1011, %v1249, %v1250
        %v1253 = vshrl.u32 %v536, 16
        %v1255 = vrot.slane %v1253, 7
        %v1256 = vrot.slane %v1255, 1
        %v1258 = vshll.u32 %v539, 16
        %v1260 = vsel %vm1011, %v1256, %v1258
        %v1261 = vshrl.u32 %v539, 16
        %v1263 = vrot.slane %v1261, 7
        %v1264 = vrot.slane %v1263, 1
        %v1266 = vshll.u32 %v542, 16
        %v1268 = vsel %vm1011, %v1264, %v1266
        %v1269 = vshrl.u32 %v542, 16
        %v1271 = vrot.slane %v1269, 7
        %v1272 = vrot.slane %v1271, 1
        %v1274 = vshll.u32 %v545, 16
        %v1276 = vsel %vm1011, %v1272, %v1274
        %v1277 = vshrl.u32 %v545, 16
        %v1279 = vrot.slane %v1277, 7
        %v1280 = vrot.slane %v1279, 1
        %v1281 = vshll.u32 %v548, 16
        %v1283 = vsel %vm1011, %v1280, %v1281
        %v1284 = vshrl.u32 %v548, 16
        %v1286 = vrot.slane %v1284, 7
        %v1287 = vrot.slane %v1286, 1
        %v1289 = vshll.u32 %v954, 16
        %v1291 = vsel %vm1011, %v1287, %v1289
        %v1292 = vshrl.u32 %v551, 16
        %v1294 = vrot.slane %v1292, 7
        %v1295 = vrot.slane %v1294, 1
        %v1297 = vshll.u32 %v554, 16
        %v1299 = vsel %vm1011, %v1295, %v1297
        %v1300 = vshrl.u32 %v554, 16
        %v1302 = vrot.slane %v1300, 7
        %v1303 = vrot.slane %v1302, 1
        %v1305 = vshll.u32 %v557, 16
        %v1307 = vsel %vm1011, %v1303, %v1305
        %v1308 = vshrl.u32 %v557, 16
        %v1310 = vrot.slane %v1308, 7
        %v1311 = vrot.slane %v1310, 1
        %v1313 = vshll.u32 %v560, 16
        %v1315 = vsel %vm1011, %v1311, %v1313
        %v1316 = vshrl.u32 %v560, 16
        %v1318 = vrot.slane %v1316, 7
        %v1319 = vrot.slane %v1318, 1
        %v1320 = vshll.u32 %v563, 16
        %v1322 = vsel %vm1011, %v1319, %v1320
        %v1323 = vshrl.u32 %v563, 16
        %v1325 = vrot.slane %v1323, 7
        %v1326 = vrot.slane %v1325, 1
        %v1328 = vshll.u32 %v566, 16
        %v1330 = vsel %vm1011, %v1326, %v1328
        %v1331 = vshrl.u32 %v566, 16
        %v1333 = vrot.slane %v1331, 7
        %v1334 = vrot.slane %v1333, 1
        %v1336 = vshll.u32 %v569, 16
        %v1338 = vsel %vm1011, %v1334, %v1336
        %v1339 = vshrl.u32 %v569, 16
        %v1341 = vrot.slane %v1339, 7
        %v1342 = vrot.slane %v1341, 1
        %v1344 = vshll.u32 %v572, 16
        %v1346 = vsel %vm1011, %v1342, %v1344
        %v1347 = vshrl.u32 %v572, 16
        %v1349 = vrot.slane %v1347, 7
        %v1350 = vrot.slane %v1349, 1
        %v1351 = vshll.u32 %v575, 16
        %v1353 = vsel %vm1011, %v1350, %v1351
        %v1354 = vshrl.u32 %v575, 16
        %v1356 = vrot.slane %v1354, 7
        %v1357 = vrot.slane %v1356, 1
        %v1359 = vshll.u32 %v957, 16
        %v1361 = vsel %vm1011, %v1357, %v1359
        %v1362 = vshrl.u32 %v578, 16
        %v1364 = vrot.slane %v1362, 7
        %v1365 = vrot.slane %v1364, 1
        %v1367 = vshll.u32 %v581, 16
        %v1369 = vsel %vm1011, %v1365, %v1367
        %v1370 = vshrl.u32 %v581, 16
        %v1372 = vrot.slane %v1370, 7
        %v1373 = vrot.slane %v1372, 1
        %v1375 = vshll.u32 %v584, 16
        %v1377 = vsel %vm1011, %v1373, %v1375
        %v1378 = vshrl.u32 %v584, 16
        %v1380 = vrot.slane %v1378, 7
        %v1381 = vrot.slane %v1380, 1
        %v1383 = vshll.u32 %v587, 16
        %v1385 = vsel %vm1011, %v1381, %v1383
        %v1386 = vshrl.u32 %v587, 16
        %v1388 = vrot.slane %v1386, 7
        %v1389 = vrot.slane %v1388, 1
        %v1390 = vshll.u32 %v590, 16
        %v1392 = vsel %vm1011, %v1389, %v1390
        %v1393 = vshrl.u32 %v590, 16
        %v1395 = vrot.slane %v1393, 7
        %v1396 = vrot.slane %v1395, 1
        %v1398 = vshll.u32 %v593, 16
        %v1400 = vsel %vm1011, %v1396, %v1398
        %v1401 = vshrl.u32 %v593, 16
        %v1403 = vrot.slane %v1401, 7
        %v1404 = vrot.slane %v1403, 1
        %v1406 = vshll.u32 %v596, 16
        %v1408 = vsel %vm1011, %v1404, %v1406
        %v1409 = vshrl.u32 %v596, 16
        %v1411 = vrot.slane %v1409, 7
        %v1412 = vrot.slane %v1411, 1
        %v1414 = vshll.u32 %v599, 16
        %v1416 = vsel %vm1011, %v1412, %v1414
        %v1417 = vshrl.u32 %v599, 16
        %v1419 = vrot.slane %v1417, 7
        %v1420 = vrot.slane %v1419, 1
        %v1421 = vshll.u32 %v602, 16
        %v1423 = vsel %vm1011, %v1420, %v1421
        %v1424 = vshrl.u32 %v602, 16
        %v1426 = vrot.slane %v1424, 7
        %v1427 = vrot.slane %v1426, 1
        %v1429 = vshll.u32 %v960, 16
        %v1431 = vsel %vm1011, %v1427, %v1429
        %v1432 = vshrl.u32 %v605, 16
        %v1434 = vrot.slane %v1432, 7
        %v1435 = vrot.slane %v1434, 1
        %v1437 = vshll.u32 %v608, 16
        %v1439 = vsel %vm1011, %v1435, %v1437
        %v1440 = vshrl.u32 %v608, 16
        %v1442 = vrot.slane %v1440, 7
        %v1443 = vrot.slane %v1442, 1
        %v1445 = vshll.u32 %v611, 16
        %v1447 = vsel %vm1011, %v1443, %v1445
        %v1448 = vshrl.u32 %v611, 16
        %v1450 = vrot.slane %v1448, 7
        %v1451 = vrot.slane %v1450, 1
        %v1453 = vshll.u32 %v614, 16
        %v1455 = vsel %vm1011, %v1451, %v1453
        %v1456 = vshrl.u32 %v614, 16
        %v1458 = vrot.slane %v1456, 7
        %v1459 = vrot.slane %v1458, 1
        %v1460 = vshll.u32 %v617, 16
        %v1462 = vsel %vm1011, %v1459, %v1460
        %v1463 = vshrl.u32 %v617, 16
        %v1465 = vrot.slane %v1463, 7
        %v1466 = vrot.slane %v1465, 1
        %v1468 = vshll.u32 %v620, 16
        %v1470 = vsel %vm1011, %v1466, %v1468
        %v1471 = vshrl.u32 %v620, 16
        %v1473 = vrot.slane %v1471, 7
        %v1474 = vrot.slane %v1473, 1
        %v1476 = vshll.u32 %v623, 16
        %v1478 = vsel %vm1011, %v1474, %v1476
        %v1479 = vshrl.u32 %v623, 16
        %v1481 = vrot.slane %v1479, 7
        %v1482 = vrot.slane %v1481, 1
        %v1484 = vshll.u32 %v626, 16
        %v1486 = vsel %vm1011, %v1482, %v1484
        %v1487 = vshrl.u32 %v626, 16
        %v1489 = vrot.slane %v1487, 7
        %v1490 = vrot.slane %v1489, 1
        %v1491 = vshll.u32 %v629, 16
        %v1493 = vsel %vm1011, %v1490, %v1491
        %v1494 = vshrl.u32 %v629, 16
        %v1496 = vrot.slane %v1494, 7
        %v1497 = vrot.slane %v1496, 1
        %v1499 = vshll.u32 %v963, 16
        %v1501 = vsel %vm1011, %v1497, %v1499
        %v1502 = vshrl.u32 %v632, 16
        %v1504 = vrot.slane %v1502, 7
        %v1505 = vrot.slane %v1504, 1
        %v1507 = vshll.u32 %v635, 16
        %v1509 = vsel %vm1011, %v1505, %v1507
        %v1510 = vshrl.u32 %v635, 16
        %v1512 = vrot.slane %v1510, 7
        %v1513 = vrot.slane %v1512, 1
        %v1515 = vshll.u32 %v638, 16
        %v1517 = vsel %vm1011, %v1513, %v1515
        %v1518 = vshrl.u32 %v638, 16
        %v1520 = vrot.slane %v1518, 7
        %v1521 = vrot.slane %v1520, 1
        %v1523 = vshll.u32 %v641, 16
        %v1525 = vsel %vm1011, %v1521, %v1523
        %v1526 = vshrl.u32 %v641, 16
        %v1528 = vrot.slane %v1526, 7
        %v1529 = vrot.slane %v1528, 1
        %v1530 = vshll.u32 %v644, 16
        %v1532 = vsel %vm1011, %v1529, %v1530
        %v1533 = vshrl.u32 %v644, 16
        %v1535 = vrot.slane %v1533, 7
        %v1536 = vrot.slane %v1535, 1
        %v1538 = vshll.u32 %v647, 16
        %v1540 = vsel %vm1011, %v1536, %v1538
        %v1541 = vshrl.u32 %v647, 16
        %v1543 = vrot.slane %v1541, 7
        %v1544 = vrot.slane %v1543, 1
        %v1546 = vshll.u32 %v650, 16
        %v1548 = vsel %vm1011, %v1544, %v1546
        %v1549 = vshrl.u32 %v650, 16
        %v1551 = vrot.slane %v1549, 7
        %v1552 = vrot.slane %v1551, 1
        %v1554 = vshll.u32 %v653, 16
        %v1556 = vsel %vm1011, %v1552, %v1554
        %v1557 = vshrl.u32 %v653, 16
        %v1559 = vrot.slane %v1557, 7
        %v1560 = vrot.slane %v1559, 1
        %v1561 = vshll.u32 %v656, 16
        %v1563 = vsel %vm1011, %v1560, %v1561
        %v1564 = vshrl.u32 %v656, 16
        %v1566 = vrot.slane %v1564, 7
        %v1567 = vrot.slane %v1566, 1
        %v1569 = vshll.u32 %v966, 16
        %v1571 = vsel %vm1011, %v1567, %v1569
        %v1572 = vshrl.u32 %v659, 16
        %v1574 = vrot.slane %v1572, 7
        %v1575 = vrot.slane %v1574, 1
        %v1577 = vshll.u32 %v662, 16
        %v1579 = vsel %vm1011, %v1575, %v1577
        %v1580 = vshrl.u32 %v662, 16
        %v1582 = vrot.slane %v1580, 7
        %v1583 = vrot.slane %v1582, 1
        %v1585 = vshll.u32 %v665, 16
        %v1587 = vsel %vm1011, %v1583, %v1585
        %v1588 = vshrl.u32 %v665, 16
        %v1590 = vrot.slane %v1588, 7
        %v1591 = vrot.slane %v1590, 1
        %v1593 = vshll.u32 %v668, 16
        %v1595 = vsel %vm1011, %v1591, %v1593
        %v1596 = vshrl.u32 %v668, 16
        %v1598 = vrot.slane %v1596, 7
        %v1599 = vrot.slane %v1598, 1
        %v1600 = vshll.u32 %v671, 16
        %v1602 = vsel %vm1011, %v1599, %v1600
        %v1603 = vshrl.u32 %v671, 16
        %v1605 = vrot.slane %v1603, 7
        %v1606 = vrot.slane %v1605, 1
        %v1608 = vshll.u32 %v674, 16
        %v1610 = vsel %vm1011, %v1606, %v1608
        %v1611 = vshrl.u32 %v674, 16
        %v1613 = vrot.slane %v1611, 7
        %v1614 = vrot.slane %v1613, 1
        %v1616 = vshll.u32 %v677, 16
        %v1618 = vsel %vm1011, %v1614, %v1616
        %v1619 = vshrl.u32 %v677, 16
        %v1621 = vrot.slane %v1619, 7
        %v1622 = vrot.slane %v1621, 1
        %v1624 = vshll.u32 %v680, 16
        %v1626 = vsel %vm1011, %v1622, %v1624
        %v1627 = vshrl.u32 %v680, 16
        %v1629 = vrot.slane %v1627, 7
        %v1630 = vrot.slane %v1629, 1
        %v1631 = vshll.u32 %v683, 16
        %v1633 = vsel %vm1011, %v1630, %v1631
        %v1634 = vshrl.u32 %v683, 16
        %v1636 = vrot.slane %v1634, 7
        %v1637 = vrot.slane %v1636, 1
        %v1639 = vshll.u32 %v969, 16
        %v1641 = vsel %vm1011, %v1637, %v1639
        %v1642 = vshrl.u32 %v686, 16
        %v1644 = vrot.slane %v1642, 7
        %v1645 = vrot.slane %v1644, 1
        %v1647 = vshll.u32 %v689, 16
        %v1649 = vsel %vm1011, %v1645, %v1647
        %v1650 = vshrl.u32 %v689, 16
        %v1652 = vrot.slane %v1650, 7
        %v1653 = vrot.slane %v1652, 1
        %v1655 = vshll.u32 %v692, 16
        %v1657 = vsel %vm1011, %v1653, %v1655
        %v1658 = vshrl.u32 %v692, 16
        %v1660 = vrot.slane %v1658, 7
        %v1661 = vrot.slane %v1660, 1
        %v1663 = vshll.u32 %v695, 16
        %v1665 = vsel %vm1011, %v1661, %v1663
        %v1666 = vshrl.u32 %v695, 16
        %v1668 = vrot.slane %v1666, 7
        %v1669 = vrot.slane %v1668, 1
        %v1670 = vshll.u32 %v698, 16
        %v1672 = vsel %vm1011, %v1669, %v1670
        %v1673 = vshrl.u32 %v698, 16
        %v1675 = vrot.slane %v1673, 7
        %v1676 = vrot.slane %v1675, 1
        %v1678 = vshll.u32 %v701, 16
        %v1680 = vsel %vm1011, %v1676, %v1678
        %v1681 = vshrl.u32 %v701, 16
        %v1683 = vrot.slane %v1681, 7
        %v1684 = vrot.slane %v1683, 1
        %v1686 = vshll.u32 %v704, 16
        %v1688 = vsel %vm1011, %v1684, %v1686
        %v1689 = vshrl.u32 %v704, 16
        %v1691 = vrot.slane %v1689, 7
        %v1692 = vrot.slane %v1691, 1
        %v1694 = vshll.u32 %v707, 16
        %v1696 = vsel %vm1011, %v1692, %v1694
        %v1697 = vshrl.u32 %v707, 16
        %v1699 = vrot.slane %v1697, 7
        %v1700 = vrot.slane %v1699, 1
        %v1701 = vshll.u32 %v710, 16
        %v1703 = vsel %vm1011, %v1700, %v1701
        %v1704 = vshrl.u32 %v710, 16
        %v1706 = vrot.slane %v1704, 7
        %v1707 = vrot.slane %v1706, 1
        %v1709 = vshll.u32 %v972, 16
        %v1711 = vsel %vm1011, %v1707, %v1709
        %v1712 = vshrl.u32 %v713, 16
        %v1714 = vrot.slane %v1712, 7
        %v1715 = vrot.slane %v1714, 1
        %v1717 = vshll.u32 %v716, 16
        %v1719 = vsel %vm1011, %v1715, %v1717
        %v1720 = vshrl.u32 %v716, 16
        %v1722 = vrot.slane %v1720, 7
        %v1723 = vrot.slane %v1722, 1
        %v1725 = vshll.u32 %v719, 16
        %v1727 = vsel %vm1011, %v1723, %v1725
        %v1728 = vshrl.u32 %v719, 16
        %v1730 = vrot.slane %v1728, 7
        %v1731 = vrot.slane %v1730, 1
        %v1733 = vshll.u32 %v722, 16
        %v1735 = vsel %vm1011, %v1731, %v1733
        %v1736 = vshrl.u32 %v722, 16
        %v1738 = vrot.slane %v1736, 7
        %v1739 = vrot.slane %v1738, 1
        %v1740 = vshll.u32 %v725, 16
        %v1742 = vsel %vm1011, %v1739, %v1740
        %v1743 = vshrl.u32 %v725, 16
        %v1745 = vrot.slane %v1743, 7
        %v1746 = vrot.slane %v1745, 1
        %v1748 = vshll.u32 %v728, 16
        %v1750 = vsel %vm1011, %v1746, %v1748
        %v1751 = vshrl.u32 %v728, 16
        %v1753 = vrot.slane %v1751, 7
        %v1754 = vrot.slane %v1753, 1
        %v1756 = vshll.u32 %v731, 16
        %v1758 = vsel %vm1011, %v1754, %v1756
        %v1759 = vshrl.u32 %v731, 16
        %v1761 = vrot.slane %v1759, 7
        %v1762 = vrot.slane %v1761, 1
        %v1764 = vshll.u32 %v734, 16
        %v1766 = vsel %vm1011, %v1762, %v1764
        %v1767 = vshrl.u32 %v734, 16
        %v1769 = vrot.slane %v1767, 7
        %v1770 = vrot.slane %v1769, 1
        %v1771 = vshll.u32 %v737, 16
        %v1773 = vsel %vm1011, %v1770, %v1771
        %v1774 = vshrl.u32 %v737, 16
        %v1776 = vrot.slane %v1774, 7
        %v1777 = vrot.slane %v1776, 1
        %v1779 = vshll.u32 %v975, 16
        %v1781 = vsel %vm1011, %v1777, %v1779
        %v1782 = vshrl.u32 %v740, 16
        %v1784 = vrot.slane %v1782, 7
        %v1785 = vrot.slane %v1784, 1
        %v1787 = vshll.u32 %v743, 16
        %v1789 = vsel %vm1011, %v1785, %v1787
        %v1790 = vshrl.u32 %v743, 16
        %v1792 = vrot.slane %v1790, 7
        %v1793 = vrot.slane %v1792, 1
        %v1795 = vshll.u32 %v746, 16
        %v1797 = vsel %vm1011, %v1793, %v1795
        %v1798 = vshrl.u32 %v746, 16
        %v1800 = vrot.slane %v1798, 7
        %v1801 = vrot.slane %v1800, 1
        %v1803 = vshll.u32 %v749, 16
        %v1805 = vsel %vm1011, %v1801, %v1803
        %v1806 = vshrl.u32 %v749, 16
        %v1808 = vrot.slane %v1806, 7
        %v1809 = vrot.slane %v1808, 1
        %v1810 = vshll.u32 %v752, 16
        %v1812 = vsel %vm1011, %v1809, %v1810
        %v1813 = vshrl.u32 %v752, 16
        %v1815 = vrot.slane %v1813, 7
        %v1816 = vrot.slane %v1815, 1
        %v1818 = vshll.u32 %v755, 16
        %v1820 = vsel %vm1011, %v1816, %v1818
        %v1821 = vshrl.u32 %v755, 16
        %v1823 = vrot.slane %v1821, 7
        %v1824 = vrot.slane %v1823, 1
        %v1826 = vshll.u32 %v758, 16
        %v1828 = vsel %vm1011, %v1824, %v1826
        %v1829 = vshrl.u32 %v758, 16
        %v1831 = vrot.slane %v1829, 7
        %v1832 = vrot.slane %v1831, 1
        %v1834 = vshll.u32 %v761, 16
        %v1836 = vsel %vm1011, %v1832, %v1834
        %v1837 = vshrl.u32 %v761, 16
        %v1839 = vrot.slane %v1837, 7
        %v1840 = vrot.slane %v1839, 1
        %v1841 = vshll.u32 %v764, 16
        %v1843 = vsel %vm1011, %v1840, %v1841
        %v1844 = vshrl.u32 %v764, 16
        %v1846 = vrot.slane %v1844, 7
        %v1847 = vrot.slane %v1846, 1
        %v1849 = vshll.u32 %v978, 16
        %v1851 = vsel %vm1011, %v1847, %v1849
        %v1852 = vshrl.u32 %v767, 16
        %v1854 = vrot.slane %v1852, 7
        %v1855 = vrot.slane %v1854, 1
        %v1857 = vshll.u32 %v770, 16
        %v1859 = vsel %vm1011, %v1855, %v1857
        %v1860 = vshrl.u32 %v770, 16
        %v1862 = vrot.slane %v1860, 7
        %v1863 = vrot.slane %v1862, 1
        %v1865 = vshll.u32 %v773, 16
        %v1867 = vsel %vm1011, %v1863, %v1865
        %v1868 = vshrl.u32 %v773, 16
        %v1870 = vrot.slane %v1868, 7
        %v1871 = vrot.slane %v1870, 1
        %v1873 = vshll.u32 %v776, 16
        %v1875 = vsel %vm1011, %v1871, %v1873
        %v1876 = vshrl.u32 %v776, 16
        %v1878 = vrot.slane %v1876, 7
        %v1879 = vrot.slane %v1878, 1
        %v1880 = vshll.u32 %v779, 16
        %v1882 = vsel %vm1011, %v1879, %v1880
        %v1883 = vshrl.u32 %v779, 16
        %v1885 = vrot.slane %v1883, 7
        %v1886 = vrot.slane %v1885, 1
        %v1888 = vshll.u32 %v782, 16
        %v1890 = vsel %vm1011, %v1886, %v1888
        %v1891 = vshrl.u32 %v782, 16
        %v1893 = vrot.slane %v1891, 7
        %v1894 = vrot.slane %v1893, 1
        %v1896 = vshll.u32 %v785, 16
        %v1898 = vsel %vm1011, %v1894, %v1896
        %v1899 = vshrl.u32 %v785, 16
        %v1901 = vrot.slane %v1899, 7
        %v1902 = vrot.slane %v1901, 1
        %v1904 = vshll.u32 %v788, 16
        %v1906 = vsel %vm1011, %v1902, %v1904
        %v1907 = vshrl.u32 %v788, 16
        %v1909 = vrot.slane %v1907, 7
        %v1910 = vrot.slane %v1909, 1
        %v1911 = vshll.u32 %v791, 16
        %v1913 = vsel %vm1011, %v1910, %v1911
        %v1914 = vshrl.u32 %v791, 16
        %v1916 = vrot.slane %v1914, 7
        %v1917 = vrot.slane %v1916, 1
        %v1919 = vshll.u32 %v981, 16
        %v1921 = vsel %vm1011, %v1917, %v1919
        %v1922 = vshrl.u32 %v794, 16
        %v1924 = vrot.slane %v1922, 7
        %v1925 = vrot.slane %v1924, 1
        %v1927 = vshll.u32 %v797, 16
        %v1929 = vsel %vm1011, %v1925, %v1927
        %v1930 = vshrl.u32 %v797, 16
        %v1932 = vrot.slane %v1930, 7
        %v1933 = vrot.slane %v1932, 1
        %v1935 = vshll.u32 %v800, 16
        %v1937 = vsel %vm1011, %v1933, %v1935
        %v1938 = vshrl.u32 %v800, 16
        %v1940 = vrot.slane %v1938, 7
        %v1941 = vrot.slane %v1940, 1
        %v1943 = vshll.u32 %v803, 16
        %v1945 = vsel %vm1011, %v1941, %v1943
        %v1946 = vshrl.u32 %v803, 16
        %v1948 = vrot.slane %v1946, 7
        %v1949 = vrot.slane %v1948, 1
        %v1950 = vshll.u32 %v806, 16
        %v1952 = vsel %vm1011, %v1949, %v1950
        %v1953 = vshrl.u32 %v806, 16
        %v1955 = vrot.slane %v1953, 7
        %v1956 = vrot.slane %v1955, 1
        %v1958 = vshll.u32 %v809, 16
        %v1960 = vsel %vm1011, %v1956, %v1958
        %v1961 = vshrl.u32 %v809, 16
        %v1963 = vrot.slane %v1961, 7
        %v1964 = vrot.slane %v1963, 1
        %v1966 = vshll.u32 %v812, 16
        %v1968 = vsel %vm1011, %v1964, %v1966
        %v1969 = vshrl.u32 %v812, 16
        %v1971 = vrot.slane %v1969, 7
        %v1972 = vrot.slane %v1971, 1
        %v1974 = vshll.u32 %v815, 16
        %v1976 = vsel %vm1011, %v1972, %v1974
        %v1977 = vshrl.u32 %v815, 16
        %v1979 = vrot.slane %v1977, 7
        %v1980 = vrot.slane %v1979, 1
        %v1981 = vshll.u32 %v818, 16
        %v1983 = vsel %vm1011, %v1980, %v1981
        %v1984 = vshrl.u32 %v818, 16
        %v1986 = vrot.slane %v1984, 7
        %v1987 = vrot.slane %v1986, 1
        %v1989 = vshll.u32 %v984, 16
        %v1991 = vsel %vm1011, %v1987, %v1989
        %v1992 = vshrl.u32 %v821, 16
        %v1994 = vrot.slane %v1992, 7
        %v1995 = vrot.slane %v1994, 1
        %v1997 = vshll.u32 %v824, 16
        %v1999 = vsel %vm1011, %v1995, %v1997
        %v2000 = vshrl.u32 %v824, 16
        %v2002 = vrot.slane %v2000, 7
        %v2003 = vrot.slane %v2002, 1
        %v2005 = vshll.u32 %v827, 16
        %v2007 = vsel %vm1011, %v2003, %v2005
        %v2008 = vshrl.u32 %v827, 16
        %v2010 = vrot.slane %v2008, 7
        %v2011 = vrot.slane %v2010, 1
        %v2013 = vshll.u32 %v830, 16
        %v2015 = vsel %vm1011, %v2011, %v2013
        %v2016 = vshrl.u32 %v830, 16
        %v2018 = vrot.slane %v2016, 7
        %v2019 = vrot.slane %v2018, 1
        %v2020 = vshll.u32 %v833, 16
        %v2022 = vsel %vm1011, %v2019, %v2020
        %v2023 = vshrl.u32 %v833, 16
        %v2025 = vrot.slane %v2023, 7
        %v2026 = vrot.slane %v2025, 1
        %v2028 = vshll.u32 %v836, 16
        %v2030 = vsel %vm1011, %v2026, %v2028
        %v2031 = vshrl.u32 %v836, 16
        %v2033 = vrot.slane %v2031, 7
        %v2034 = vrot.slane %v2033, 1
        %v2036 = vshll.u32 %v839, 16
        %v2038 = vsel %vm1011, %v2034, %v2036
        %v2039 = vshrl.u32 %v839, 16
        %v2041 = vrot.slane %v2039, 7
        %v2042 = vrot.slane %v2041, 1
        %v2044 = vshll.u32 %v842, 16
        %v2046 = vsel %vm1011, %v2042, %v2044
        %v2047 = vshrl.u32 %v842, 16
        %v2049 = vrot.slane %v2047, 7
        %v2050 = vrot.slane %v2049, 1
        %v2051 = vshll.u32 %v845, 16
        %v2053 = vsel %vm1011, %v2050, %v2051
        %v2054 = vshrl.u32 %v845, 16
        %v2056 = vrot.slane %v2054, 7
        %v2057 = vrot.slane %v2056, 1
        %v2059 = vshll.u32 %v987, 16
        %v2061 = vsel %vm1011, %v2057, %v2059
        %v2062 = vshrl.u32 %v848, 16
        %v2064 = vrot.slane %v2062, 7
        %v2065 = vrot.slane %v2064, 1
        %v2067 = vshll.u32 %v851, 16
        %v2069 = vsel %vm1011, %v2065, %v2067
        %v2070 = vshrl.u32 %v851, 16
        %v2072 = vrot.slane %v2070, 7
        %v2073 = vrot.slane %v2072, 1
        %v2075 = vshll.u32 %v854, 16
        %v2077 = vsel %vm1011, %v2073, %v2075
        %v2078 = vshrl.u32 %v854, 16
        %v2080 = vrot.slane %v2078, 7
        %v2081 = vrot.slane %v2080, 1
        %v2083 = vshll.u32 %v857, 16
        %v2085 = vsel %vm1011, %v2081, %v2083
        %v2086 = vshrl.u32 %v857, 16
        %v2088 = vrot.slane %v2086, 7
        %v2089 = vrot.slane %v2088, 1
        %v2090 = vshll.u32 %v860, 16
        %v2092 = vsel %vm1011, %v2089, %v2090
        %v2093 = vshrl.u32 %v860, 16
        %v2095 = vrot.slane %v2093, 7
        %v2096 = vrot.slane %v2095, 1
        %v2098 = vshll.u32 %v863, 16
        %v2100 = vsel %vm1011, %v2096, %v2098
        %v2101 = vshrl.u32 %v863, 16
        %v2103 = vrot.slane %v2101, 7
        %v2104 = vrot.slane %v2103, 1
        %v2106 = vshll.u32 %v866, 16
        %v2108 = vsel %vm1011, %v2104, %v2106
        %v2109 = vshrl.u32 %v866, 16
        %v2111 = vrot.slane %v2109, 7
        %v2112 = vrot.slane %v2111, 1
        %v2114 = vshll.u32 %v869, 16
        %v2116 = vsel %vm1011, %v2112, %v2114
        %v2117 = vshrl.u32 %v869, 16
        %v2119 = vrot.slane %v2117, 7
        %v2120 = vrot.slane %v2119, 1
        %v2121 = vshll.u32 %v872, 16
        %v2123 = vsel %vm1011, %v2120, %v2121
        %v2124 = vshrl.u32 %v872, 16
        %v2126 = vrot.slane %v2124, 7
        %v2127 = vrot.slane %v2126, 1
        %v2129 = vshll.u32 %v990, 16
        %v2131 = vsel %vm1011, %v2127, %v2129
        %v2132 = vshrl.u32 %v875, 16
        %v2134 = vrot.slane %v2132, 7
        %v2135 = vrot.slane %v2134, 1
        %v2137 = vshll.u32 %v878, 16
        %v2139 = vsel %vm1011, %v2135, %v2137
        %v2140 = vshrl.u32 %v878, 16
        %v2142 = vrot.slane %v2140, 7
        %v2143 = vrot.slane %v2142, 1
        %v2145 = vshll.u32 %v881, 16
        %v2147 = vsel %vm1011, %v2143, %v2145
        %v2148 = vshrl.u32 %v881, 16
        %v2150 = vrot.slane %v2148, 7
        %v2151 = vrot.slane %v2150, 1
        %v2153 = vshll.u32 %v884, 16
        %v2155 = vsel %vm1011, %v2151, %v2153
        %v2156 = vshrl.u32 %v884, 16
        %v2158 = vrot.slane %v2156, 7
        %v2159 = vrot.slane %v2158, 1
        %v2160 = vshll.u32 %v887, 16
        %v2162 = vsel %vm1011, %v2159, %v2160
        %v2163 = vshrl.u32 %v887, 16
        %v2165 = vrot.slane %v2163, 7
        %v2166 = vrot.slane %v2165, 1
        %v2168 = vshll.u32 %v890, 16
        %v2170 = vsel %vm1011, %v2166, %v2168
        %v2171 = vshrl.u32 %v890, 16
        %v2173 = vrot.slane %v2171, 7
        %v2174 = vrot.slane %v2173, 1
        %v2176 = vshll.u32 %v893, 16
        %v2178 = vsel %vm1011, %v2174, %v2176
        %v2179 = vshrl.u32 %v893, 16
        %v2181 = vrot.slane %v2179, 7
        %v2182 = vrot.slane %v2181, 1
        %v2184 = vshll.u32 %v896, 16
        %v2186 = vsel %vm1011, %v2182, %v2184
        %v2187 = vshrl.u32 %v896, 16
        %v2189 = vrot.slane %v2187, 7
        %v2190 = vrot.slane %v2189, 1
        %v2191 = vshll.u32 %v899, 16
        %v2193 = vsel %vm1011, %v2190, %v2191
        %v2194 = vshrl.u32 %v899, 16
        %v2196 = vrot.slane %v2194, 7
        %v2197 = vrot.slane %v2196, 1
        %v2199 = vshll.u32 %v993, 16
        %v2201 = vsel %vm1011, %v2197, %v2199
        %v2202 = vshrl.u32 %v902, 16
        %v2204 = vrot.slane %v2202, 7
        %v2205 = vrot.slane %v2204, 1
        %v2207 = vshll.u32 %v905, 16
        %v2209 = vsel %vm1011, %v2205, %v2207
        %v2210 = vshrl.u32 %v905, 16
        %v2212 = vrot.slane %v2210, 7
        %v2213 = vrot.slane %v2212, 1
        %v2215 = vshll.u32 %v908, 16
        %v2217 = vsel %vm1011, %v2213, %v2215
        %v2218 = vshrl.u32 %v908, 16
        %v2220 = vrot.slane %v2218, 7
        %v2221 = vrot.slane %v2220, 1
        %v2223 = vshll.u32 %v911, 16
        %v2225 = vsel %vm1011, %v2221, %v2223
        %v2226 = vshrl.u32 %v911, 16
        %v2228 = vrot.slane %v2226, 7
        %v2229 = vrot.slane %v2228, 1
        %v2230 = vshll.u32 %v914, 16
        %v2232 = vsel %vm1011, %v2229, %v2230
        %v2233 = vshrl.u32 %v914, 16
        %v2235 = vrot.slane %v2233, 7
        %v2236 = vrot.slane %v2235, 1
        %v2238 = vshll.u32 %v917, 16
        %v2240 = vsel %vm1011, %v2236, %v2238
        %v2241 = vshrl.u32 %v917, 16
        %v2243 = vrot.slane %v2241, 7
        %v2244 = vrot.slane %v2243, 1
        %v2246 = vshll.u32 %v920, 16
        %v2248 = vsel %vm1011, %v2244, %v2246
        %v2249 = vshrl.u32 %v920, 16
        %v2251 = vrot.slane %v2249, 7
        %v2252 = vrot.slane %v2251, 1
        %v2254 = vshll.u32 %v923, 16
        %v2256 = vsel %vm1011, %v2252, %v2254
        %v2257 = vshrl.u32 %v923, 16
        %v2259 = vrot.slane %v2257, 7
        %v2260 = vrot.slane %v2259, 1
        %v2261 = vshll.u32 %v926, 16
        %v2263 = vsel %vm1011, %v2260, %v2261
        %v2264 = vshrl.u32 %v926, 16
        %v2266 = vrot.slane %v2264, 7
        %v2267 = vrot.slane %v2266, 1
        %v2269 = vshll.u32 %v996, 16
        %v2271 = vsel %vm1011, %v2267, %v2269
        %v2272 = vld [vmem:[%s1 + $0x40] sm:$0xf]
        %v2273 = vld [vmem:[%s1 + $0x44] sm:$0xf]
        %v2274 = vld [vmem:[%s1 + $0x48] sm:$0xf]
        %v2275 = vld [vmem:[%s1 + $0x4c] sm:$0xf]
        %v2276 = vld [vmem:[%s1 + $0x50] sm:$0xf]
        %v2277 = vld [vmem:[%s1 + $0x54] sm:$0xf]
        %v2278 = vld [vmem:[%s1 + $0x58] sm:$0xf]
        %v2279 = vld [vmem:[%s1 + $0x5c] sm:$0xf]
        %v2280 = vld [vmem:[%s1 + $0x60] sm:$0xf]
        %v2281 = vld [vmem:[%s1 + $0x64] sm:$0xf]
        %v2282 = vld [vmem:[%s1 + $0x68] sm:$0xf]
        %v2283 = vld [vmem:[%s1 + $0x6c] sm:$0xf]
        %v2284 = vld [vmem:[%s1 + $0x70] sm:$0xf]
        %v2285 = vld [vmem:[%s1 + $0x74] sm:$0xf]
        %v2286 = vld [vmem:[%s1 + $0x78] sm:$0xf]
        %v2287 = vld [vmem:[%s1 + $0x7c] sm:$0xf]
        %2289 = vst [vmem:[#allocation1] ss:$9 sm:$0xff] %v1019
        %s2291 = scalar_lea.vmem [#allocation1], 1
        %2292 = vst [vmem:[%s2291] ss:$9 sm:$0xff] %v1027
        %s2294 = scalar_lea.vmem [#allocation1], 2
        %2295 = vst [vmem:[%s2294] ss:$9 sm:$0xff] %v1035
        %s2297 = scalar_lea.vmem [#allocation1], 3
        %2298 = vst [vmem:[%s2297] ss:$9 sm:$0xff] %v1042
        %s2300 = scalar_lea.vmem [#allocation1], 4
        %2301 = vst [vmem:[%s2300] ss:$9 sm:$0xff] %v1050
        %s2303 = scalar_lea.vmem [#allocation1], 5
        %2304 = vst [vmem:[%s2303] ss:$9 sm:$0xff] %v1058
        %s2306 = scalar_lea.vmem [#allocation1], 6
        %2307 = vst [vmem:[%s2306] ss:$9 sm:$0xff] %v1066
        %s2309 = scalar_lea.vmem [#allocation1], 7
        %2310 = vst [vmem:[%s2309] ss:$9 sm:$0xff] %v1073
        %v2311 = vld [vmem:[#allocation1] sm:$0xff]
        %2313 = vst [vmem:[#allocation1] ss:$9 sm:$0xff] %v1081
        %2315 = vst [vmem:[%s2291] ss:$9 sm:$0xff] %v1089
        %2317 = vst [vmem:[%s2294] ss:$9 sm:$0xff] %v1097
        %2319 = vst [vmem:[%s2297] ss:$9 sm:$0xff] %v1105
        %2321 = vst [vmem:[%s2300] ss:$9 sm:$0xff] %v1112
        %2323 = vst [vmem:[%s2303] ss:$9 sm:$0xff] %v1120
        %2325 = vst [vmem:[%s2306] ss:$9 sm:$0xff] %v1128
        %2327 = vst [vmem:[%s2309] ss:$9 sm:$0xff] %v1136
        %v2328 = vld [vmem:[#allocation1] sm:$0xff]
        %2330 = vst [vmem:[#allocation1] ss:$9 sm:$0xff] %v1143
        %2332 = vst [vmem:[%s2291] ss:$9 sm:$0xff] %v1151
        %2334 = vst [vmem:[%s2294] ss:$9 sm:$0xff] %v1159
        %2336 = vst [vmem:[%s2297] ss:$9 sm:$0xff] %v1167
        %2338 = vst [vmem:[%s2300] ss:$9 sm:$0xff] %v1175
        %2340 = vst [vmem:[%s2303] ss:$9 sm:$0xff] %v1182
        %2342 = vst [vmem:[%s2306] ss:$9 sm:$0xff] %v1190
        %2344 = vst [vmem:[%s2309] ss:$9 sm:$0xff] %v1198
        %v2345 = vld [vmem:[#allocation1] sm:$0xff]
        %2347 = vst [vmem:[#allocation1] ss:$9 sm:$0xff] %v1206
        %2349 = vst [vmem:[%s2291] ss:$9 sm:$0xff] %v1213
        %2351 = vst [vmem:[%s2294] ss:$9 sm:$0xff] %v1221
        %2353 = vst [vmem:[%s2297] ss:$9 sm:$0xff] %v1229
        %2355 = vst [vmem:[%s2300] ss:$9 sm:$0xff] %v1237
        %2357 = vst [vmem:[%s2303] ss:$9 sm:$0xff] %v1245
        %2359 = vst [vmem:[%s2306] ss:$9 sm:$0xff] %v1252
        %2361 = vst [vmem:[%s2309] ss:$9 sm:$0xff] %v1260
        %v2362 = vld [vmem:[#allocation1] sm:$0xff]
        %2364 = vst [vmem:[#allocation1] ss:$9 sm:$0xff] %v1268
        %2366 = vst [vmem:[%s2291] ss:$9 sm:$0xff] %v1276
        %2368 = vst [vmem:[%s2294] ss:$9 sm:$0xff] %v1283
        %2370 = vst [vmem:[%s2297] ss:$9 sm:$0xff] %v1291
        %2372 = vst [vmem:[%s2300] ss:$9 sm:$0xff] %v1299
        %2374 = vst [vmem:[%s2303] ss:$9 sm:$0xff] %v1307
        %2376 = vst [vmem:[%s2306] ss:$9 sm:$0xff] %v1315
        %2378 = vst [vmem:[%s2309] ss:$9 sm:$0xff] %v1322
        %v2379 = vld [vmem:[#allocation1] sm:$0xff]
        %2381 = vst [vmem:[#allocation1] ss:$9 sm:$0xff] %v1330
        %2383 = vst [vmem:[%s2291] ss:$9 sm:$0xff] %v1338
        %2385 = vst [vmem:[%s2294] ss:$9 sm:$0xff] %v1346
        %2387 = vst [vmem:[%s2297] ss:$9 sm:$0xff] %v1353
        %2389 = vst [vmem:[%s2300] ss:$9 sm:$0xff] %v1361
        %2391 = vst [vmem:[%s2303] ss:$9 sm:$0xff] %v1369
        %2393 = vst [vmem:[%s2306] ss:$9 sm:$0xff] %v1377
        %2395 = vst [vmem:[%s2309] ss:$9 sm:$0xff] %v1385
        %v2396 = vld [vmem:[#allocation1] sm:$0xff]
        %2398 = vst [vmem:[#allocation1] ss:$9 sm:$0xff] %v1392
        %2400 = vst [vmem:[%s2291] ss:$9 sm:$0xff] %v1400
        %2402 = vst [vmem:[%s2294] ss:$9 sm:$0xff] %v1408
        %2404 = vst [vmem:[%s2297] ss:$9 sm:$0xff] %v1416
        %2406 = vst [vmem:[%s2300] ss:$9 sm:$0xff] %v1423
        %2408 = vst [vmem:[%s2303] ss:$9 sm:$0xff] %v1431
        %2410 = vst [vmem:[%s2306] ss:$9 sm:$0xff] %v1439
        %2412 = vst [vmem:[%s2309] ss:$9 sm:$0xff] %v1447
        %v2413 = vld [vmem:[#allocation1] sm:$0xff]
        %2415 = vst [vmem:[#allocation1] ss:$9 sm:$0xff] %v1455
        %2417 = vst [vmem:[%s2291] ss:$9 sm:$0xff] %v1462
        %2419 = vst [vmem:[%s2294] ss:$9 sm:$0xff] %v1470
        %2421 = vst [vmem:[%s2297] ss:$9 sm:$0xff] %v1478
        %2423 = vst [vmem:[%s2300] ss:$9 sm:$0xff] %v1486
        %2425 = vst [vmem:[%s2303] ss:$9 sm:$0xff] %v1493
        %2427 = vst [vmem:[%s2306] ss:$9 sm:$0xff] %v1501
        %2429 = vst [vmem:[%s2309] ss:$9 sm:$0xff] %v1509
        %v2430 = vld [vmem:[#allocation1] sm:$0xff]
        %2432 = vst [vmem:[#allocation1] ss:$9 sm:$0xff] %v1517
        %2434 = vst [vmem:[%s2291] ss:$9 sm:$0xff] %v1525
        %2436 = vst [vmem:[%s2294] ss:$9 sm:$0xff] %v1532
        %2438 = vst [vmem:[%s2297] ss:$9 sm:$0xff] %v1540
        %2440 = vst [vmem:[%s2300] ss:$9 sm:$0xff] %v1548
        %2442 = vst [vmem:[%s2303] ss:$9 sm:$0xff] %v1556
        %2444 = vst [vmem:[%s2306] ss:$9 sm:$0xff] %v1563
        %2446 = vst [vmem:[%s2309] ss:$9 sm:$0xff] %v1571
        %v2447 = vld [vmem:[#allocation1] sm:$0xff]
        %2449 = vst [vmem:[#allocation1] ss:$9 sm:$0xff] %v1579
        %2451 = vst [vmem:[%s2291] ss:$9 sm:$0xff] %v1587
        %2453 = vst [vmem:[%s2294] ss:$9 sm:$0xff] %v1595
        %2455 = vst [vmem:[%s2297] ss:$9 sm:$0xff] %v1602
        %2457 = vst [vmem:[%s2300] ss:$9 sm:$0xff] %v1610
        %2459 = vst [vmem:[%s2303] ss:$9 sm:$0xff] %v1618
        %2461 = vst [vmem:[%s2306] ss:$9 sm:$0xff] %v1626
        %2463 = vst [vmem:[%s2309] ss:$9 sm:$0xff] %v1633
        %v2464 = vld [vmem:[#allocation1] sm:$0xff]
        %2466 = vst [vmem:[#allocation1] ss:$9 sm:$0xff] %v1641
        %2468 = vst [vmem:[%s2291] ss:$9 sm:$0xff] %v1649
        %2470 = vst [vmem:[%s2294] ss:$9 sm:$0xff] %v1657
        %2472 = vst [vmem:[%s2297] ss:$9 sm:$0xff] %v1665
        %2474 = vst [vmem:[%s2300] ss:$9 sm:$0xff] %v1672
        %2476 = vst [vmem:[%s2303] ss:$9 sm:$0xff] %v1680
        %2478 = vst [vmem:[%s2306] ss:$9 sm:$0xff] %v1688
        %2480 = vst [vmem:[%s2309] ss:$9 sm:$0xff] %v1696
        %v2481 = vld [vmem:[#allocation1] sm:$0xff]
        %2483 = vst [vmem:[#allocation1] ss:$9 sm:$0xff] %v1703
        %2485 = vst [vmem:[%s2291] ss:$9 sm:$0xff] %v1711
        %2487 = vst [vmem:[%s2294] ss:$9 sm:$0xff] %v1719
        %2489 = vst [vmem:[%s2297] ss:$9 sm:$0xff] %v1727
        %2491 = vst [vmem:[%s2300] ss:$9 sm:$0xff] %v1735
        %2493 = vst [vmem:[%s2303] ss:$9 sm:$0xff] %v1742
        %2495 = vst [vmem:[%s2306] ss:$9 sm:$0xff] %v1750
        %2497 = vst [vmem:[%s2309] ss:$9 sm:$0xff] %v1758
        %v2498 = vld [vmem:[#allocation1] sm:$0xff]
        %2500 = vst [vmem:[#allocation1] ss:$9 sm:$0xff] %v1766
        %2502 = vst [vmem:[%s2291] ss:$9 sm:$0xff] %v1773
        %2504 = vst [vmem:[%s2294] ss:$9 sm:$0xff] %v1781
        %2506 = vst [vmem:[%s2297] ss:$9 sm:$0xff] %v1789
        %2508 = vst [vmem:[%s2300] ss:$9 sm:$0xff] %v1797
        %2510 = vst [vmem:[%s2303] ss:$9 sm:$0xff] %v1805
        %2512 = vst [vmem:[%s2306] ss:$9 sm:$0xff] %v1812
        %2514 = vst [vmem:[%s2309] ss:$9 sm:$0xff] %v1820
        %v2515 = vld [vmem:[#allocation1] sm:$0xff]
        %2517 = vst [vmem:[#allocation1] ss:$9 sm:$0xff] %v1828
        %2519 = vst [vmem:[%s2291] ss:$9 sm:$0xff] %v1836
        %2521 = vst [vmem:[%s2294] ss:$9 sm:$0xff] %v1843
        %2523 = vst [vmem:[%s2297] ss:$9 sm:$0xff] %v1851
        %2525 = vst [vmem:[%s2300] ss:$9 sm:$0xff] %v1859
        %2527 = vst [vmem:[%s2303] ss:$9 sm:$0xff] %v1867
        %2529 = vst [vmem:[%s2306] ss:$9 sm:$0xff] %v1875
        %2531 = vst [vmem:[%s2309] ss:$9 sm:$0xff] %v1882
        %v2532 = vld [vmem:[#allocation1] sm:$0xff]
        %2534 = vst [vmem:[#allocation1] ss:$9 sm:$0xff] %v1890
        %2536 = vst [vmem:[%s2291] ss:$9 sm:$0xff] %v1898
        %2538 = vst [vmem:[%s2294] ss:$9 sm:$0xff] %v1906
        %2540 = vst [vmem:[%s2297] ss:$9 sm:$0xff] %v1913
        %2542 = vst [vmem:[%s2300] ss:$9 sm:$0xff] %v1921
        %2544 = vst [vmem:[%s2303] ss:$9 sm:$0xff] %v1929
        %2546 = vst [vmem:[%s2306] ss:$9 sm:$0xff] %v1937
        %2548 = vst [vmem:[%s2309] ss:$9 sm:$0xff] %v1945
        %v2549 = vld [vmem:[#allocation1] sm:$0xff]
        %2551 = vst [vmem:[#allocation1] ss:$9 sm:$0xff] %v1952
        %2553 = vst [vmem:[%s2291] ss:$9 sm:$0xff] %v1960
        %2555 = vst [vmem:[%s2294] ss:$9 sm:$0xff] %v1968
        %2557 = vst [vmem:[%s2297] ss:$9 sm:$0xff] %v1976
        %2559 = vst [vmem:[%s2300] ss:$9 sm:$0xff] %v1983
        %2561 = vst [vmem:[%s2303] ss:$9 sm:$0xff] %v1991
        %2563 = vst [vmem:[%s2306] ss:$9 sm:$0xff] %v1999
        %2565 = vst [vmem:[%s2309] ss:$9 sm:$0xff] %v2007
        %v2566 = vld [vmem:[#allocation1] sm:$0xff]
        %2568 = vst [vmem:[#allocation1] ss:$9 sm:$0xff] %v2015
        %2570 = vst [vmem:[%s2291] ss:$9 sm:$0xff] %v2022
        %2572 = vst [vmem:[%s2294] ss:$9 sm:$0xff] %v2030
        %2574 = vst [vmem:[%s2297] ss:$9 sm:$0xff] %v2038
        %2576 = vst [vmem:[%s2300] ss:$9 sm:$0xff] %v2046
        %2578 = vst [vmem:[%s2303] ss:$9 sm:$0xff] %v2053
        %2580 = vst [vmem:[%s2306] ss:$9 sm:$0xff] %v2061
        %2582 = vst [vmem:[%s2309] ss:$9 sm:$0xff] %v2069
        %v2583 = vld [vmem:[#allocation1] sm:$0xff]
        %2585 = vst [vmem:[#allocation1] ss:$9 sm:$0xff] %v2077
        %2587 = vst [vmem:[%s2291] ss:$9 sm:$0xff] %v2085
        %2589 = vst [vmem:[%s2294] ss:$9 sm:$0xff] %v2092
        %2591 = vst [vmem:[%s2297] ss:$9 sm:$0xff] %v2100
        %2593 = vst [vmem:[%s2300] ss:$9 sm:$0xff] %v2108
        %2595 = vst [vmem:[%s2303] ss:$9 sm:$0xff] %v2116
        %2597 = vst [vmem:[%s2306] ss:$9 sm:$0xff] %v2123
        %2599 = vst [vmem:[%s2309] ss:$9 sm:$0xff] %v2131
        %v2600 = vld [vmem:[#allocation1] sm:$0xff]
        %2602 = vst [vmem:[#allocation1] ss:$9 sm:$0xff] %v2139
        %2604 = vst [vmem:[%s2291] ss:$9 sm:$0xff] %v2147
        %2606 = vst [vmem:[%s2294] ss:$9 sm:$0xff] %v2155
        %2608 = vst [vmem:[%s2297] ss:$9 sm:$0xff] %v2162
        %2610 = vst [vmem:[%s2300] ss:$9 sm:$0xff] %v2170
        %2612 = vst [vmem:[%s2303] ss:$9 sm:$0xff] %v2178
        %2614 = vst [vmem:[%s2306] ss:$9 sm:$0xff] %v2186
        %2616 = vst [vmem:[%s2309] ss:$9 sm:$0xff] %v2193
        %v2617 = vld [vmem:[#allocation1] sm:$0xff]
        %2619 = vst [vmem:[#allocation1] ss:$9 sm:$0xff] %v2201
        %2621 = vst [vmem:[%s2291] ss:$9 sm:$0xff] %v2209
        %2623 = vst [vmem:[%s2294] ss:$9 sm:$0xff] %v2217
        %2625 = vst [vmem:[%s2297] ss:$9 sm:$0xff] %v2225
        %2627 = vst [vmem:[%s2300] ss:$9 sm:$0xff] %v2232
        %2629 = vst [vmem:[%s2303] ss:$9 sm:$0xff] %v2240
        %2631 = vst [vmem:[%s2306] ss:$9 sm:$0xff] %v2248
        %2633 = vst [vmem:[%s2309] ss:$9 sm:$0xff] %v2256
        %v2634 = vld [vmem:[#allocation1] sm:$0xff]
        %2636 = vst [vmem:[#allocation1] ss:$9 sm:$0xff] %v2263
        %2638 = vst [vmem:[%s2291] ss:$9 sm:$0xff] %v2271
        %v2639 = vld [vmem:[#allocation1] sm:$0xff]
        %v2677 = vunpack.c.l.b16 %v2272
        %v2678 = vunpack.c.l.b16 %v2273
        %v2679 = vunpack.c.l.b16 %v2274
        %v2680 = vunpack.c.l.b16 %v2275
        %v2681 = vunpack.c.l.b16 %v2276
        %v2682 = vunpack.c.l.b16 %v2277
        %v2683 = vunpack.c.l.b16 %v2278
        %v2684 = vunpack.c.l.b16 %v2279
        %v2685 = vunpack.c.l.b16 %v2280
        %v2686 = vunpack.c.l.b16 %v2281
        %v2687 = vunpack.c.l.b16 %v2282
        %v2688 = vunpack.c.l.b16 %v2283
        %v2689 = vunpack.c.l.b16 %v2284
        %v2690 = vunpack.c.l.b16 %v2285
        %v2691 = vunpack.c.l.b16 %v2286
        %v2692 = vunpack.c.l.b16 %v2287
        %v2693 = vpack.c.b16 %v2678, %v2677
        %v2694 = vpack.c.b16 %v2680, %v2679
        %v2695 = vpack.c.b16 %v2682, %v2681
        %v2696 = vpack.c.b16 %v2684, %v2683
        %v2697 = vpack.c.b16 %v2686, %v2685
        %v2698 = vpack.c.b16 %v2688, %v2687
        %v2699 = vpack.c.b16 %v2690, %v2689
        %v2700 = vpack.c.b16 %v2692, %v2691
        %2709 = vmatpush.bf16.msra.mxu0 %v2700
        %2710 = vmatpush.bf16.msra.mxu0 %v2699
        %2711 = vmatpush.bf16.msra.mxu0 %v2698
        %2712 = vmatpush.bf16.msra.mxu0 %v2697
        %2713 = vmatpush.bf16.msra.mxu0 %v2696
        %2714 = vmatpush.bf16.msra.mxu0 %v2695
        %2715 = vmatpush.bf16.msra.mxu0 %v2694
        %2716 = vmatpush.bf16.msra.mxu0 %v2693
        %2717 = vmatmul.bf16.gmra.mxu0 %v2311
        %v2718 = vpop.f32.mrf.mxu0
        %v2719 = vadd.f32 0.0, %v2718
        %v2720 = vpop.f32.mrf.mxu0
        %v2721 = vadd.f32 0.0, %v2720
        %2722 = vmatmul.bf16.gmra.mxu0 %v2328
        %v2723 = vpop.f32.mrf.mxu0
        %v2724 = vadd.f32 0.0, %v2723
        %v2725 = vpop.f32.mrf.mxu0
        %v2726 = vadd.f32 0.0, %v2725
        %2727 = vmatmul.bf16.gmra.mxu0 %v2345
        %v2728 = vpop.f32.mrf.mxu0
        %v2729 = vadd.f32 0.0, %v2728
        %v2730 = vpop.f32.mrf.mxu0
        %v2731 = vadd.f32 0.0, %v2730
        %2732 = vmatmul.bf16.gmra.mxu0 %v2362
        %v2733 = vpop.f32.mrf.mxu0
        %v2734 = vadd.f32 0.0, %v2733
        %v2735 = vpop.f32.mrf.mxu0
        %v2736 = vadd.f32 0.0, %v2735
        %2737 = vmatmul.bf16.gmra.mxu0 %v2379
        %v2738 = vpop.f32.mrf.mxu0
        %v2739 = vadd.f32 0.0, %v2738
        %v2740 = vpop.f32.mrf.mxu0
        %v2741 = vadd.f32 0.0, %v2740
        %2742 = vmatmul.bf16.gmra.mxu0 %v2396
        %v2743 = vpop.f32.mrf.mxu0
        %v2744 = vadd.f32 0.0, %v2743
        %v2745 = vpop.f32.mrf.mxu0
        %v2746 = vadd.f32 0.0, %v2745
        %2747 = vmatmul.bf16.gmra.mxu0 %v2413
        %v2748 = vpop.f32.mrf.mxu0
        %v2749 = vadd.f32 0.0, %v2748
        %v2750 = vpop.f32.mrf.mxu0
        %v2751 = vadd.f32 0.0, %v2750
        %2752 = vmatmul.bf16.gmra.mxu0 %v2430
        %v2753 = vpop.f32.mrf.mxu0
        %v2754 = vadd.f32 0.0, %v2753
        %v2755 = vpop.f32.mrf.mxu0
        %v2756 = vadd.f32 0.0, %v2755
        %2757 = vmatmul.bf16.gmra.mxu0 %v2447
        %v2758 = vpop.f32.mrf.mxu0
        %v2759 = vadd.f32 0.0, %v2758
        %v2760 = vpop.f32.mrf.mxu0
        %v2761 = vadd.f32 0.0, %v2760
        %2762 = vmatmul.bf16.gmra.mxu0 %v2464
        %v2763 = vpop.f32.mrf.mxu0
        %v2764 = vadd.f32 0.0, %v2763
        %v2765 = vpop.f32.mrf.mxu0
        %v2766 = vadd.f32 0.0, %v2765
        %2767 = vmatmul.bf16.gmra.mxu0 %v2481
        %v2768 = vpop.f32.mrf.mxu0
        %v2769 = vadd.f32 0.0, %v2768
        %v2770 = vpop.f32.mrf.mxu0
        %v2771 = vadd.f32 0.0, %v2770
        %2772 = vmatmul.bf16.gmra.mxu0 %v2498
        %v2773 = vpop.f32.mrf.mxu0
        %v2774 = vadd.f32 0.0, %v2773
        %v2775 = vpop.f32.mrf.mxu0
        %v2776 = vadd.f32 0.0, %v2775
        %2777 = vmatmul.bf16.gmra.mxu0 %v2515
        %v2778 = vpop.f32.mrf.mxu0
        %v2779 = vadd.f32 0.0, %v2778
        %v2780 = vpop.f32.mrf.mxu0
        %v2781 = vadd.f32 0.0, %v2780
        %2782 = vmatmul.bf16.gmra.mxu0 %v2532
        %v2783 = vpop.f32.mrf.mxu0
        %v2784 = vadd.f32 0.0, %v2783
        %v2785 = vpop.f32.mrf.mxu0
        %v2786 = vadd.f32 0.0, %v2785
        %2787 = vmatmul.bf16.gmra.mxu0 %v2549
        %v2788 = vpop.f32.mrf.mxu0
        %v2789 = vadd.f32 0.0, %v2788
        %v2790 = vpop.f32.mrf.mxu0
        %v2791 = vadd.f32 0.0, %v2790
        %2792 = vmatmul.bf16.gmra.mxu0 %v2566
        %v2793 = vpop.f32.mrf.mxu0
        %v2794 = vadd.f32 0.0, %v2793
        %v2795 = vpop.f32.mrf.mxu0
        %v2796 = vadd.f32 0.0, %v2795
        %2797 = vmatmul.bf16.gmra.mxu0 %v2583
        %v2798 = vpop.f32.mrf.mxu0
        %v2799 = vadd.f32 0.0, %v2798
        %v2800 = vpop.f32.mrf.mxu0
        %v2801 = vadd.f32 0.0, %v2800
        %2802 = vmatmul.bf16.gmra.mxu0 %v2600
        %v2803 = vpop.f32.mrf.mxu0
        %v2804 = vadd.f32 0.0, %v2803
        %v2805 = vpop.f32.mrf.mxu0
        %v2806 = vadd.f32 0.0, %v2805
        %2807 = vmatmul.bf16.gmra.mxu0 %v2617
        %v2808 = vpop.f32.mrf.mxu0
        %v2809 = vadd.f32 0.0, %v2808
        %v2810 = vpop.f32.mrf.mxu0
        %v2811 = vadd.f32 0.0, %v2810
        %2812 = vmatmul.bf16.gmra.mxu0 %v2634
        %v2813 = vpop.f32.mrf.mxu0
        %v2814 = vadd.f32 0.0, %v2813
        %v2815 = vpop.f32.mrf.mxu0
        %v2816 = vadd.f32 0.0, %v2815
        %2817 = vmatmul.bf16.gmra.mxu0 %v2639
        %v2818 = vpop.f32.mrf.mxu0
        %v2819 = vadd.f32 0.0, %v2818
        %v2820 = vpop.f32.mrf.mxu0
        %2821 = vdwg.mxu0
        %2822 = vst [vmem:[#allocation1] ss:$9 sm:$0xff] %v440
        %s2823 = scalar_lea.vmem [#allocation1], 1
        %2824 = vst [vmem:[%s2823] ss:$9 sm:$0xff] %v444
        %s2825 = scalar_lea.vmem [#allocation1], 2
        %2826 = vst [vmem:[%s2825] ss:$9 sm:$0xff] %v448
        %s2827 = scalar_lea.vmem [#allocation1], 3
        %2828 = vst [vmem:[%s2827] ss:$9 sm:$0xff] %v452
        %s2829 = scalar_lea.vmem [#allocation1], 4
        %2830 = vst [vmem:[%s2829] ss:$9 sm:$0xff] %v455
        %s2831 = scalar_lea.vmem [#allocation1], 5
        %2832 = vst [vmem:[%s2831] ss:$9 sm:$0xff] %v458
        %s2833 = scalar_lea.vmem [#allocation1], 6
        %2834 = vst [vmem:[%s2833] ss:$9 sm:$0xff] %v461
        %s2835 = scalar_lea.vmem [#allocation1], 7
        %2836 = vst [vmem:[%s2835] ss:$9 sm:$0xff] %v464
        %v2837 = vld [vmem:[#allocation1] sm:$0xff]
        %2838 = vst [vmem:[#allocation1] ss:$9 sm:$0xff] %v467
        %2839 = vst [vmem:[%s2823] ss:$9 sm:$0xff] %v470
        %2840 = vst [vmem:[%s2825] ss:$9 sm:$0xff] %v473
        %2841 = vst [vmem:[%s2827] ss:$9 sm:$0xff] %v476
        %2842 = vst [vmem:[%s2829] ss:$9 sm:$0xff] %v479
        %2843 = vst [vmem:[%s2831] ss:$9 sm:$0xff] %v482
        %2844 = vst [vmem:[%s2833] ss:$9 sm:$0xff] %v485
        %2845 = vst [vmem:[%s2835] ss:$9 sm:$0xff] %v488
        %v2846 = vld [vmem:[#allocation1] sm:$0xff]
        %2847 = vst [vmem:[#allocation1] ss:$9 sm:$0xff] %v491
        %2848 = vst [vmem:[%s2823] ss:$9 sm:$0xff] %v494
        %2849 = vst [vmem:[%s2825] ss:$9 sm:$0xff] %v497
        %2850 = vst [vmem:[%s2827] ss:$9 sm:$0xff] %v500
        %2851 = vst [vmem:[%s2829] ss:$9 sm:$0xff] %v503
        %2852 = vst [vmem:[%s2831] ss:$9 sm:$0xff] %v506
        %2853 = vst [vmem:[%s2833] ss:$9 sm:$0xff] %v509
        %2854 = vst [vmem:[%s2835] ss:$9 sm:$0xff] %v512
        %v2855 = vld [vmem:[#allocation1] sm:$0xff]
        %2856 = vst [vmem:[#allocation1] ss:$9 sm:$0xff] %v515
        %2857 = vst [vmem:[%s2823] ss:$9 sm:$0xff] %v518
        %2858 = vst [vmem:[%s2825] ss:$9 sm:$0xff] %v521
        %2859 = vst [vmem:[%s2827] ss:$9 sm:$0xff] %v524
        %2860 = vst [vmem:[%s2829] ss:$9 sm:$0xff] %v527
        %2861 = vst [vmem:[%s2831] ss:$9 sm:$0xff] %v530
        %2862 = vst [vmem:[%s2833] ss:$9 sm:$0xff] %v533
        %2863 = vst [vmem:[%s2835] ss:$9 sm:$0xff] %v536
        %v2864 = vld [vmem:[#allocation1] sm:$0xff]
        %2865 = vst [vmem:[#allocation1] ss:$9 sm:$0xff] %v539
        %2866 = vst [vmem:[%s2823] ss:$9 sm:$0xff] %v542
        %2867 = vst [vmem:[%s2825] ss:$9 sm:$0xff] %v545
        %2868 = vst [vmem:[%s2827] ss:$9 sm:$0xff] %v548
        %2869 = vst [vmem:[%s2829] ss:$9 sm:$0xff] %v551
        %2870 = vst [vmem:[%s2831] ss:$9 sm:$0xff] %v554
        %2871 = vst [vmem:[%s2833] ss:$9 sm:$0xff] %v557
        %2872 = vst [vmem:[%s2835] ss:$9 sm:$0xff] %v560
        %v2873 = vld [vmem:[#allocation1] sm:$0xff]
        %2874 = vst [vmem:[#allocation1] ss:$9 sm:$0xff] %v563
        %2875 = vst [vmem:[%s2823] ss:$9 sm:$0xff] %v566
        %2876 = vst [vmem:[%s2825] ss:$9 sm:$0xff] %v569
        %2877 = vst [vmem:[%s2827] ss:$9 sm:$0xff] %v572
        %2878 = vst [vmem:[%s2829] ss:$9 sm:$0xff] %v575
        %2879 = vst [vmem:[%s2831] ss:$9 sm:$0xff] %v578
        %2880 = vst [vmem:[%s2833] ss:$9 sm:$0xff] %v581
        %2881 = vst [vmem:[%s2835] ss:$9 sm:$0xff] %v584
        %v2882 = vld [vmem:[#allocation1] sm:$0xff]
        %2883 = vst [vmem:[#allocation1] ss:$9 sm:$0xff] %v587
        %2884 = vst [vmem:[%s2823] ss:$9 sm:$0xff] %v590
        %2885 = vst [vmem:[%s2825] ss:$9 sm:$0xff] %v593
        %2886 = vst [vmem:[%s2827] ss:$9 sm:$0xff] %v596
        %2887 = vst [vmem:[%s2829] ss:$9 sm:$0xff] %v599
        %2888 = vst [vmem:[%s2831] ss:$9 sm:$0xff] %v602
        %2889 = vst [vmem:[%s2833] ss:$9 sm:$0xff] %v605
        %2890 = vst [vmem:[%s2835] ss:$9 sm:$0xff] %v608
        %v2891 = vld [vmem:[#allocation1] sm:$0xff]
        %2892 = vst [vmem:[#allocation1] ss:$9 sm:$0xff] %v611
        %2893 = vst [vmem:[%s2823] ss:$9 sm:$0xff] %v614
        %2894 = vst [vmem:[%s2825] ss:$9 sm:$0xff] %v617
        %2895 = vst [vmem:[%s2827] ss:$9 sm:$0xff] %v620
        %2896 = vst [vmem:[%s2829] ss:$9 sm:$0xff] %v623
        %2897 = vst [vmem:[%s2831] ss:$9 sm:$0xff] %v626
        %2898 = vst [vmem:[%s2833] ss:$9 sm:$0xff] %v629
        %2899 = vst [vmem:[%s2835] ss:$9 sm:$0xff] %v632
        %v2900 = vld [vmem:[#allocation1] sm:$0xff]
        %2901 = vst [vmem:[#allocation1] ss:$9 sm:$0xff] %v635
        %2902 = vst [vmem:[%s2823] ss:$9 sm:$0xff] %v638
        %2903 = vst [vmem:[%s2825] ss:$9 sm:$0xff] %v641
        %2904 = vst [vmem:[%s2827] ss:$9 sm:$0xff] %v644
        %2905 = vst [vmem:[%s2829] ss:$9 sm:$0xff] %v647
        %2906 = vst [vmem:[%s2831] ss:$9 sm:$0xff] %v650
        %2907 = vst [vmem:[%s2833] ss:$9 sm:$0xff] %v653
        %2908 = vst [vmem:[%s2835] ss:$9 sm:$0xff] %v656
        %v2909 = vld [vmem:[#allocation1] sm:$0xff]
        %2910 = vst [vmem:[#allocation1] ss:$9 sm:$0xff] %v659
        %2911 = vst [vmem:[%s2823] ss:$9 sm:$0xff] %v662
        %2912 = vst [vmem:[%s2825] ss:$9 sm:$0xff] %v665
        %2913 = vst [vmem:[%s2827] ss:$9 sm:$0xff] %v668
        %2914 = vst [vmem:[%s2829] ss:$9 sm:$0xff] %v671
        %2915 = vst [vmem:[%s2831] ss:$9 sm:$0xff] %v674
        %2916 = vst [vmem:[%s2833] ss:$9 sm:$0xff] %v677
        %2917 = vst [vmem:[%s2835] ss:$9 sm:$0xff] %v680
        %v2918 = vld [vmem:[#allocation1] sm:$0xff]
        %2919 = vst [vmem:[#allocation1] ss:$9 sm:$0xff] %v683
        %2920 = vst [vmem:[%s2823] ss:$9 sm:$0xff] %v686
        %2921 = vst [vmem:[%s2825] ss:$9 sm:$0xff] %v689
        %2922 = vst [vmem:[%s2827] ss:$9 sm:$0xff] %v692
        %2923 = vst [vmem:[%s2829] ss:$9 sm:$0xff] %v695
        %2924 = vst [vmem:[%s2831] ss:$9 sm:$0xff] %v698
        %2925 = vst [vmem:[%s2833] ss:$9 sm:$0xff] %v701
        %2926 = vst [vmem:[%s2835] ss:$9 sm:$0xff] %v704
        %v2927 = vld [vmem:[#allocation1] sm:$0xff]
        %2928 = vst [vmem:[#allocation1] ss:$9 sm:$0xff] %v707
        %2929 = vst [vmem:[%s2823] ss:$9 sm:$0xff] %v710
        %2930 = vst [vmem:[%s2825] ss:$9 sm:$0xff] %v713
        %2931 = vst [vmem:[%s2827] ss:$9 sm:$0xff] %v716
        %2932 = vst [vmem:[%s2829] ss:$9 sm:$0xff] %v719
        %2933 = vst [vmem:[%s2831] ss:$9 sm:$0xff] %v722
        %2934 = vst [vmem:[%s2833] ss:$9 sm:$0xff] %v725
        %2935 = vst [vmem:[%s2835] ss:$9 sm:$0xff] %v728
        %v2936 = vld [vmem:[#allocation1] sm:$0xff]
        %2937 = vst [vmem:[#allocation1] ss:$9 sm:$0xff] %v731
        %2938 = vst [vmem:[%s2823] ss:$9 sm:$0xff] %v734
        %2939 = vst [vmem:[%s2825] ss:$9 sm:$0xff] %v737
        %2940 = vst [vmem:[%s2827] ss:$9 sm:$0xff] %v740
        %2941 = vst [vmem:[%s2829] ss:$9 sm:$0xff] %v743
        %2942 = vst [vmem:[%s2831] ss:$9 sm:$0xff] %v746
        %2943 = vst [vmem:[%s2833] ss:$9 sm:$0xff] %v749
        %2944 = vst [vmem:[%s2835] ss:$9 sm:$0xff] %v752
        %v2945 = vld [vmem:[#allocation1] sm:$0xff]
        %2946 = vst [vmem:[#allocation1] ss:$9 sm:$0xff] %v755
        %2947 = vst [vmem:[%s2823] ss:$9 sm:$0xff] %v758
        %2948 = vst [vmem:[%s2825] ss:$9 sm:$0xff] %v761
        %2949 = vst [vmem:[%s2827] ss:$9 sm:$0xff] %v764
        %2950 = vst [vmem:[%s2829] ss:$9 sm:$0xff] %v767
        %2951 = vst [vmem:[%s2831] ss:$9 sm:$0xff] %v770
        %2952 = vst [vmem:[%s2833] ss:$9 sm:$0xff] %v773
        %2953 = vst [vmem:[%s2835] ss:$9 sm:$0xff] %v776
        %v2954 = vld [vmem:[#allocation1] sm:$0xff]
        %2955 = vst [vmem:[#allocation1] ss:$9 sm:$0xff] %v779
        %2956 = vst [vmem:[%s2823] ss:$9 sm:$0xff] %v782
        %2957 = vst [vmem:[%s2825] ss:$9 sm:$0xff] %v785
        %2958 = vst [vmem:[%s2827] ss:$9 sm:$0xff] %v788
        %2959 = vst [vmem:[%s2829] ss:$9 sm:$0xff] %v791
        %2960 = vst [vmem:[%s2831] ss:$9 sm:$0xff] %v794
        %2961 = vst [vmem:[%s2833] ss:$9 sm:$0xff] %v797
        %2962 = vst [vmem:[%s2835] ss:$9 sm:$0xff] %v800
        %v2963 = vld [vmem:[#allocation1] sm:$0xff]
        %2964 = vst [vmem:[#allocation1] ss:$9 sm:$0xff] %v803
        %2965 = vst [vmem:[%s2823] ss:$9 sm:$0xff] %v806
        %2966 = vst [vmem:[%s2825] ss:$9 sm:$0xff] %v809
        %2967 = vst [vmem:[%s2827] ss:$9 sm:$0xff] %v812
        %2968 = vst [vmem:[%s2829] ss:$9 sm:$0xff] %v815
        %2969 = vst [vmem:[%s2831] ss:$9 sm:$0xff] %v818
        %2970 = vst [vmem:[%s2833] ss:$9 sm:$0xff] %v821
        %2971 = vst [vmem:[%s2835] ss:$9 sm:$0xff] %v824
        %v2972 = vld [vmem:[#allocation1] sm:$0xff]
        %2973 = vst [vmem:[#allocation1] ss:$9 sm:$0xff] %v827
        %2974 = vst [vmem:[%s2823] ss:$9 sm:$0xff] %v830
        %2975 = vst [vmem:[%s2825] ss:$9 sm:$0xff] %v833
        %2976 = vst [vmem:[%s2827] ss:$9 sm:$0xff] %v836
        %2977 = vst [vmem:[%s2829] ss:$9 sm:$0xff] %v839
        %2978 = vst [vmem:[%s2831] ss:$9 sm:$0xff] %v842
        %2979 = vst [vmem:[%s2833] ss:$9 sm:$0xff] %v845
        %2980 = vst [vmem:[%s2835] ss:$9 sm:$0xff] %v848
        %v2981 = vld [vmem:[#allocation1] sm:$0xff]
        %2982 = vst [vmem:[#allocation1] ss:$9 sm:$0xff] %v851
        %2983 = vst [vmem:[%s2823] ss:$9 sm:$0xff] %v854
        %2984 = vst [vmem:[%s2825] ss:$9 sm:$0xff] %v857
        %2985 = vst [vmem:[%s2827] ss:$9 sm:$0xff] %v860
        %2986 = vst [vmem:[%s2829] ss:$9 sm:$0xff] %v863
        %2987 = vst [vmem:[%s2831] ss:$9 sm:$0xff] %v866
        %2988 = vst [vmem:[%s2833] ss:$9 sm:$0xff] %v869
        %2989 = vst [vmem:[%s2835] ss:$9 sm:$0xff] %v872
        %v2990 = vld [vmem:[#allocation1] sm:$0xff]
        %2991 = vst [vmem:[#allocation1] ss:$9 sm:$0xff] %v875
        %2992 = vst [vmem:[%s2823] ss:$9 sm:$0xff] %v878
        %2993 = vst [vmem:[%s2825] ss:$9 sm:$0xff] %v881
        %2994 = vst [vmem:[%s2827] ss:$9 sm:$0xff] %v884
        %2995 = vst [vmem:[%s2829] ss:$9 sm:$0xff] %v887
        %2996 = vst [vmem:[%s2831] ss:$9 sm:$0xff] %v890
        %2997 = vst [vmem:[%s2833] ss:$9 sm:$0xff] %v893
        %2998 = vst [vmem:[%s2835] ss:$9 sm:$0xff] %v896
        %v2999 = vld [vmem:[#allocation1] sm:$0xff]
        %3000 = vst [vmem:[#allocation1] ss:$9 sm:$0xff] %v899
        %3001 = vst [vmem:[%s2823] ss:$9 sm:$0xff] %v902
        %3002 = vst [vmem:[%s2825] ss:$9 sm:$0xff] %v905
        %3003 = vst [vmem:[%s2827] ss:$9 sm:$0xff] %v908
        %3004 = vst [vmem:[%s2829] ss:$9 sm:$0xff] %v911
        %3005 = vst [vmem:[%s2831] ss:$9 sm:$0xff] %v914
        %3006 = vst [vmem:[%s2833] ss:$9 sm:$0xff] %v917
        %3007 = vst [vmem:[%s2835] ss:$9 sm:$0xff] %v920
        %v3008 = vld [vmem:[#allocation1] sm:$0xff]
        %3009 = vst [vmem:[#allocation1] ss:$9 sm:$0xff] %v923
        %3010 = vst [vmem:[%s2823] ss:$9 sm:$0xff] %v926
        %v3011 = vld [vmem:[#allocation1] sm:$0xff]
        %v3049 = vunpack.c.l.b16 %v927
        %v3050 = vunpack.c.l.b16 %v928
        %v3051 = vunpack.c.l.b16 %v929
        %v3052 = vunpack.c.l.b16 %v930
        %v3053 = vunpack.c.l.b16 %v931
        %v3054 = vunpack.c.l.b16 %v932
        %v3055 = vunpack.c.l.b16 %v933
        %v3056 = vunpack.c.l.b16 %v934
        %v3057 = vunpack.c.l.b16 %v935
        %v3058 = vunpack.c.l.b16 %v936
        %v3059 = vunpack.c.l.b16 %v937
        %v3060 = vunpack.c.l.b16 %v938
        %v3061 = vunpack.c.l.b16 %v939
        %v3062 = vunpack.c.l.b16 %v940
        %v3063 = vunpack.c.l.b16 %v941
        %v3064 = vunpack.c.l.b16 %v942
        %v3065 = vpack.c.b16 %v3050, %v3049
        %v3066 = vpack.c.b16 %v3052, %v3051
        %v3067 = vpack.c.b16 %v3054, %v3053
        %v3068 = vpack.c.b16 %v3056, %v3055
        %v3069 = vpack.c.b16 %v3058, %v3057
        %v3070 = vpack.c.b16 %v3060, %v3059
        %v3071 = vpack.c.b16 %v3062, %v3061
        %v3072 = vpack.c.b16 %v3064, %v3063
        %3081 = vmatpush.bf16.msra.mxu0 %v3072
        %3082 = vmatpush.bf16.msra.mxu0 %v3071
        %3083 = vmatpush.bf16.msra.mxu0 %v3070
        %3084 = vmatpush.bf16.msra.mxu0 %v3069
        %3085 = vmatpush.bf16.msra.mxu0 %v3068
        %3086 = vmatpush.bf16.msra.mxu0 %v3067
        %3087 = vmatpush.bf16.msra.mxu0 %v3066
        %3088 = vmatpush.bf16.msra.mxu0 %v3065
        %3089 = vmatmul.bf16.gmra.mxu0 %v2837
        %v3090 = vpop.f32.mrf.mxu0
        %v3091 = vadd.f32 %v2719, %v3090
        %v3092 = vpop.f32.mrf.mxu0
        %v3093 = vadd.f32 %v2721, %v3092
        %3094 = vmatmul.bf16.gmra.mxu0 %v2846
        %v3095 = vpop.f32.mrf.mxu0
        %v3096 = vadd.f32 %v2724, %v3095
        %v3097 = vpop.f32.mrf.mxu0
        %v3098 = vadd.f32 %v2726, %v3097
        %3099 = vmatmul.bf16.gmra.mxu0 %v2855
        %v3100 = vpop.f32.mrf.mxu0
        %v3101 = vadd.f32 %v2729, %v3100
        %v3102 = vpop.f32.mrf.mxu0
        %v3103 = vadd.f32 %v2731, %v3102
        %3104 = vmatmul.bf16.gmra.mxu0 %v2864
        %v3105 = vpop.f32.mrf.mxu0
        %v3106 = vadd.f32 %v2734, %v3105
        %v3107 = vpop.f32.mrf.mxu0
        %v3108 = vadd.f32 %v2736, %v3107
        %3109 = vmatmul.bf16.gmra.mxu0 %v2873
        %v3110 = vpop.f32.mrf.mxu0
        %v3111 = vadd.f32 %v2739, %v3110
        %v3112 = vpop.f32.mrf.mxu0
        %v3113 = vadd.f32 %v2741, %v3112
        %3114 = vmatmul.bf16.gmra.mxu0 %v2882
        %v3115 = vpop.f32.mrf.mxu0
        %v3116 = vadd.f32 %v2744, %v3115
        %v3117 = vpop.f32.mrf.mxu0
        %v3118 = vadd.f32 %v2746, %v3117
        %3119 = vmatmul.bf16.gmra.mxu0 %v2891
        %v3120 = vpop.f32.mrf.mxu0
        %v3121 = vadd.f32 %v2749, %v3120
        %v3122 = vpop.f32.mrf.mxu0
        %v3123 = vadd.f32 %v2751, %v3122
        %3124 = vmatmul.bf16.gmra.mxu0 %v2900
        %v3125 = vpop.f32.mrf.mxu0
        %v3126 = vadd.f32 %v2754, %v3125
        %v3127 = vpop.f32.mrf.mxu0
        %v3128 = vadd.f32 %v2756, %v3127
        %3129 = vmatmul.bf16.gmra.mxu0 %v2909
        %v3130 = vpop.f32.mrf.mxu0
        %v3131 = vadd.f32 %v2759, %v3130
        %v3132 = vpop.f32.mrf.mxu0
        %v3133 = vadd.f32 %v2761, %v3132
        %3134 = vmatmul.bf16.gmra.mxu0 %v2918
        %v3135 = vpop.f32.mrf.mxu0
        %v3136 = vadd.f32 %v2764, %v3135
        %v3137 = vpop.f32.mrf.mxu0
        %v3138 = vadd.f32 %v2766, %v3137
        %3139 = vmatmul.bf16.gmra.mxu0 %v2927
        %v3140 = vpop.f32.mrf.mxu0
        %v3141 = vadd.f32 %v2769, %v3140
        %v3142 = vpop.f32.mrf.mxu0
        %v3143 = vadd.f32 %v2771, %v3142
        %3144 = vmatmul.bf16.gmra.mxu0 %v2936
        %v3145 = vpop.f32.mrf.mxu0
        %v3146 = vadd.f32 %v2774, %v3145
        %v3147 = vpop.f32.mrf.mxu0
        %v3148 = vadd.f32 %v2776, %v3147
        %3149 = vmatmul.bf16.gmra.mxu0 %v2945
        %v3150 = vpop.f32.mrf.mxu0
        %v3151 = vadd.f32 %v2779, %v3150
        %v3152 = vpop.f32.mrf.mxu0
        %v3153 = vadd.f32 %v2781, %v3152
        %3154 = vmatmul.bf16.gmra.mxu0 %v2954
        %v3155 = vpop.f32.mrf.mxu0
        %v3156 = vadd.f32 %v2784, %v3155
        %v3157 = vpop.f32.mrf.mxu0
        %v3158 = vadd.f32 %v2786, %v3157
        %3159 = vmatmul.bf16.gmra.mxu0 %v2963
        %v3160 = vpop.f32.mrf.mxu0
        %v3161 = vadd.f32 %v2789, %v3160
        %v3162 = vpop.f32.mrf.mxu0
        %v3163 = vadd.f32 %v2791, %v3162
        %3164 = vmatmul.bf16.gmra.mxu0 %v2972
        %v3165 = vpop.f32.mrf.mxu0
        %v3166 = vadd.f32 %v2794, %v3165
        %v3167 = vpop.f32.mrf.mxu0
        %v3168 = vadd.f32 %v2796, %v3167
        %3169 = vmatmul.bf16.gmra.mxu0 %v2981
        %v3170 = vpop.f32.mrf.mxu0
        %v3171 = vadd.f32 %v2799, %v3170
        %v3172 = vpop.f32.mrf.mxu0
        %v3173 = vadd.f32 %v2801, %v3172
        %3174 = vmatmul.bf16.gmra.mxu0 %v2990
        %v3175 = vpop.f32.mrf.mxu0
        %v3176 = vadd.f32 %v2804, %v3175
        %v3177 = vpop.f32.mrf.mxu0
        %v3178 = vadd.f32 %v2806, %v3177
        %3179 = vmatmul.bf16.gmra.mxu0 %v2999
        %v3180 = vpop.f32.mrf.mxu0
        %v3181 = vadd.f32 %v2809, %v3180
        %v3182 = vpop.f32.mrf.mxu0
        %v3183 = vadd.f32 %v2811, %v3182
        %3184 = vmatmul.bf16.gmra.mxu0 %v3008
        %v3185 = vpop.f32.mrf.mxu0
        %v3186 = vadd.f32 %v2814, %v3185
        %v3187 = vpop.f32.mrf.mxu0
        %v3188 = vadd.f32 %v2816, %v3187
        %3189 = vmatmul.bf16.gmra.mxu0 %v3011
        %v3190 = vpop.f32.mrf.mxu0
        %v3191 = vadd.f32 %v2819, %v3190
        %v3192 = vpop.f32.mrf.mxu0
        %3193 = vdwg.mxu0
        %3194 = vst [vmem:[#allocation1] sm:$0xff] %v269
        %3195 = vst [vmem:[#allocation1 + $0x20] sm:$0xff] %v270
        %s3196 = scalar_lea.vmem [#allocation1], 1
        %v3197 = vld [vmem:[%s3196] ss:$4 sm:$0xff]
        %s3198 = scalar_lea.vmem [#allocation1], 2
        %v3199 = vld [vmem:[%s3198] ss:$4 sm:$0xff]
        %s3200 = scalar_lea.vmem [#allocation1], 3
        %v3201 = vld [vmem:[%s3200] ss:$4 sm:$0xff]
        %s3202 = scalar_lea.vmem [#allocation1], 32
        %v3203 = vld [vmem:[%s3202] ss:$4 sm:$0xff]
        %s3204 = scalar_lea.vmem [#allocation1], 33
        %v3205 = vld [vmem:[%s3204] ss:$4 sm:$0xff]
        %s3206 = scalar_lea.vmem [#allocation1], 34
        %v3207 = vld [vmem:[%s3206] ss:$4 sm:$0xff]
        %s3208 = scalar_lea.vmem [#allocation1], 35
        %v3209 = vld [vmem:[%s3208] ss:$4 sm:$0xff]
        %3210 = vst [vmem:[#allocation1] sm:$0xff] %v271
        %v3211 = vld [vmem:[#allocation1] ss:$4 sm:$0xff]
        %v3212 = vld [vmem:[%s3196] ss:$4 sm:$0xff]
        %3213 = vst [vmem:[#allocation1 + $0x20] sm:$0xff] %v272
        %v3214 = vld [vmem:[%s3204] ss:$4 sm:$0xff]
        %v3215 = vld [vmem:[%s3206] ss:$4 sm:$0xff]
        %v3216 = vld [vmem:[%s3208] ss:$4 sm:$0xff]
        %3217 = vst [vmem:[#allocation1] sm:$0xff] %v273
        %3218 = vst [vmem:[#allocation1 + $0x20] sm:$0xff] %v274
        %v3219 = vld [vmem:[#allocation1] ss:$4 sm:$0xff]
        %v3220 = vld [vmem:[%s3196] ss:$4 sm:$0xff]
        %v3221 = vld [vmem:[%s3198] ss:$4 sm:$0xff]
        %v3222 = vld [vmem:[%s3200] ss:$4 sm:$0xff]
        %v3223 = vld [vmem:[%s3202] ss:$4 sm:$0xff]
        %v3224 = vld [vmem:[%s3204] ss:$4 sm:$0xff]
        %3225 = vst [vmem:[#allocation1] sm:$0xff] %v275
        %3226 = vst [vmem:[#allocation1 + $0x20] sm:$0xff] %v276
        %v3227 = vld [vmem:[%s3196] ss:$4 sm:$0xff]
        %v3228 = vld [vmem:[%s3198] ss:$4 sm:$0xff]
        %v3229 = vld [vmem:[%s3200] ss:$4 sm:$0xff]
        %v3230 = vld [vmem:[%s3202] ss:$4 sm:$0xff]
        %v3231 = vld [vmem:[%s3204] ss:$4 sm:$0xff]
        %v3232 = vld [vmem:[%s3206] ss:$4 sm:$0xff]
        %v3233 = vld [vmem:[%s3208] ss:$4 sm:$0xff]
        %3234 = vst [vmem:[#allocation1] sm:$0xff] %v277
        %v3235 = vld [vmem:[#allocation1] ss:$4 sm:$0xff]
        %v3236 = vld [vmem:[%s3196] ss:$4 sm:$0xff]
        %3237 = vst [vmem:[#allocation1 + $0x20] sm:$0xff] %v278
        %v3238 = vld [vmem:[%s3204] ss:$4 sm:$0xff]
        %v3239 = vld [vmem:[%s3206] ss:$4 sm:$0xff]
        %v3240 = vld [vmem:[%s3208] ss:$4 sm:$0xff]
        %3241 = vst [vmem:[#allocation1] sm:$0xff] %v279
        %3242 = vst [vmem:[#allocation1 + $0x20] sm:$0xff] %v280
        %v3243 = vld [vmem:[#allocation1] ss:$4 sm:$0xff]
        %v3244 = vld [vmem:[%s3196] ss:$4 sm:$0xff]
        %v3245 = vld [vmem:[%s3198] ss:$4 sm:$0xff]
        %v3246 = vld [vmem:[%s3200] ss:$4 sm:$0xff]
        %v3247 = vld [vmem:[%s3202] ss:$4 sm:$0xff]
        %v3248 = vld [vmem:[%s3204] ss:$4 sm:$0xff]
        %3249 = vst [vmem:[#allocation1] sm:$0xff] %v281
        %3250 = vst [vmem:[#allocation1 + $0x20] sm:$0xff] %v282
        %v3251 = vld [vmem:[%s3196] ss:$4 sm:$0xff]
        %v3252 = vld [vmem:[%s3198] ss:$4 sm:$0xff]
        %v3253 = vld [vmem:[%s3200] ss:$4 sm:$0xff]
        %v3254 = vld [vmem:[%s3202] ss:$4 sm:$0xff]
        %v3255 = vld [vmem:[%s3204] ss:$4 sm:$0xff]
        %v3256 = vld [vmem:[%s3206] ss:$4 sm:$0xff]
        %v3257 = vld [vmem:[%s3208] ss:$4 sm:$0xff]
        %3258 = vst [vmem:[#allocation1] sm:$0xff] %v283
        %v3259 = vld [vmem:[#allocation1] ss:$4 sm:$0xff]
        %v3260 = vld [vmem:[%s3196] ss:$4 sm:$0xff]
        %3261 = vst [vmem:[#allocation1 + $0x20] sm:$0xff] %v284
        %v3262 = vld [vmem:[%s3204] ss:$4 sm:$0xff]
        %v3263 = vld [vmem:[%s3206] ss:$4 sm:$0xff]
        %v3264 = vld [vmem:[%s3208] ss:$4 sm:$0xff]
        %3265 = vst [vmem:[#allocation1] sm:$0xff] %v285
        %3266 = vst [vmem:[#allocation1 + $0x20] sm:$0xff] %v286
        %v3267 = vld [vmem:[#allocation1] ss:$4 sm:$0xff]
        %v3268 = vld [vmem:[%s3196] ss:$4 sm:$0xff]
        %v3269 = vld [vmem:[%s3198] ss:$4 sm:$0xff]
        %v3270 = vld [vmem:[%s3200] ss:$4 sm:$0xff]
        %v3271 = vld [vmem:[%s3202] ss:$4 sm:$0xff]
        %v3272 = vld [vmem:[%s3204] ss:$4 sm:$0xff]
        %3273 = vst [vmem:[#allocation1] sm:$0xff] %v287
        %3274 = vst [vmem:[#allocation1 + $0x20] sm:$0xff] %v288
        %v3275 = vld [vmem:[%s3196] ss:$4 sm:$0xff]
        %v3276 = vld [vmem:[%s3198] ss:$4 sm:$0xff]
        %v3277 = vld [vmem:[%s3200] ss:$4 sm:$0xff]
        %v3278 = vld [vmem:[%s3202] ss:$4 sm:$0xff]
        %v3279 = vld [vmem:[%s3204] ss:$4 sm:$0xff]
        %v3280 = vld [vmem:[%s3206] ss:$4 sm:$0xff]
        %v3281 = vld [vmem:[%s3208] ss:$4 sm:$0xff]
        %3282 = vst [vmem:[#allocation1] sm:$0xff] %v289
        %v3283 = vld [vmem:[#allocation1] ss:$4 sm:$0xff]
        %v3284 = vld [vmem:[%s3196] ss:$4 sm:$0xff]
        %3285 = vst [vmem:[#allocation1 + $0x20] sm:$0xff] %v290
        %v3286 = vld [vmem:[%s3204] ss:$4 sm:$0xff]
        %v3287 = vld [vmem:[%s3206] ss:$4 sm:$0xff]
        %v3288 = vld [vmem:[%s3208] ss:$4 sm:$0xff]
        %3289 = vst [vmem:[#allocation1] sm:$0xff] %v291
        %3290 = vst [vmem:[#allocation1 + $0x20] sm:$0xff] %v292
        %v3291 = vld [vmem:[#allocation1] ss:$4 sm:$0xff]
        %v3292 = vld [vmem:[%s3196] ss:$4 sm:$0xff]
        %v3293 = vld [vmem:[%s3198] ss:$4 sm:$0xff]
        %v3294 = vld [vmem:[%s3200] ss:$4 sm:$0xff]
        %v3295 = vld [vmem:[%s3202] ss:$4 sm:$0xff]
        %v3296 = vld [vmem:[%s3204] ss:$4 sm:$0xff]
        %3297 = vst [vmem:[#allocation1] sm:$0xff] %v293
        %3298 = vst [vmem:[#allocation1 + $0x20] sm:$0xff] %v294
        %v3299 = vld [vmem:[%s3196] ss:$4 sm:$0xff]
        %v3300 = vld [vmem:[%s3198] ss:$4 sm:$0xff]
        %v3301 = vld [vmem:[%s3200] ss:$4 sm:$0xff]
        %v3302 = vld [vmem:[%s3202] ss:$4 sm:$0xff]
        %v3303 = vld [vmem:[%s3204] ss:$4 sm:$0xff]
        %v3304 = vld [vmem:[%s3206] ss:$4 sm:$0xff]
        %v3305 = vld [vmem:[%s3208] ss:$4 sm:$0xff]
        %3306 = vst [vmem:[#allocation1] sm:$0xff] %v295
        %v3307 = vld [vmem:[#allocation1] ss:$4 sm:$0xff]
        %v3308 = vld [vmem:[%s3196] ss:$4 sm:$0xff]
        %3309 = vst [vmem:[#allocation1 + $0x20] sm:$0xff] %v296
        %v3310 = vld [vmem:[%s3204] ss:$4 sm:$0xff]
        %v3311 = vld [vmem:[%s3206] ss:$4 sm:$0xff]
        %v3312 = vld [vmem:[%s3208] ss:$4 sm:$0xff]
        %3313 = vst [vmem:[#allocation1] sm:$0xff] %v297
        %3314 = vst [vmem:[#allocation1 + $0x20] sm:$0xff] %v298
        %v3315 = vld [vmem:[#allocation1] ss:$4 sm:$0xff]
        %v3316 = vld [vmem:[%s3196] ss:$4 sm:$0xff]
        %v3317 = vld [vmem:[%s3198] ss:$4 sm:$0xff]
        %v3318 = vld [vmem:[%s3200] ss:$4 sm:$0xff]
        %v3319 = vld [vmem:[%s3202] ss:$4 sm:$0xff]
        %v3320 = vld [vmem:[%s3204] ss:$4 sm:$0xff]
        %3321 = vst [vmem:[#allocation1] sm:$0xff] %v299
        %3322 = vst [vmem:[#allocation1 + $0x20] sm:$0xff] %v300
        %v3323 = vld [vmem:[%s3196] ss:$4 sm:$0xff]
        %v3324 = vld [vmem:[%s3198] ss:$4 sm:$0xff]
        %v3325 = vld [vmem:[%s3200] ss:$4 sm:$0xff]
        %v3326 = vld [vmem:[%s3202] ss:$4 sm:$0xff]
        %v3327 = vld [vmem:[%s3204] ss:$4 sm:$0xff]
        %v3328 = vld [vmem:[%s3206] ss:$4 sm:$0xff]
        %v3329 = vld [vmem:[%s3208] ss:$4 sm:$0xff]
        %3330 = vst [vmem:[#allocation1] sm:$0xff] %v301
        %v3331 = vld [vmem:[#allocation1] ss:$4 sm:$0xff]
        %v3332 = vld [vmem:[%s3196] ss:$4 sm:$0xff]
        %3333 = vst [vmem:[#allocation1 + $0x20] sm:$0xff] %v302
        %v3334 = vld [vmem:[%s3204] ss:$4 sm:$0xff]
        %v3335 = vld [vmem:[%s3206] ss:$4 sm:$0xff]
        %v3336 = vld [vmem:[%s3208] ss:$4 sm:$0xff]
        %3337 = vst [vmem:[#allocation1] sm:$0xff] %v303
        %3338 = vst [vmem:[#allocation1 + $0x20] sm:$0xff] %v304
        %v3339 = vld [vmem:[#allocation1] ss:$4 sm:$0xff]
        %v3340 = vld [vmem:[%s3196] ss:$4 sm:$0xff]
        %v3341 = vld [vmem:[%s3198] ss:$4 sm:$0xff]
        %v3342 = vld [vmem:[%s3200] ss:$4 sm:$0xff]
        %v3343 = vld [vmem:[%s3202] ss:$4 sm:$0xff]
        %v3344 = vld [vmem:[%s3204] ss:$4 sm:$0xff]
        %3345 = vst [vmem:[#allocation1] sm:$0xff] %v305
        %3346 = vst [vmem:[#allocation1 + $0x20] sm:$0xff] %v306
        %v3347 = vld [vmem:[%s3196] ss:$4 sm:$0xff]
        %v3348 = vld [vmem:[%s3198] ss:$4 sm:$0xff]
        %v3349 = vld [vmem:[%s3200] ss:$4 sm:$0xff]
        %v3350 = vld [vmem:[%s3202] ss:$4 sm:$0xff]
        %v3351 = vld [vmem:[%s3204] ss:$4 sm:$0xff]
        %v3352 = vld [vmem:[%s3206] ss:$4 sm:$0xff]
        %v3353 = vld [vmem:[%s3208] ss:$4 sm:$0xff]
        %3354 = vst [vmem:[#allocation1] sm:$0xff] %v307
        %v3355 = vld [vmem:[#allocation1] ss:$4 sm:$0xff]
        %v3356 = vld [vmem:[%s3196] ss:$4 sm:$0xff]
        %3357 = vst [vmem:[#allocation1 + $0x20] sm:$0xff] %v308
        %v3358 = vld [vmem:[%s3204] ss:$4 sm:$0xff]
        %v3359 = vld [vmem:[%s3206] ss:$4 sm:$0xff]
        %v3360 = vld [vmem:[%s3208] ss:$4 sm:$0xff]
        %3361 = vst [vmem:[#allocation1] sm:$0xff] %v309
        %3362 = vst [vmem:[#allocation1 + $0x20] sm:$0xff] %v310
        %v3363 = vld [vmem:[#allocation1] ss:$4 sm:$0xff]
        %v3364 = vld [vmem:[%s3196] ss:$4 sm:$0xff]
        %v3365 = vld [vmem:[%s3198] ss:$4 sm:$0xff]
        %v3366 = vld [vmem:[%s3200] ss:$4 sm:$0xff]
        %v3367 = vld [vmem:[%s3202] ss:$4 sm:$0xff]
        %v3368 = vld [vmem:[%s3204] ss:$4 sm:$0xff]
        %3369 = vst [vmem:[#allocation1] sm:$0xff] %v311
        %3370 = vst [vmem:[#allocation1 + $0x20] sm:$0xff] %v312
        %v3371 = vld [vmem:[%s3196] ss:$4 sm:$0xff]
        %v3372 = vld [vmem:[%s3198] ss:$4 sm:$0xff]
        %v3373 = vld [vmem:[%s3200] ss:$4 sm:$0xff]
        %v3374 = vld [vmem:[%s3202] ss:$4 sm:$0xff]
        %v3375 = vld [vmem:[%s3204] ss:$4 sm:$0xff]
        %v3376 = vld [vmem:[%s3206] ss:$4 sm:$0xff]
        %v3377 = vld [vmem:[%s3208] ss:$4 sm:$0xff]
        %3378 = vst [vmem:[#allocation1] sm:$0xff] %v313
        %v3379 = vld [vmem:[#allocation1] ss:$4 sm:$0xff]
        %v3380 = vld [vmem:[%s3196] ss:$4 sm:$0xff]
        %3381 = vst [vmem:[#allocation1 + $0x20] sm:$0xff] %v314
        %v3382 = vld [vmem:[%s3204] ss:$4 sm:$0xff]
        %v3383 = vld [vmem:[%s3206] ss:$4 sm:$0xff]
        %v3384 = vld [vmem:[%s3208] ss:$4 sm:$0xff]
        %3385 = vst [vmem:[#allocation1] sm:$0xff] %v315
        %3386 = vst [vmem:[#allocation1 + $0x20] sm:$0xff] %v316
        %v3387 = vld [vmem:[#allocation1] ss:$4 sm:$0xff]
        %v3388 = vld [vmem:[%s3196] ss:$4 sm:$0xff]
        %v3389 = vld [vmem:[%s3198] ss:$4 sm:$0xff]
        %v3390 = vld [vmem:[%s3200] ss:$4 sm:$0xff]
        %v3391 = vld [vmem:[%s3202] ss:$4 sm:$0xff]
        %v3392 = vld [vmem:[%s3204] ss:$4 sm:$0xff]
        %3393 = vst [vmem:[#allocation1] sm:$0xff] %v317
        %3394 = vst [vmem:[#allocation1 + $0x20] sm:$0xff] %v318
        %v3395 = vld [vmem:[%s3196] ss:$4 sm:$0xff]
        %v3396 = vld [vmem:[%s3198] ss:$4 sm:$0xff]
        %v3397 = vld [vmem:[%s3200] ss:$4 sm:$0xff]
        %v3398 = vld [vmem:[%s3202] ss:$4 sm:$0xff]
        %v3399 = vld [vmem:[%s3204] ss:$4 sm:$0xff]
        %v3400 = vld [vmem:[%s3206] ss:$4 sm:$0xff]
        %v3401 = vld [vmem:[%s3208] ss:$4 sm:$0xff]
        %3402 = vst [vmem:[#allocation1] sm:$0xff] %v319
        %v3403 = vld [vmem:[#allocation1] ss:$4 sm:$0xff]
        %v3404 = vld [vmem:[%s3196] ss:$4 sm:$0xff]
        %3405 = vst [vmem:[#allocation1 + $0x20] sm:$0xff] %v320
        %v3406 = vld [vmem:[%s3204] ss:$4 sm:$0xff]
        %v3407 = vld [vmem:[%s3206] ss:$4 sm:$0xff]
        %v3408 = vld [vmem:[%s3208] ss:$4 sm:$0xff]
        %3409 = vst [vmem:[#allocation1] sm:$0xff] %v321
        %3410 = vst [vmem:[#allocation1 + $0x20] sm:$0xff] %v322
        %v3411 = vld [vmem:[#allocation1] ss:$4 sm:$0xff]
        %v3412 = vld [vmem:[%s3196] ss:$4 sm:$0xff]
        %v3413 = vld [vmem:[%s3198] ss:$4 sm:$0xff]
        %v3414 = vld [vmem:[%s3200] ss:$4 sm:$0xff]
        %v3415 = vld [vmem:[%s3202] ss:$4 sm:$0xff]
        %v3416 = vld [vmem:[%s3204] ss:$4 sm:$0xff]
        %v3417 = vld [vmem:[%s1 + $0x80] sm:$0xf]
        %v3418 = vld [vmem:[%s1 + $0x84] sm:$0xf]
        %v3419 = vld [vmem:[%s1 + $0x88] sm:$0xf]
        %v3420 = vld [vmem:[%s1 + $0x8c] sm:$0xf]
        %v3421 = vld [vmem:[%s1 + $0x90] sm:$0xf]
        %v3422 = vld [vmem:[%s1 + $0x94] sm:$0xf]
        %v3423 = vld [vmem:[%s1 + $0x98] sm:$0xf]
        %v3424 = vld [vmem:[%s1 + $0x9c] sm:$0xf]
        %v3425 = vld [vmem:[%s1 + $0xa0] sm:$0xf]
        %v3426 = vld [vmem:[%s1 + $0xa4] sm:$0xf]
        %v3427 = vld [vmem:[%s1 + $0xa8] sm:$0xf]
        %v3428 = vld [vmem:[%s1 + $0xac] sm:$0xf]
        %v3429 = vld [vmem:[%s1 + $0xb0] sm:$0xf]
        %v3430 = vld [vmem:[%s1 + $0xb4] sm:$0xf]
        %v3431 = vld [vmem:[%s1 + $0xb8] sm:$0xf]
        %v3432 = vld [vmem:[%s1 + $0xbc] sm:$0xf]
        %3433 = vst [vmem:[#allocation1] ss:$9 sm:$0xff] %v3197
        %s3434 = scalar_lea.vmem [#allocation1], 1
        %3435 = vst [vmem:[%s3434] ss:$9 sm:$0xff] %v3199
        %s3436 = scalar_lea.vmem [#allocation1], 2
        %3437 = vst [vmem:[%s3436] ss:$9 sm:$0xff] %v3201
        %s3438 = scalar_lea.vmem [#allocation1], 3
        %3439 = vst [vmem:[%s3438] ss:$9 sm:$0xff] %v3203
        %s3440 = scalar_lea.vmem [#allocation1], 4
        %3441 = vst [vmem:[%s3440] ss:$9 sm:$0xff] %v3205
        %s3442 = scalar_lea.vmem [#allocation1], 5
        %3443 = vst [vmem:[%s3442] ss:$9 sm:$0xff] %v3207
        %s3444 = scalar_lea.vmem [#allocation1], 6
        %3445 = vst [vmem:[%s3444] ss:$9 sm:$0xff] %v3209
        %s3446 = scalar_lea.vmem [#allocation1], 7
        %3447 = vst [vmem:[%s3446] ss:$9 sm:$0xff] %v3211
        %v3448 = vld [vmem:[#allocation1] sm:$0xff]
        %3449 = vst [vmem:[#allocation1] ss:$9 sm:$0xff] %v3212
        %3450 = vst [vmem:[%s3434] ss:$9 sm:$0xff] %v3214
        %3451 = vst [vmem:[%s3436] ss:$9 sm:$0xff] %v3215
        %3452 = vst [vmem:[%s3438] ss:$9 sm:$0xff] %v3216
        %3453 = vst [vmem:[%s3440] ss:$9 sm:$0xff] %v3219
        %3454 = vst [vmem:[%s3442] ss:$9 sm:$0xff] %v3220
        %3455 = vst [vmem:[%s3444] ss:$9 sm:$0xff] %v3221
        %3456 = vst [vmem:[%s3446] ss:$9 sm:$0xff] %v3222
        %v3457 = vld [vmem:[#allocation1] sm:$0xff]
        %3458 = vst [vmem:[#allocation1] ss:$9 sm:$0xff] %v3223
        %3459 = vst [vmem:[%s3434] ss:$9 sm:$0xff] %v3224
        %3460 = vst [vmem:[%s3436] ss:$9 sm:$0xff] %v3227
        %3461 = vst [vmem:[%s3438] ss:$9 sm:$0xff] %v3228
        %3462 = vst [vmem:[%s3440] ss:$9 sm:$0xff] %v3229
        %3463 = vst [vmem:[%s3442] ss:$9 sm:$0xff] %v3230
        %3464 = vst [vmem:[%s3444] ss:$9 sm:$0xff] %v3231
        %3465 = vst [vmem:[%s3446] ss:$9 sm:$0xff] %v3232
        %v3466 = vld [vmem:[#allocation1] sm:$0xff]
        %3467 = vst [vmem:[#allocation1] ss:$9 sm:$0xff] %v3233
        %3468 = vst [vmem:[%s3434] ss:$9 sm:$0xff] %v3235
        %3469 = vst [vmem:[%s3436] ss:$9 sm:$0xff] %v3236
        %3470 = vst [vmem:[%s3438] ss:$9 sm:$0xff] %v3238
        %3471 = vst [vmem:[%s3440] ss:$9 sm:$0xff] %v3239
        %3472 = vst [vmem:[%s3442] ss:$9 sm:$0xff] %v3240
        %3473 = vst [vmem:[%s3444] ss:$9 sm:$0xff] %v3243
        %3474 = vst [vmem:[%s3446] ss:$9 sm:$0xff] %v3244
        %v3475 = vld [vmem:[#allocation1] sm:$0xff]
        %3476 = vst [vmem:[#allocation1] ss:$9 sm:$0xff] %v3245
        %3477 = vst [vmem:[%s3434] ss:$9 sm:$0xff] %v3246
        %3478 = vst [vmem:[%s3436] ss:$9 sm:$0xff] %v3247
        %3479 = vst [vmem:[%s3438] ss:$9 sm:$0xff] %v3248
        %3480 = vst [vmem:[%s3440] ss:$9 sm:$0xff] %v3251
        %3481 = vst [vmem:[%s3442] ss:$9 sm:$0xff] %v3252
        %3482 = vst [vmem:[%s3444] ss:$9 sm:$0xff] %v3253
        %3483 = vst [vmem:[%s3446] ss:$9 sm:$0xff] %v3254
        %v3484 = vld [vmem:[#allocation1] sm:$0xff]
        %3485 = vst [vmem:[#allocation1] ss:$9 sm:$0xff] %v3255
        %3486 = vst [vmem:[%s3434] ss:$9 sm:$0xff] %v3256
        %3487 = vst [vmem:[%s3436] ss:$9 sm:$0xff] %v3257
        %3488 = vst [vmem:[%s3438] ss:$9 sm:$0xff] %v3259
        %3489 = vst [vmem:[%s3440] ss:$9 sm:$0xff] %v3260
        %3490 = vst [vmem:[%s3442] ss:$9 sm:$0xff] %v3262
        %3491 = vst [vmem:[%s3444] ss:$9 sm:$0xff] %v3263
        %3492 = vst [vmem:[%s3446] ss:$9 sm:$0xff] %v3264
        %v3493 = vld [vmem:[#allocation1] sm:$0xff]
        %3494 = vst [vmem:[#allocation1] ss:$9 sm:$0xff] %v3267
        %3495 = vst [vmem:[%s3434] ss:$9 sm:$0xff] %v3268
        %3496 = vst [vmem:[%s3436] ss:$9 sm:$0xff] %v3269
        %3497 = vst [vmem:[%s3438] ss:$9 sm:$0xff] %v3270
        %3498 = vst [vmem:[%s3440] ss:$9 sm:$0xff] %v3271
        %3499 = vst [vmem:[%s3442] ss:$9 sm:$0xff] %v3272
        %3500 = vst [vmem:[%s3444] ss:$9 sm:$0xff] %v3275
        %3501 = vst [vmem:[%s3446] ss:$9 sm:$0xff] %v3276
        %v3502 = vld [vmem:[#allocation1] sm:$0xff]
        %3503 = vst [vmem:[#allocation1] ss:$9 sm:$0xff] %v3277
        %3504 = vst [vmem:[%s3434] ss:$9 sm:$0xff] %v3278
        %3505 = vst [vmem:[%s3436] ss:$9 sm:$0xff] %v3279
        %3506 = vst [vmem:[%s3438] ss:$9 sm:$0xff] %v3280
        %3507 = vst [vmem:[%s3440] ss:$9 sm:$0xff] %v3281
        %3508 = vst [vmem:[%s3442] ss:$9 sm:$0xff] %v3283
        %3509 = vst [vmem:[%s3444] ss:$9 sm:$0xff] %v3284
        %3510 = vst [vmem:[%s3446] ss:$9 sm:$0xff] %v3286
        %v3511 = vld [vmem:[#allocation1] sm:$0xff]
        %3512 = vst [vmem:[#allocation1] ss:$9 sm:$0xff] %v3287
        %3513 = vst [vmem:[%s3434] ss:$9 sm:$0xff] %v3288
        %3514 = vst [vmem:[%s3436] ss:$9 sm:$0xff] %v3291
        %3515 = vst [vmem:[%s3438] ss:$9 sm:$0xff] %v3292
        %3516 = vst [vmem:[%s3440] ss:$9 sm:$0xff] %v3293
        %3517 = vst [vmem:[%s3442] ss:$9 sm:$0xff] %v3294
        %3518 = vst [vmem:[%s3444] ss:$9 sm:$0xff] %v3295
        %3519 = vst [vmem:[%s3446] ss:$9 sm:$0xff] %v3296
        %v3520 = vld [vmem:[#allocation1] sm:$0xff]
        %3521 = vst [vmem:[#allocation1] ss:$9 sm:$0xff] %v3299
        %3522 = vst [vmem:[%s3434] ss:$9 sm:$0xff] %v3300
        %3523 = vst [vmem:[%s3436] ss:$9 sm:$0xff] %v3301
        %3524 = vst [vmem:[%s3438] ss:$9 sm:$0xff] %v3302
        %3525 = vst [vmem:[%s3440] ss:$9 sm:$0xff] %v3303
        %3526 = vst [vmem:[%s3442] ss:$9 sm:$0xff] %v3304
        %3527 = vst [vmem:[%s3444] ss:$9 sm:$0xff] %v3305
        %3528 = vst [vmem:[%s3446] ss:$9 sm:$0xff] %v3307
        %v3529 = vld [vmem:[#allocation1] sm:$0xff]
        %3530 = vst [vmem:[#allocation1] ss:$9 sm:$0xff] %v3308
        %3531 = vst [vmem:[%s3434] ss:$9 sm:$0xff] %v3310
        %3532 = vst [vmem:[%s3436] ss:$9 sm:$0xff] %v3311
        %3533 = vst [vmem:[%s3438] ss:$9 sm:$0xff] %v3312
        %3534 = vst [vmem:[%s3440] ss:$9 sm:$0xff] %v3315
        %3535 = vst [vmem:[%s3442] ss:$9 sm:$0xff] %v3316
        %3536 = vst [vmem:[%s3444] ss:$9 sm:$0xff] %v3317
        %3537 = vst [vmem:[%s3446] ss:$9 sm:$0xff] %v3318
        %v3538 = vld [vmem:[#allocation1] sm:$0xff]
        %3539 = vst [vmem:[#allocation1] ss:$9 sm:$0xff] %v3319
        %3540 = vst [vmem:[%s3434] ss:$9 sm:$0xff] %v3320
        %3541 = vst [vmem:[%s3436] ss:$9 sm:$0xff] %v3323
        %3542 = vst [vmem:[%s3438] ss:$9 sm:$0xff] %v3324
        %3543 = vst [vmem:[%s3440] ss:$9 sm:$0xff] %v3325
        %3544 = vst [vmem:[%s3442] ss:$9 sm:$0xff] %v3326
        %3545 = vst [vmem:[%s3444] ss:$9 sm:$0xff] %v3327
        %3546 = vst [vmem:[%s3446] ss:$9 sm:$0xff] %v3328
        %v3547 = vld [vmem:[#allocation1] sm:$0xff]
        %3548 = vst [vmem:[#allocation1] ss:$9 sm:$0xff] %v3329
        %3549 = vst [vmem:[%s3434] ss:$9 sm:$0xff] %v3331
        %3550 = vst [vmem:[%s3436] ss:$9 sm:$0xff] %v3332
        %3551 = vst [vmem:[%s3438] ss:$9 sm:$0xff] %v3334
        %3552 = vst [vmem:[%s3440] ss:$9 sm:$0xff] %v3335
        %3553 = vst [vmem:[%s3442] ss:$9 sm:$0xff] %v3336
        %3554 = vst [vmem:[%s3444] ss:$9 sm:$0xff] %v3339
        %3555 = vst [vmem:[%s3446] ss:$9 sm:$0xff] %v3340
        %v3556 = vld [vmem:[#allocation1] sm:$0xff]
        %3557 = vst [vmem:[#allocation1] ss:$9 sm:$0xff] %v3341
        %3558 = vst [vmem:[%s3434] ss:$9 sm:$0xff] %v3342
        %3559 = vst [vmem:[%s3436] ss:$9 sm:$0xff] %v3343
        %3560 = vst [vmem:[%s3438] ss:$9 sm:$0xff] %v3344
        %3561 = vst [vmem:[%s3440] ss:$9 sm:$0xff] %v3347
        %3562 = vst [vmem:[%s3442] ss:$9 sm:$0xff] %v3348
        %3563 = vst [vmem:[%s3444] ss:$9 sm:$0xff] %v3349
        %3564 = vst [vmem:[%s3446] ss:$9 sm:$0xff] %v3350
        %v3565 = vld [vmem:[#allocation1] sm:$0xff]
        %3566 = vst [vmem:[#allocation1] ss:$9 sm:$0xff] %v3351
        %3567 = vst [vmem:[%s3434] ss:$9 sm:$0xff] %v3352
        %3568 = vst [vmem:[%s3436] ss:$9 sm:$0xff] %v3353
        %3569 = vst [vmem:[%s3438] ss:$9 sm:$0xff] %v3355
        %3570 = vst [vmem:[%s3440] ss:$9 sm:$0xff] %v3356
        %3571 = vst [vmem:[%s3442] ss:$9 sm:$0xff] %v3358
        %3572 = vst [vmem:[%s3444] ss:$9 sm:$0xff] %v3359
        %3573 = vst [vmem:[%s3446] ss:$9 sm:$0xff] %v3360
        %v3574 = vld [vmem:[#allocation1] sm:$0xff]
        %3575 = vst [vmem:[#allocation1] ss:$9 sm:$0xff] %v3363
        %3576 = vst [vmem:[%s3434] ss:$9 sm:$0xff] %v3364
        %3577 = vst [vmem:[%s3436] ss:$9 sm:$0xff] %v3365
        %3578 = vst [vmem:[%s3438] ss:$9 sm:$0xff] %v3366
        %3579 = vst [vmem:[%s3440] ss:$9 sm:$0xff] %v3367
        %3580 = vst [vmem:[%s3442] ss:$9 sm:$0xff] %v3368
        %3581 = vst [vmem:[%s3444] ss:$9 sm:$0xff] %v3371
        %3582 = vst [vmem:[%s3446] ss:$9 sm:$0xff] %v3372
        %v3583 = vld [vmem:[#allocation1] sm:$0xff]
        %3584 = vst [vmem:[#allocation1] ss:$9 sm:$0xff] %v3373
        %3585 = vst [vmem:[%s3434] ss:$9 sm:$0xff] %v3374
        %3586 = vst [vmem:[%s3436] ss:$9 sm:$0xff] %v3375
        %3587 = vst [vmem:[%s3438] ss:$9 sm:$0xff] %v3376
        %3588 = vst [vmem:[%s3440] ss:$9 sm:$0xff] %v3377
        %3589 = vst [vmem:[%s3442] ss:$9 sm:$0xff] %v3379
        %3590 = vst [vmem:[%s3444] ss:$9 sm:$0xff] %v3380
        %3591 = vst [vmem:[%s3446] ss:$9 sm:$0xff] %v3382
        %v3592 = vld [vmem:[#allocation1] sm:$0xff]
        %3593 = vst [vmem:[#allocation1] ss:$9 sm:$0xff] %v3383
        %3594 = vst [vmem:[%s3434] ss:$9 sm:$0xff] %v3384
        %3595 = vst [vmem:[%s3436] ss:$9 sm:$0xff] %v3387
        %3596 = vst [vmem:[%s3438] ss:$9 sm:$0xff] %v3388
        %3597 = vst [vmem:[%s3440] ss:$9 sm:$0xff] %v3389
        %3598 = vst [vmem:[%s3442] ss:$9 sm:$0xff] %v3390
        %3599 = vst [vmem:[%s3444] ss:$9 sm:$0xff] %v3391
        %3600 = vst [vmem:[%s3446] ss:$9 sm:$0xff] %v3392
        %v3601 = vld [vmem:[#allocation1] sm:$0xff]
        %3602 = vst [vmem:[#allocation1] ss:$9 sm:$0xff] %v3395
        %3603 = vst [vmem:[%s3434] ss:$9 sm:$0xff] %v3396
        %3604 = vst [vmem:[%s3436] ss:$9 sm:$0xff] %v3397
        %3605 = vst [vmem:[%s3438] ss:$9 sm:$0xff] %v3398
        %3606 = vst [vmem:[%s3440] ss:$9 sm:$0xff] %v3399
        %3607 = vst [vmem:[%s3442] ss:$9 sm:$0xff] %v3400
        %3608 = vst [vmem:[%s3444] ss:$9 sm:$0xff] %v3401
        %3609 = vst [vmem:[%s3446] ss:$9 sm:$0xff] %v3403
        %v3610 = vld [vmem:[#allocation1] sm:$0xff]
        %3611 = vst [vmem:[#allocation1] ss:$9 sm:$0xff] %v3404
        %3612 = vst [vmem:[%s3434] ss:$9 sm:$0xff] %v3406
        %3613 = vst [vmem:[%s3436] ss:$9 sm:$0xff] %v3407
        %3614 = vst [vmem:[%s3438] ss:$9 sm:$0xff] %v3408
        %3615 = vst [vmem:[%s3440] ss:$9 sm:$0xff] %v3411
        %3616 = vst [vmem:[%s3442] ss:$9 sm:$0xff] %v3412
        %3617 = vst [vmem:[%s3444] ss:$9 sm:$0xff] %v3413
        %3618 = vst [vmem:[%s3446] ss:$9 sm:$0xff] %v3414
        %v3619 = vld [vmem:[#allocation1] sm:$0xff]
        %3620 = vst [vmem:[#allocation1] ss:$9 sm:$0xff] %v3415
        %3621 = vst [vmem:[%s3434] ss:$9 sm:$0xff] %v3416
        %v3622 = vld [vmem:[#allocation1] sm:$0xff]
        %v3660 = vunpack.c.l.b16 %v3417
        %v3661 = vunpack.c.l.b16 %v3418
        %v3662 = vunpack.c.l.b16 %v3419
        %v3663 = vunpack.c.l.b16 %v3420
        %v3664 = vunpack.c.l.b16 %v3421
        %v3665 = vunpack.c.l.b16 %v3422
        %v3666 = vunpack.c.l.b16 %v3423
        %v3667 = vunpack.c.l.b16 %v3424
        %v3668 = vunpack.c.l.b16 %v3425
        %v3669 = vunpack.c.l.b16 %v3426
        %v3670 = vunpack.c.l.b16 %v3427
        %v3671 = vunpack.c.l.b16 %v3428
        %v3672 = vunpack.c.l.b16 %v3429
        %v3673 = vunpack.c.l.b16 %v3430
        %v3674 = vunpack.c.l.b16 %v3431
        %v3675 = vunpack.c.l.b16 %v3432
        %v3676 = vpack.c.b16 %v3661, %v3660
        %v3677 = vpack.c.b16 %v3663, %v3662
        %v3678 = vpack.c.b16 %v3665, %v3664
        %v3679 = vpack.c.b16 %v3667, %v3666
        %v3680 = vpack.c.b16 %v3669, %v3668
        %v3681 = vpack.c.b16 %v3671, %v3670
        %v3682 = vpack.c.b16 %v3673, %v3672
        %v3683 = vpack.c.b16 %v3675, %v3674
        %3692 = vmatpush.bf16.msra.mxu0 %v3683
        %3693 = vmatpush.bf16.msra.mxu0 %v3682
        %3694 = vmatpush.bf16.msra.mxu0 %v3681
        %3695 = vmatpush.bf16.msra.mxu0 %v3680
        %3696 = vmatpush.bf16.msra.mxu0 %v3679
        %3697 = vmatpush.bf16.msra.mxu0 %v3678
        %3698 = vmatpush.bf16.msra.mxu0 %v3677
        %3699 = vmatpush.bf16.msra.mxu0 %v3676
        %3700 = vmatmul.bf16.gmra.mxu0 %v3448
        %v3701 = vpop.f32.mrf.mxu0
        %v3702 = vadd.f32 0.0, %v3701
        %v3703 = vpop.f32.mrf.mxu0
        %v3704 = vadd.f32 0.0, %v3703
        %3705 = vmatmul.bf16.gmra.mxu0 %v3457
        %v3706 = vpop.f32.mrf.mxu0
        %v3707 = vadd.f32 0.0, %v3706
        %v3708 = vpop.f32.mrf.mxu0
        %v3709 = vadd.f32 0.0, %v3708
        %3710 = vmatmul.bf16.gmra.mxu0 %v3466
        %v3711 = vpop.f32.mrf.mxu0
        %v3712 = vadd.f32 0.0, %v3711
        %v3713 = vpop.f32.mrf.mxu0
        %v3714 = vadd.f32 0.0, %v3713
        %3715 = vmatmul.bf16.gmra.mxu0 %v3475
        %v3716 = vpop.f32.mrf.mxu0
        %v3717 = vadd.f32 0.0, %v3716
        %v3718 = vpop.f32.mrf.mxu0
        %v3719 = vadd.f32 0.0, %v3718
        %3720 = vmatmul.bf16.gmra.mxu0 %v3484
        %v3721 = vpop.f32.mrf.mxu0
        %v3722 = vadd.f32 0.0, %v3721
        %v3723 = vpop.f32.mrf.mxu0
        %v3724 = vadd.f32 0.0, %v3723
        %3725 = vmatmul.bf16.gmra.mxu0 %v3493
        %v3726 = vpop.f32.mrf.mxu0
        %v3727 = vadd.f32 0.0, %v3726
        %v3728 = vpop.f32.mrf.mxu0
        %v3729 = vadd.f32 0.0, %v3728
        %3730 = vmatmul.bf16.gmra.mxu0 %v3502
        %v3731 = vpop.f32.mrf.mxu0
        %v3732 = vadd.f32 0.0, %v3731
        %v3733 = vpop.f32.mrf.mxu0
        %v3734 = vadd.f32 0.0, %v3733
        %3735 = vmatmul.bf16.gmra.mxu0 %v3511
        %v3736 = vpop.f32.mrf.mxu0
        %v3737 = vadd.f32 0.0, %v3736
        %v3738 = vpop.f32.mrf.mxu0
        %v3739 = vadd.f32 0.0, %v3738
        %3740 = vmatmul.bf16.gmra.mxu0 %v3520
        %v3741 = vpop.f32.mrf.mxu0
        %v3742 = vadd.f32 0.0, %v3741
        %v3743 = vpop.f32.mrf.mxu0
        %v3744 = vadd.f32 0.0, %v3743
        %3745 = vmatmul.bf16.gmra.mxu0 %v3529
        %v3746 = vpop.f32.mrf.mxu0
        %v3747 = vadd.f32 0.0, %v3746
        %v3748 = vpop.f32.mrf.mxu0
        %v3749 = vadd.f32 0.0, %v3748
        %3750 = vmatmul.bf16.gmra.mxu0 %v3538
        %v3751 = vpop.f32.mrf.mxu0
        %v3752 = vadd.f32 0.0, %v3751
        %v3753 = vpop.f32.mrf.mxu0
        %v3754 = vadd.f32 0.0, %v3753
        %3755 = vmatmul.bf16.gmra.mxu0 %v3547
        %v3756 = vpop.f32.mrf.mxu0
        %v3757 = vadd.f32 0.0, %v3756
        %v3758 = vpop.f32.mrf.mxu0
        %v3759 = vadd.f32 0.0, %v3758
        %3760 = vmatmul.bf16.gmra.mxu0 %v3556
        %v3761 = vpop.f32.mrf.mxu0
        %v3762 = vadd.f32 0.0, %v3761
        %v3763 = vpop.f32.mrf.mxu0
        %v3764 = vadd.f32 0.0, %v3763
        %3765 = vmatmul.bf16.gmra.mxu0 %v3565
        %v3766 = vpop.f32.mrf.mxu0
        %v3767 = vadd.f32 0.0, %v3766
        %v3768 = vpop.f32.mrf.mxu0
        %v3769 = vadd.f32 0.0, %v3768
        %3770 = vmatmul.bf16.gmra.mxu0 %v3574
        %v3771 = vpop.f32.mrf.mxu0
        %v3772 = vadd.f32 0.0, %v3771
        %v3773 = vpop.f32.mrf.mxu0
        %v3774 = vadd.f32 0.0, %v3773
        %3775 = vmatmul.bf16.gmra.mxu0 %v3583
        %v3776 = vpop.f32.mrf.mxu0
        %v3777 = vadd.f32 0.0, %v3776
        %v3778 = vpop.f32.mrf.mxu0
        %v3779 = vadd.f32 0.0, %v3778
        %3780 = vmatmul.bf16.gmra.mxu0 %v3592
        %v3781 = vpop.f32.mrf.mxu0
        %v3782 = vadd.f32 0.0, %v3781
        %v3783 = vpop.f32.mrf.mxu0
        %v3784 = vadd.f32 0.0, %v3783
        %3785 = vmatmul.bf16.gmra.mxu0 %v3601
        %v3786 = vpop.f32.mrf.mxu0
        %v3787 = vadd.f32 0.0, %v3786
        %v3788 = vpop.f32.mrf.mxu0
        %v3789 = vadd.f32 0.0, %v3788
        %3790 = vmatmul.bf16.gmra.mxu0 %v3610
        %v3791 = vpop.f32.mrf.mxu0
        %v3792 = vadd.f32 0.0, %v3791
        %v3793 = vpop.f32.mrf.mxu0
        %v3794 = vadd.f32 0.0, %v3793
        %3795 = vmatmul.bf16.gmra.mxu0 %v3619
        %v3796 = vpop.f32.mrf.mxu0
        %v3797 = vadd.f32 0.0, %v3796
        %v3798 = vpop.f32.mrf.mxu0
        %v3799 = vadd.f32 0.0, %v3798
        %3800 = vmatmul.bf16.gmra.mxu0 %v3622
        %v3801 = vpop.f32.mrf.mxu0
        %v3802 = vadd.f32 0.0, %v3801
        %v3803 = vpop.f32.mrf.mxu0
        %3804 = vdwg.mxu0
        %v3805 = vadd.f32 %v3091, %v3702
        %v3806 = vadd.f32 %v3093, %v3704
        %v3807 = vadd.f32 %v3096, %v3707
        %v3808 = vadd.f32 %v3098, %v3709
        %v3809 = vadd.f32 %v3101, %v3712
        %v3810 = vadd.f32 %v3103, %v3714
        %v3811 = vadd.f32 %v3106, %v3717
        %v3812 = vadd.f32 %v3108, %v3719
        %v3813 = vadd.f32 %v3111, %v3722
        %v3814 = vadd.f32 %v3113, %v3724
        %v3815 = vadd.f32 %v3116, %v3727
        %v3816 = vadd.f32 %v3118, %v3729
        %v3817 = vadd.f32 %v3121, %v3732
        %v3818 = vadd.f32 %v3123, %v3734
        %v3819 = vadd.f32 %v3126, %v3737
        %v3820 = vadd.f32 %v3128, %v3739
        %v3821 = vadd.f32 %v3131, %v3742
        %v3822 = vadd.f32 %v3133, %v3744
        %v3823 = vadd.f32 %v3136, %v3747
        %v3824 = vadd.f32 %v3138, %v3749
        %v3825 = vadd.f32 %v3141, %v3752
        %v3826 = vadd.f32 %v3143, %v3754
        %v3827 = vadd.f32 %v3146, %v3757
        %v3828 = vadd.f32 %v3148, %v3759
        %v3829 = vadd.f32 %v3151, %v3762
        %v3830 = vadd.f32 %v3153, %v3764
        %v3831 = vadd.f32 %v3156, %v3767
        %v3832 = vadd.f32 %v3158, %v3769
        %v3833 = vadd.f32 %v3161, %v3772
        %v3834 = vadd.f32 %v3163, %v3774
        %v3835 = vadd.f32 %v3166, %v3777
        %v3836 = vadd.f32 %v3168, %v3779
        %v3837 = vadd.f32 %v3171, %v3782
        %v3838 = vadd.f32 %v3173, %v3784
        %v3839 = vadd.f32 %v3176, %v3787
        %v3840 = vadd.f32 %v3178, %v3789
        %v3841 = vadd.f32 %v3181, %v3792
        %v3842 = vadd.f32 %v3183, %v3794
        %v3843 = vadd.f32 %v3186, %v3797
        %v3844 = vadd.f32 %v3188, %v3799
        %v3845 = vadd.f32 %v3191, %v3802
        %v3849 = vrot.slane %v323, 3
        %v3850 = vrot.slane %v324, 3
        %v3851 = vrot.slane %v325, 3
        %v3854 = vsel %vm437, %v323, %v3849
        %v3855 = vsel %vm441, %v323, %v3849
        %v3857 = vrot.slane %v3855, 1
        %v3858 = vsel %vm445, %v323, %v3849
        %v3860 = vrot.slane %v3858, 2
        %v3861 = vsel %vm449, %v323, %v3849
        %v3863 = vrot.slane %v3861, 3
        %v3866 = vsel %vm437, %v324, %v3850
        %v3867 = vsel %vm441, %v324, %v3850
        %v3869 = vrot.slane %v3867, 1
        %v3870 = vsel %vm445, %v324, %v3850
        %v3872 = vrot.slane %v3870, 2
        %v3873 = vsel %vm449, %v324, %v3850
        %v3875 = vrot.slane %v3873, 3
        %v3878 = vsel %vm437, %v325, %v3851
        %v3879 = vld [vmem:[%s1 + $0xc0] sm:$0xf]
        %v3880 = vld [vmem:[%s1 + $0xc4] sm:$0xf]
        %v3881 = vld [vmem:[%s1 + $0xc8] sm:$0xf]
        %v3882 = vld [vmem:[%s1 + $0xcc] sm:$0xf]
        %v3883 = vld [vmem:[%s1 + $0xd0] sm:$0xf]
        %v3884 = vld [vmem:[%s1 + $0xd4] sm:$0xf]
        %v3885 = vld [vmem:[%s1 + $0xd8] sm:$0xf]
        %v3886 = vld [vmem:[%s1 + $0xdc] sm:$0xf]
        %v3887 = vld [vmem:[%s1 + $0xe0] sm:$0xf]
        %v3888 = vld [vmem:[%s1 + $0xe4] sm:$0xf]
        %v3889 = vld [vmem:[%s1 + $0xe8] sm:$0xf]
        %v3890 = vld [vmem:[%s1 + $0xec] sm:$0xf]
        %v3891 = vld [vmem:[%s1 + $0xf0] sm:$0xf]
        %v3892 = vld [vmem:[%s1 + $0xf4] sm:$0xf]
        %v3893 = vld [vmem:[%s1 + $0xf8] sm:$0xf]
        %v3894 = vld [vmem:[%s1 + $0xfc] sm:$0xf]
        %3895 = vst [vmem:[#allocation1] ss:$9 sm:$0xff] %v470
        %s3896 = scalar_lea.vmem [#allocation1], 1
        %3897 = vst [vmem:[%s3896] ss:$9 sm:$0xff] %v473
        %s3898 = scalar_lea.vmem [#allocation1], 2
        %3899 = vst [vmem:[%s3898] ss:$9 sm:$0xff] %v476
        %s3900 = scalar_lea.vmem [#allocation1], 3
        %3901 = vst [vmem:[%s3900] ss:$9 sm:$0xff] %v479
        %s3902 = scalar_lea.vmem [#allocation1], 4
        %3903 = vst [vmem:[%s3902] ss:$9 sm:$0xff] %v482
        %s3904 = scalar_lea.vmem [#allocation1], 5
        %3905 = vst [vmem:[%s3904] ss:$9 sm:$0xff] %v485
        %s3906 = scalar_lea.vmem [#allocation1], 6
        %3907 = vst [vmem:[%s3906] ss:$9 sm:$0xff] %v488
        %s3908 = scalar_lea.vmem [#allocation1], 7
        %3909 = vst [vmem:[%s3908] ss:$9 sm:$0xff] %v491
        %v3910 = vld [vmem:[#allocation1] sm:$0xff]
        %3911 = vst [vmem:[#allocation1] ss:$9 sm:$0xff] %v494
        %3912 = vst [vmem:[%s3896] ss:$9 sm:$0xff] %v497
        %3913 = vst [vmem:[%s3898] ss:$9 sm:$0xff] %v500
        %3914 = vst [vmem:[%s3900] ss:$9 sm:$0xff] %v503
        %3915 = vst [vmem:[%s3902] ss:$9 sm:$0xff] %v506
        %3916 = vst [vmem:[%s3904] ss:$9 sm:$0xff] %v509
        %3917 = vst [vmem:[%s3906] ss:$9 sm:$0xff] %v512
        %3918 = vst [vmem:[%s3908] ss:$9 sm:$0xff] %v515
        %v3919 = vld [vmem:[#allocation1] sm:$0xff]
        %3920 = vst [vmem:[#allocation1] ss:$9 sm:$0xff] %v518
        %3921 = vst [vmem:[%s3896] ss:$9 sm:$0xff] %v521
        %3922 = vst [vmem:[%s3898] ss:$9 sm:$0xff] %v524
        %3923 = vst [vmem:[%s3900] ss:$9 sm:$0xff] %v527
        %3924 = vst [vmem:[%s3902] ss:$9 sm:$0xff] %v530
        %3925 = vst [vmem:[%s3904] ss:$9 sm:$0xff] %v533
        %3926 = vst [vmem:[%s3906] ss:$9 sm:$0xff] %v536
        %3927 = vst [vmem:[%s3908] ss:$9 sm:$0xff] %v539
        %v3928 = vld [vmem:[#allocation1] sm:$0xff]
        %3929 = vst [vmem:[#allocation1] ss:$9 sm:$0xff] %v542
        %3930 = vst [vmem:[%s3896] ss:$9 sm:$0xff] %v545
        %3931 = vst [vmem:[%s3898] ss:$9 sm:$0xff] %v548
        %3932 = vst [vmem:[%s3900] ss:$9 sm:$0xff] %v551
        %3933 = vst [vmem:[%s3902] ss:$9 sm:$0xff] %v554
        %3934 = vst [vmem:[%s3904] ss:$9 sm:$0xff] %v557
        %3935 = vst [vmem:[%s3906] ss:$9 sm:$0xff] %v560
        %3936 = vst [vmem:[%s3908] ss:$9 sm:$0xff] %v563
        %v3937 = vld [vmem:[#allocation1] sm:$0xff]
        %3938 = vst [vmem:[#allocation1] ss:$9 sm:$0xff] %v566
        %3939 = vst [vmem:[%s3896] ss:$9 sm:$0xff] %v569
        %3940 = vst [vmem:[%s3898] ss:$9 sm:$0xff] %v572
        %3941 = vst [vmem:[%s3900] ss:$9 sm:$0xff] %v575
        %3942 = vst [vmem:[%s3902] ss:$9 sm:$0xff] %v578
        %3943 = vst [vmem:[%s3904] ss:$9 sm:$0xff] %v581
        %3944 = vst [vmem:[%s3906] ss:$9 sm:$0xff] %v584
        %3945 = vst [vmem:[%s3908] ss:$9 sm:$0xff] %v587
        %v3946 = vld [vmem:[#allocation1] sm:$0xff]
        %3947 = vst [vmem:[#allocation1] ss:$9 sm:$0xff] %v590
        %3948 = vst [vmem:[%s3896] ss:$9 sm:$0xff] %v593
        %3949 = vst [vmem:[%s3898] ss:$9 sm:$0xff] %v596
        %3950 = vst [vmem:[%s3900] ss:$9 sm:$0xff] %v599
        %3951 = vst [vmem:[%s3902] ss:$9 sm:$0xff] %v602
        %3952 = vst [vmem:[%s3904] ss:$9 sm:$0xff] %v605
        %3953 = vst [vmem:[%s3906] ss:$9 sm:$0xff] %v608
        %3954 = vst [vmem:[%s3908] ss:$9 sm:$0xff] %v611
        %v3955 = vld [vmem:[#allocation1] sm:$0xff]
        %3956 = vst [vmem:[#allocation1] ss:$9 sm:$0xff] %v614
        %3957 = vst [vmem:[%s3896] ss:$9 sm:$0xff] %v617
        %3958 = vst [vmem:[%s3898] ss:$9 sm:$0xff] %v620
        %3959 = vst [vmem:[%s3900] ss:$9 sm:$0xff] %v623
        %3960 = vst [vmem:[%s3902] ss:$9 sm:$0xff] %v626
        %3961 = vst [vmem:[%s3904] ss:$9 sm:$0xff] %v629
        %3962 = vst [vmem:[%s3906] ss:$9 sm:$0xff] %v632
        %3963 = vst [vmem:[%s3908] ss:$9 sm:$0xff] %v635
        %v3964 = vld [vmem:[#allocation1] sm:$0xff]
        %3965 = vst [vmem:[#allocation1] ss:$9 sm:$0xff] %v638
        %3966 = vst [vmem:[%s3896] ss:$9 sm:$0xff] %v641
        %3967 = vst [vmem:[%s3898] ss:$9 sm:$0xff] %v644
        %3968 = vst [vmem:[%s3900] ss:$9 sm:$0xff] %v647
        %3969 = vst [vmem:[%s3902] ss:$9 sm:$0xff] %v650
        %3970 = vst [vmem:[%s3904] ss:$9 sm:$0xff] %v653
        %3971 = vst [vmem:[%s3906] ss:$9 sm:$0xff] %v656
        %3972 = vst [vmem:[%s3908] ss:$9 sm:$0xff] %v659
        %v3973 = vld [vmem:[#allocation1] sm:$0xff]
        %3974 = vst [vmem:[#allocation1] ss:$9 sm:$0xff] %v662
        %3975 = vst [vmem:[%s3896] ss:$9 sm:$0xff] %v665
        %3976 = vst [vmem:[%s3898] ss:$9 sm:$0xff] %v668
        %3977 = vst [vmem:[%s3900] ss:$9 sm:$0xff] %v671
        %3978 = vst [vmem:[%s3902] ss:$9 sm:$0xff] %v674
        %3979 = vst [vmem:[%s3904] ss:$9 sm:$0xff] %v677
        %3980 = vst [vmem:[%s3906] ss:$9 sm:$0xff] %v680
        %3981 = vst [vmem:[%s3908] ss:$9 sm:$0xff] %v683
        %v3982 = vld [vmem:[#allocation1] sm:$0xff]
        %3983 = vst [vmem:[#allocation1] ss:$9 sm:$0xff] %v686
        %3984 = vst [vmem:[%s3896] ss:$9 sm:$0xff] %v689
        %3985 = vst [vmem:[%s3898] ss:$9 sm:$0xff] %v692
        %3986 = vst [vmem:[%s3900] ss:$9 sm:$0xff] %v695
        %3987 = vst [vmem:[%s3902] ss:$9 sm:$0xff] %v698
        %3988 = vst [vmem:[%s3904] ss:$9 sm:$0xff] %v701
        %3989 = vst [vmem:[%s3906] ss:$9 sm:$0xff] %v704
        %3990 = vst [vmem:[%s3908] ss:$9 sm:$0xff] %v707
        %v3991 = vld [vmem:[#allocation1] sm:$0xff]
        %3992 = vst [vmem:[#allocation1] ss:$9 sm:$0xff] %v710
        %3993 = vst [vmem:[%s3896] ss:$9 sm:$0xff] %v713
        %3994 = vst [vmem:[%s3898] ss:$9 sm:$0xff] %v716
        %3995 = vst [vmem:[%s3900] ss:$9 sm:$0xff] %v719
        %3996 = vst [vmem:[%s3902] ss:$9 sm:$0xff] %v722
        %3997 = vst [vmem:[%s3904] ss:$9 sm:$0xff] %v725
        %3998 = vst [vmem:[%s3906] ss:$9 sm:$0xff] %v728
        %3999 = vst [vmem:[%s3908] ss:$9 sm:$0xff] %v731
        %v4000 = vld [vmem:[#allocation1] sm:$0xff]
        %4001 = vst [vmem:[#allocation1] ss:$9 sm:$0xff] %v734
        %4002 = vst [vmem:[%s3896] ss:$9 sm:$0xff] %v737
        %4003 = vst [vmem:[%s3898] ss:$9 sm:$0xff] %v740
        %4004 = vst [vmem:[%s3900] ss:$9 sm:$0xff] %v743
        %4005 = vst [vmem:[%s3902] ss:$9 sm:$0xff] %v746
        %4006 = vst [vmem:[%s3904] ss:$9 sm:$0xff] %v749
        %4007 = vst [vmem:[%s3906] ss:$9 sm:$0xff] %v752
        %4008 = vst [vmem:[%s3908] ss:$9 sm:$0xff] %v755
        %v4009 = vld [vmem:[#allocation1] sm:$0xff]
        %4010 = vst [vmem:[#allocation1] ss:$9 sm:$0xff] %v758
        %4011 = vst [vmem:[%s3896] ss:$9 sm:$0xff] %v761
        %4012 = vst [vmem:[%s3898] ss:$9 sm:$0xff] %v764
        %4013 = vst [vmem:[%s3900] ss:$9 sm:$0xff] %v767
        %4014 = vst [vmem:[%s3902] ss:$9 sm:$0xff] %v770
        %4015 = vst [vmem:[%s3904] ss:$9 sm:$0xff] %v773
        %4016 = vst [vmem:[%s3906] ss:$9 sm:$0xff] %v776
        %4017 = vst [vmem:[%s3908] ss:$9 sm:$0xff] %v779
        %v4018 = vld [vmem:[#allocation1] sm:$0xff]
        %4019 = vst [vmem:[#allocation1] ss:$9 sm:$0xff] %v782
        %4020 = vst [vmem:[%s3896] ss:$9 sm:$0xff] %v785
        %4021 = vst [vmem:[%s3898] ss:$9 sm:$0xff] %v788
        %4022 = vst [vmem:[%s3900] ss:$9 sm:$0xff] %v791
        %4023 = vst [vmem:[%s3902] ss:$9 sm:$0xff] %v794
        %4024 = vst [vmem:[%s3904] ss:$9 sm:$0xff] %v797
        %4025 = vst [vmem:[%s3906] ss:$9 sm:$0xff] %v800
        %4026 = vst [vmem:[%s3908] ss:$9 sm:$0xff] %v803
        %v4027 = vld [vmem:[#allocation1] sm:$0xff]
        %4028 = vst [vmem:[#allocation1] ss:$9 sm:$0xff] %v806
        %4029 = vst [vmem:[%s3896] ss:$9 sm:$0xff] %v809
        %4030 = vst [vmem:[%s3898] ss:$9 sm:$0xff] %v812
        %4031 = vst [vmem:[%s3900] ss:$9 sm:$0xff] %v815
        %4032 = vst [vmem:[%s3902] ss:$9 sm:$0xff] %v818
        %4033 = vst [vmem:[%s3904] ss:$9 sm:$0xff] %v821
        %4034 = vst [vmem:[%s3906] ss:$9 sm:$0xff] %v824
        %4035 = vst [vmem:[%s3908] ss:$9 sm:$0xff] %v827
        %v4036 = vld [vmem:[#allocation1] sm:$0xff]
        %4037 = vst [vmem:[#allocation1] ss:$9 sm:$0xff] %v830
        %4038 = vst [vmem:[%s3896] ss:$9 sm:$0xff] %v833
        %4039 = vst [vmem:[%s3898] ss:$9 sm:$0xff] %v836
        %4040 = vst [vmem:[%s3900] ss:$9 sm:$0xff] %v839
        %4041 = vst [vmem:[%s3902] ss:$9 sm:$0xff] %v842
        %4042 = vst [vmem:[%s3904] ss:$9 sm:$0xff] %v845
        %4043 = vst [vmem:[%s3906] ss:$9 sm:$0xff] %v848
        %4044 = vst [vmem:[%s3908] ss:$9 sm:$0xff] %v851
        %v4045 = vld [vmem:[#allocation1] sm:$0xff]
        %4046 = vst [vmem:[#allocation1] ss:$9 sm:$0xff] %v854
        %4047 = vst [vmem:[%s3896] ss:$9 sm:$0xff] %v857
        %4048 = vst [vmem:[%s3898] ss:$9 sm:$0xff] %v860
        %4049 = vst [vmem:[%s3900] ss:$9 sm:$0xff] %v863
        %4050 = vst [vmem:[%s3902] ss:$9 sm:$0xff] %v866
        %4051 = vst [vmem:[%s3904] ss:$9 sm:$0xff] %v869
        %4052 = vst [vmem:[%s3906] ss:$9 sm:$0xff] %v872
        %4053 = vst [vmem:[%s3908] ss:$9 sm:$0xff] %v875
        %v4054 = vld [vmem:[#allocation1] sm:$0xff]
        %4055 = vst [vmem:[#allocation1] ss:$9 sm:$0xff] %v878
        %4056 = vst [vmem:[%s3896] ss:$9 sm:$0xff] %v881
        %4057 = vst [vmem:[%s3898] ss:$9 sm:$0xff] %v884
        %4058 = vst [vmem:[%s3900] ss:$9 sm:$0xff] %v887
        %4059 = vst [vmem:[%s3902] ss:$9 sm:$0xff] %v890
        %4060 = vst [vmem:[%s3904] ss:$9 sm:$0xff] %v893
        %4061 = vst [vmem:[%s3906] ss:$9 sm:$0xff] %v896
        %4062 = vst [vmem:[%s3908] ss:$9 sm:$0xff] %v899
        %v4063 = vld [vmem:[#allocation1] sm:$0xff]
        %4064 = vst [vmem:[#allocation1] ss:$9 sm:$0xff] %v902
        %4065 = vst [vmem:[%s3896] ss:$9 sm:$0xff] %v905
        %4066 = vst [vmem:[%s3898] ss:$9 sm:$0xff] %v908
        %4067 = vst [vmem:[%s3900] ss:$9 sm:$0xff] %v911
        %4068 = vst [vmem:[%s3902] ss:$9 sm:$0xff] %v914
        %4069 = vst [vmem:[%s3904] ss:$9 sm:$0xff] %v917
        %4070 = vst [vmem:[%s3906] ss:$9 sm:$0xff] %v920
        %4071 = vst [vmem:[%s3908] ss:$9 sm:$0xff] %v923
        %v4072 = vld [vmem:[#allocation1] sm:$0xff]
        %4073 = vst [vmem:[#allocation1] ss:$9 sm:$0xff] %v926
        %4074 = vst [vmem:[%s3896] ss:$9 sm:$0xff] %v3854
        %4076 = vst [vmem:[%s3898] ss:$9 sm:$0xff] %v3857
        %4078 = vst [vmem:[%s3900] ss:$9 sm:$0xff] %v3860
        %4080 = vst [vmem:[%s3902] ss:$9 sm:$0xff] %v3863
        %4081 = vst [vmem:[%s3904] ss:$9 sm:$0xff] %v3866
        %4083 = vst [vmem:[%s3906] ss:$9 sm:$0xff] %v3869
        %4085 = vst [vmem:[%s3908] ss:$9 sm:$0xff] %v3872
        %v4086 = vld [vmem:[#allocation1] sm:$0xff]
        %4088 = vst [vmem:[#allocation1] ss:$9 sm:$0xff] %v3875
        %4089 = vst [vmem:[%s3896] ss:$9 sm:$0xff] %v3878
        %v4090 = vld [vmem:[#allocation1] sm:$0xff]
        %v4128 = vunpack.c.l.b16 %v3879
        %v4129 = vunpack.c.l.b16 %v3880
        %v4130 = vunpack.c.l.b16 %v3881
        %v4131 = vunpack.c.l.b16 %v3882
        %v4132 = vunpack.c.l.b16 %v3883
        %v4133 = vunpack.c.l.b16 %v3884
        %v4134 = vunpack.c.l.b16 %v3885
        %v4135 = vunpack.c.l.b16 %v3886
        %v4136 = vunpack.c.l.b16 %v3887
        %v4137 = vunpack.c.l.b16 %v3888
        %v4138 = vunpack.c.l.b16 %v3889
        %v4139 = vunpack.c.l.b16 %v3890
        %v4140 = vunpack.c.l.b16 %v3891
        %v4141 = vunpack.c.l.b16 %v3892
        %v4142 = vunpack.c.l.b16 %v3893
        %v4143 = vunpack.c.l.b16 %v3894
        %v4144 = vpack.c.b16 %v4129, %v4128
        %v4145 = vpack.c.b16 %v4131, %v4130
        %v4146 = vpack.c.b16 %v4133, %v4132
        %v4147 = vpack.c.b16 %v4135, %v4134
        %v4148 = vpack.c.b16 %v4137, %v4136
        %v4149 = vpack.c.b16 %v4139, %v4138
        %v4150 = vpack.c.b16 %v4141, %v4140
        %v4151 = vpack.c.b16 %v4143, %v4142
        %4160 = vmatpush.bf16.msra.mxu0 %v4151
        %4161 = vmatpush.bf16.msra.mxu0 %v4150
        %4162 = vmatpush.bf16.msra.mxu0 %v4149
        %4163 = vmatpush.bf16.msra.mxu0 %v4148
        %4164 = vmatpush.bf16.msra.mxu0 %v4147
        %4165 = vmatpush.bf16.msra.mxu0 %v4146
        %4166 = vmatpush.bf16.msra.mxu0 %v4145
        %4167 = vmatpush.bf16.msra.mxu0 %v4144
        %4168 = vmatmul.bf16.gmra.mxu0 %v3910
        %v4169 = vpop.f32.mrf.mxu0
        %v4170 = vadd.f32 0.0, %v4169
        %v4171 = vpop.f32.mrf.mxu0
        %v4172 = vadd.f32 0.0, %v4171
        %4173 = vmatmul.bf16.gmra.mxu0 %v3919
        %v4174 = vpop.f32.mrf.mxu0
        %v4175 = vadd.f32 0.0, %v4174
        %v4176 = vpop.f32.mrf.mxu0
        %v4177 = vadd.f32 0.0, %v4176
        %4178 = vmatmul.bf16.gmra.mxu0 %v3928
        %v4179 = vpop.f32.mrf.mxu0
        %v4180 = vadd.f32 0.0, %v4179
        %v4181 = vpop.f32.mrf.mxu0
        %v4182 = vadd.f32 0.0, %v4181
        %4183 = vmatmul.bf16.gmra.mxu0 %v3937
        %v4184 = vpop.f32.mrf.mxu0
        %v4185 = vadd.f32 0.0, %v4184
        %v4186 = vpop.f32.mrf.mxu0
        %v4187 = vadd.f32 0.0, %v4186
        %4188 = vmatmul.bf16.gmra.mxu0 %v3946
        %v4189 = vpop.f32.mrf.mxu0
        %v4190 = vadd.f32 0.0, %v4189
        %v4191 = vpop.f32.mrf.mxu0
        %v4192 = vadd.f32 0.0, %v4191
        %4193 = vmatmul.bf16.gmra.mxu0 %v3955
        %v4194 = vpop.f32.mrf.mxu0
        %v4195 = vadd.f32 0.0, %v4194
        %v4196 = vpop.f32.mrf.mxu0
        %v4197 = vadd.f32 0.0, %v4196
        %4198 = vmatmul.bf16.gmra.mxu0 %v3964
        %v4199 = vpop.f32.mrf.mxu0
        %v4200 = vadd.f32 0.0, %v4199
        %v4201 = vpop.f32.mrf.mxu0
        %v4202 = vadd.f32 0.0, %v4201
        %4203 = vmatmul.bf16.gmra.mxu0 %v3973
        %v4204 = vpop.f32.mrf.mxu0
        %v4205 = vadd.f32 0.0, %v4204
        %v4206 = vpop.f32.mrf.mxu0
        %v4207 = vadd.f32 0.0, %v4206
        %4208 = vmatmul.bf16.gmra.mxu0 %v3982
        %v4209 = vpop.f32.mrf.mxu0
        %v4210 = vadd.f32 0.0, %v4209
        %v4211 = vpop.f32.mrf.mxu0
        %v4212 = vadd.f32 0.0, %v4211
        %4213 = vmatmul.bf16.gmra.mxu0 %v3991
        %v4214 = vpop.f32.mrf.mxu0
        %v4215 = vadd.f32 0.0, %v4214
        %v4216 = vpop.f32.mrf.mxu0
        %v4217 = vadd.f32 0.0, %v4216
        %4218 = vmatmul.bf16.gmra.mxu0 %v4000
        %v4219 = vpop.f32.mrf.mxu0
        %v4220 = vadd.f32 0.0, %v4219
        %v4221 = vpop.f32.mrf.mxu0
        %v4222 = vadd.f32 0.0, %v4221
        %4223 = vmatmul.bf16.gmra.mxu0 %v4009
        %v4224 = vpop.f32.mrf.mxu0
        %v4225 = vadd.f32 0.0, %v4224
        %v4226 = vpop.f32.mrf.mxu0
        %v4227 = vadd.f32 0.0, %v4226
        %4228 = vmatmul.bf16.gmra.mxu0 %v4018
        %v4229 = vpop.f32.mrf.mxu0
        %v4230 = vadd.f32 0.0, %v4229
        %v4231 = vpop.f32.mrf.mxu0
        %v4232 = vadd.f32 0.0, %v4231
        %4233 = vmatmul.bf16.gmra.mxu0 %v4027
        %v4234 = vpop.f32.mrf.mxu0
        %v4235 = vadd.f32 0.0, %v4234
        %v4236 = vpop.f32.mrf.mxu0
        %v4237 = vadd.f32 0.0, %v4236
        %4238 = vmatmul.bf16.gmra.mxu0 %v4036
        %v4239 = vpop.f32.mrf.mxu0
        %v4240 = vadd.f32 0.0, %v4239
        %v4241 = vpop.f32.mrf.mxu0
        %v4242 = vadd.f32 0.0, %v4241
        %4243 = vmatmul.bf16.gmra.mxu0 %v4045
        %v4244 = vpop.f32.mrf.mxu0
        %v4245 = vadd.f32 0.0, %v4244
        %v4246 = vpop.f32.mrf.mxu0
        %v4247 = vadd.f32 0.0, %v4246
        %4248 = vmatmul.bf16.gmra.mxu0 %v4054
        %v4249 = vpop.f32.mrf.mxu0
        %v4250 = vadd.f32 0.0, %v4249
        %v4251 = vpop.f32.mrf.mxu0
        %v4252 = vadd.f32 0.0, %v4251
        %4253 = vmatmul.bf16.gmra.mxu0 %v4063
        %v4254 = vpop.f32.mrf.mxu0
        %v4255 = vadd.f32 0.0, %v4254
        %v4256 = vpop.f32.mrf.mxu0
        %v4257 = vadd.f32 0.0, %v4256
        %4258 = vmatmul.bf16.gmra.mxu0 %v4072
        %v4259 = vpop.f32.mrf.mxu0
        %v4260 = vadd.f32 0.0, %v4259
        %v4261 = vpop.f32.mrf.mxu0
        %v4262 = vadd.f32 0.0, %v4261
        %4263 = vmatmul.bf16.gmra.mxu0 %v4086
        %v4264 = vpop.f32.mrf.mxu0
        %v4265 = vadd.f32 0.0, %v4264
        %v4266 = vpop.f32.mrf.mxu0
        %v4267 = vadd.f32 0.0, %v4266
        %4268 = vmatmul.bf16.gmra.mxu0 %v4090
        %v4269 = vpop.f32.mrf.mxu0
        %v4270 = vadd.f32 0.0, %v4269
        %v4271 = vpop.f32.mrf.mxu0
        %4272 = vdwg.mxu0
        %v4273 = vadd.f32 %v3805, %v4170
        %v4274 = vadd.f32 %v3806, %v4172
        %v4275 = vadd.f32 %v3807, %v4175
        %v4276 = vadd.f32 %v3808, %v4177
        %v4277 = vadd.f32 %v3809, %v4180
        %v4278 = vadd.f32 %v3810, %v4182
        %v4279 = vadd.f32 %v3811, %v4185
        %v4280 = vadd.f32 %v3812, %v4187
        %v4281 = vadd.f32 %v3813, %v4190
        %v4282 = vadd.f32 %v3814, %v4192
        %v4283 = vadd.f32 %v3815, %v4195
        %v4284 = vadd.f32 %v3816, %v4197
        %v4285 = vadd.f32 %v3817, %v4200
        %v4286 = vadd.f32 %v3818, %v4202
        %v4287 = vadd.f32 %v3819, %v4205
        %v4288 = vadd.f32 %v3820, %v4207
        %v4289 = vadd.f32 %v3821, %v4210
        %v4290 = vadd.f32 %v3822, %v4212
        %v4291 = vadd.f32 %v3823, %v4215
        %v4292 = vadd.f32 %v3824, %v4217
        %v4293 = vadd.f32 %v3825, %v4220
        %v4294 = vadd.f32 %v3826, %v4222
        %v4295 = vadd.f32 %v3827, %v4225
        %v4296 = vadd.f32 %v3828, %v4227
        %v4297 = vadd.f32 %v3829, %v4230
        %v4298 = vadd.f32 %v3830, %v4232
        %v4299 = vadd.f32 %v3831, %v4235
        %v4300 = vadd.f32 %v3832, %v4237
        %v4301 = vadd.f32 %v3833, %v4240
        %v4302 = vadd.f32 %v3834, %v4242
        %v4303 = vadd.f32 %v3835, %v4245
        %v4304 = vadd.f32 %v3836, %v4247
        %v4305 = vadd.f32 %v3837, %v4250
        %v4306 = vadd.f32 %v3838, %v4252
        %v4307 = vadd.f32 %v3839, %v4255
        %v4308 = vadd.f32 %v3840, %v4257
        %v4309 = vadd.f32 %v3841, %v4260
        %v4310 = vadd.f32 %v3842, %v4262
        %v4311 = vadd.f32 %v3843, %v4265
        %v4312 = vadd.f32 %v3844, %v4267
        %v4313 = vadd.f32 %v3845, %v4270
        %v4314 = vsel %vm441, %v325, %v3851
        %v4316 = vrot.slane %v4314, 1
        %v4317 = vshrl.u32 %v3854, 16
        %v4319 = vrot.slane %v4317, 7
        %v4320 = vrot.slane %v4319, 1
        %v4321 = vshll.u32 %v3857, 16
        %v4323 = vsel %vm1011, %v4320, %v4321
        %v4324 = vshrl.u32 %v3857, 16
        %v4326 = vrot.slane %v4324, 7
        %v4327 = vrot.slane %v4326, 1
        %v4328 = vshll.u32 %v3860, 16
        %v4330 = vsel %vm1011, %v4327, %v4328
        %v4331 = vshrl.u32 %v3860, 16
        %v4333 = vrot.slane %v4331, 7
        %v4334 = vrot.slane %v4333, 1
        %v4335 = vshll.u32 %v3863, 16
        %v4337 = vsel %vm1011, %v4334, %v4335
        %v4338 = vshrl.u32 %v3863, 16
        %v4340 = vrot.slane %v4338, 7
        %v4341 = vrot.slane %v4340, 1
        %v4342 = vshll.u32 %v3866, 16
        %v4344 = vsel %vm1011, %v4341, %v4342
        %v4345 = vshrl.u32 %v3866, 16
        %v4347 = vrot.slane %v4345, 7
        %v4348 = vrot.slane %v4347, 1
        %v4349 = vshll.u32 %v3869, 16
        %v4351 = vsel %vm1011, %v4348, %v4349
        %v4352 = vshrl.u32 %v3869, 16
        %v4354 = vrot.slane %v4352, 7
        %v4355 = vrot.slane %v4354, 1
        %v4356 = vshll.u32 %v3872, 16
        %v4358 = vsel %vm1011, %v4355, %v4356
        %v4359 = vshrl.u32 %v3872, 16
        %v4361 = vrot.slane %v4359, 7
        %v4362 = vrot.slane %v4361, 1
        %v4363 = vshll.u32 %v3875, 16
        %v4365 = vsel %vm1011, %v4362, %v4363
        %v4366 = vshrl.u32 %v3875, 16
        %v4368 = vrot.slane %v4366, 7
        %v4369 = vrot.slane %v4368, 1
        %v4370 = vshll.u32 %v3878, 16
        %v4372 = vsel %vm1011, %v4369, %v4370
        %v4373 = vshrl.u32 %v3878, 16
        %v4375 = vrot.slane %v4373, 7
        %v4376 = vrot.slane %v4375, 1
        %v4378 = vshll.u32 %v4316, 16
        %v4380 = vsel %vm1011, %v4376, %v4378
        %v4381 = vld [vmem:[%s1 + $0x100] sm:$0xf]
        %v4382 = vld [vmem:[%s1 + $0x104] sm:$0xf]
        %v4383 = vld [vmem:[%s1 + $0x108] sm:$0xf]
        %v4384 = vld [vmem:[%s1 + $0x10c] sm:$0xf]
        %v4385 = vld [vmem:[%s1 + $0x110] sm:$0xf]
        %v4386 = vld [vmem:[%s1 + $0x114] sm:$0xf]
        %v4387 = vld [vmem:[%s1 + $0x118] sm:$0xf]
        %v4388 = vld [vmem:[%s1 + $0x11c] sm:$0xf]
        %v4389 = vld [vmem:[%s1 + $0x120] sm:$0xf]
        %v4390 = vld [vmem:[%s1 + $0x124] sm:$0xf]
        %v4391 = vld [vmem:[%s1 + $0x128] sm:$0xf]
        %v4392 = vld [vmem:[%s1 + $0x12c] sm:$0xf]
        %v4393 = vld [vmem:[%s1 + $0x130] sm:$0xf]
        %v4394 = vld [vmem:[%s1 + $0x134] sm:$0xf]
        %v4395 = vld [vmem:[%s1 + $0x138] sm:$0xf]
        %v4396 = vld [vmem:[%s1 + $0x13c] sm:$0xf]
        %4397 = vst [vmem:[#allocation1] ss:$9 sm:$0xff] %v1089
        %s4398 = scalar_lea.vmem [#allocation1], 1
        %4399 = vst [vmem:[%s4398] ss:$9 sm:$0xff] %v1097
        %s4400 = scalar_lea.vmem [#allocation1], 2
        %4401 = vst [vmem:[%s4400] ss:$9 sm:$0xff] %v1105
        %s4402 = scalar_lea.vmem [#allocation1], 3
        %4403 = vst [vmem:[%s4402] ss:$9 sm:$0xff] %v1112
        %s4404 = scalar_lea.vmem [#allocation1], 4
        %4405 = vst [vmem:[%s4404] ss:$9 sm:$0xff] %v1120
        %s4406 = scalar_lea.vmem [#allocation1], 5
        %4407 = vst [vmem:[%s4406] ss:$9 sm:$0xff] %v1128
        %s4408 = scalar_lea.vmem [#allocation1], 6
        %4409 = vst [vmem:[%s4408] ss:$9 sm:$0xff] %v1136
        %s4410 = scalar_lea.vmem [#allocation1], 7
        %4411 = vst [vmem:[%s4410] ss:$9 sm:$0xff] %v1143
        %v4412 = vld [vmem:[#allocation1] sm:$0xff]
        %4413 = vst [vmem:[#allocation1] ss:$9 sm:$0xff] %v1151
        %4414 = vst [vmem:[%s4398] ss:$9 sm:$0xff] %v1159
        %4415 = vst [vmem:[%s4400] ss:$9 sm:$0xff] %v1167
        %4416 = vst [vmem:[%s4402] ss:$9 sm:$0xff] %v1175
        %4417 = vst [vmem:[%s4404] ss:$9 sm:$0xff] %v1182
        %4418 = vst [vmem:[%s4406] ss:$9 sm:$0xff] %v1190
        %4419 = vst [vmem:[%s4408] ss:$9 sm:$0xff] %v1198
        %4420 = vst [vmem:[%s4410] ss:$9 sm:$0xff] %v1206
        %v4421 = vld [vmem:[#allocation1] sm:$0xff]
        %4422 = vst [vmem:[#allocation1] ss:$9 sm:$0xff] %v1213
        %4423 = vst [vmem:[%s4398] ss:$9 sm:$0xff] %v1221
        %4424 = vst [vmem:[%s4400] ss:$9 sm:$0xff] %v1229
        %4425 = vst [vmem:[%s4402] ss:$9 sm:$0xff] %v1237
        %4426 = vst [vmem:[%s4404] ss:$9 sm:$0xff] %v1245
        %4427 = vst [vmem:[%s4406] ss:$9 sm:$0xff] %v1252
        %4428 = vst [vmem:[%s4408] ss:$9 sm:$0xff] %v1260
        %4429 = vst [vmem:[%s4410] ss:$9 sm:$0xff] %v1268
        %v4430 = vld [vmem:[#allocation1] sm:$0xff]
        %4431 = vst [vmem:[#allocation1] ss:$9 sm:$0xff] %v1276
        %4432 = vst [vmem:[%s4398] ss:$9 sm:$0xff] %v1283
        %4433 = vst [vmem:[%s4400] ss:$9 sm:$0xff] %v1291
        %4434 = vst [vmem:[%s4402] ss:$9 sm:$0xff] %v1299
        %4435 = vst [vmem:[%s4404] ss:$9 sm:$0xff] %v1307
        %4436 = vst [vmem:[%s4406] ss:$9 sm:$0xff] %v1315
        %4437 = vst [vmem:[%s4408] ss:$9 sm:$0xff] %v1322
        %4438 = vst [vmem:[%s4410] ss:$9 sm:$0xff] %v1330
        %v4439 = vld [vmem:[#allocation1] sm:$0xff]
        %4440 = vst [vmem:[#allocation1] ss:$9 sm:$0xff] %v1338
        %4441 = vst [vmem:[%s4398] ss:$9 sm:$0xff] %v1346
        %4442 = vst [vmem:[%s4400] ss:$9 sm:$0xff] %v1353
        %4443 = vst [vmem:[%s4402] ss:$9 sm:$0xff] %v1361
        %4444 = vst [vmem:[%s4404] ss:$9 sm:$0xff] %v1369
        %4445 = vst [vmem:[%s4406] ss:$9 sm:$0xff] %v1377
        %4446 = vst [vmem:[%s4408] ss:$9 sm:$0xff] %v1385
        %4447 = vst [vmem:[%s4410] ss:$9 sm:$0xff] %v1392
        %v4448 = vld [vmem:[#allocation1] sm:$0xff]
        %4449 = vst [vmem:[#allocation1] ss:$9 sm:$0xff] %v1400
        %4450 = vst [vmem:[%s4398] ss:$9 sm:$0xff] %v1408
        %4451 = vst [vmem:[%s4400] ss:$9 sm:$0xff] %v1416
        %4452 = vst [vmem:[%s4402] ss:$9 sm:$0xff] %v1423
        %4453 = vst [vmem:[%s4404] ss:$9 sm:$0xff] %v1431
        %4454 = vst [vmem:[%s4406] ss:$9 sm:$0xff] %v1439
        %4455 = vst [vmem:[%s4408] ss:$9 sm:$0xff] %v1447
        %4456 = vst [vmem:[%s4410] ss:$9 sm:$0xff] %v1455
        %v4457 = vld [vmem:[#allocation1] sm:$0xff]
        %4458 = vst [vmem:[#allocation1] ss:$9 sm:$0xff] %v1462
        %4459 = vst [vmem:[%s4398] ss:$9 sm:$0xff] %v1470
        %4460 = vst [vmem:[%s4400] ss:$9 sm:$0xff] %v1478
        %4461 = vst [vmem:[%s4402] ss:$9 sm:$0xff] %v1486
        %4462 = vst [vmem:[%s4404] ss:$9 sm:$0xff] %v1493
        %4463 = vst [vmem:[%s4406] ss:$9 sm:$0xff] %v1501
        %4464 = vst [vmem:[%s4408] ss:$9 sm:$0xff] %v1509
        %4465 = vst [vmem:[%s4410] ss:$9 sm:$0xff] %v1517
        %v4466 = vld [vmem:[#allocation1] sm:$0xff]
        %4467 = vst [vmem:[#allocation1] ss:$9 sm:$0xff] %v1525
        %4468 = vst [vmem:[%s4398] ss:$9 sm:$0xff] %v1532
        %4469 = vst [vmem:[%s4400] ss:$9 sm:$0xff] %v1540
        %4470 = vst [vmem:[%s4402] ss:$9 sm:$0xff] %v1548
        %4471 = vst [vmem:[%s4404] ss:$9 sm:$0xff] %v1556
        %4472 = vst [vmem:[%s4406] ss:$9 sm:$0xff] %v1563
        %4473 = vst [vmem:[%s4408] ss:$9 sm:$0xff] %v1571
        %4474 = vst [vmem:[%s4410] ss:$9 sm:$0xff] %v1579
        %v4475 = vld [vmem:[#allocation1] sm:$0xff]
        %4476 = vst [vmem:[#allocation1] ss:$9 sm:$0xff] %v1587
        %4477 = vst [vmem:[%s4398] ss:$9 sm:$0xff] %v1595
        %4478 = vst [vmem:[%s4400] ss:$9 sm:$0xff] %v1602
        %4479 = vst [vmem:[%s4402] ss:$9 sm:$0xff] %v1610
        %4480 = vst [vmem:[%s4404] ss:$9 sm:$0xff] %v1618
        %4481 = vst [vmem:[%s4406] ss:$9 sm:$0xff] %v1626
        %4482 = vst [vmem:[%s4408] ss:$9 sm:$0xff] %v1633
        %4483 = vst [vmem:[%s4410] ss:$9 sm:$0xff] %v1641
        %v4484 = vld [vmem:[#allocation1] sm:$0xff]
        %4485 = vst [vmem:[#allocation1] ss:$9 sm:$0xff] %v1649
        %4486 = vst [vmem:[%s4398] ss:$9 sm:$0xff] %v1657
        %4487 = vst [vmem:[%s4400] ss:$9 sm:$0xff] %v1665
        %4488 = vst [vmem:[%s4402] ss:$9 sm:$0xff] %v1672
        %4489 = vst [vmem:[%s4404] ss:$9 sm:$0xff] %v1680
        %4490 = vst [vmem:[%s4406] ss:$9 sm:$0xff] %v1688
        %4491 = vst [vmem:[%s4408] ss:$9 sm:$0xff] %v1696
        %4492 = vst [vmem:[%s4410] ss:$9 sm:$0xff] %v1703
        %v4493 = vld [vmem:[#allocation1] sm:$0xff]
        %4494 = vst [vmem:[#allocation1] ss:$9 sm:$0xff] %v1711
        %4495 = vst [vmem:[%s4398] ss:$9 sm:$0xff] %v1719
        %4496 = vst [vmem:[%s4400] ss:$9 sm:$0xff] %v1727
        %4497 = vst [vmem:[%s4402] ss:$9 sm:$0xff] %v1735
        %4498 = vst [vmem:[%s4404] ss:$9 sm:$0xff] %v1742
        %4499 = vst [vmem:[%s4406] ss:$9 sm:$0xff] %v1750
        %4500 = vst [vmem:[%s4408] ss:$9 sm:$0xff] %v1758
        %4501 = vst [vmem:[%s4410] ss:$9 sm:$0xff] %v1766
        %v4502 = vld [vmem:[#allocation1] sm:$0xff]
        %4503 = vst [vmem:[#allocation1] ss:$9 sm:$0xff] %v1773
        %4504 = vst [vmem:[%s4398] ss:$9 sm:$0xff] %v1781
        %4505 = vst [vmem:[%s4400] ss:$9 sm:$0xff] %v1789
        %4506 = vst [vmem:[%s4402] ss:$9 sm:$0xff] %v1797
        %4507 = vst [vmem:[%s4404] ss:$9 sm:$0xff] %v1805
        %4508 = vst [vmem:[%s4406] ss:$9 sm:$0xff] %v1812
        %4509 = vst [vmem:[%s4408] ss:$9 sm:$0xff] %v1820
        %4510 = vst [vmem:[%s4410] ss:$9 sm:$0xff] %v1828
        %v4511 = vld [vmem:[#allocation1] sm:$0xff]
        %4512 = vst [vmem:[#allocation1] ss:$9 sm:$0xff] %v1836
        %4513 = vst [vmem:[%s4398] ss:$9 sm:$0xff] %v1843
        %4514 = vst [vmem:[%s4400] ss:$9 sm:$0xff] %v1851
        %4515 = vst [vmem:[%s4402] ss:$9 sm:$0xff] %v1859
        %4516 = vst [vmem:[%s4404] ss:$9 sm:$0xff] %v1867
        %4517 = vst [vmem:[%s4406] ss:$9 sm:$0xff] %v1875
        %4518 = vst [vmem:[%s4408] ss:$9 sm:$0xff] %v1882
        %4519 = vst [vmem:[%s4410] ss:$9 sm:$0xff] %v1890
        %v4520 = vld [vmem:[#allocation1] sm:$0xff]
        %4521 = vst [vmem:[#allocation1] ss:$9 sm:$0xff] %v1898
        %4522 = vst [vmem:[%s4398] ss:$9 sm:$0xff] %v1906
        %4523 = vst [vmem:[%s4400] ss:$9 sm:$0xff] %v1913
        %4524 = vst [vmem:[%s4402] ss:$9 sm:$0xff] %v1921
        %4525 = vst [vmem:[%s4404] ss:$9 sm:$0xff] %v1929
        %4526 = vst [vmem:[%s4406] ss:$9 sm:$0xff] %v1937
        %4527 = vst [vmem:[%s4408] ss:$9 sm:$0xff] %v1945
        %4528 = vst [vmem:[%s4410] ss:$9 sm:$0xff] %v1952
        %v4529 = vld [vmem:[#allocation1] sm:$0xff]
        %4530 = vst [vmem:[#allocation1] ss:$9 sm:$0xff] %v1960
        %4531 = vst [vmem:[%s4398] ss:$9 sm:$0xff] %v1968
        %4532 = vst [vmem:[%s4400] ss:$9 sm:$0xff] %v1976
        %4533 = vst [vmem:[%s4402] ss:$9 sm:$0xff] %v1983
        %4534 = vst [vmem:[%s4404] ss:$9 sm:$0xff] %v1991
        %4535 = vst [vmem:[%s4406] ss:$9 sm:$0xff] %v1999
        %4536 = vst [vmem:[%s4408] ss:$9 sm:$0xff] %v2007
        %4537 = vst [vmem:[%s4410] ss:$9 sm:$0xff] %v2015
        %v4538 = vld [vmem:[#allocation1] sm:$0xff]
        %4539 = vst [vmem:[#allocation1] ss:$9 sm:$0xff] %v2022
        %4540 = vst [vmem:[%s4398] ss:$9 sm:$0xff] %v2030
        %4541 = vst [vmem:[%s4400] ss:$9 sm:$0xff] %v2038
        %4542 = vst [vmem:[%s4402] ss:$9 sm:$0xff] %v2046
        %4543 = vst [vmem:[%s4404] ss:$9 sm:$0xff] %v2053
        %4544 = vst [vmem:[%s4406] ss:$9 sm:$0xff] %v2061
        %4545 = vst [vmem:[%s4408] ss:$9 sm:$0xff] %v2069
        %4546 = vst [vmem:[%s4410] ss:$9 sm:$0xff] %v2077
        %v4547 = vld [vmem:[#allocation1] sm:$0xff]
        %4548 = vst [vmem:[#allocation1] ss:$9 sm:$0xff] %v2085
        %4549 = vst [vmem:[%s4398] ss:$9 sm:$0xff] %v2092
        %4550 = vst [vmem:[%s4400] ss:$9 sm:$0xff] %v2100
        %4551 = vst [vmem:[%s4402] ss:$9 sm:$0xff] %v2108
        %4552 = vst [vmem:[%s4404] ss:$9 sm:$0xff] %v2116
        %4553 = vst [vmem:[%s4406] ss:$9 sm:$0xff] %v2123
        %4554 = vst [vmem:[%s4408] ss:$9 sm:$0xff] %v2131
        %4555 = vst [vmem:[%s4410] ss:$9 sm:$0xff] %v2139
        %v4556 = vld [vmem:[#allocation1] sm:$0xff]
        %4557 = vst [vmem:[#allocation1] ss:$9 sm:$0xff] %v2147
        %4558 = vst [vmem:[%s4398] ss:$9 sm:$0xff] %v2155
        %4559 = vst [vmem:[%s4400] ss:$9 sm:$0xff] %v2162
        %4560 = vst [vmem:[%s4402] ss:$9 sm:$0xff] %v2170
        %4561 = vst [vmem:[%s4404] ss:$9 sm:$0xff] %v2178
        %4562 = vst [vmem:[%s4406] ss:$9 sm:$0xff] %v2186
        %4563 = vst [vmem:[%s4408] ss:$9 sm:$0xff] %v2193
        %4564 = vst [vmem:[%s4410] ss:$9 sm:$0xff] %v2201
        %v4565 = vld [vmem:[#allocation1] sm:$0xff]
        %4566 = vst [vmem:[#allocation1] ss:$9 sm:$0xff] %v2209
        %4567 = vst [vmem:[%s4398] ss:$9 sm:$0xff] %v2217
        %4568 = vst [vmem:[%s4400] ss:$9 sm:$0xff] %v2225
        %4569 = vst [vmem:[%s4402] ss:$9 sm:$0xff] %v2232
        %4570 = vst [vmem:[%s4404] ss:$9 sm:$0xff] %v2240
        %4571 = vst [vmem:[%s4406] ss:$9 sm:$0xff] %v2248
        %4572 = vst [vmem:[%s4408] ss:$9 sm:$0xff] %v2256
        %4573 = vst [vmem:[%s4410] ss:$9 sm:$0xff] %v2263
        %v4574 = vld [vmem:[#allocation1] sm:$0xff]
        %4575 = vst [vmem:[#allocation1] ss:$9 sm:$0xff] %v2271
        %4577 = vst [vmem:[%s4398] ss:$9 sm:$0xff] %v4323
        %4579 = vst [vmem:[%s4400] ss:$9 sm:$0xff] %v4330
        %4581 = vst [vmem:[%s4402] ss:$9 sm:$0xff] %v4337
        %4583 = vst [vmem:[%s4404] ss:$9 sm:$0xff] %v4344
        %4585 = vst [vmem:[%s4406] ss:$9 sm:$0xff] %v4351
        %4587 = vst [vmem:[%s4408] ss:$9 sm:$0xff] %v4358
        %4589 = vst [vmem:[%s4410] ss:$9 sm:$0xff] %v4365
        %v4590 = vld [vmem:[#allocation1] sm:$0xff]
        %4592 = vst [vmem:[#allocation1] ss:$9 sm:$0xff] %v4372
        %4594 = vst [vmem:[%s4398] ss:$9 sm:$0xff] %v4380
        %v4595 = vld [vmem:[#allocation1] sm:$0xff]
        %v4633 = vunpack.c.l.b16 %v4381
        %v4634 = vunpack.c.l.b16 %v4382
        %v4635 = vunpack.c.l.b16 %v4383
        %v4636 = vunpack.c.l.b16 %v4384
        %v4637 = vunpack.c.l.b16 %v4385
        %v4638 = vunpack.c.l.b16 %v4386
        %v4639 = vunpack.c.l.b16 %v4387
        %v4640 = vunpack.c.l.b16 %v4388
        %v4641 = vunpack.c.l.b16 %v4389
        %v4642 = vunpack.c.l.b16 %v4390
        %v4643 = vunpack.c.l.b16 %v4391
        %v4644 = vunpack.c.l.b16 %v4392
        %v4645 = vunpack.c.l.b16 %v4393
        %v4646 = vunpack.c.l.b16 %v4394
        %v4647 = vunpack.c.l.b16 %v4395
        %v4648 = vunpack.c.l.b16 %v4396
        %v4649 = vpack.c.b16 %v4634, %v4633
        %v4650 = vpack.c.b16 %v4636, %v4635
        %v4651 = vpack.c.b16 %v4638, %v4637
        %v4652 = vpack.c.b16 %v4640, %v4639
        %v4653 = vpack.c.b16 %v4642, %v4641
        %v4654 = vpack.c.b16 %v4644, %v4643
        %v4655 = vpack.c.b16 %v4646, %v4645
        %v4656 = vpack.c.b16 %v4648, %v4647
        %4665 = vmatpush.bf16.msra.mxu0 %v4656
        %4666 = vmatpush.bf16.msra.mxu0 %v4655
        %4667 = vmatpush.bf16.msra.mxu0 %v4654
        %4668 = vmatpush.bf16.msra.mxu0 %v4653
        %4669 = vmatpush.bf16.msra.mxu0 %v4652
        %4670 = vmatpush.bf16.msra.mxu0 %v4651
        %4671 = vmatpush.bf16.msra.mxu0 %v4650
        %4672 = vmatpush.bf16.msra.mxu0 %v4649
        %4673 = vmatmul.bf16.gmra.mxu0 %v4412
        %v4674 = vpop.f32.mrf.mxu0
        %v4675 = vadd.f32 0.0, %v4674
        %v4676 = vpop.f32.mrf.mxu0
        %v4677 = vadd.f32 0.0, %v4676
        %4678 = vmatmul.bf16.gmra.mxu0 %v4421
        %v4679 = vpop.f32.mrf.mxu0
        %v4680 = vadd.f32 0.0, %v4679
        %v4681 = vpop.f32.mrf.mxu0
        %v4682 = vadd.f32 0.0, %v4681
        %4683 = vmatmul.bf16.gmra.mxu0 %v4430
        %v4684 = vpop.f32.mrf.mxu0
        %v4685 = vadd.f32 0.0, %v4684
        %v4686 = vpop.f32.mrf.mxu0
        %v4687 = vadd.f32 0.0, %v4686
        %4688 = vmatmul.bf16.gmra.mxu0 %v4439
        %v4689 = vpop.f32.mrf.mxu0
        %v4690 = vadd.f32 0.0, %v4689
        %v4691 = vpop.f32.mrf.mxu0
        %v4692 = vadd.f32 0.0, %v4691
        %4693 = vmatmul.bf16.gmra.mxu0 %v4448
        %v4694 = vpop.f32.mrf.mxu0
        %v4695 = vadd.f32 0.0, %v4694
        %v4696 = vpop.f32.mrf.mxu0
        %v4697 = vadd.f32 0.0, %v4696
        %4698 = vmatmul.bf16.gmra.mxu0 %v4457
        %v4699 = vpop.f32.mrf.mxu0
        %v4700 = vadd.f32 0.0, %v4699
        %v4701 = vpop.f32.mrf.mxu0
        %v4702 = vadd.f32 0.0, %v4701
        %4703 = vmatmul.bf16.gmra.mxu0 %v4466
        %v4704 = vpop.f32.mrf.mxu0
        %v4705 = vadd.f32 0.0, %v4704
        %v4706 = vpop.f32.mrf.mxu0
        %v4707 = vadd.f32 0.0, %v4706
        %4708 = vmatmul.bf16.gmra.mxu0 %v4475
        %v4709 = vpop.f32.mrf.mxu0
        %v4710 = vadd.f32 0.0, %v4709
        %v4711 = vpop.f32.mrf.mxu0
        %v4712 = vadd.f32 0.0, %v4711
        %4713 = vmatmul.bf16.gmra.mxu0 %v4484
        %v4714 = vpop.f32.mrf.mxu0
        %v4715 = vadd.f32 0.0, %v4714
        %v4716 = vpop.f32.mrf.mxu0
        %v4717 = vadd.f32 0.0, %v4716
        %4718 = vmatmul.bf16.gmra.mxu0 %v4493
        %v4719 = vpop.f32.mrf.mxu0
        %v4720 = vadd.f32 0.0, %v4719
        %v4721 = vpop.f32.mrf.mxu0
        %v4722 = vadd.f32 0.0, %v4721
        %4723 = vmatmul.bf16.gmra.mxu0 %v4502
        %v4724 = vpop.f32.mrf.mxu0
        %v4725 = vadd.f32 0.0, %v4724
        %v4726 = vpop.f32.mrf.mxu0
        %v4727 = vadd.f32 0.0, %v4726
        %4728 = vmatmul.bf16.gmra.mxu0 %v4511
        %v4729 = vpop.f32.mrf.mxu0
        %v4730 = vadd.f32 0.0, %v4729
        %v4731 = vpop.f32.mrf.mxu0
        %v4732 = vadd.f32 0.0, %v4731
        %4733 = vmatmul.bf16.gmra.mxu0 %v4520
        %v4734 = vpop.f32.mrf.mxu0
        %v4735 = vadd.f32 0.0, %v4734
        %v4736 = vpop.f32.mrf.mxu0
        %v4737 = vadd.f32 0.0, %v4736
        %4738 = vmatmul.bf16.gmra.mxu0 %v4529
        %v4739 = vpop.f32.mrf.mxu0
        %v4740 = vadd.f32 0.0, %v4739
        %v4741 = vpop.f32.mrf.mxu0
        %v4742 = vadd.f32 0.0, %v4741
        %4743 = vmatmul.bf16.gmra.mxu0 %v4538
        %v4744 = vpop.f32.mrf.mxu0
        %v4745 = vadd.f32 0.0, %v4744
        %v4746 = vpop.f32.mrf.mxu0
        %v4747 = vadd.f32 0.0, %v4746
        %4748 = vmatmul.bf16.gmra.mxu0 %v4547
        %v4749 = vpop.f32.mrf.mxu0
        %v4750 = vadd.f32 0.0, %v4749
        %v4751 = vpop.f32.mrf.mxu0
        %v4752 = vadd.f32 0.0, %v4751
        %4753 = vmatmul.bf16.gmra.mxu0 %v4556
        %v4754 = vpop.f32.mrf.mxu0
        %v4755 = vadd.f32 0.0, %v4754
        %v4756 = vpop.f32.mrf.mxu0
        %v4757 = vadd.f32 0.0, %v4756
        %4758 = vmatmul.bf16.gmra.mxu0 %v4565
        %v4759 = vpop.f32.mrf.mxu0
        %v4760 = vadd.f32 0.0, %v4759
        %v4761 = vpop.f32.mrf.mxu0
        %v4762 = vadd.f32 0.0, %v4761
        %4763 = vmatmul.bf16.gmra.mxu0 %v4574
        %v4764 = vpop.f32.mrf.mxu0
        %v4765 = vadd.f32 0.0, %v4764
        %v4766 = vpop.f32.mrf.mxu0
        %v4767 = vadd.f32 0.0, %v4766
        %4768 = vmatmul.bf16.gmra.mxu0 %v4590
        %v4769 = vpop.f32.mrf.mxu0
        %v4770 = vadd.f32 0.0, %v4769
        %v4771 = vpop.f32.mrf.mxu0
        %v4772 = vadd.f32 0.0, %v4771
        %4773 = vmatmul.bf16.gmra.mxu0 %v4595
        %v4774 = vpop.f32.mrf.mxu0
        %v4775 = vadd.f32 0.0, %v4774
        %v4776 = vpop.f32.mrf.mxu0
        %4777 = vdwg.mxu0
        %v4778 = vadd.f32 %v4273, %v4675
        %v4779 = vadd.f32 %v4274, %v4677
        %v4780 = vadd.f32 %v4275, %v4680
        %v4781 = vadd.f32 %v4276, %v4682
        %v4782 = vadd.f32 %v4277, %v4685
        %v4783 = vadd.f32 %v4278, %v4687
        %v4784 = vadd.f32 %v4279, %v4690
        %v4785 = vadd.f32 %v4280, %v4692
        %v4786 = vadd.f32 %v4281, %v4695
        %v4787 = vadd.f32 %v4282, %v4697
        %v4788 = vadd.f32 %v4283, %v4700
        %v4789 = vadd.f32 %v4284, %v4702
        %v4790 = vadd.f32 %v4285, %v4705
        %v4791 = vadd.f32 %v4286, %v4707
        %v4792 = vadd.f32 %v4287, %v4710
        %v4793 = vadd.f32 %v4288, %v4712
        %v4794 = vadd.f32 %v4289, %v4715
        %v4795 = vadd.f32 %v4290, %v4717
        %v4796 = vadd.f32 %v4291, %v4720
        %v4797 = vadd.f32 %v4292, %v4722
        %v4798 = vadd.f32 %v4293, %v4725
        %v4799 = vadd.f32 %v4294, %v4727
        %v4800 = vadd.f32 %v4295, %v4730
        %v4801 = vadd.f32 %v4296, %v4732
        %v4802 = vadd.f32 %v4297, %v4735
        %v4803 = vadd.f32 %v4298, %v4737
        %v4804 = vadd.f32 %v4299, %v4740
        %v4805 = vadd.f32 %v4300, %v4742
        %v4806 = vadd.f32 %v4301, %v4745
        %v4807 = vadd.f32 %v4302, %v4747
        %v4808 = vadd.f32 %v4303, %v4750
        %v4809 = vadd.f32 %v4304, %v4752
        %v4810 = vadd.f32 %v4305, %v4755
        %v4811 = vadd.f32 %v4306, %v4757
        %v4812 = vadd.f32 %v4307, %v4760
        %v4813 = vadd.f32 %v4308, %v4762
        %v4814 = vadd.f32 %v4309, %v4765
        %v4815 = vadd.f32 %v4310, %v4767
        %v4816 = vadd.f32 %v4311, %v4770
        %v4817 = vadd.f32 %v4312, %v4772
        %v4818 = vadd.f32 %v4313, %v4775
        %4819 = vst [vmem:[#allocation1] sm:$0xff] %v272
        %4820 = vst [vmem:[#allocation1 + $0x20] sm:$0xff] %v273
        %s4821 = scalar_lea.vmem [#allocation1], 1
        %v4822 = vld [vmem:[%s4821] ss:$4 sm:$0xff]
        %s4823 = scalar_lea.vmem [#allocation1], 2
        %v4824 = vld [vmem:[%s4823] ss:$4 sm:$0xff]
        %s4825 = scalar_lea.vmem [#allocation1], 3
        %v4826 = vld [vmem:[%s4825] ss:$4 sm:$0xff]
        %s4827 = scalar_lea.vmem [#allocation1], 32
        %v4828 = vld [vmem:[%s4827] ss:$4 sm:$0xff]
        %s4829 = scalar_lea.vmem [#allocation1], 33
        %v4830 = vld [vmem:[%s4829] ss:$4 sm:$0xff]
        %s4831 = scalar_lea.vmem [#allocation1], 34
        %v4832 = vld [vmem:[%s4831] ss:$4 sm:$0xff]
        %s4833 = scalar_lea.vmem [#allocation1], 35
        %v4834 = vld [vmem:[%s4833] ss:$4 sm:$0xff]
        %4835 = vst [vmem:[#allocation1] sm:$0xff] %v274
        %v4836 = vld [vmem:[#allocation1] ss:$4 sm:$0xff]
        %v4837 = vld [vmem:[%s4821] ss:$4 sm:$0xff]
        %4838 = vst [vmem:[#allocation1 + $0x20] sm:$0xff] %v275
        %v4839 = vld [vmem:[%s4829] ss:$4 sm:$0xff]
        %v4840 = vld [vmem:[%s4831] ss:$4 sm:$0xff]
        %v4841 = vld [vmem:[%s4833] ss:$4 sm:$0xff]
        %4842 = vst [vmem:[#allocation1] sm:$0xff] %v276
        %4843 = vst [vmem:[#allocation1 + $0x20] sm:$0xff] %v277
        %v4844 = vld [vmem:[#allocation1] ss:$4 sm:$0xff]
        %v4845 = vld [vmem:[%s4821] ss:$4 sm:$0xff]
        %v4846 = vld [vmem:[%s4823] ss:$4 sm:$0xff]
        %v4847 = vld [vmem:[%s4825] ss:$4 sm:$0xff]
        %v4848 = vld [vmem:[%s4827] ss:$4 sm:$0xff]
        %v4849 = vld [vmem:[%s4829] ss:$4 sm:$0xff]
        %4850 = vst [vmem:[#allocation1] sm:$0xff] %v278
        %4851 = vst [vmem:[#allocation1 + $0x20] sm:$0xff] %v279
        %v4852 = vld [vmem:[%s4821] ss:$4 sm:$0xff]
        %v4853 = vld [vmem:[%s4823] ss:$4 sm:$0xff]
        %v4854 = vld [vmem:[%s4825] ss:$4 sm:$0xff]
        %v4855 = vld [vmem:[%s4827] ss:$4 sm:$0xff]
        %v4856 = vld [vmem:[%s4829] ss:$4 sm:$0xff]
        %v4857 = vld [vmem:[%s4831] ss:$4 sm:$0xff]
        %v4858 = vld [vmem:[%s4833] ss:$4 sm:$0xff]
        %4859 = vst [vmem:[#allocation1] sm:$0xff] %v280
        %v4860 = vld [vmem:[#allocation1] ss:$4 sm:$0xff]
        %v4861 = vld [vmem:[%s4821] ss:$4 sm:$0xff]
        %4862 = vst [vmem:[#allocation1 + $0x20] sm:$0xff] %v281
        %v4863 = vld [vmem:[%s4829] ss:$4 sm:$0xff]
        %v4864 = vld [vmem:[%s4831] ss:$4 sm:$0xff]
        %v4865 = vld [vmem:[%s4833] ss:$4 sm:$0xff]
        %4866 = vst [vmem:[#allocation1] sm:$0xff] %v282
        %4867 = vst [vmem:[#allocation1 + $0x20] sm:$0xff] %v283
        %v4868 = vld [vmem:[#allocation1] ss:$4 sm:$0xff]
        %v4869 = vld [vmem:[%s4821] ss:$4 sm:$0xff]
        %v4870 = vld [vmem:[%s4823] ss:$4 sm:$0xff]
        %v4871 = vld [vmem:[%s4825] ss:$4 sm:$0xff]
        %v4872 = vld [vmem:[%s4827] ss:$4 sm:$0xff]
        %v4873 = vld [vmem:[%s4829] ss:$4 sm:$0xff]
        %4874 = vst [vmem:[#allocation1] sm:$0xff] %v284
        %4875 = vst [vmem:[#allocation1 + $0x20] sm:$0xff] %v285
        %v4876 = vld [vmem:[%s4821] ss:$4 sm:$0xff]
        %v4877 = vld [vmem:[%s4823] ss:$4 sm:$0xff]
        %v4878 = vld [vmem:[%s4825] ss:$4 sm:$0xff]
        %v4879 = vld [vmem:[%s4827] ss:$4 sm:$0xff]
        %v4880 = vld [vmem:[%s4829] ss:$4 sm:$0xff]
        %v4881 = vld [vmem:[%s4831] ss:$4 sm:$0xff]
        %v4882 = vld [vmem:[%s4833] ss:$4 sm:$0xff]
        %4883 = vst [vmem:[#allocation1] sm:$0xff] %v286
        %v4884 = vld [vmem:[#allocation1] ss:$4 sm:$0xff]
        %v4885 = vld [vmem:[%s4821] ss:$4 sm:$0xff]
        %4886 = vst [vmem:[#allocation1 + $0x20] sm:$0xff] %v287
        %v4887 = vld [vmem:[%s4829] ss:$4 sm:$0xff]
        %v4888 = vld [vmem:[%s4831] ss:$4 sm:$0xff]
        %v4889 = vld [vmem:[%s4833] ss:$4 sm:$0xff]
        %4890 = vst [vmem:[#allocation1] sm:$0xff] %v288
        %4891 = vst [vmem:[#allocation1 + $0x20] sm:$0xff] %v289
        %v4892 = vld [vmem:[#allocation1] ss:$4 sm:$0xff]
        %v4893 = vld [vmem:[%s4821] ss:$4 sm:$0xff]
        %v4894 = vld [vmem:[%s4823] ss:$4 sm:$0xff]
        %v4895 = vld [vmem:[%s4825] ss:$4 sm:$0xff]
        %v4896 = vld [vmem:[%s4827] ss:$4 sm:$0xff]
        %v4897 = vld [vmem:[%s4829] ss:$4 sm:$0xff]
        %4898 = vst [vmem:[#allocation1] sm:$0xff] %v290
        %4899 = vst [vmem:[#allocation1 + $0x20] sm:$0xff] %v291
        %v4900 = vld [vmem:[%s4821] ss:$4 sm:$0xff]
        %v4901 = vld [vmem:[%s4823] ss:$4 sm:$0xff]
        %v4902 = vld [vmem:[%s4825] ss:$4 sm:$0xff]
        %v4903 = vld [vmem:[%s4827] ss:$4 sm:$0xff]
        %v4904 = vld [vmem:[%s4829] ss:$4 sm:$0xff]
        %v4905 = vld [vmem:[%s4831] ss:$4 sm:$0xff]
        %v4906 = vld [vmem:[%s4833] ss:$4 sm:$0xff]
        %4907 = vst [vmem:[#allocation1] sm:$0xff] %v292
        %v4908 = vld [vmem:[#allocation1] ss:$4 sm:$0xff]
        %v4909 = vld [vmem:[%s4821] ss:$4 sm:$0xff]
        %4910 = vst [vmem:[#allocation1 + $0x20] sm:$0xff] %v293
        %v4911 = vld [vmem:[%s4829] ss:$4 sm:$0xff]
        %v4912 = vld [vmem:[%s4831] ss:$4 sm:$0xff]
        %v4913 = vld [vmem:[%s4833] ss:$4 sm:$0xff]
        %4914 = vst [vmem:[#allocation1] sm:$0xff] %v294
        %4915 = vst [vmem:[#allocation1 + $0x20] sm:$0xff] %v295
        %v4916 = vld [vmem:[#allocation1] ss:$4 sm:$0xff]
        %v4917 = vld [vmem:[%s4821] ss:$4 sm:$0xff]
        %v4918 = vld [vmem:[%s4823] ss:$4 sm:$0xff]
        %v4919 = vld [vmem:[%s4825] ss:$4 sm:$0xff]
        %v4920 = vld [vmem:[%s4827] ss:$4 sm:$0xff]
        %v4921 = vld [vmem:[%s4829] ss:$4 sm:$0xff]
        %4922 = vst [vmem:[#allocation1] sm:$0xff] %v296
        %4923 = vst [vmem:[#allocation1 + $0x20] sm:$0xff] %v297
        %v4924 = vld [vmem:[%s4821] ss:$4 sm:$0xff]
        %v4925 = vld [vmem:[%s4823] ss:$4 sm:$0xff]
        %v4926 = vld [vmem:[%s4825] ss:$4 sm:$0xff]
        %v4927 = vld [vmem:[%s4827] ss:$4 sm:$0xff]
        %v4928 = vld [vmem:[%s4829] ss:$4 sm:$0xff]
        %v4929 = vld [vmem:[%s4831] ss:$4 sm:$0xff]
        %v4930 = vld [vmem:[%s4833] ss:$4 sm:$0xff]
        %4931 = vst [vmem:[#allocation1] sm:$0xff] %v298
        %v4932 = vld [vmem:[#allocation1] ss:$4 sm:$0xff]
        %v4933 = vld [vmem:[%s4821] ss:$4 sm:$0xff]
        %4934 = vst [vmem:[#allocation1 + $0x20] sm:$0xff] %v299
        %v4935 = vld [vmem:[%s4829] ss:$4 sm:$0xff]
        %v4936 = vld [vmem:[%s4831] ss:$4 sm:$0xff]
        %v4937 = vld [vmem:[%s4833] ss:$4 sm:$0xff]
        %4938 = vst [vmem:[#allocation1] sm:$0xff] %v300
        %4939 = vst [vmem:[#allocation1 + $0x20] sm:$0xff] %v301
        %v4940 = vld [vmem:[#allocation1] ss:$4 sm:$0xff]
        %v4941 = vld [vmem:[%s4821] ss:$4 sm:$0xff]
        %v4942 = vld [vmem:[%s4823] ss:$4 sm:$0xff]
        %v4943 = vld [vmem:[%s4825] ss:$4 sm:$0xff]
        %v4944 = vld [vmem:[%s4827] ss:$4 sm:$0xff]
        %v4945 = vld [vmem:[%s4829] ss:$4 sm:$0xff]
        %4946 = vst [vmem:[#allocation1] sm:$0xff] %v302
        %4947 = vst [vmem:[#allocation1 + $0x20] sm:$0xff] %v303
        %v4948 = vld [vmem:[%s4821] ss:$4 sm:$0xff]
        %v4949 = vld [vmem:[%s4823] ss:$4 sm:$0xff]
        %v4950 = vld [vmem:[%s4825] ss:$4 sm:$0xff]
        %v4951 = vld [vmem:[%s4827] ss:$4 sm:$0xff]
        %v4952 = vld [vmem:[%s4829] ss:$4 sm:$0xff]
        %v4953 = vld [vmem:[%s4831] ss:$4 sm:$0xff]
        %v4954 = vld [vmem:[%s4833] ss:$4 sm:$0xff]
        %4955 = vst [vmem:[#allocation1] sm:$0xff] %v304
        %v4956 = vld [vmem:[#allocation1] ss:$4 sm:$0xff]
        %v4957 = vld [vmem:[%s4821] ss:$4 sm:$0xff]
        %4958 = vst [vmem:[#allocation1 + $0x20] sm:$0xff] %v305
        %v4959 = vld [vmem:[%s4829] ss:$4 sm:$0xff]
        %v4960 = vld [vmem:[%s4831] ss:$4 sm:$0xff]
        %v4961 = vld [vmem:[%s4833] ss:$4 sm:$0xff]
        %4962 = vst [vmem:[#allocation1] sm:$0xff] %v306
        %4963 = vst [vmem:[#allocation1 + $0x20] sm:$0xff] %v307
        %v4964 = vld [vmem:[#allocation1] ss:$4 sm:$0xff]
        %v4965 = vld [vmem:[%s4821] ss:$4 sm:$0xff]
        %v4966 = vld [vmem:[%s4823] ss:$4 sm:$0xff]
        %v4967 = vld [vmem:[%s4825] ss:$4 sm:$0xff]
        %v4968 = vld [vmem:[%s4827] ss:$4 sm:$0xff]
        %v4969 = vld [vmem:[%s4829] ss:$4 sm:$0xff]
        %4970 = vst [vmem:[#allocation1] sm:$0xff] %v308
        %4971 = vst [vmem:[#allocation1 + $0x20] sm:$0xff] %v309
        %v4972 = vld [vmem:[%s4821] ss:$4 sm:$0xff]
        %v4973 = vld [vmem:[%s4823] ss:$4 sm:$0xff]
        %v4974 = vld [vmem:[%s4825] ss:$4 sm:$0xff]
        %v4975 = vld [vmem:[%s4827] ss:$4 sm:$0xff]
        %v4976 = vld [vmem:[%s4829] ss:$4 sm:$0xff]
        %v4977 = vld [vmem:[%s4831] ss:$4 sm:$0xff]
        %v4978 = vld [vmem:[%s4833] ss:$4 sm:$0xff]
        %4979 = vst [vmem:[#allocation1] sm:$0xff] %v310
        %v4980 = vld [vmem:[#allocation1] ss:$4 sm:$0xff]
        %v4981 = vld [vmem:[%s4821] ss:$4 sm:$0xff]
        %4982 = vst [vmem:[#allocation1 + $0x20] sm:$0xff] %v311
        %v4983 = vld [vmem:[%s4829] ss:$4 sm:$0xff]
        %v4984 = vld [vmem:[%s4831] ss:$4 sm:$0xff]
        %v4985 = vld [vmem:[%s4833] ss:$4 sm:$0xff]
        %4986 = vst [vmem:[#allocation1] sm:$0xff] %v312
        %4987 = vst [vmem:[#allocation1 + $0x20] sm:$0xff] %v313
        %v4988 = vld [vmem:[#allocation1] ss:$4 sm:$0xff]
        %v4989 = vld [vmem:[%s4821] ss:$4 sm:$0xff]
        %v4990 = vld [vmem:[%s4823] ss:$4 sm:$0xff]
        %v4991 = vld [vmem:[%s4825] ss:$4 sm:$0xff]
        %v4992 = vld [vmem:[%s4827] ss:$4 sm:$0xff]
        %v4993 = vld [vmem:[%s4829] ss:$4 sm:$0xff]
        %4994 = vst [vmem:[#allocation1] sm:$0xff] %v314
        %4995 = vst [vmem:[#allocation1 + $0x20] sm:$0xff] %v315
        %v4996 = vld [vmem:[%s4821] ss:$4 sm:$0xff]
        %v4997 = vld [vmem:[%s4823] ss:$4 sm:$0xff]
        %v4998 = vld [vmem:[%s4825] ss:$4 sm:$0xff]
        %v4999 = vld [vmem:[%s4827] ss:$4 sm:$0xff]
        %v5000 = vld [vmem:[%s4829] ss:$4 sm:$0xff]
        %v5001 = vld [vmem:[%s4831] ss:$4 sm:$0xff]
        %v5002 = vld [vmem:[%s4833] ss:$4 sm:$0xff]
        %5003 = vst [vmem:[#allocation1] sm:$0xff] %v316
        %v5004 = vld [vmem:[#allocation1] ss:$4 sm:$0xff]
        %v5005 = vld [vmem:[%s4821] ss:$4 sm:$0xff]
        %5006 = vst [vmem:[#allocation1 + $0x20] sm:$0xff] %v317
        %v5007 = vld [vmem:[%s4829] ss:$4 sm:$0xff]
        %v5008 = vld [vmem:[%s4831] ss:$4 sm:$0xff]
        %v5009 = vld [vmem:[%s4833] ss:$4 sm:$0xff]
        %5010 = vst [vmem:[#allocation1] sm:$0xff] %v318
        %5011 = vst [vmem:[#allocation1 + $0x20] sm:$0xff] %v319
        %v5012 = vld [vmem:[#allocation1] ss:$4 sm:$0xff]
        %v5013 = vld [vmem:[%s4821] ss:$4 sm:$0xff]
        %v5014 = vld [vmem:[%s4823] ss:$4 sm:$0xff]
        %v5015 = vld [vmem:[%s4825] ss:$4 sm:$0xff]
        %v5016 = vld [vmem:[%s4827] ss:$4 sm:$0xff]
        %v5017 = vld [vmem:[%s4829] ss:$4 sm:$0xff]
        %5018 = vst [vmem:[#allocation1] sm:$0xff] %v320
        %5019 = vst [vmem:[#allocation1 + $0x20] sm:$0xff] %v321
        %v5020 = vld [vmem:[%s4821] ss:$4 sm:$0xff]
        %v5021 = vld [vmem:[%s4823] ss:$4 sm:$0xff]
        %v5022 = vld [vmem:[%s4825] ss:$4 sm:$0xff]
        %v5023 = vld [vmem:[%s4827] ss:$4 sm:$0xff]
        %v5024 = vld [vmem:[%s4829] ss:$4 sm:$0xff]
        %v5025 = vld [vmem:[%s4831] ss:$4 sm:$0xff]
        %v5026 = vld [vmem:[%s4833] ss:$4 sm:$0xff]
        %5027 = vst [vmem:[#allocation1] sm:$0xff] %v322
        %v5028 = vld [vmem:[#allocation1] ss:$4 sm:$0xff]
        %v5029 = vld [vmem:[%s4821] ss:$4 sm:$0xff]
        %5030 = vst [vmem:[#allocation1 + $0x20] sm:$0xff] %v323
        %v5031 = vld [vmem:[%s4829] ss:$4 sm:$0xff]
        %v5032 = vld [vmem:[%s4831] ss:$4 sm:$0xff]
        %v5033 = vld [vmem:[%s4833] ss:$4 sm:$0xff]
        %5034 = vst [vmem:[#allocation1] sm:$0xff] %v324
        %5035 = vst [vmem:[#allocation1 + $0x20] sm:$0xff] %v325
        %v5036 = vld [vmem:[#allocation1] ss:$4 sm:$0xff]
        %v5037 = vld [vmem:[%s4821] ss:$4 sm:$0xff]
        %v5038 = vld [vmem:[%s4823] ss:$4 sm:$0xff]
        %v5039 = vld [vmem:[%s4825] ss:$4 sm:$0xff]
        %v5040 = vld [vmem:[%s4827] ss:$4 sm:$0xff]
        %v5041 = vld [vmem:[%s4829] ss:$4 sm:$0xff]
        %v5042 = vld [vmem:[%s1 + $0x140] sm:$0xf]
        %v5043 = vld [vmem:[%s1 + $0x144] sm:$0xf]
        %v5044 = vld [vmem:[%s1 + $0x148] sm:$0xf]
        %v5045 = vld [vmem:[%s1 + $0x14c] sm:$0xf]
        %v5046 = vld [vmem:[%s1 + $0x150] sm:$0xf]
        %v5047 = vld [vmem:[%s1 + $0x154] sm:$0xf]
        %v5048 = vld [vmem:[%s1 + $0x158] sm:$0xf]
        %v5049 = vld [vmem:[%s1 + $0x15c] sm:$0xf]
        %v5050 = vld [vmem:[%s1 + $0x160] sm:$0xf]
        %v5051 = vld [vmem:[%s1 + $0x164] sm:$0xf]
        %v5052 = vld [vmem:[%s1 + $0x168] sm:$0xf]
        %v5053 = vld [vmem:[%s1 + $0x16c] sm:$0xf]
        %v5054 = vld [vmem:[%s1 + $0x170] sm:$0xf]
        %v5055 = vld [vmem:[%s1 + $0x174] sm:$0xf]
        %v5056 = vld [vmem:[%s1 + $0x178] sm:$0xf]
        %v5057 = vld [vmem:[%s1 + $0x17c] sm:$0xf]
        %5058 = vst [vmem:[#allocation1] ss:$9 sm:$0xff] %v4822
        %s5059 = scalar_lea.vmem [#allocation1], 1
        %5060 = vst [vmem:[%s5059] ss:$9 sm:$0xff] %v4824
        %s5061 = scalar_lea.vmem [#allocation1], 2
        %5062 = vst [vmem:[%s5061] ss:$9 sm:$0xff] %v4826
        %s5063 = scalar_lea.vmem [#allocation1], 3
        %5064 = vst [vmem:[%s5063] ss:$9 sm:$0xff] %v4828
        %s5065 = scalar_lea.vmem [#allocation1], 4
        %5066 = vst [vmem:[%s5065] ss:$9 sm:$0xff] %v4830
        %s5067 = scalar_lea.vmem [#allocation1], 5
        %5068 = vst [vmem:[%s5067] ss:$9 sm:$0xff] %v4832
        %s5069 = scalar_lea.vmem [#allocation1], 6
        %5070 = vst [vmem:[%s5069] ss:$9 sm:$0xff] %v4834
        %s5071 = scalar_lea.vmem [#allocation1], 7
        %5072 = vst [vmem:[%s5071] ss:$9 sm:$0xff] %v4836
        %v5073 = vld [vmem:[#allocation1] sm:$0xff]
        %5074 = vst [vmem:[#allocation1] ss:$9 sm:$0xff] %v4837
        %5075 = vst [vmem:[%s5059] ss:$9 sm:$0xff] %v4839
        %5076 = vst [vmem:[%s5061] ss:$9 sm:$0xff] %v4840
        %5077 = vst [vmem:[%s5063] ss:$9 sm:$0xff] %v4841
        %5078 = vst [vmem:[%s5065] ss:$9 sm:$0xff] %v4844
        %5079 = vst [vmem:[%s5067] ss:$9 sm:$0xff] %v4845
        %5080 = vst [vmem:[%s5069] ss:$9 sm:$0xff] %v4846
        %5081 = vst [vmem:[%s5071] ss:$9 sm:$0xff] %v4847
        %v5082 = vld [vmem:[#allocation1] sm:$0xff]
        %5083 = vst [vmem:[#allocation1] ss:$9 sm:$0xff] %v4848
        %5084 = vst [vmem:[%s5059] ss:$9 sm:$0xff] %v4849
        %5085 = vst [vmem:[%s5061] ss:$9 sm:$0xff] %v4852
        %5086 = vst [vmem:[%s5063] ss:$9 sm:$0xff] %v4853
        %5087 = vst [vmem:[%s5065] ss:$9 sm:$0xff] %v4854
        %5088 = vst [vmem:[%s5067] ss:$9 sm:$0xff] %v4855
        %5089 = vst [vmem:[%s5069] ss:$9 sm:$0xff] %v4856
        %5090 = vst [vmem:[%s5071] ss:$9 sm:$0xff] %v4857
        %v5091 = vld [vmem:[#allocation1] sm:$0xff]
        %5092 = vst [vmem:[#allocation1] ss:$9 sm:$0xff] %v4858
        %5093 = vst [vmem:[%s5059] ss:$9 sm:$0xff] %v4860
        %5094 = vst [vmem:[%s5061] ss:$9 sm:$0xff] %v4861
        %5095 = vst [vmem:[%s5063] ss:$9 sm:$0xff] %v4863
        %5096 = vst [vmem:[%s5065] ss:$9 sm:$0xff] %v4864
        %5097 = vst [vmem:[%s5067] ss:$9 sm:$0xff] %v4865
        %5098 = vst [vmem:[%s5069] ss:$9 sm:$0xff] %v4868
        %5099 = vst [vmem:[%s5071] ss:$9 sm:$0xff] %v4869
        %v5100 = vld [vmem:[#allocation1] sm:$0xff]
        %5101 = vst [vmem:[#allocation1] ss:$9 sm:$0xff] %v4870
        %5102 = vst [vmem:[%s5059] ss:$9 sm:$0xff] %v4871
        %5103 = vst [vmem:[%s5061] ss:$9 sm:$0xff] %v4872
        %5104 = vst [vmem:[%s5063] ss:$9 sm:$0xff] %v4873
        %5105 = vst [vmem:[%s5065] ss:$9 sm:$0xff] %v4876
        %5106 = vst [vmem:[%s5067] ss:$9 sm:$0xff] %v4877
        %5107 = vst [vmem:[%s5069] ss:$9 sm:$0xff] %v4878
        %5108 = vst [vmem:[%s5071] ss:$9 sm:$0xff] %v4879
        %v5109 = vld [vmem:[#allocation1] sm:$0xff]
        %5110 = vst [vmem:[#allocation1] ss:$9 sm:$0xff] %v4880
        %5111 = vst [vmem:[%s5059] ss:$9 sm:$0xff] %v4881
        %5112 = vst [vmem:[%s5061] ss:$9 sm:$0xff] %v4882
        %5113 = vst [vmem:[%s5063] ss:$9 sm:$0xff] %v4884
        %5114 = vst [vmem:[%s5065] ss:$9 sm:$0xff] %v4885
        %5115 = vst [vmem:[%s5067] ss:$9 sm:$0xff] %v4887
        %5116 = vst [vmem:[%s5069] ss:$9 sm:$0xff] %v4888
        %5117 = vst [vmem:[%s5071] ss:$9 sm:$0xff] %v4889
        %v5118 = vld [vmem:[#allocation1] sm:$0xff]
        %5119 = vst [vmem:[#allocation1] ss:$9 sm:$0xff] %v4892
        %5120 = vst [vmem:[%s5059] ss:$9 sm:$0xff] %v4893
        %5121 = vst [vmem:[%s5061] ss:$9 sm:$0xff] %v4894
        %5122 = vst [vmem:[%s5063] ss:$9 sm:$0xff] %v4895
        %5123 = vst [vmem:[%s5065] ss:$9 sm:$0xff] %v4896
        %5124 = vst [vmem:[%s5067] ss:$9 sm:$0xff] %v4897
        %5125 = vst [vmem:[%s5069] ss:$9 sm:$0xff] %v4900
        %5126 = vst [vmem:[%s5071] ss:$9 sm:$0xff] %v4901
        %v5127 = vld [vmem:[#allocation1] sm:$0xff]
        %5128 = vst [vmem:[#allocation1] ss:$9 sm:$0xff] %v4902
        %5129 = vst [vmem:[%s5059] ss:$9 sm:$0xff] %v4903
        %5130 = vst [vmem:[%s5061] ss:$9 sm:$0xff] %v4904
        %5131 = vst [vmem:[%s5063] ss:$9 sm:$0xff] %v4905
        %5132 = vst [vmem:[%s5065] ss:$9 sm:$0xff] %v4906
        %5133 = vst [vmem:[%s5067] ss:$9 sm:$0xff] %v4908
        %5134 = vst [vmem:[%s5069] ss:$9 sm:$0xff] %v4909
        %5135 = vst [vmem:[%s5071] ss:$9 sm:$0xff] %v4911
        %v5136 = vld [vmem:[#allocation1] sm:$0xff]
        %5137 = vst [vmem:[#allocation1] ss:$9 sm:$0xff] %v4912
        %5138 = vst [vmem:[%s5059] ss:$9 sm:$0xff] %v4913
        %5139 = vst [vmem:[%s5061] ss:$9 sm:$0xff] %v4916
        %5140 = vst [vmem:[%s5063] ss:$9 sm:$0xff] %v4917
        %5141 = vst [vmem:[%s5065] ss:$9 sm:$0xff] %v4918
        %5142 = vst [vmem:[%s5067] ss:$9 sm:$0xff] %v4919
        %5143 = vst [vmem:[%s5069] ss:$9 sm:$0xff] %v4920
        %5144 = vst [vmem:[%s5071] ss:$9 sm:$0xff] %v4921
        %v5145 = vld [vmem:[#allocation1] sm:$0xff]
        %5146 = vst [vmem:[#allocation1] ss:$9 sm:$0xff] %v4924
        %5147 = vst [vmem:[%s5059] ss:$9 sm:$0xff] %v4925
        %5148 = vst [vmem:[%s5061] ss:$9 sm:$0xff] %v4926
        %5149 = vst [vmem:[%s5063] ss:$9 sm:$0xff] %v4927
        %5150 = vst [vmem:[%s5065] ss:$9 sm:$0xff] %v4928
        %5151 = vst [vmem:[%s5067] ss:$9 sm:$0xff] %v4929
        %5152 = vst [vmem:[%s5069] ss:$9 sm:$0xff] %v4930
        %5153 = vst [vmem:[%s5071] ss:$9 sm:$0xff] %v4932
        %v5154 = vld [vmem:[#allocation1] sm:$0xff]
        %5155 = vst [vmem:[#allocation1] ss:$9 sm:$0xff] %v4933
        %5156 = vst [vmem:[%s5059] ss:$9 sm:$0xff] %v4935
        %5157 = vst [vmem:[%s5061] ss:$9 sm:$0xff] %v4936
        %5158 = vst [vmem:[%s5063] ss:$9 sm:$0xff] %v4937
        %5159 = vst [vmem:[%s5065] ss:$9 sm:$0xff] %v4940
        %5160 = vst [vmem:[%s5067] ss:$9 sm:$0xff] %v4941
        %5161 = vst [vmem:[%s5069] ss:$9 sm:$0xff] %v4942
        %5162 = vst [vmem:[%s5071] ss:$9 sm:$0xff] %v4943
        %v5163 = vld [vmem:[#allocation1] sm:$0xff]
        %5164 = vst [vmem:[#allocation1] ss:$9 sm:$0xff] %v4944
        %5165 = vst [vmem:[%s5059] ss:$9 sm:$0xff] %v4945
        %5166 = vst [vmem:[%s5061] ss:$9 sm:$0xff] %v4948
        %5167 = vst [vmem:[%s5063] ss:$9 sm:$0xff] %v4949
        %5168 = vst [vmem:[%s5065] ss:$9 sm:$0xff] %v4950
        %5169 = vst [vmem:[%s5067] ss:$9 sm:$0xff] %v4951
        %5170 = vst [vmem:[%s5069] ss:$9 sm:$0xff] %v4952
        %5171 = vst [vmem:[%s5071] ss:$9 sm:$0xff] %v4953
        %v5172 = vld [vmem:[#allocation1] sm:$0xff]
        %5173 = vst [vmem:[#allocation1] ss:$9 sm:$0xff] %v4954
        %5174 = vst [vmem:[%s5059] ss:$9 sm:$0xff] %v4956
        %5175 = vst [vmem:[%s5061] ss:$9 sm:$0xff] %v4957
        %5176 = vst [vmem:[%s5063] ss:$9 sm:$0xff] %v4959
        %5177 = vst [vmem:[%s5065] ss:$9 sm:$0xff] %v4960
        %5178 = vst [vmem:[%s5067] ss:$9 sm:$0xff] %v4961
        %5179 = vst [vmem:[%s5069] ss:$9 sm:$0xff] %v4964
        %5180 = vst [vmem:[%s5071] ss:$9 sm:$0xff] %v4965
        %v5181 = vld [vmem:[#allocation1] sm:$0xff]
        %5182 = vst [vmem:[#allocation1] ss:$9 sm:$0xff] %v4966
        %5183 = vst [vmem:[%s5059] ss:$9 sm:$0xff] %v4967
        %5184 = vst [vmem:[%s5061] ss:$9 sm:$0xff] %v4968
        %5185 = vst [vmem:[%s5063] ss:$9 sm:$0xff] %v4969
        %5186 = vst [vmem:[%s5065] ss:$9 sm:$0xff] %v4972
        %5187 = vst [vmem:[%s5067] ss:$9 sm:$0xff] %v4973
        %5188 = vst [vmem:[%s5069] ss:$9 sm:$0xff] %v4974
        %5189 = vst [vmem:[%s5071] ss:$9 sm:$0xff] %v4975
        %v5190 = vld [vmem:[#allocation1] sm:$0xff]
        %5191 = vst [vmem:[#allocation1] ss:$9 sm:$0xff] %v4976
        %5192 = vst [vmem:[%s5059] ss:$9 sm:$0xff] %v4977
        %5193 = vst [vmem:[%s5061] ss:$9 sm:$0xff] %v4978
        %5194 = vst [vmem:[%s5063] ss:$9 sm:$0xff] %v4980
        %5195 = vst [vmem:[%s5065] ss:$9 sm:$0xff] %v4981
        %5196 = vst [vmem:[%s5067] ss:$9 sm:$0xff] %v4983
        %5197 = vst [vmem:[%s5069] ss:$9 sm:$0xff] %v4984
        %5198 = vst [vmem:[%s5071] ss:$9 sm:$0xff] %v4985
        %v5199 = vld [vmem:[#allocation1] sm:$0xff]
        %5200 = vst [vmem:[#allocation1] ss:$9 sm:$0xff] %v4988
        %5201 = vst [vmem:[%s5059] ss:$9 sm:$0xff] %v4989
        %5202 = vst [vmem:[%s5061] ss:$9 sm:$0xff] %v4990
        %5203 = vst [vmem:[%s5063] ss:$9 sm:$0xff] %v4991
        %5204 = vst [vmem:[%s5065] ss:$9 sm:$0xff] %v4992
        %5205 = vst [vmem:[%s5067] ss:$9 sm:$0xff] %v4993
        %5206 = vst [vmem:[%s5069] ss:$9 sm:$0xff] %v4996
        %5207 = vst [vmem:[%s5071] ss:$9 sm:$0xff] %v4997
        %v5208 = vld [vmem:[#allocation1] sm:$0xff]
        %5209 = vst [vmem:[#allocation1] ss:$9 sm:$0xff] %v4998
        %5210 = vst [vmem:[%s5059] ss:$9 sm:$0xff] %v4999
        %5211 = vst [vmem:[%s5061] ss:$9 sm:$0xff] %v5000
        %5212 = vst [vmem:[%s5063] ss:$9 sm:$0xff] %v5001
        %5213 = vst [vmem:[%s5065] ss:$9 sm:$0xff] %v5002
        %5214 = vst [vmem:[%s5067] ss:$9 sm:$0xff] %v5004
        %5215 = vst [vmem:[%s5069] ss:$9 sm:$0xff] %v5005
        %5216 = vst [vmem:[%s5071] ss:$9 sm:$0xff] %v5007
        %v5217 = vld [vmem:[#allocation1] sm:$0xff]
        %5218 = vst [vmem:[#allocation1] ss:$9 sm:$0xff] %v5008
        %5219 = vst [vmem:[%s5059] ss:$9 sm:$0xff] %v5009
        %5220 = vst [vmem:[%s5061] ss:$9 sm:$0xff] %v5012
        %5221 = vst [vmem:[%s5063] ss:$9 sm:$0xff] %v5013
        %5222 = vst [vmem:[%s5065] ss:$9 sm:$0xff] %v5014
        %5223 = vst [vmem:[%s5067] ss:$9 sm:$0xff] %v5015
        %5224 = vst [vmem:[%s5069] ss:$9 sm:$0xff] %v5016
        %5225 = vst [vmem:[%s5071] ss:$9 sm:$0xff] %v5017
        %v5226 = vld [vmem:[#allocation1] sm:$0xff]
        %5227 = vst [vmem:[#allocation1] ss:$9 sm:$0xff] %v5020
        %5228 = vst [vmem:[%s5059] ss:$9 sm:$0xff] %v5021
        %5229 = vst [vmem:[%s5061] ss:$9 sm:$0xff] %v5022
        %5230 = vst [vmem:[%s5063] ss:$9 sm:$0xff] %v5023
        %5231 = vst [vmem:[%s5065] ss:$9 sm:$0xff] %v5024
        %5232 = vst [vmem:[%s5067] ss:$9 sm:$0xff] %v5025
        %5233 = vst [vmem:[%s5069] ss:$9 sm:$0xff] %v5026
        %5234 = vst [vmem:[%s5071] ss:$9 sm:$0xff] %v5028
        %v5235 = vld [vmem:[#allocation1] sm:$0xff]
        %5236 = vst [vmem:[#allocation1] ss:$9 sm:$0xff] %v5029
        %5237 = vst [vmem:[%s5059] ss:$9 sm:$0xff] %v5031
        %5238 = vst [vmem:[%s5061] ss:$9 sm:$0xff] %v5032
        %5239 = vst [vmem:[%s5063] ss:$9 sm:$0xff] %v5033
        %5240 = vst [vmem:[%s5065] ss:$9 sm:$0xff] %v5036
        %5241 = vst [vmem:[%s5067] ss:$9 sm:$0xff] %v5037
        %5242 = vst [vmem:[%s5069] ss:$9 sm:$0xff] %v5038
        %5243 = vst [vmem:[%s5071] ss:$9 sm:$0xff] %v5039
        %v5244 = vld [vmem:[#allocation1] sm:$0xff]
        %5245 = vst [vmem:[#allocation1] ss:$9 sm:$0xff] %v5040
        %5246 = vst [vmem:[%s5059] ss:$9 sm:$0xff] %v5041
        %v5247 = vld [vmem:[#allocation1] sm:$0xff]
        %v5285 = vunpack.c.l.b16 %v5042
        %v5286 = vunpack.c.l.b16 %v5043
        %v5287 = vunpack.c.l.b16 %v5044
        %v5288 = vunpack.c.l.b16 %v5045
        %v5289 = vunpack.c.l.b16 %v5046
        %v5290 = vunpack.c.l.b16 %v5047
        %v5291 = vunpack.c.l.b16 %v5048
        %v5292 = vunpack.c.l.b16 %v5049
        %v5293 = vunpack.c.l.b16 %v5050
        %v5294 = vunpack.c.l.b16 %v5051
        %v5295 = vunpack.c.l.b16 %v5052
        %v5296 = vunpack.c.l.b16 %v5053
        %v5297 = vunpack.c.l.b16 %v5054
        %v5298 = vunpack.c.l.b16 %v5055
        %v5299 = vunpack.c.l.b16 %v5056
        %v5300 = vunpack.c.l.b16 %v5057
        %v5301 = vpack.c.b16 %v5286, %v5285
        %v5302 = vpack.c.b16 %v5288, %v5287
        %v5303 = vpack.c.b16 %v5290, %v5289
        %v5304 = vpack.c.b16 %v5292, %v5291
        %v5305 = vpack.c.b16 %v5294, %v5293
        %v5306 = vpack.c.b16 %v5296, %v5295
        %v5307 = vpack.c.b16 %v5298, %v5297
        %v5308 = vpack.c.b16 %v5300, %v5299
        %5317 = vmatpush.bf16.msra.mxu0 %v5308
        %5318 = vmatpush.bf16.msra.mxu0 %v5307
        %5319 = vmatpush.bf16.msra.mxu0 %v5306
        %5320 = vmatpush.bf16.msra.mxu0 %v5305
        %5321 = vmatpush.bf16.msra.mxu0 %v5304
        %5322 = vmatpush.bf16.msra.mxu0 %v5303
        %5323 = vmatpush.bf16.msra.mxu0 %v5302
        %5324 = vmatpush.bf16.msra.mxu0 %v5301
        %5325 = vmatmul.bf16.gmra.mxu0 %v5073
        %v5326 = vpop.f32.mrf.mxu0
        %v5327 = vadd.f32 0.0, %v5326
        %v5328 = vpop.f32.mrf.mxu0
        %v5329 = vadd.f32 0.0, %v5328
        %5330 = vmatmul.bf16.gmra.mxu0 %v5082
        %v5331 = vpop.f32.mrf.mxu0
        %v5332 = vadd.f32 0.0, %v5331
        %v5333 = vpop.f32.mrf.mxu0
        %v5334 = vadd.f32 0.0, %v5333
        %5335 = vmatmul.bf16.gmra.mxu0 %v5091
        %v5336 = vpop.f32.mrf.mxu0
        %v5337 = vadd.f32 0.0, %v5336
        %v5338 = vpop.f32.mrf.mxu0
        %v5339 = vadd.f32 0.0, %v5338
        %5340 = vmatmul.bf16.gmra.mxu0 %v5100
        %v5341 = vpop.f32.mrf.mxu0
        %v5342 = vadd.f32 0.0, %v5341
        %v5343 = vpop.f32.mrf.mxu0
        %v5344 = vadd.f32 0.0, %v5343
        %5345 = vmatmul.bf16.gmra.mxu0 %v5109
        %v5346 = vpop.f32.mrf.mxu0
        %v5347 = vadd.f32 0.0, %v5346
        %v5348 = vpop.f32.mrf.mxu0
        %v5349 = vadd.f32 0.0, %v5348
        %5350 = vmatmul.bf16.gmra.mxu0 %v5118
        %v5351 = vpop.f32.mrf.mxu0
        %v5352 = vadd.f32 0.0, %v5351
        %v5353 = vpop.f32.mrf.mxu0
        %v5354 = vadd.f32 0.0, %v5353
        %5355 = vmatmul.bf16.gmra.mxu0 %v5127
        %v5356 = vpop.f32.mrf.mxu0
        %v5357 = vadd.f32 0.0, %v5356
        %v5358 = vpop.f32.mrf.mxu0
        %v5359 = vadd.f32 0.0, %v5358
        %5360 = vmatmul.bf16.gmra.mxu0 %v5136
        %v5361 = vpop.f32.mrf.mxu0
        %v5362 = vadd.f32 0.0, %v5361
        %v5363 = vpop.f32.mrf.mxu0
        %v5364 = vadd.f32 0.0, %v5363
        %5365 = vmatmul.bf16.gmra.mxu0 %v5145
        %v5366 = vpop.f32.mrf.mxu0
        %v5367 = vadd.f32 0.0, %v5366
        %v5368 = vpop.f32.mrf.mxu0
        %v5369 = vadd.f32 0.0, %v5368
        %5370 = vmatmul.bf16.gmra.mxu0 %v5154
        %v5371 = vpop.f32.mrf.mxu0
        %v5372 = vadd.f32 0.0, %v5371
        %v5373 = vpop.f32.mrf.mxu0
        %v5374 = vadd.f32 0.0, %v5373
        %5375 = vmatmul.bf16.gmra.mxu0 %v5163
        %v5376 = vpop.f32.mrf.mxu0
        %v5377 = vadd.f32 0.0, %v5376
        %v5378 = vpop.f32.mrf.mxu0
        %v5379 = vadd.f32 0.0, %v5378
        %5380 = vmatmul.bf16.gmra.mxu0 %v5172
        %v5381 = vpop.f32.mrf.mxu0
        %v5382 = vadd.f32 0.0, %v5381
        %v5383 = vpop.f32.mrf.mxu0
        %v5384 = vadd.f32 0.0, %v5383
        %5385 = vmatmul.bf16.gmra.mxu0 %v5181
        %v5386 = vpop.f32.mrf.mxu0
        %v5387 = vadd.f32 0.0, %v5386
        %v5388 = vpop.f32.mrf.mxu0
        %v5389 = vadd.f32 0.0, %v5388
        %5390 = vmatmul.bf16.gmra.mxu0 %v5190
        %v5391 = vpop.f32.mrf.mxu0
        %v5392 = vadd.f32 0.0, %v5391
        %v5393 = vpop.f32.mrf.mxu0
        %v5394 = vadd.f32 0.0, %v5393
        %5395 = vmatmul.bf16.gmra.mxu0 %v5199
        %v5396 = vpop.f32.mrf.mxu0
        %v5397 = vadd.f32 0.0, %v5396
        %v5398 = vpop.f32.mrf.mxu0
        %v5399 = vadd.f32 0.0, %v5398
        %5400 = vmatmul.bf16.gmra.mxu0 %v5208
        %v5401 = vpop.f32.mrf.mxu0
        %v5402 = vadd.f32 0.0, %v5401
        %v5403 = vpop.f32.mrf.mxu0
        %v5404 = vadd.f32 0.0, %v5403
        %5405 = vmatmul.bf16.gmra.mxu0 %v5217
        %v5406 = vpop.f32.mrf.mxu0
        %v5407 = vadd.f32 0.0, %v5406
        %v5408 = vpop.f32.mrf.mxu0
        %v5409 = vadd.f32 0.0, %v5408
        %5410 = vmatmul.bf16.gmra.mxu0 %v5226
        %v5411 = vpop.f32.mrf.mxu0
        %v5412 = vadd.f32 0.0, %v5411
        %v5413 = vpop.f32.mrf.mxu0
        %v5414 = vadd.f32 0.0, %v5413
        %5415 = vmatmul.bf16.gmra.mxu0 %v5235
        %v5416 = vpop.f32.mrf.mxu0
        %v5417 = vadd.f32 0.0, %v5416
        %v5418 = vpop.f32.mrf.mxu0
        %v5419 = vadd.f32 0.0, %v5418
        %5420 = vmatmul.bf16.gmra.mxu0 %v5244
        %v5421 = vpop.f32.mrf.mxu0
        %v5422 = vadd.f32 0.0, %v5421
        %v5423 = vpop.f32.mrf.mxu0
        %v5424 = vadd.f32 0.0, %v5423
        %5425 = vmatmul.bf16.gmra.mxu0 %v5247
        %v5426 = vpop.f32.mrf.mxu0
        %v5427 = vadd.f32 0.0, %v5426
        %v5428 = vpop.f32.mrf.mxu0
        %5429 = vdwg.mxu0
        %v5430 = vadd.f32 %v4778, %v5327
        %v5431 = vadd.f32 %v4779, %v5329
        %v5432 = vadd.f32 %v4780, %v5332
        %v5433 = vadd.f32 %v4781, %v5334
        %v5434 = vadd.f32 %v4782, %v5337
        %v5435 = vadd.f32 %v4783, %v5339
        %v5436 = vadd.f32 %v4784, %v5342
        %v5437 = vadd.f32 %v4785, %v5344
        %v5438 = vadd.f32 %v4786, %v5347
        %v5439 = vadd.f32 %v4787, %v5349
        %v5440 = vadd.f32 %v4788, %v5352
        %v5441 = vadd.f32 %v4789, %v5354
        %v5442 = vadd.f32 %v4790, %v5357
        %v5443 = vadd.f32 %v4791, %v5359
        %v5444 = vadd.f32 %v4792, %v5362
        %v5445 = vadd.f32 %v4793, %v5364
        %v5446 = vadd.f32 %v4794, %v5367
        %v5447 = vadd.f32 %v4795, %v5369
        %v5448 = vadd.f32 %v4796, %v5372
        %v5449 = vadd.f32 %v4797, %v5374
        %v5450 = vadd.f32 %v4798, %v5377
        %v5451 = vadd.f32 %v4799, %v5379
        %v5452 = vadd.f32 %v4800, %v5382
        %v5453 = vadd.f32 %v4801, %v5384
        %v5454 = vadd.f32 %v4802, %v5387
        %v5455 = vadd.f32 %v4803, %v5389
        %v5456 = vadd.f32 %v4804, %v5392
        %v5457 = vadd.f32 %v4805, %v5394
        %v5458 = vadd.f32 %v4806, %v5397
        %v5459 = vadd.f32 %v4807, %v5399
        %v5460 = vadd.f32 %v4808, %v5402
        %v5461 = vadd.f32 %v4809, %v5404
        %v5462 = vadd.f32 %v4810, %v5407
        %v5463 = vadd.f32 %v4811, %v5409
        %v5464 = vadd.f32 %v4812, %v5412
        %v5465 = vadd.f32 %v4813, %v5414
        %v5466 = vadd.f32 %v4814, %v5417
        %v5467 = vadd.f32 %v4815, %v5419
        %v5468 = vadd.f32 %v4816, %v5422
        %v5469 = vadd.f32 %v4817, %v5424
        %v5470 = vadd.f32 %v4818, %v5427
        %v5474 = vrot.slane %v326, 3
        %v5475 = vrot.slane %v327, 3
        %v5476 = vrot.slane %v328, 3
        %v5479 = vsel %vm437, %v326, %v5474
        %v5480 = vsel %vm441, %v326, %v5474
        %v5482 = vrot.slane %v5480, 1
        %v5483 = vsel %vm445, %v326, %v5474
        %v5485 = vrot.slane %v5483, 2
        %v5486 = vsel %vm449, %v326, %v5474
        %v5488 = vrot.slane %v5486, 3
        %v5491 = vsel %vm437, %v327, %v5475
        %v5492 = vsel %vm441, %v327, %v5475
        %v5494 = vrot.slane %v5492, 1
        %v5495 = vsel %vm445, %v327, %v5475
        %v5497 = vrot.slane %v5495, 2
        %v5498 = vsel %vm449, %v327, %v5475
        %v5500 = vrot.slane %v5498, 3
        %v5503 = vsel %vm437, %v328, %v5476
        %v5504 = vld [vmem:[%s1 + $0x180] sm:$0xf]
        %v5505 = vld [vmem:[%s1 + $0x184] sm:$0xf]
        %v5506 = vld [vmem:[%s1 + $0x188] sm:$0xf]
        %v5507 = vld [vmem:[%s1 + $0x18c] sm:$0xf]
        %v5508 = vld [vmem:[%s1 + $0x190] sm:$0xf]
        %v5509 = vld [vmem:[%s1 + $0x194] sm:$0xf]
        %v5510 = vld [vmem:[%s1 + $0x198] sm:$0xf]
        %v5511 = vld [vmem:[%s1 + $0x19c] sm:$0xf]
        %v5512 = vld [vmem:[%s1 + $0x1a0] sm:$0xf]
        %v5513 = vld [vmem:[%s1 + $0x1a4] sm:$0xf]
        %v5514 = vld [vmem:[%s1 + $0x1a8] sm:$0xf]
        %v5515 = vld [vmem:[%s1 + $0x1ac] sm:$0xf]
        %v5516 = vld [vmem:[%s1 + $0x1b0] sm:$0xf]
        %v5517 = vld [vmem:[%s1 + $0x1b4] sm:$0xf]
        %v5518 = vld [vmem:[%s1 + $0x1b8] sm:$0xf]
        %v5519 = vld [vmem:[%s1 + $0x1bc] sm:$0xf]
        %5520 = vst [vmem:[#allocation1] ss:$9 sm:$0xff] %v497
        %s5521 = scalar_lea.vmem [#allocation1], 1
        %5522 = vst [vmem:[%s5521] ss:$9 sm:$0xff] %v500
        %s5523 = scalar_lea.vmem [#allocation1], 2
        %5524 = vst [vmem:[%s5523] ss:$9 sm:$0xff] %v503
        %s5525 = scalar_lea.vmem [#allocation1], 3
        %5526 = vst [vmem:[%s5525] ss:$9 sm:$0xff] %v506
        %s5527 = scalar_lea.vmem [#allocation1], 4
        %5528 = vst [vmem:[%s5527] ss:$9 sm:$0xff] %v509
        %s5529 = scalar_lea.vmem [#allocation1], 5
        %5530 = vst [vmem:[%s5529] ss:$9 sm:$0xff] %v512
        %s5531 = scalar_lea.vmem [#allocation1], 6
        %5532 = vst [vmem:[%s5531] ss:$9 sm:$0xff] %v515
        %s5533 = scalar_lea.vmem [#allocation1], 7
        %5534 = vst [vmem:[%s5533] ss:$9 sm:$0xff] %v518
        %v5535 = vld [vmem:[#allocation1] sm:$0xff]
        %5536 = vst [vmem:[#allocation1] ss:$9 sm:$0xff] %v521
        %5537 = vst [vmem:[%s5521] ss:$9 sm:$0xff] %v524
        %5538 = vst [vmem:[%s5523] ss:$9 sm:$0xff] %v527
        %5539 = vst [vmem:[%s5525] ss:$9 sm:$0xff] %v530
        %5540 = vst [vmem:[%s5527] ss:$9 sm:$0xff] %v533
        %5541 = vst [vmem:[%s5529] ss:$9 sm:$0xff] %v536
        %5542 = vst [vmem:[%s5531] ss:$9 sm:$0xff] %v539
        %5543 = vst [vmem:[%s5533] ss:$9 sm:$0xff] %v542
        %v5544 = vld [vmem:[#allocation1] sm:$0xff]
        %5545 = vst [vmem:[#allocation1] ss:$9 sm:$0xff] %v545
        %5546 = vst [vmem:[%s5521] ss:$9 sm:$0xff] %v548
        %5547 = vst [vmem:[%s5523] ss:$9 sm:$0xff] %v551
        %5548 = vst [vmem:[%s5525] ss:$9 sm:$0xff] %v554
        %5549 = vst [vmem:[%s5527] ss:$9 sm:$0xff] %v557
        %5550 = vst [vmem:[%s5529] ss:$9 sm:$0xff] %v560
        %5551 = vst [vmem:[%s5531] ss:$9 sm:$0xff] %v563
        %5552 = vst [vmem:[%s5533] ss:$9 sm:$0xff] %v566
        %v5553 = vld [vmem:[#allocation1] sm:$0xff]
        %5554 = vst [vmem:[#allocation1] ss:$9 sm:$0xff] %v569
        %5555 = vst [vmem:[%s5521] ss:$9 sm:$0xff] %v572
        %5556 = vst [vmem:[%s5523] ss:$9 sm:$0xff] %v575
        %5557 = vst [vmem:[%s5525] ss:$9 sm:$0xff] %v578
        %5558 = vst [vmem:[%s5527] ss:$9 sm:$0xff] %v581
        %5559 = vst [vmem:[%s5529] ss:$9 sm:$0xff] %v584
        %5560 = vst [vmem:[%s5531] ss:$9 sm:$0xff] %v587
        %5561 = vst [vmem:[%s5533] ss:$9 sm:$0xff] %v590
        %v5562 = vld [vmem:[#allocation1] sm:$0xff]
        %5563 = vst [vmem:[#allocation1] ss:$9 sm:$0xff] %v593
        %5564 = vst [vmem:[%s5521] ss:$9 sm:$0xff] %v596
        %5565 = vst [vmem:[%s5523] ss:$9 sm:$0xff] %v599
        %5566 = vst [vmem:[%s5525] ss:$9 sm:$0xff] %v602
        %5567 = vst [vmem:[%s5527] ss:$9 sm:$0xff] %v605
        %5568 = vst [vmem:[%s5529] ss:$9 sm:$0xff] %v608
        %5569 = vst [vmem:[%s5531] ss:$9 sm:$0xff] %v611
        %5570 = vst [vmem:[%s5533] ss:$9 sm:$0xff] %v614
        %v5571 = vld [vmem:[#allocation1] sm:$0xff]
        %5572 = vst [vmem:[#allocation1] ss:$9 sm:$0xff] %v617
        %5573 = vst [vmem:[%s5521] ss:$9 sm:$0xff] %v620
        %5574 = vst [vmem:[%s5523] ss:$9 sm:$0xff] %v623
        %5575 = vst [vmem:[%s5525] ss:$9 sm:$0xff] %v626
        %5576 = vst [vmem:[%s5527] ss:$9 sm:$0xff] %v629
        %5577 = vst [vmem:[%s5529] ss:$9 sm:$0xff] %v632
        %5578 = vst [vmem:[%s5531] ss:$9 sm:$0xff] %v635
        %5579 = vst [vmem:[%s5533] ss:$9 sm:$0xff] %v638
        %v5580 = vld [vmem:[#allocation1] sm:$0xff]
        %5581 = vst [vmem:[#allocation1] ss:$9 sm:$0xff] %v641
        %5582 = vst [vmem:[%s5521] ss:$9 sm:$0xff] %v644
        %5583 = vst [vmem:[%s5523] ss:$9 sm:$0xff] %v647
        %5584 = vst [vmem:[%s5525] ss:$9 sm:$0xff] %v650
        %5585 = vst [vmem:[%s5527] ss:$9 sm:$0xff] %v653
        %5586 = vst [vmem:[%s5529] ss:$9 sm:$0xff] %v656
        %5587 = vst [vmem:[%s5531] ss:$9 sm:$0xff] %v659
        %5588 = vst [vmem:[%s5533] ss:$9 sm:$0xff] %v662
        %v5589 = vld [vmem:[#allocation1] sm:$0xff]
        %5590 = vst [vmem:[#allocation1] ss:$9 sm:$0xff] %v665
        %5591 = vst [vmem:[%s5521] ss:$9 sm:$0xff] %v668
        %5592 = vst [vmem:[%s5523] ss:$9 sm:$0xff] %v671
        %5593 = vst [vmem:[%s5525] ss:$9 sm:$0xff] %v674
        %5594 = vst [vmem:[%s5527] ss:$9 sm:$0xff] %v677
        %5595 = vst [vmem:[%s5529] ss:$9 sm:$0xff] %v680
        %5596 = vst [vmem:[%s5531] ss:$9 sm:$0xff] %v683
        %5597 = vst [vmem:[%s5533] ss:$9 sm:$0xff] %v686
        %v5598 = vld [vmem:[#allocation1] sm:$0xff]
        %5599 = vst [vmem:[#allocation1] ss:$9 sm:$0xff] %v689
        %5600 = vst [vmem:[%s5521] ss:$9 sm:$0xff] %v692
        %5601 = vst [vmem:[%s5523] ss:$9 sm:$0xff] %v695
        %5602 = vst [vmem:[%s5525] ss:$9 sm:$0xff] %v698
        %5603 = vst [vmem:[%s5527] ss:$9 sm:$0xff] %v701
        %5604 = vst [vmem:[%s5529] ss:$9 sm:$0xff] %v704
        %5605 = vst [vmem:[%s5531] ss:$9 sm:$0xff] %v707
        %5606 = vst [vmem:[%s5533] ss:$9 sm:$0xff] %v710
        %v5607 = vld [vmem:[#allocation1] sm:$0xff]
        %5608 = vst [vmem:[#allocation1] ss:$9 sm:$0xff] %v713
        %5609 = vst [vmem:[%s5521] ss:$9 sm:$0xff] %v716
        %5610 = vst [vmem:[%s5523] ss:$9 sm:$0xff] %v719
        %5611 = vst [vmem:[%s5525] ss:$9 sm:$0xff] %v722
        %5612 = vst [vmem:[%s5527] ss:$9 sm:$0xff] %v725
        %5613 = vst [vmem:[%s5529] ss:$9 sm:$0xff] %v728
        %5614 = vst [vmem:[%s5531] ss:$9 sm:$0xff] %v731
        %5615 = vst [vmem:[%s5533] ss:$9 sm:$0xff] %v734
        %v5616 = vld [vmem:[#allocation1] sm:$0xff]
        %5617 = vst [vmem:[#allocation1] ss:$9 sm:$0xff] %v737
        %5618 = vst [vmem:[%s5521] ss:$9 sm:$0xff] %v740
        %5619 = vst [vmem:[%s5523] ss:$9 sm:$0xff] %v743
        %5620 = vst [vmem:[%s5525] ss:$9 sm:$0xff] %v746
        %5621 = vst [vmem:[%s5527] ss:$9 sm:$0xff] %v749
        %5622 = vst [vmem:[%s5529] ss:$9 sm:$0xff] %v752
        %5623 = vst [vmem:[%s5531] ss:$9 sm:$0xff] %v755
        %5624 = vst [vmem:[%s5533] ss:$9 sm:$0xff] %v758
        %v5625 = vld [vmem:[#allocation1] sm:$0xff]
        %5626 = vst [vmem:[#allocation1] ss:$9 sm:$0xff] %v761
        %5627 = vst [vmem:[%s5521] ss:$9 sm:$0xff] %v764
        %5628 = vst [vmem:[%s5523] ss:$9 sm:$0xff] %v767
        %5629 = vst [vmem:[%s5525] ss:$9 sm:$0xff] %v770
        %5630 = vst [vmem:[%s5527] ss:$9 sm:$0xff] %v773
        %5631 = vst [vmem:[%s5529] ss:$9 sm:$0xff] %v776
        %5632 = vst [vmem:[%s5531] ss:$9 sm:$0xff] %v779
        %5633 = vst [vmem:[%s5533] ss:$9 sm:$0xff] %v782
        %v5634 = vld [vmem:[#allocation1] sm:$0xff]
        %5635 = vst [vmem:[#allocation1] ss:$9 sm:$0xff] %v785
        %5636 = vst [vmem:[%s5521] ss:$9 sm:$0xff] %v788
        %5637 = vst [vmem:[%s5523] ss:$9 sm:$0xff] %v791
        %5638 = vst [vmem:[%s5525] ss:$9 sm:$0xff] %v794
        %5639 = vst [vmem:[%s5527] ss:$9 sm:$0xff] %v797
        %5640 = vst [vmem:[%s5529] ss:$9 sm:$0xff] %v800
        %5641 = vst [vmem:[%s5531] ss:$9 sm:$0xff] %v803
        %5642 = vst [vmem:[%s5533] ss:$9 sm:$0xff] %v806
        %v5643 = vld [vmem:[#allocation1] sm:$0xff]
        %5644 = vst [vmem:[#allocation1] ss:$9 sm:$0xff] %v809
        %5645 = vst [vmem:[%s5521] ss:$9 sm:$0xff] %v812
        %5646 = vst [vmem:[%s5523] ss:$9 sm:$0xff] %v815
        %5647 = vst [vmem:[%s5525] ss:$9 sm:$0xff] %v818
        %5648 = vst [vmem:[%s5527] ss:$9 sm:$0xff] %v821
        %5649 = vst [vmem:[%s5529] ss:$9 sm:$0xff] %v824
        %5650 = vst [vmem:[%s5531] ss:$9 sm:$0xff] %v827
        %5651 = vst [vmem:[%s5533] ss:$9 sm:$0xff] %v830
        %v5652 = vld [vmem:[#allocation1] sm:$0xff]
        %5653 = vst [vmem:[#allocation1] ss:$9 sm:$0xff] %v833
        %5654 = vst [vmem:[%s5521] ss:$9 sm:$0xff] %v836
        %5655 = vst [vmem:[%s5523] ss:$9 sm:$0xff] %v839
        %5656 = vst [vmem:[%s5525] ss:$9 sm:$0xff] %v842
        %5657 = vst [vmem:[%s5527] ss:$9 sm:$0xff] %v845
        %5658 = vst [vmem:[%s5529] ss:$9 sm:$0xff] %v848
        %5659 = vst [vmem:[%s5531] ss:$9 sm:$0xff] %v851
        %5660 = vst [vmem:[%s5533] ss:$9 sm:$0xff] %v854
        %v5661 = vld [vmem:[#allocation1] sm:$0xff]
        %5662 = vst [vmem:[#allocation1] ss:$9 sm:$0xff] %v857
        %5663 = vst [vmem:[%s5521] ss:$9 sm:$0xff] %v860
        %5664 = vst [vmem:[%s5523] ss:$9 sm:$0xff] %v863
        %5665 = vst [vmem:[%s5525] ss:$9 sm:$0xff] %v866
        %5666 = vst [vmem:[%s5527] ss:$9 sm:$0xff] %v869
        %5667 = vst [vmem:[%s5529] ss:$9 sm:$0xff] %v872
        %5668 = vst [vmem:[%s5531] ss:$9 sm:$0xff] %v875
        %5669 = vst [vmem:[%s5533] ss:$9 sm:$0xff] %v878
        %v5670 = vld [vmem:[#allocation1] sm:$0xff]
        %5671 = vst [vmem:[#allocation1] ss:$9 sm:$0xff] %v881
        %5672 = vst [vmem:[%s5521] ss:$9 sm:$0xff] %v884
        %5673 = vst [vmem:[%s5523] ss:$9 sm:$0xff] %v887
        %5674 = vst [vmem:[%s5525] ss:$9 sm:$0xff] %v890
        %5675 = vst [vmem:[%s5527] ss:$9 sm:$0xff] %v893
        %5676 = vst [vmem:[%s5529] ss:$9 sm:$0xff] %v896
        %5677 = vst [vmem:[%s5531] ss:$9 sm:$0xff] %v899
        %5678 = vst [vmem:[%s5533] ss:$9 sm:$0xff] %v902
        %v5679 = vld [vmem:[#allocation1] sm:$0xff]
        %5680 = vst [vmem:[#allocation1] ss:$9 sm:$0xff] %v905
        %5681 = vst [vmem:[%s5521] ss:$9 sm:$0xff] %v908
        %5682 = vst [vmem:[%s5523] ss:$9 sm:$0xff] %v911
        %5683 = vst [vmem:[%s5525] ss:$9 sm:$0xff] %v914
        %5684 = vst [vmem:[%s5527] ss:$9 sm:$0xff] %v917
        %5685 = vst [vmem:[%s5529] ss:$9 sm:$0xff] %v920
        %5686 = vst [vmem:[%s5531] ss:$9 sm:$0xff] %v923
        %5687 = vst [vmem:[%s5533] ss:$9 sm:$0xff] %v926
        %v5688 = vld [vmem:[#allocation1] sm:$0xff]
        %5689 = vst [vmem:[#allocation1] ss:$9 sm:$0xff] %v3854
        %5690 = vst [vmem:[%s5521] ss:$9 sm:$0xff] %v3857
        %5691 = vst [vmem:[%s5523] ss:$9 sm:$0xff] %v3860
        %5692 = vst [vmem:[%s5525] ss:$9 sm:$0xff] %v3863
        %5693 = vst [vmem:[%s5527] ss:$9 sm:$0xff] %v3866
        %5694 = vst [vmem:[%s5529] ss:$9 sm:$0xff] %v3869
        %5695 = vst [vmem:[%s5531] ss:$9 sm:$0xff] %v3872
        %5696 = vst [vmem:[%s5533] ss:$9 sm:$0xff] %v3875
        %v5697 = vld [vmem:[#allocation1] sm:$0xff]
        %5698 = vst [vmem:[#allocation1] ss:$9 sm:$0xff] %v3878
        %5699 = vst [vmem:[%s5521] ss:$9 sm:$0xff] %v5479
        %5701 = vst [vmem:[%s5523] ss:$9 sm:$0xff] %v5482
        %5703 = vst [vmem:[%s5525] ss:$9 sm:$0xff] %v5485
        %5705 = vst [vmem:[%s5527] ss:$9 sm:$0xff] %v5488
        %5706 = vst [vmem:[%s5529] ss:$9 sm:$0xff] %v5491
        %5708 = vst [vmem:[%s5531] ss:$9 sm:$0xff] %v5494
        %5710 = vst [vmem:[%s5533] ss:$9 sm:$0xff] %v5497
        %v5711 = vld [vmem:[#allocation1] sm:$0xff]
        %5713 = vst [vmem:[#allocation1] ss:$9 sm:$0xff] %v5500
        %5714 = vst [vmem:[%s5521] ss:$9 sm:$0xff] %v5503
        %v5715 = vld [vmem:[#allocation1] sm:$0xff]
        %v5753 = vunpack.c.l.b16 %v5504
        %v5754 = vunpack.c.l.b16 %v5505
        %v5755 = vunpack.c.l.b16 %v5506
        %v5756 = vunpack.c.l.b16 %v5507
        %v5757 = vunpack.c.l.b16 %v5508
        %v5758 = vunpack.c.l.b16 %v5509
        %v5759 = vunpack.c.l.b16 %v5510
        %v5760 = vunpack.c.l.b16 %v5511
        %v5761 = vunpack.c.l.b16 %v5512
        %v5762 = vunpack.c.l.b16 %v5513
        %v5763 = vunpack.c.l.b16 %v5514
        %v5764 = vunpack.c.l.b16 %v5515
        %v5765 = vunpack.c.l.b16 %v5516
        %v5766 = vunpack.c.l.b16 %v5517
        %v5767 = vunpack.c.l.b16 %v5518
        %v5768 = vunpack.c.l.b16 %v5519
        %v5769 = vpack.c.b16 %v5754, %v5753
        %v5770 = vpack.c.b16 %v5756, %v5755
        %v5771 = vpack.c.b16 %v5758, %v5757
        %v5772 = vpack.c.b16 %v5760, %v5759
        %v5773 = vpack.c.b16 %v5762, %v5761
        %v5774 = vpack.c.b16 %v5764, %v5763
        %v5775 = vpack.c.b16 %v5766, %v5765
        %v5776 = vpack.c.b16 %v5768, %v5767
        %5785 = vmatpush.bf16.msra.mxu0 %v5776
        %5786 = vmatpush.bf16.msra.mxu0 %v5775
        %5787 = vmatpush.bf16.msra.mxu0 %v5774
        %5788 = vmatpush.bf16.msra.mxu0 %v5773
        %5789 = vmatpush.bf16.msra.mxu0 %v5772
        %5790 = vmatpush.bf16.msra.mxu0 %v5771
        %5791 = vmatpush.bf16.msra.mxu0 %v5770
        %5792 = vmatpush.bf16.msra.mxu0 %v5769
        %5793 = vmatmul.bf16.gmra.mxu0 %v5535
        %v5794 = vpop.f32.mrf.mxu0
        %v5795 = vadd.f32 0.0, %v5794
        %v5796 = vpop.f32.mrf.mxu0
        %v5797 = vadd.f32 0.0, %v5796
        %5798 = vmatmul.bf16.gmra.mxu0 %v5544
        %v5799 = vpop.f32.mrf.mxu0
        %v5800 = vadd.f32 0.0, %v5799
        %v5801 = vpop.f32.mrf.mxu0
        %v5802 = vadd.f32 0.0, %v5801
        %5803 = vmatmul.bf16.gmra.mxu0 %v5553
        %v5804 = vpop.f32.mrf.mxu0
        %v5805 = vadd.f32 0.0, %v5804
        %v5806 = vpop.f32.mrf.mxu0
        %v5807 = vadd.f32 0.0, %v5806
        %5808 = vmatmul.bf16.gmra.mxu0 %v5562
        %v5809 = vpop.f32.mrf.mxu0
        %v5810 = vadd.f32 0.0, %v5809
        %v5811 = vpop.f32.mrf.mxu0
        %v5812 = vadd.f32 0.0, %v5811
        %5813 = vmatmul.bf16.gmra.mxu0 %v5571
        %v5814 = vpop.f32.mrf.mxu0
        %v5815 = vadd.f32 0.0, %v5814
        %v5816 = vpop.f32.mrf.mxu0
        %v5817 = vadd.f32 0.0, %v5816
        %5818 = vmatmul.bf16.gmra.mxu0 %v5580
        %v5819 = vpop.f32.mrf.mxu0
        %v5820 = vadd.f32 0.0, %v5819
        %v5821 = vpop.f32.mrf.mxu0
        %v5822 = vadd.f32 0.0, %v5821
        %5823 = vmatmul.bf16.gmra.mxu0 %v5589
        %v5824 = vpop.f32.mrf.mxu0
        %v5825 = vadd.f32 0.0, %v5824
        %v5826 = vpop.f32.mrf.mxu0
        %v5827 = vadd.f32 0.0, %v5826
        %5828 = vmatmul.bf16.gmra.mxu0 %v5598
        %v5829 = vpop.f32.mrf.mxu0
        %v5830 = vadd.f32 0.0, %v5829
        %v5831 = vpop.f32.mrf.mxu0
        %v5832 = vadd.f32 0.0, %v5831
        %5833 = vmatmul.bf16.gmra.mxu0 %v5607
        %v5834 = vpop.f32.mrf.mxu0
        %v5835 = vadd.f32 0.0, %v5834
        %v5836 = vpop.f32.mrf.mxu0
        %v5837 = vadd.f32 0.0, %v5836
        %5838 = vmatmul.bf16.gmra.mxu0 %v5616
        %v5839 = vpop.f32.mrf.mxu0
        %v5840 = vadd.f32 0.0, %v5839
        %v5841 = vpop.f32.mrf.mxu0
        %v5842 = vadd.f32 0.0, %v5841
        %5843 = vmatmul.bf16.gmra.mxu0 %v5625
        %v5844 = vpop.f32.mrf.mxu0
        %v5845 = vadd.f32 0.0, %v5844
        %v5846 = vpop.f32.mrf.mxu0
        %v5847 = vadd.f32 0.0, %v5846
        %5848 = vmatmul.bf16.gmra.mxu0 %v5634
        %v5849 = vpop.f32.mrf.mxu0
        %v5850 = vadd.f32 0.0, %v5849
        %v5851 = vpop.f32.mrf.mxu0
        %v5852 = vadd.f32 0.0, %v5851
        %5853 = vmatmul.bf16.gmra.mxu0 %v5643
        %v5854 = vpop.f32.mrf.mxu0
        %v5855 = vadd.f32 0.0, %v5854
        %v5856 = vpop.f32.mrf.mxu0
        %v5857 = vadd.f32 0.0, %v5856
        %5858 = vmatmul.bf16.gmra.mxu0 %v5652
        %v5859 = vpop.f32.mrf.mxu0
        %v5860 = vadd.f32 0.0, %v5859
        %v5861 = vpop.f32.mrf.mxu0
        %v5862 = vadd.f32 0.0, %v5861
        %5863 = vmatmul.bf16.gmra.mxu0 %v5661
        %v5864 = vpop.f32.mrf.mxu0
        %v5865 = vadd.f32 0.0, %v5864
        %v5866 = vpop.f32.mrf.mxu0
        %v5867 = vadd.f32 0.0, %v5866
        %5868 = vmatmul.bf16.gmra.mxu0 %v5670
        %v5869 = vpop.f32.mrf.mxu0
        %v5870 = vadd.f32 0.0, %v5869
        %v5871 = vpop.f32.mrf.mxu0
        %v5872 = vadd.f32 0.0, %v5871
        %5873 = vmatmul.bf16.gmra.mxu0 %v5679
        %v5874 = vpop.f32.mrf.mxu0
        %v5875 = vadd.f32 0.0, %v5874
        %v5876 = vpop.f32.mrf.mxu0
        %v5877 = vadd.f32 0.0, %v5876
        %5878 = vmatmul.bf16.gmra.mxu0 %v5688
        %v5879 = vpop.f32.mrf.mxu0
        %v5880 = vadd.f32 0.0, %v5879
        %v5881 = vpop.f32.mrf.mxu0
        %v5882 = vadd.f32 0.0, %v5881
        %5883 = vmatmul.bf16.gmra.mxu0 %v5697
        %v5884 = vpop.f32.mrf.mxu0
        %v5885 = vadd.f32 0.0, %v5884
        %v5886 = vpop.f32.mrf.mxu0
        %v5887 = vadd.f32 0.0, %v5886
        %5888 = vmatmul.bf16.gmra.mxu0 %v5711
        %v5889 = vpop.f32.mrf.mxu0
        %v5890 = vadd.f32 0.0, %v5889
        %v5891 = vpop.f32.mrf.mxu0
        %v5892 = vadd.f32 0.0, %v5891
        %5893 = vmatmul.bf16.gmra.mxu0 %v5715
        %v5894 = vpop.f32.mrf.mxu0
        %v5895 = vadd.f32 0.0, %v5894
        %v5896 = vpop.f32.mrf.mxu0
        %5897 = vdwg.mxu0
        %v5898 = vadd.f32 %v5430, %v5795
        %v5899 = vadd.f32 %v5431, %v5797
        %v5900 = vadd.f32 %v5432, %v5800
        %v5901 = vadd.f32 %v5433, %v5802
        %v5902 = vadd.f32 %v5434, %v5805
        %v5903 = vadd.f32 %v5435, %v5807
        %v5904 = vadd.f32 %v5436, %v5810
        %v5905 = vadd.f32 %v5437, %v5812
        %v5906 = vadd.f32 %v5438, %v5815
        %v5907 = vadd.f32 %v5439, %v5817
        %v5908 = vadd.f32 %v5440, %v5820
        %v5909 = vadd.f32 %v5441, %v5822
        %v5910 = vadd.f32 %v5442, %v5825
        %v5911 = vadd.f32 %v5443, %v5827
        %v5912 = vadd.f32 %v5444, %v5830
        %v5913 = vadd.f32 %v5445, %v5832
        %v5914 = vadd.f32 %v5446, %v5835
        %v5915 = vadd.f32 %v5447, %v5837
        %v5916 = vadd.f32 %v5448, %v5840
        %v5917 = vadd.f32 %v5449, %v5842
        %v5918 = vadd.f32 %v5450, %v5845
        %v5919 = vadd.f32 %v5451, %v5847
        %v5920 = vadd.f32 %v5452, %v5850
        %v5921 = vadd.f32 %v5453, %v5852
        %v5922 = vadd.f32 %v5454, %v5855
        %v5923 = vadd.f32 %v5455, %v5857
        %v5924 = vadd.f32 %v5456, %v5860
        %v5925 = vadd.f32 %v5457, %v5862
        %v5926 = vadd.f32 %v5458, %v5865
        %v5927 = vadd.f32 %v5459, %v5867
        %v5928 = vadd.f32 %v5460, %v5870
        %v5929 = vadd.f32 %v5461, %v5872
        %v5930 = vadd.f32 %v5462, %v5875
        %v5931 = vadd.f32 %v5463, %v5877
        %v5932 = vadd.f32 %v5464, %v5880
        %v5933 = vadd.f32 %v5465, %v5882
        %v5934 = vadd.f32 %v5466, %v5885
        %v5935 = vadd.f32 %v5467, %v5887
        %v5936 = vadd.f32 %v5468, %v5890
        %v5937 = vadd.f32 %v5469, %v5892
        %v5938 = vadd.f32 %v5470, %v5895
        %v5939 = vsel %vm441, %v328, %v5476
        %v5941 = vrot.slane %v5939, 1
        %v5942 = vshrl.u32 %v5479, 16
        %v5944 = vrot.slane %v5942, 7
        %v5945 = vrot.slane %v5944, 1
        %v5946 = vshll.u32 %v5482, 16
        %v5948 = vsel %vm1011, %v5945, %v5946
        %v5949 = vshrl.u32 %v5482, 16
        %v5951 = vrot.slane %v5949, 7
        %v5952 = vrot.slane %v5951, 1
        %v5953 = vshll.u32 %v5485, 16
        %v5955 = vsel %vm1011, %v5952, %v5953
        %v5956 = vshrl.u32 %v5485, 16
        %v5958 = vrot.slane %v5956, 7
        %v5959 = vrot.slane %v5958, 1
        %v5960 = vshll.u32 %v5488, 16
        %v5962 = vsel %vm1011, %v5959, %v5960
        %v5963 = vshrl.u32 %v5488, 16
        %v5965 = vrot.slane %v5963, 7
        %v5966 = vrot.slane %v5965, 1
        %v5967 = vshll.u32 %v5491, 16
        %v5969 = vsel %vm1011, %v5966, %v5967
        %v5970 = vshrl.u32 %v5491, 16
        %v5972 = vrot.slane %v5970, 7
        %v5973 = vrot.slane %v5972, 1
        %v5974 = vshll.u32 %v5494, 16
        %v5976 = vsel %vm1011, %v5973, %v5974
        %v5977 = vshrl.u32 %v5494, 16
        %v5979 = vrot.slane %v5977, 7
        %v5980 = vrot.slane %v5979, 1
        %v5981 = vshll.u32 %v5497, 16
        %v5983 = vsel %vm1011, %v5980, %v5981
        %v5984 = vshrl.u32 %v5497, 16
        %v5986 = vrot.slane %v5984, 7
        %v5987 = vrot.slane %v5986, 1
        %v5988 = vshll.u32 %v5500, 16
        %v5990 = vsel %vm1011, %v5987, %v5988
        %v5991 = vshrl.u32 %v5500, 16
        %v5993 = vrot.slane %v5991, 7
        %v5994 = vrot.slane %v5993, 1
        %v5995 = vshll.u32 %v5503, 16
        %v5997 = vsel %vm1011, %v5994, %v5995
        %v5998 = vshrl.u32 %v5503, 16
        %v6000 = vrot.slane %v5998, 7
        %v6001 = vrot.slane %v6000, 1
        %v6003 = vshll.u32 %v5941, 16
        %v6005 = vsel %vm1011, %v6001, %v6003
        %v6006 = vld [vmem:[%s1 + $0x1c0] sm:$0xf]
        %v6007 = vld [vmem:[%s1 + $0x1c4] sm:$0xf]
        %v6008 = vld [vmem:[%s1 + $0x1c8] sm:$0xf]
        %v6009 = vld [vmem:[%s1 + $0x1cc] sm:$0xf]
        %v6010 = vld [vmem:[%s1 + $0x1d0] sm:$0xf]
        %v6011 = vld [vmem:[%s1 + $0x1d4] sm:$0xf]
        %v6012 = vld [vmem:[%s1 + $0x1d8] sm:$0xf]
        %v6013 = vld [vmem:[%s1 + $0x1dc] sm:$0xf]
        %v6014 = vld [vmem:[%s1 + $0x1e0] sm:$0xf]
        %v6015 = vld [vmem:[%s1 + $0x1e4] sm:$0xf]
        %v6016 = vld [vmem:[%s1 + $0x1e8] sm:$0xf]
        %v6017 = vld [vmem:[%s1 + $0x1ec] sm:$0xf]
        %v6018 = vld [vmem:[%s1 + $0x1f0] sm:$0xf]
        %v6019 = vld [vmem:[%s1 + $0x1f4] sm:$0xf]
        %v6020 = vld [vmem:[%s1 + $0x1f8] sm:$0xf]
        %v6021 = vld [vmem:[%s1 + $0x1fc] sm:$0xf]
        %6022 = vst [vmem:[#allocation1] ss:$9 sm:$0xff] %v1159
        %s6023 = scalar_lea.vmem [#allocation1], 1
        %6024 = vst [vmem:[%s6023] ss:$9 sm:$0xff] %v1167
        %s6025 = scalar_lea.vmem [#allocation1], 2
        %6026 = vst [vmem:[%s6025] ss:$9 sm:$0xff] %v1175
        %s6027 = scalar_lea.vmem [#allocation1], 3
        %6028 = vst [vmem:[%s6027] ss:$9 sm:$0xff] %v1182
        %s6029 = scalar_lea.vmem [#allocation1], 4
        %6030 = vst [vmem:[%s6029] ss:$9 sm:$0xff] %v1190
        %s6031 = scalar_lea.vmem [#allocation1], 5
        %6032 = vst [vmem:[%s6031] ss:$9 sm:$0xff] %v1198
        %s6033 = scalar_lea.vmem [#allocation1], 6
        %6034 = vst [vmem:[%s6033] ss:$9 sm:$0xff] %v1206
        %s6035 = scalar_lea.vmem [#allocation1], 7
        %6036 = vst [vmem:[%s6035] ss:$9 sm:$0xff] %v1213
        %v6037 = vld [vmem:[#allocation1] sm:$0xff]
        %6038 = vst [vmem:[#allocation1] ss:$9 sm:$0xff] %v1221
        %6039 = vst [vmem:[%s6023] ss:$9 sm:$0xff] %v1229
        %6040 = vst [vmem:[%s6025] ss:$9 sm:$0xff] %v1237
        %6041 = vst [vmem:[%s6027] ss:$9 sm:$0xff] %v1245
        %6042 = vst [vmem:[%s6029] ss:$9 sm:$0xff] %v1252
        %6043 = vst [vmem:[%s6031] ss:$9 sm:$0xff] %v1260
        %6044 = vst [vmem:[%s6033] ss:$9 sm:$0xff] %v1268
        %6045 = vst [vmem:[%s6035] ss:$9 sm:$0xff] %v1276
        %v6046 = vld [vmem:[#allocation1] sm:$0xff]
        %6047 = vst [vmem:[#allocation1] ss:$9 sm:$0xff] %v1283
        %6048 = vst [vmem:[%s6023] ss:$9 sm:$0xff] %v1291
        %6049 = vst [vmem:[%s6025] ss:$9 sm:$0xff] %v1299
        %6050 = vst [vmem:[%s6027] ss:$9 sm:$0xff] %v1307
        %6051 = vst [vmem:[%s6029] ss:$9 sm:$0xff] %v1315
        %6052 = vst [vmem:[%s6031] ss:$9 sm:$0xff] %v1322
        %6053 = vst [vmem:[%s6033] ss:$9 sm:$0xff] %v1330
        %6054 = vst [vmem:[%s6035] ss:$9 sm:$0xff] %v1338
        %v6055 = vld [vmem:[#allocation1] sm:$0xff]
        %6056 = vst [vmem:[#allocation1] ss:$9 sm:$0xff] %v1346
        %6057 = vst [vmem:[%s6023] ss:$9 sm:$0xff] %v1353
        %6058 = vst [vmem:[%s6025] ss:$9 sm:$0xff] %v1361
        %6059 = vst [vmem:[%s6027] ss:$9 sm:$0xff] %v1369
        %6060 = vst [vmem:[%s6029] ss:$9 sm:$0xff] %v1377
        %6061 = vst [vmem:[%s6031] ss:$9 sm:$0xff] %v1385
        %6062 = vst [vmem:[%s6033] ss:$9 sm:$0xff] %v1392
        %6063 = vst [vmem:[%s6035] ss:$9 sm:$0xff] %v1400
        %v6064 = vld [vmem:[#allocation1] sm:$0xff]
        %6065 = vst [vmem:[#allocation1] ss:$9 sm:$0xff] %v1408
        %6066 = vst [vmem:[%s6023] ss:$9 sm:$0xff] %v1416
        %6067 = vst [vmem:[%s6025] ss:$9 sm:$0xff] %v1423
        %6068 = vst [vmem:[%s6027] ss:$9 sm:$0xff] %v1431
        %6069 = vst [vmem:[%s6029] ss:$9 sm:$0xff] %v1439
        %6070 = vst [vmem:[%s6031] ss:$9 sm:$0xff] %v1447
        %6071 = vst [vmem:[%s6033] ss:$9 sm:$0xff] %v1455
        %6072 = vst [vmem:[%s6035] ss:$9 sm:$0xff] %v1462
        %v6073 = vld [vmem:[#allocation1] sm:$0xff]
        %6074 = vst [vmem:[#allocation1] ss:$9 sm:$0xff] %v1470
        %6075 = vst [vmem:[%s6023] ss:$9 sm:$0xff] %v1478
        %6076 = vst [vmem:[%s6025] ss:$9 sm:$0xff] %v1486
        %6077 = vst [vmem:[%s6027] ss:$9 sm:$0xff] %v1493
        %6078 = vst [vmem:[%s6029] ss:$9 sm:$0xff] %v1501
        %6079 = vst [vmem:[%s6031] ss:$9 sm:$0xff] %v1509
        %6080 = vst [vmem:[%s6033] ss:$9 sm:$0xff] %v1517
        %6081 = vst [vmem:[%s6035] ss:$9 sm:$0xff] %v1525
        %v6082 = vld [vmem:[#allocation1] sm:$0xff]
        %6083 = vst [vmem:[#allocation1] ss:$9 sm:$0xff] %v1532
        %6084 = vst [vmem:[%s6023] ss:$9 sm:$0xff] %v1540
        %6085 = vst [vmem:[%s6025] ss:$9 sm:$0xff] %v1548
        %6086 = vst [vmem:[%s6027] ss:$9 sm:$0xff] %v1556
        %6087 = vst [vmem:[%s6029] ss:$9 sm:$0xff] %v1563
        %6088 = vst [vmem:[%s6031] ss:$9 sm:$0xff] %v1571
        %6089 = vst [vmem:[%s6033] ss:$9 sm:$0xff] %v1579
        %6090 = vst [vmem:[%s6035] ss:$9 sm:$0xff] %v1587
        %v6091 = vld [vmem:[#allocation1] sm:$0xff]
        %6092 = vst [vmem:[#allocation1] ss:$9 sm:$0xff] %v1595
        %6093 = vst [vmem:[%s6023] ss:$9 sm:$0xff] %v1602
        %6094 = vst [vmem:[%s6025] ss:$9 sm:$0xff] %v1610
        %6095 = vst [vmem:[%s6027] ss:$9 sm:$0xff] %v1618
        %6096 = vst [vmem:[%s6029] ss:$9 sm:$0xff] %v1626
        %6097 = vst [vmem:[%s6031] ss:$9 sm:$0xff] %v1633
        %6098 = vst [vmem:[%s6033] ss:$9 sm:$0xff] %v1641
        %6099 = vst [vmem:[%s6035] ss:$9 sm:$0xff] %v1649
        %v6100 = vld [vmem:[#allocation1] sm:$0xff]
        %6101 = vst [vmem:[#allocation1] ss:$9 sm:$0xff] %v1657
        %6102 = vst [vmem:[%s6023] ss:$9 sm:$0xff] %v1665
        %6103 = vst [vmem:[%s6025] ss:$9 sm:$0xff] %v1672
        %6104 = vst [vmem:[%s6027] ss:$9 sm:$0xff] %v1680
        %6105 = vst [vmem:[%s6029] ss:$9 sm:$0xff] %v1688
        %6106 = vst [vmem:[%s6031] ss:$9 sm:$0xff] %v1696
        %6107 = vst [vmem:[%s6033] ss:$9 sm:$0xff] %v1703
        %6108 = vst [vmem:[%s6035] ss:$9 sm:$0xff] %v1711
        %v6109 = vld [vmem:[#allocation1] sm:$0xff]
        %6110 = vst [vmem:[#allocation1] ss:$9 sm:$0xff] %v1719
        %6111 = vst [vmem:[%s6023] ss:$9 sm:$0xff] %v1727
        %6112 = vst [vmem:[%s6025] ss:$9 sm:$0xff] %v1735
        %6113 = vst [vmem:[%s6027] ss:$9 sm:$0xff] %v1742
        %6114 = vst [vmem:[%s6029] ss:$9 sm:$0xff] %v1750
        %6115 = vst [vmem:[%s6031] ss:$9 sm:$0xff] %v1758
        %6116 = vst [vmem:[%s6033] ss:$9 sm:$0xff] %v1766
        %6117 = vst [vmem:[%s6035] ss:$9 sm:$0xff] %v1773
        %v6118 = vld [vmem:[#allocation1] sm:$0xff]
        %6119 = vst [vmem:[#allocation1] ss:$9 sm:$0xff] %v1781
        %6120 = vst [vmem:[%s6023] ss:$9 sm:$0xff] %v1789
        %6121 = vst [vmem:[%s6025] ss:$9 sm:$0xff] %v1797
        %6122 = vst [vmem:[%s6027] ss:$9 sm:$0xff] %v1805
        %6123 = vst [vmem:[%s6029] ss:$9 sm:$0xff] %v1812
        %6124 = vst [vmem:[%s6031] ss:$9 sm:$0xff] %v1820
        %6125 = vst [vmem:[%s6033] ss:$9 sm:$0xff] %v1828
        %6126 = vst [vmem:[%s6035] ss:$9 sm:$0xff] %v1836
        %v6127 = vld [vmem:[#allocation1] sm:$0xff]
        %6128 = vst [vmem:[#allocation1] ss:$9 sm:$0xff] %v1843
        %6129 = vst [vmem:[%s6023] ss:$9 sm:$0xff] %v1851
        %6130 = vst [vmem:[%s6025] ss:$9 sm:$0xff] %v1859
        %6131 = vst [vmem:[%s6027] ss:$9 sm:$0xff] %v1867
        %6132 = vst [vmem:[%s6029] ss:$9 sm:$0xff] %v1875
        %6133 = vst [vmem:[%s6031] ss:$9 sm:$0xff] %v1882
        %6134 = vst [vmem:[%s6033] ss:$9 sm:$0xff] %v1890
        %6135 = vst [vmem:[%s6035] ss:$9 sm:$0xff] %v1898
        %v6136 = vld [vmem:[#allocation1] sm:$0xff]
        %6137 = vst [vmem:[#allocation1] ss:$9 sm:$0xff] %v1906
        %6138 = vst [vmem:[%s6023] ss:$9 sm:$0xff] %v1913
        %6139 = vst [vmem:[%s6025] ss:$9 sm:$0xff] %v1921
        %6140 = vst [vmem:[%s6027] ss:$9 sm:$0xff] %v1929
        %6141 = vst [vmem:[%s6029] ss:$9 sm:$0xff] %v1937
        %6142 = vst [vmem:[%s6031] ss:$9 sm:$0xff] %v1945
        %6143 = vst [vmem:[%s6033] ss:$9 sm:$0xff] %v1952
        %6144 = vst [vmem:[%s6035] ss:$9 sm:$0xff] %v1960
        %v6145 = vld [vmem:[#allocation1] sm:$0xff]
        %6146 = vst [vmem:[#allocation1] ss:$9 sm:$0xff] %v1968
        %6147 = vst [vmem:[%s6023] ss:$9 sm:$0xff] %v1976
        %6148 = vst [vmem:[%s6025] ss:$9 sm:$0xff] %v1983
        %6149 = vst [vmem:[%s6027] ss:$9 sm:$0xff] %v1991
        %6150 = vst [vmem:[%s6029] ss:$9 sm:$0xff] %v1999
        %6151 = vst [vmem:[%s6031] ss:$9 sm:$0xff] %v2007
        %6152 = vst [vmem:[%s6033] ss:$9 sm:$0xff] %v2015
        %6153 = vst [vmem:[%s6035] ss:$9 sm:$0xff] %v2022
        %v6154 = vld [vmem:[#allocation1] sm:$0xff]
        %6155 = vst [vmem:[#allocation1] ss:$9 sm:$0xff] %v2030
        %6156 = vst [vmem:[%s6023] ss:$9 sm:$0xff] %v2038
        %6157 = vst [vmem:[%s6025] ss:$9 sm:$0xff] %v2046
        %6158 = vst [vmem:[%s6027] ss:$9 sm:$0xff] %v2053
        %6159 = vst [vmem:[%s6029] ss:$9 sm:$0xff] %v2061
        %6160 = vst [vmem:[%s6031] ss:$9 sm:$0xff] %v2069
        %6161 = vst [vmem:[%s6033] ss:$9 sm:$0xff] %v2077
        %6162 = vst [vmem:[%s6035] ss:$9 sm:$0xff] %v2085
        %v6163 = vld [vmem:[#allocation1] sm:$0xff]
        %6164 = vst [vmem:[#allocation1] ss:$9 sm:$0xff] %v2092
        %6165 = vst [vmem:[%s6023] ss:$9 sm:$0xff] %v2100
        %6166 = vst [vmem:[%s6025] ss:$9 sm:$0xff] %v2108
        %6167 = vst [vmem:[%s6027] ss:$9 sm:$0xff] %v2116
        %6168 = vst [vmem:[%s6029] ss:$9 sm:$0xff] %v2123
        %6169 = vst [vmem:[%s6031] ss:$9 sm:$0xff] %v2131
        %6170 = vst [vmem:[%s6033] ss:$9 sm:$0xff] %v2139
        %6171 = vst [vmem:[%s6035] ss:$9 sm:$0xff] %v2147
        %v6172 = vld [vmem:[#allocation1] sm:$0xff]
        %6173 = vst [vmem:[#allocation1] ss:$9 sm:$0xff] %v2155
        %6174 = vst [vmem:[%s6023] ss:$9 sm:$0xff] %v2162
        %6175 = vst [vmem:[%s6025] ss:$9 sm:$0xff] %v2170
        %6176 = vst [vmem:[%s6027] ss:$9 sm:$0xff] %v2178
        %6177 = vst [vmem:[%s6029] ss:$9 sm:$0xff] %v2186
        %6178 = vst [vmem:[%s6031] ss:$9 sm:$0xff] %v2193
        %6179 = vst [vmem:[%s6033] ss:$9 sm:$0xff] %v2201
        %6180 = vst [vmem:[%s6035] ss:$9 sm:$0xff] %v2209
        %v6181 = vld [vmem:[#allocation1] sm:$0xff]
        %6182 = vst [vmem:[#allocation1] ss:$9 sm:$0xff] %v2217
        %6183 = vst [vmem:[%s6023] ss:$9 sm:$0xff] %v2225
        %6184 = vst [vmem:[%s6025] ss:$9 sm:$0xff] %v2232
        %6185 = vst [vmem:[%s6027] ss:$9 sm:$0xff] %v2240
        %6186 = vst [vmem:[%s6029] ss:$9 sm:$0xff] %v2248
        %6187 = vst [vmem:[%s6031] ss:$9 sm:$0xff] %v2256
        %6188 = vst [vmem:[%s6033] ss:$9 sm:$0xff] %v2263
        %6189 = vst [vmem:[%s6035] ss:$9 sm:$0xff] %v2271
        %v6190 = vld [vmem:[#allocation1] sm:$0xff]
        %6191 = vst [vmem:[#allocation1] ss:$9 sm:$0xff] %v4323
        %6192 = vst [vmem:[%s6023] ss:$9 sm:$0xff] %v4330
        %6193 = vst [vmem:[%s6025] ss:$9 sm:$0xff] %v4337
        %6194 = vst [vmem:[%s6027] ss:$9 sm:$0xff] %v4344
        %6195 = vst [vmem:[%s6029] ss:$9 sm:$0xff] %v4351
        %6196 = vst [vmem:[%s6031] ss:$9 sm:$0xff] %v4358
        %6197 = vst [vmem:[%s6033] ss:$9 sm:$0xff] %v4365
        %6198 = vst [vmem:[%s6035] ss:$9 sm:$0xff] %v4372
        %v6199 = vld [vmem:[#allocation1] sm:$0xff]
        %6200 = vst [vmem:[#allocation1] ss:$9 sm:$0xff] %v4380
        %6202 = vst [vmem:[%s6023] ss:$9 sm:$0xff] %v5948
        %6204 = vst [vmem:[%s6025] ss:$9 sm:$0xff] %v5955
        %6206 = vst [vmem:[%s6027] ss:$9 sm:$0xff] %v5962
        %6208 = vst [vmem:[%s6029] ss:$9 sm:$0xff] %v5969
        %6210 = vst [vmem:[%s6031] ss:$9 sm:$0xff] %v5976
        %6212 = vst [vmem:[%s6033] ss:$9 sm:$0xff] %v5983
        %6214 = vst [vmem:[%s6035] ss:$9 sm:$0xff] %v5990
        %v6215 = vld [vmem:[#allocation1] sm:$0xff]
        %6217 = vst [vmem:[#allocation1] ss:$9 sm:$0xff] %v5997
        %6219 = vst [vmem:[%s6023] ss:$9 sm:$0xff] %v6005
        %v6220 = vld [vmem:[#allocation1] sm:$0xff]
        %v6258 = vunpack.c.l.b16 %v6006
        %v6259 = vunpack.c.l.b16 %v6007
        %v6260 = vunpack.c.l.b16 %v6008
        %v6261 = vunpack.c.l.b16 %v6009
        %v6262 = vunpack.c.l.b16 %v6010
        %v6263 = vunpack.c.l.b16 %v6011
        %v6264 = vunpack.c.l.b16 %v6012
        %v6265 = vunpack.c.l.b16 %v6013
        %v6266 = vunpack.c.l.b16 %v6014
        %v6267 = vunpack.c.l.b16 %v6015
        %v6268 = vunpack.c.l.b16 %v6016
        %v6269 = vunpack.c.l.b16 %v6017
        %v6270 = vunpack.c.l.b16 %v6018
        %v6271 = vunpack.c.l.b16 %v6019
        %v6272 = vunpack.c.l.b16 %v6020
        %v6273 = vunpack.c.l.b16 %v6021
        %v6274 = vpack.c.b16 %v6259, %v6258
        %v6275 = vpack.c.b16 %v6261, %v6260
        %v6276 = vpack.c.b16 %v6263, %v6262
        %v6277 = vpack.c.b16 %v6265, %v6264
        %v6278 = vpack.c.b16 %v6267, %v6266
        %v6279 = vpack.c.b16 %v6269, %v6268
        %v6280 = vpack.c.b16 %v6271, %v6270
        %v6281 = vpack.c.b16 %v6273, %v6272
        %6290 = vmatpush.bf16.msra.mxu0 %v6281
        %6291 = vmatpush.bf16.msra.mxu0 %v6280
        %6292 = vmatpush.bf16.msra.mxu0 %v6279
        %6293 = vmatpush.bf16.msra.mxu0 %v6278
        %6294 = vmatpush.bf16.msra.mxu0 %v6277
        %6295 = vmatpush.bf16.msra.mxu0 %v6276
        %6296 = vmatpush.bf16.msra.mxu0 %v6275
        %6297 = vmatpush.bf16.msra.mxu0 %v6274
        %6298 = vmatmul.bf16.gmra.mxu0 %v6037
        %v6299 = vpop.f32.mrf.mxu0
        %v6300 = vadd.f32 0.0, %v6299
        %v6301 = vpop.f32.mrf.mxu0
        %v6302 = vadd.f32 0.0, %v6301
        %6303 = vmatmul.bf16.gmra.mxu0 %v6046
        %v6304 = vpop.f32.mrf.mxu0
        %v6305 = vadd.f32 0.0, %v6304
        %v6306 = vpop.f32.mrf.mxu0
        %v6307 = vadd.f32 0.0, %v6306
        %6308 = vmatmul.bf16.gmra.mxu0 %v6055
        %v6309 = vpop.f32.mrf.mxu0
        %v6310 = vadd.f32 0.0, %v6309
        %v6311 = vpop.f32.mrf.mxu0
        %v6312 = vadd.f32 0.0, %v6311
        %6313 = vmatmul.bf16.gmra.mxu0 %v6064
        %v6314 = vpop.f32.mrf.mxu0
        %v6315 = vadd.f32 0.0, %v6314
        %v6316 = vpop.f32.mrf.mxu0
        %v6317 = vadd.f32 0.0, %v6316
        %6318 = vmatmul.bf16.gmra.mxu0 %v6073
        %v6319 = vpop.f32.mrf.mxu0
        %v6320 = vadd.f32 0.0, %v6319
        %v6321 = vpop.f32.mrf.mxu0
        %v6322 = vadd.f32 0.0, %v6321
        %6323 = vmatmul.bf16.gmra.mxu0 %v6082
        %v6324 = vpop.f32.mrf.mxu0
        %v6325 = vadd.f32 0.0, %v6324
        %v6326 = vpop.f32.mrf.mxu0
        %v6327 = vadd.f32 0.0, %v6326
        %6328 = vmatmul.bf16.gmra.mxu0 %v6091
        %v6329 = vpop.f32.mrf.mxu0
        %v6330 = vadd.f32 0.0, %v6329
        %v6331 = vpop.f32.mrf.mxu0
        %v6332 = vadd.f32 0.0, %v6331
        %6333 = vmatmul.bf16.gmra.mxu0 %v6100
        %v6334 = vpop.f32.mrf.mxu0
        %v6335 = vadd.f32 0.0, %v6334
        %v6336 = vpop.f32.mrf.mxu0
        %v6337 = vadd.f32 0.0, %v6336
        %6338 = vmatmul.bf16.gmra.mxu0 %v6109
        %v6339 = vpop.f32.mrf.mxu0
        %v6340 = vadd.f32 0.0, %v6339
        %v6341 = vpop.f32.mrf.mxu0
        %v6342 = vadd.f32 0.0, %v6341
        %6343 = vmatmul.bf16.gmra.mxu0 %v6118
        %v6344 = vpop.f32.mrf.mxu0
        %v6345 = vadd.f32 0.0, %v6344
        %v6346 = vpop.f32.mrf.mxu0
        %v6347 = vadd.f32 0.0, %v6346
        %6348 = vmatmul.bf16.gmra.mxu0 %v6127
        %v6349 = vpop.f32.mrf.mxu0
        %v6350 = vadd.f32 0.0, %v6349
        %v6351 = vpop.f32.mrf.mxu0
        %v6352 = vadd.f32 0.0, %v6351
        %6353 = vmatmul.bf16.gmra.mxu0 %v6136
        %v6354 = vpop.f32.mrf.mxu0
        %v6355 = vadd.f32 0.0, %v6354
        %v6356 = vpop.f32.mrf.mxu0
        %v6357 = vadd.f32 0.0, %v6356
        %6358 = vmatmul.bf16.gmra.mxu0 %v6145
        %v6359 = vpop.f32.mrf.mxu0
        %v6360 = vadd.f32 0.0, %v6359
        %v6361 = vpop.f32.mrf.mxu0
        %v6362 = vadd.f32 0.0, %v6361
        %6363 = vmatmul.bf16.gmra.mxu0 %v6154
        %v6364 = vpop.f32.mrf.mxu0
        %v6365 = vadd.f32 0.0, %v6364
        %v6366 = vpop.f32.mrf.mxu0
        %v6367 = vadd.f32 0.0, %v6366
        %6368 = vmatmul.bf16.gmra.mxu0 %v6163
        %v6369 = vpop.f32.mrf.mxu0
        %v6370 = vadd.f32 0.0, %v6369
        %v6371 = vpop.f32.mrf.mxu0
        %v6372 = vadd.f32 0.0, %v6371
        %6373 = vmatmul.bf16.gmra.mxu0 %v6172
        %v6374 = vpop.f32.mrf.mxu0
        %v6375 = vadd.f32 0.0, %v6374
        %v6376 = vpop.f32.mrf.mxu0
        %v6377 = vadd.f32 0.0, %v6376
        %6378 = vmatmul.bf16.gmra.mxu0 %v6181
        %v6379 = vpop.f32.mrf.mxu0
        %v6380 = vadd.f32 0.0, %v6379
        %v6381 = vpop.f32.mrf.mxu0
        %v6382 = vadd.f32 0.0, %v6381
        %6383 = vmatmul.bf16.gmra.mxu0 %v6190
        %v6384 = vpop.f32.mrf.mxu0
        %v6385 = vadd.f32 0.0, %v6384
        %v6386 = vpop.f32.mrf.mxu0
        %v6387 = vadd.f32 0.0, %v6386
        %6388 = vmatmul.bf16.gmra.mxu0 %v6199
        %v6389 = vpop.f32.mrf.mxu0
        %v6390 = vadd.f32 0.0, %v6389
        %v6391 = vpop.f32.mrf.mxu0
        %v6392 = vadd.f32 0.0, %v6391
        %6393 = vmatmul.bf16.gmra.mxu0 %v6215
        %v6394 = vpop.f32.mrf.mxu0
        %v6395 = vadd.f32 0.0, %v6394
        %v6396 = vpop.f32.mrf.mxu0
        %v6397 = vadd.f32 0.0, %v6396
        %6398 = vmatmul.bf16.gmra.mxu0 %v6220
        %v6399 = vpop.f32.mrf.mxu0
        %v6400 = vadd.f32 0.0, %v6399
        %v6401 = vpop.f32.mrf.mxu0
        %6402 = vdwg.mxu0
        %v6403 = vadd.f32 %v5898, %v6300
        %v6404 = vadd.f32 %v5899, %v6302
        %v6405 = vadd.f32 %v5900, %v6305
        %v6406 = vadd.f32 %v5901, %v6307
        %v6407 = vadd.f32 %v5902, %v6310
        %v6408 = vadd.f32 %v5903, %v6312
        %v6409 = vadd.f32 %v5904, %v6315
        %v6410 = vadd.f32 %v5905, %v6317
        %v6411 = vadd.f32 %v5906, %v6320
        %v6412 = vadd.f32 %v5907, %v6322
        %v6413 = vadd.f32 %v5908, %v6325
        %v6414 = vadd.f32 %v5909, %v6327
        %v6415 = vadd.f32 %v5910, %v6330
        %v6416 = vadd.f32 %v5911, %v6332
        %v6417 = vadd.f32 %v5912, %v6335
        %v6418 = vadd.f32 %v5913, %v6337
        %v6419 = vadd.f32 %v5914, %v6340
        %v6420 = vadd.f32 %v5915, %v6342
        %v6421 = vadd.f32 %v5916, %v6345
        %v6422 = vadd.f32 %v5917, %v6347
        %v6423 = vadd.f32 %v5918, %v6350
        %v6424 = vadd.f32 %v5919, %v6352
        %v6425 = vadd.f32 %v5920, %v6355
        %v6426 = vadd.f32 %v5921, %v6357
        %v6427 = vadd.f32 %v5922, %v6360
        %v6428 = vadd.f32 %v5923, %v6362
        %v6429 = vadd.f32 %v5924, %v6365
        %v6430 = vadd.f32 %v5925, %v6367
        %v6431 = vadd.f32 %v5926, %v6370
        %v6432 = vadd.f32 %v5927, %v6372
        %v6433 = vadd.f32 %v5928, %v6375
        %v6434 = vadd.f32 %v5929, %v6377
        %v6435 = vadd.f32 %v5930, %v6380
        %v6436 = vadd.f32 %v5931, %v6382
        %v6437 = vadd.f32 %v5932, %v6385
        %v6438 = vadd.f32 %v5933, %v6387
        %v6439 = vadd.f32 %v5934, %v6390
        %v6440 = vadd.f32 %v5935, %v6392
        %v6441 = vadd.f32 %v5936, %v6395
        %v6442 = vadd.f32 %v5937, %v6397
        %v6443 = vadd.f32 %v5938, %v6400
        %6444 = vst [vmem:[#allocation1] sm:$0xff] %v275
        %6445 = vst [vmem:[#allocation1 + $0x20] sm:$0xff] %v276
        %s6446 = scalar_lea.vmem [#allocation1], 1
        %v6447 = vld [vmem:[%s6446] ss:$4 sm:$0xff]
        %s6448 = scalar_lea.vmem [#allocation1], 2
        %v6449 = vld [vmem:[%s6448] ss:$4 sm:$0xff]
        %s6450 = scalar_lea.vmem [#allocation1], 3
        %v6451 = vld [vmem:[%s6450] ss:$4 sm:$0xff]
        %s6452 = scalar_lea.vmem [#allocation1], 32
        %v6453 = vld [vmem:[%s6452] ss:$4 sm:$0xff]
        %s6454 = scalar_lea.vmem [#allocation1], 33
        %v6455 = vld [vmem:[%s6454] ss:$4 sm:$0xff]
        %s6456 = scalar_lea.vmem [#allocation1], 34
        %v6457 = vld [vmem:[%s6456] ss:$4 sm:$0xff]
        %s6458 = scalar_lea.vmem [#allocation1], 35
        %v6459 = vld [vmem:[%s6458] ss:$4 sm:$0xff]
        %6460 = vst [vmem:[#allocation1] sm:$0xff] %v277
        %v6461 = vld [vmem:[#allocation1] ss:$4 sm:$0xff]
        %v6462 = vld [vmem:[%s6446] ss:$4 sm:$0xff]
        %6463 = vst [vmem:[#allocation1 + $0x20] sm:$0xff] %v278
        %v6464 = vld [vmem:[%s6454] ss:$4 sm:$0xff]
        %v6465 = vld [vmem:[%s6456] ss:$4 sm:$0xff]
        %v6466 = vld [vmem:[%s6458] ss:$4 sm:$0xff]
        %6467 = vst [vmem:[#allocation1] sm:$0xff] %v279
        %6468 = vst [vmem:[#allocation1 + $0x20] sm:$0xff] %v280
        %v6469 = vld [vmem:[#allocation1] ss:$4 sm:$0xff]
        %v6470 = vld [vmem:[%s6446] ss:$4 sm:$0xff]
        %v6471 = vld [vmem:[%s6448] ss:$4 sm:$0xff]
        %v6472 = vld [vmem:[%s6450] ss:$4 sm:$0xff]
        %v6473 = vld [vmem:[%s6452] ss:$4 sm:$0xff]
        %v6474 = vld [vmem:[%s6454] ss:$4 sm:$0xff]
        %6475 = vst [vmem:[#allocation1] sm:$0xff] %v281
        %6476 = vst [vmem:[#allocation1 + $0x20] sm:$0xff] %v282
        %v6477 = vld [vmem:[%s6446] ss:$4 sm:$0xff]
        %v6478 = vld [vmem:[%s6448] ss:$4 sm:$0xff]
        %v6479 = vld [vmem:[%s6450] ss:$4 sm:$0xff]
        %v6480 = vld [vmem:[%s6452] ss:$4 sm:$0xff]
        %v6481 = vld [vmem:[%s6454] ss:$4 sm:$0xff]
        %v6482 = vld [vmem:[%s6456] ss:$4 sm:$0xff]
        %v6483 = vld [vmem:[%s6458] ss:$4 sm:$0xff]
        %6484 = vst [vmem:[#allocation1] sm:$0xff] %v283
        %v6485 = vld [vmem:[#allocation1] ss:$4 sm:$0xff]
        %v6486 = vld [vmem:[%s6446] ss:$4 sm:$0xff]
        %6487 = vst [vmem:[#allocation1 + $0x20] sm:$0xff] %v284
        %v6488 = vld [vmem:[%s6454] ss:$4 sm:$0xff]
        %v6489 = vld [vmem:[%s6456] ss:$4 sm:$0xff]
        %v6490 = vld [vmem:[%s6458] ss:$4 sm:$0xff]
        %6491 = vst [vmem:[#allocation1] sm:$0xff] %v285
        %6492 = vst [vmem:[#allocation1 + $0x20] sm:$0xff] %v286
        %v6493 = vld [vmem:[#allocation1] ss:$4 sm:$0xff]
        %v6494 = vld [vmem:[%s6446] ss:$4 sm:$0xff]
        %v6495 = vld [vmem:[%s6448] ss:$4 sm:$0xff]
        %v6496 = vld [vmem:[%s6450] ss:$4 sm:$0xff]
        %v6497 = vld [vmem:[%s6452] ss:$4 sm:$0xff]
        %v6498 = vld [vmem:[%s6454] ss:$4 sm:$0xff]
        %6499 = vst [vmem:[#allocation1] sm:$0xff] %v287
        %6500 = vst [vmem:[#allocation1 + $0x20] sm:$0xff] %v288
        %v6501 = vld [vmem:[%s6446] ss:$4 sm:$0xff]
        %v6502 = vld [vmem:[%s6448] ss:$4 sm:$0xff]
        %v6503 = vld [vmem:[%s6450] ss:$4 sm:$0xff]
        %v6504 = vld [vmem:[%s6452] ss:$4 sm:$0xff]
        %v6505 = vld [vmem:[%s6454] ss:$4 sm:$0xff]
        %v6506 = vld [vmem:[%s6456] ss:$4 sm:$0xff]
        %v6507 = vld [vmem:[%s6458] ss:$4 sm:$0xff]
        %6508 = vst [vmem:[#allocation1] sm:$0xff] %v289
        %v6509 = vld [vmem:[#allocation1] ss:$4 sm:$0xff]
        %v6510 = vld [vmem:[%s6446] ss:$4 sm:$0xff]
        %6511 = vst [vmem:[#allocation1 + $0x20] sm:$0xff] %v290
        %v6512 = vld [vmem:[%s6454] ss:$4 sm:$0xff]
        %v6513 = vld [vmem:[%s6456] ss:$4 sm:$0xff]
        %v6514 = vld [vmem:[%s6458] ss:$4 sm:$0xff]
        %6515 = vst [vmem:[#allocation1] sm:$0xff] %v291
        %6516 = vst [vmem:[#allocation1 + $0x20] sm:$0xff] %v292
        %v6517 = vld [vmem:[#allocation1] ss:$4 sm:$0xff]
        %v6518 = vld [vmem:[%s6446] ss:$4 sm:$0xff]
        %v6519 = vld [vmem:[%s6448] ss:$4 sm:$0xff]
        %v6520 = vld [vmem:[%s6450] ss:$4 sm:$0xff]
        %v6521 = vld [vmem:[%s6452] ss:$4 sm:$0xff]
        %v6522 = vld [vmem:[%s6454] ss:$4 sm:$0xff]
        %6523 = vst [vmem:[#allocation1] sm:$0xff] %v293
        %6524 = vst [vmem:[#allocation1 + $0x20] sm:$0xff] %v294
        %v6525 = vld [vmem:[%s6446] ss:$4 sm:$0xff]
        %v6526 = vld [vmem:[%s6448] ss:$4 sm:$0xff]
        %v6527 = vld [vmem:[%s6450] ss:$4 sm:$0xff]
        %v6528 = vld [vmem:[%s6452] ss:$4 sm:$0xff]
        %v6529 = vld [vmem:[%s6454] ss:$4 sm:$0xff]
        %v6530 = vld [vmem:[%s6456] ss:$4 sm:$0xff]
        %v6531 = vld [vmem:[%s6458] ss:$4 sm:$0xff]
        %6532 = vst [vmem:[#allocation1] sm:$0xff] %v295
        %v6533 = vld [vmem:[#allocation1] ss:$4 sm:$0xff]
        %v6534 = vld [vmem:[%s6446] ss:$4 sm:$0xff]
        %6535 = vst [vmem:[#allocation1 + $0x20] sm:$0xff] %v296
        %v6536 = vld [vmem:[%s6454] ss:$4 sm:$0xff]
        %v6537 = vld [vmem:[%s6456] ss:$4 sm:$0xff]
        %v6538 = vld [vmem:[%s6458] ss:$4 sm:$0xff]
        %6539 = vst [vmem:[#allocation1] sm:$0xff] %v297
        %6540 = vst [vmem:[#allocation1 + $0x20] sm:$0xff] %v298
        %v6541 = vld [vmem:[#allocation1] ss:$4 sm:$0xff]
        %v6542 = vld [vmem:[%s6446] ss:$4 sm:$0xff]
        %v6543 = vld [vmem:[%s6448] ss:$4 sm:$0xff]
        %v6544 = vld [vmem:[%s6450] ss:$4 sm:$0xff]
        %v6545 = vld [vmem:[%s6452] ss:$4 sm:$0xff]
        %v6546 = vld [vmem:[%s6454] ss:$4 sm:$0xff]
        %6547 = vst [vmem:[#allocation1] sm:$0xff] %v299
        %6548 = vst [vmem:[#allocation1 + $0x20] sm:$0xff] %v300
        %v6549 = vld [vmem:[%s6446] ss:$4 sm:$0xff]
        %v6550 = vld [vmem:[%s6448] ss:$4 sm:$0xff]
        %v6551 = vld [vmem:[%s6450] ss:$4 sm:$0xff]
        %v6552 = vld [vmem:[%s6452] ss:$4 sm:$0xff]
        %v6553 = vld [vmem:[%s6454] ss:$4 sm:$0xff]
        %v6554 = vld [vmem:[%s6456] ss:$4 sm:$0xff]
        %v6555 = vld [vmem:[%s6458] ss:$4 sm:$0xff]
        %6556 = vst [vmem:[#allocation1] sm:$0xff] %v301
        %v6557 = vld [vmem:[#allocation1] ss:$4 sm:$0xff]
        %v6558 = vld [vmem:[%s6446] ss:$4 sm:$0xff]
        %6559 = vst [vmem:[#allocation1 + $0x20] sm:$0xff] %v302
        %v6560 = vld [vmem:[%s6454] ss:$4 sm:$0xff]
        %v6561 = vld [vmem:[%s6456] ss:$4 sm:$0xff]
        %v6562 = vld [vmem:[%s6458] ss:$4 sm:$0xff]
        %6563 = vst [vmem:[#allocation1] sm:$0xff] %v303
        %6564 = vst [vmem:[#allocation1 + $0x20] sm:$0xff] %v304
        %v6565 = vld [vmem:[#allocation1] ss:$4 sm:$0xff]
        %v6566 = vld [vmem:[%s6446] ss:$4 sm:$0xff]
        %v6567 = vld [vmem:[%s6448] ss:$4 sm:$0xff]
        %v6568 = vld [vmem:[%s6450] ss:$4 sm:$0xff]
        %v6569 = vld [vmem:[%s6452] ss:$4 sm:$0xff]
        %v6570 = vld [vmem:[%s6454] ss:$4 sm:$0xff]
        %6571 = vst [vmem:[#allocation1] sm:$0xff] %v305
        %6572 = vst [vmem:[#allocation1 + $0x20] sm:$0xff] %v306
        %v6573 = vld [vmem:[%s6446] ss:$4 sm:$0xff]
        %v6574 = vld [vmem:[%s6448] ss:$4 sm:$0xff]
        %v6575 = vld [vmem:[%s6450] ss:$4 sm:$0xff]
        %v6576 = vld [vmem:[%s6452] ss:$4 sm:$0xff]
        %v6577 = vld [vmem:[%s6454] ss:$4 sm:$0xff]
        %v6578 = vld [vmem:[%s6456] ss:$4 sm:$0xff]
        %v6579 = vld [vmem:[%s6458] ss:$4 sm:$0xff]
        %6580 = vst [vmem:[#allocation1] sm:$0xff] %v307
        %v6581 = vld [vmem:[#allocation1] ss:$4 sm:$0xff]
        %v6582 = vld [vmem:[%s6446] ss:$4 sm:$0xff]
        %6583 = vst [vmem:[#allocation1 + $0x20] sm:$0xff] %v308
        %v6584 = vld [vmem:[%s6454] ss:$4 sm:$0xff]
        %v6585 = vld [vmem:[%s6456] ss:$4 sm:$0xff]
        %v6586 = vld [vmem:[%s6458] ss:$4 sm:$0xff]
        %6587 = vst [vmem:[#allocation1] sm:$0xff] %v309
        %6588 = vst [vmem:[#allocation1 + $0x20] sm:$0xff] %v310
        %v6589 = vld [vmem:[#allocation1] ss:$4 sm:$0xff]
        %v6590 = vld [vmem:[%s6446] ss:$4 sm:$0xff]
        %v6591 = vld [vmem:[%s6448] ss:$4 sm:$0xff]
        %v6592 = vld [vmem:[%s6450] ss:$4 sm:$0xff]
        %v6593 = vld [vmem:[%s6452] ss:$4 sm:$0xff]
        %v6594 = vld [vmem:[%s6454] ss:$4 sm:$0xff]
        %6595 = vst [vmem:[#allocation1] sm:$0xff] %v311
        %6596 = vst [vmem:[#allocation1 + $0x20] sm:$0xff] %v312
        %v6597 = vld [vmem:[%s6446] ss:$4 sm:$0xff]
        %v6598 = vld [vmem:[%s6448] ss:$4 sm:$0xff]
        %v6599 = vld [vmem:[%s6450] ss:$4 sm:$0xff]
        %v6600 = vld [vmem:[%s6452] ss:$4 sm:$0xff]
        %v6601 = vld [vmem:[%s6454] ss:$4 sm:$0xff]
        %v6602 = vld [vmem:[%s6456] ss:$4 sm:$0xff]
        %v6603 = vld [vmem:[%s6458] ss:$4 sm:$0xff]
        %6604 = vst [vmem:[#allocation1] sm:$0xff] %v313
        %v6605 = vld [vmem:[#allocation1] ss:$4 sm:$0xff]
        %v6606 = vld [vmem:[%s6446] ss:$4 sm:$0xff]
        %6607 = vst [vmem:[#allocation1 + $0x20] sm:$0xff] %v314
        %v6608 = vld [vmem:[%s6454] ss:$4 sm:$0xff]
        %v6609 = vld [vmem:[%s6456] ss:$4 sm:$0xff]
        %v6610 = vld [vmem:[%s6458] ss:$4 sm:$0xff]
        %6611 = vst [vmem:[#allocation1] sm:$0xff] %v315
        %6612 = vst [vmem:[#allocation1 + $0x20] sm:$0xff] %v316
        %v6613 = vld [vmem:[#allocation1] ss:$4 sm:$0xff]
        %v6614 = vld [vmem:[%s6446] ss:$4 sm:$0xff]
        %v6615 = vld [vmem:[%s6448] ss:$4 sm:$0xff]
        %v6616 = vld [vmem:[%s6450] ss:$4 sm:$0xff]
        %v6617 = vld [vmem:[%s6452] ss:$4 sm:$0xff]
        %v6618 = vld [vmem:[%s6454] ss:$4 sm:$0xff]
        %6619 = vst [vmem:[#allocation1] sm:$0xff] %v317
        %6620 = vst [vmem:[#allocation1 + $0x20] sm:$0xff] %v318
        %v6621 = vld [vmem:[%s6446] ss:$4 sm:$0xff]
        %v6622 = vld [vmem:[%s6448] ss:$4 sm:$0xff]
        %v6623 = vld [vmem:[%s6450] ss:$4 sm:$0xff]
        %v6624 = vld [vmem:[%s6452] ss:$4 sm:$0xff]
        %v6625 = vld [vmem:[%s6454] ss:$4 sm:$0xff]
        %v6626 = vld [vmem:[%s6456] ss:$4 sm:$0xff]
        %v6627 = vld [vmem:[%s6458] ss:$4 sm:$0xff]
        %6628 = vst [vmem:[#allocation1] sm:$0xff] %v319
        %v6629 = vld [vmem:[#allocation1] ss:$4 sm:$0xff]
        %v6630 = vld [vmem:[%s6446] ss:$4 sm:$0xff]
        %6631 = vst [vmem:[#allocation1 + $0x20] sm:$0xff] %v320
        %v6632 = vld [vmem:[%s6454] ss:$4 sm:$0xff]
        %v6633 = vld [vmem:[%s6456] ss:$4 sm:$0xff]
        %v6634 = vld [vmem:[%s6458] ss:$4 sm:$0xff]
        %6635 = vst [vmem:[#allocation1] sm:$0xff] %v321
        %6636 = vst [vmem:[#allocation1 + $0x20] sm:$0xff] %v322
        %v6637 = vld [vmem:[#allocation1] ss:$4 sm:$0xff]
        %v6638 = vld [vmem:[%s6446] ss:$4 sm:$0xff]
        %v6639 = vld [vmem:[%s6448] ss:$4 sm:$0xff]
        %v6640 = vld [vmem:[%s6450] ss:$4 sm:$0xff]
        %v6641 = vld [vmem:[%s6452] ss:$4 sm:$0xff]
        %v6642 = vld [vmem:[%s6454] ss:$4 sm:$0xff]
        %6643 = vst [vmem:[#allocation1] sm:$0xff] %v323
        %6644 = vst [vmem:[#allocation1 + $0x20] sm:$0xff] %v324
        %v6645 = vld [vmem:[%s6446] ss:$4 sm:$0xff]
        %v6646 = vld [vmem:[%s6448] ss:$4 sm:$0xff]
        %v6647 = vld [vmem:[%s6450] ss:$4 sm:$0xff]
        %v6648 = vld [vmem:[%s6452] ss:$4 sm:$0xff]
        %v6649 = vld [vmem:[%s6454] ss:$4 sm:$0xff]
        %v6650 = vld [vmem:[%s6456] ss:$4 sm:$0xff]
        %v6651 = vld [vmem:[%s6458] ss:$4 sm:$0xff]
        %6652 = vst [vmem:[#allocation1] sm:$0xff] %v325
        %v6653 = vld [vmem:[#allocation1] ss:$4 sm:$0xff]
        %v6654 = vld [vmem:[%s6446] ss:$4 sm:$0xff]
        %6655 = vst [vmem:[#allocation1 + $0x20] sm:$0xff] %v326
        %v6656 = vld [vmem:[%s6454] ss:$4 sm:$0xff]
        %v6657 = vld [vmem:[%s6456] ss:$4 sm:$0xff]
        %v6658 = vld [vmem:[%s6458] ss:$4 sm:$0xff]
        %6659 = vst [vmem:[#allocation1] sm:$0xff] %v327
        %6660 = vst [vmem:[#allocation1 + $0x20] sm:$0xff] %v328
        %v6661 = vld [vmem:[#allocation1] ss:$4 sm:$0xff]
        %v6662 = vld [vmem:[%s6446] ss:$4 sm:$0xff]
        %v6663 = vld [vmem:[%s6448] ss:$4 sm:$0xff]
        %v6664 = vld [vmem:[%s6450] ss:$4 sm:$0xff]
        %v6665 = vld [vmem:[%s6452] ss:$4 sm:$0xff]
        %v6666 = vld [vmem:[%s6454] ss:$4 sm:$0xff]
        %v6667 = vld [vmem:[%s1 + $0x200] sm:$0xf]
        %v6668 = vld [vmem:[%s1 + $0x204] sm:$0xf]
        %v6669 = vld [vmem:[%s1 + $0x208] sm:$0xf]
        %v6670 = vld [vmem:[%s1 + $0x20c] sm:$0xf]
        %v6671 = vld [vmem:[%s1 + $0x210] sm:$0xf]
        %v6672 = vld [vmem:[%s1 + $0x214] sm:$0xf]
        %v6673 = vld [vmem:[%s1 + $0x218] sm:$0xf]
        %v6674 = vld [vmem:[%s1 + $0x21c] sm:$0xf]
        %v6675 = vld [vmem:[%s1 + $0x220] sm:$0xf]
        %v6676 = vld [vmem:[%s1 + $0x224] sm:$0xf]
        %v6677 = vld [vmem:[%s1 + $0x228] sm:$0xf]
        %v6678 = vld [vmem:[%s1 + $0x22c] sm:$0xf]
        %v6679 = vld [vmem:[%s1 + $0x230] sm:$0xf]
        %v6680 = vld [vmem:[%s1 + $0x234] sm:$0xf]
        %v6681 = vld [vmem:[%s1 + $0x238] sm:$0xf]
        %v6682 = vld [vmem:[%s1 + $0x23c] sm:$0xf]
        %6683 = vst [vmem:[#allocation1] ss:$9 sm:$0xff] %v6447
        %s6684 = scalar_lea.vmem [#allocation1], 1
        %6685 = vst [vmem:[%s6684] ss:$9 sm:$0xff] %v6449
        %s6686 = scalar_lea.vmem [#allocation1], 2
        %6687 = vst [vmem:[%s6686] ss:$9 sm:$0xff] %v6451
        %s6688 = scalar_lea.vmem [#allocation1], 3
        %6689 = vst [vmem:[%s6688] ss:$9 sm:$0xff] %v6453
        %s6690 = scalar_lea.vmem [#allocation1], 4
        %6691 = vst [vmem:[%s6690] ss:$9 sm:$0xff] %v6455
        %s6692 = scalar_lea.vmem [#allocation1], 5
        %6693 = vst [vmem:[%s6692] ss:$9 sm:$0xff] %v6457
        %s6694 = scalar_lea.vmem [#allocation1], 6
        %6695 = vst [vmem:[%s6694] ss:$9 sm:$0xff] %v6459
        %s6696 = scalar_lea.vmem [#allocation1], 7
        %6697 = vst [vmem:[%s6696] ss:$9 sm:$0xff] %v6461
        %v6698 = vld [vmem:[#allocation1] sm:$0xff]
        %6699 = vst [vmem:[#allocation1] ss:$9 sm:$0xff] %v6462
        %6700 = vst [vmem:[%s6684] ss:$9 sm:$0xff] %v6464
        %6701 = vst [vmem:[%s6686] ss:$9 sm:$0xff] %v6465
        %6702 = vst [vmem:[%s6688] ss:$9 sm:$0xff] %v6466
        %6703 = vst [vmem:[%s6690] ss:$9 sm:$0xff] %v6469
        %6704 = vst [vmem:[%s6692] ss:$9 sm:$0xff] %v6470
        %6705 = vst [vmem:[%s6694] ss:$9 sm:$0xff] %v6471
        %6706 = vst [vmem:[%s6696] ss:$9 sm:$0xff] %v6472
        %v6707 = vld [vmem:[#allocation1] sm:$0xff]
        %6708 = vst [vmem:[#allocation1] ss:$9 sm:$0xff] %v6473
        %6709 = vst [vmem:[%s6684] ss:$9 sm:$0xff] %v6474
        %6710 = vst [vmem:[%s6686] ss:$9 sm:$0xff] %v6477
        %6711 = vst [vmem:[%s6688] ss:$9 sm:$0xff] %v6478
        %6712 = vst [vmem:[%s6690] ss:$9 sm:$0xff] %v6479
        %6713 = vst [vmem:[%s6692] ss:$9 sm:$0xff] %v6480
        %6714 = vst [vmem:[%s6694] ss:$9 sm:$0xff] %v6481
        %6715 = vst [vmem:[%s6696] ss:$9 sm:$0xff] %v6482
        %v6716 = vld [vmem:[#allocation1] sm:$0xff]
        %6717 = vst [vmem:[#allocation1] ss:$9 sm:$0xff] %v6483
        %6718 = vst [vmem:[%s6684] ss:$9 sm:$0xff] %v6485
        %6719 = vst [vmem:[%s6686] ss:$9 sm:$0xff] %v6486
        %6720 = vst [vmem:[%s6688] ss:$9 sm:$0xff] %v6488
        %6721 = vst [vmem:[%s6690] ss:$9 sm:$0xff] %v6489
        %6722 = vst [vmem:[%s6692] ss:$9 sm:$0xff] %v6490
        %6723 = vst [vmem:[%s6694] ss:$9 sm:$0xff] %v6493
        %6724 = vst [vmem:[%s6696] ss:$9 sm:$0xff] %v6494
        %v6725 = vld [vmem:[#allocation1] sm:$0xff]
        %6726 = vst [vmem:[#allocation1] ss:$9 sm:$0xff] %v6495
        %6727 = vst [vmem:[%s6684] ss:$9 sm:$0xff] %v6496
        %6728 = vst [vmem:[%s6686] ss:$9 sm:$0xff] %v6497
        %6729 = vst [vmem:[%s6688] ss:$9 sm:$0xff] %v6498
        %6730 = vst [vmem:[%s6690] ss:$9 sm:$0xff] %v6501
        %6731 = vst [vmem:[%s6692] ss:$9 sm:$0xff] %v6502
        %6732 = vst [vmem:[%s6694] ss:$9 sm:$0xff] %v6503
        %6733 = vst [vmem:[%s6696] ss:$9 sm:$0xff] %v6504
        %v6734 = vld [vmem:[#allocation1] sm:$0xff]
        %6735 = vst [vmem:[#allocation1] ss:$9 sm:$0xff] %v6505
        %6736 = vst [vmem:[%s6684] ss:$9 sm:$0xff] %v6506
        %6737 = vst [vmem:[%s6686] ss:$9 sm:$0xff] %v6507
        %6738 = vst [vmem:[%s6688] ss:$9 sm:$0xff] %v6509
        %6739 = vst [vmem:[%s6690] ss:$9 sm:$0xff] %v6510
        %6740 = vst [vmem:[%s6692] ss:$9 sm:$0xff] %v6512
        %6741 = vst [vmem:[%s6694] ss:$9 sm:$0xff] %v6513
        %6742 = vst [vmem:[%s6696] ss:$9 sm:$0xff] %v6514
        %v6743 = vld [vmem:[#allocation1] sm:$0xff]
        %6744 = vst [vmem:[#allocation1] ss:$9 sm:$0xff] %v6517
        %6745 = vst [vmem:[%s6684] ss:$9 sm:$0xff] %v6518
        %6746 = vst [vmem:[%s6686] ss:$9 sm:$0xff] %v6519
        %6747 = vst [vmem:[%s6688] ss:$9 sm:$0xff] %v6520
        %6748 = vst [vmem:[%s6690] ss:$9 sm:$0xff] %v6521
        %6749 = vst [vmem:[%s6692] ss:$9 sm:$0xff] %v6522
        %6750 = vst [vmem:[%s6694] ss:$9 sm:$0xff] %v6525
        %6751 = vst [vmem:[%s6696] ss:$9 sm:$0xff] %v6526
        %v6752 = vld [vmem:[#allocation1] sm:$0xff]
        %6753 = vst [vmem:[#allocation1] ss:$9 sm:$0xff] %v6527
        %6754 = vst [vmem:[%s6684] ss:$9 sm:$0xff] %v6528
        %6755 = vst [vmem:[%s6686] ss:$9 sm:$0xff] %v6529
        %6756 = vst [vmem:[%s6688] ss:$9 sm:$0xff] %v6530
        %6757 = vst [vmem:[%s6690] ss:$9 sm:$0xff] %v6531
        %6758 = vst [vmem:[%s6692] ss:$9 sm:$0xff] %v6533
        %6759 = vst [vmem:[%s6694] ss:$9 sm:$0xff] %v6534
        %6760 = vst [vmem:[%s6696] ss:$9 sm:$0xff] %v6536
        %v6761 = vld [vmem:[#allocation1] sm:$0xff]
        %6762 = vst [vmem:[#allocation1] ss:$9 sm:$0xff] %v6537
        %6763 = vst [vmem:[%s6684] ss:$9 sm:$0xff] %v6538
        %6764 = vst [vmem:[%s6686] ss:$9 sm:$0xff] %v6541
        %6765 = vst [vmem:[%s6688] ss:$9 sm:$0xff] %v6542
        %6766 = vst [vmem:[%s6690] ss:$9 sm:$0xff] %v6543
        %6767 = vst [vmem:[%s6692] ss:$9 sm:$0xff] %v6544
        %6768 = vst [vmem:[%s6694] ss:$9 sm:$0xff] %v6545
        %6769 = vst [vmem:[%s6696] ss:$9 sm:$0xff] %v6546
        %v6770 = vld [vmem:[#allocation1] sm:$0xff]
        %6771 = vst [vmem:[#allocation1] ss:$9 sm:$0xff] %v6549
        %6772 = vst [vmem:[%s6684] ss:$9 sm:$0xff] %v6550
        %6773 = vst [vmem:[%s6686] ss:$9 sm:$0xff] %v6551
        %6774 = vst [vmem:[%s6688] ss:$9 sm:$0xff] %v6552
        %6775 = vst [vmem:[%s6690] ss:$9 sm:$0xff] %v6553
        %6776 = vst [vmem:[%s6692] ss:$9 sm:$0xff] %v6554
        %6777 = vst [vmem:[%s6694] ss:$9 sm:$0xff] %v6555
        %6778 = vst [vmem:[%s6696] ss:$9 sm:$0xff] %v6557
        %v6779 = vld [vmem:[#allocation1] sm:$0xff]
        %6780 = vst [vmem:[#allocation1] ss:$9 sm:$0xff] %v6558
        %6781 = vst [vmem:[%s6684] ss:$9 sm:$0xff] %v6560
        %6782 = vst [vmem:[%s6686] ss:$9 sm:$0xff] %v6561
        %6783 = vst [vmem:[%s6688] ss:$9 sm:$0xff] %v6562
        %6784 = vst [vmem:[%s6690] ss:$9 sm:$0xff] %v6565
        %6785 = vst [vmem:[%s6692] ss:$9 sm:$0xff] %v6566
        %6786 = vst [vmem:[%s6694] ss:$9 sm:$0xff] %v6567
        %6787 = vst [vmem:[%s6696] ss:$9 sm:$0xff] %v6568
        %v6788 = vld [vmem:[#allocation1] sm:$0xff]
        %6789 = vst [vmem:[#allocation1] ss:$9 sm:$0xff] %v6569
        %6790 = vst [vmem:[%s6684] ss:$9 sm:$0xff] %v6570
        %6791 = vst [vmem:[%s6686] ss:$9 sm:$0xff] %v6573
        %6792 = vst [vmem:[%s6688] ss:$9 sm:$0xff] %v6574
        %6793 = vst [vmem:[%s6690] ss:$9 sm:$0xff] %v6575
        %6794 = vst [vmem:[%s6692] ss:$9 sm:$0xff] %v6576
        %6795 = vst [vmem:[%s6694] ss:$9 sm:$0xff] %v6577
        %6796 = vst [vmem:[%s6696] ss:$9 sm:$0xff] %v6578
        %v6797 = vld [vmem:[#allocation1] sm:$0xff]
        %6798 = vst [vmem:[#allocation1] ss:$9 sm:$0xff] %v6579
        %6799 = vst [vmem:[%s6684] ss:$9 sm:$0xff] %v6581
        %6800 = vst [vmem:[%s6686] ss:$9 sm:$0xff] %v6582
        %6801 = vst [vmem:[%s6688] ss:$9 sm:$0xff] %v6584
        %6802 = vst [vmem:[%s6690] ss:$9 sm:$0xff] %v6585
        %6803 = vst [vmem:[%s6692] ss:$9 sm:$0xff] %v6586
        %6804 = vst [vmem:[%s6694] ss:$9 sm:$0xff] %v6589
        %6805 = vst [vmem:[%s6696] ss:$9 sm:$0xff] %v6590
        %v6806 = vld [vmem:[#allocation1] sm:$0xff]
        %6807 = vst [vmem:[#allocation1] ss:$9 sm:$0xff] %v6591
        %6808 = vst [vmem:[%s6684] ss:$9 sm:$0xff] %v6592
        %6809 = vst [vmem:[%s6686] ss:$9 sm:$0xff] %v6593
        %6810 = vst [vmem:[%s6688] ss:$9 sm:$0xff] %v6594
        %6811 = vst [vmem:[%s6690] ss:$9 sm:$0xff] %v6597
        %6812 = vst [vmem:[%s6692] ss:$9 sm:$0xff] %v6598
        %6813 = vst [vmem:[%s6694] ss:$9 sm:$0xff] %v6599
        %6814 = vst [vmem:[%s6696] ss:$9 sm:$0xff] %v6600
        %v6815 = vld [vmem:[#allocation1] sm:$0xff]
        %6816 = vst [vmem:[#allocation1] ss:$9 sm:$0xff] %v6601
        %6817 = vst [vmem:[%s6684] ss:$9 sm:$0xff] %v6602
        %6818 = vst [vmem:[%s6686] ss:$9 sm:$0xff] %v6603
        %6819 = vst [vmem:[%s6688] ss:$9 sm:$0xff] %v6605
        %6820 = vst [vmem:[%s6690] ss:$9 sm:$0xff] %v6606
        %6821 = vst [vmem:[%s6692] ss:$9 sm:$0xff] %v6608
        %6822 = vst [vmem:[%s6694] ss:$9 sm:$0xff] %v6609
        %6823 = vst [vmem:[%s6696] ss:$9 sm:$0xff] %v6610
        %v6824 = vld [vmem:[#allocation1] sm:$0xff]
        %6825 = vst [vmem:[#allocation1] ss:$9 sm:$0xff] %v6613
        %6826 = vst [vmem:[%s6684] ss:$9 sm:$0xff] %v6614
        %6827 = vst [vmem:[%s6686] ss:$9 sm:$0xff] %v6615
        %6828 = vst [vmem:[%s6688] ss:$9 sm:$0xff] %v6616
        %6829 = vst [vmem:[%s6690] ss:$9 sm:$0xff] %v6617
        %6830 = vst [vmem:[%s6692] ss:$9 sm:$0xff] %v6618
        %6831 = vst [vmem:[%s6694] ss:$9 sm:$0xff] %v6621
        %6832 = vst [vmem:[%s6696] ss:$9 sm:$0xff] %v6622
        %v6833 = vld [vmem:[#allocation1] sm:$0xff]
        %6834 = vst [vmem:[#allocation1] ss:$9 sm:$0xff] %v6623
        %6835 = vst [vmem:[%s6684] ss:$9 sm:$0xff] %v6624
        %6836 = vst [vmem:[%s6686] ss:$9 sm:$0xff] %v6625
        %6837 = vst [vmem:[%s6688] ss:$9 sm:$0xff] %v6626
        %6838 = vst [vmem:[%s6690] ss:$9 sm:$0xff] %v6627
        %6839 = vst [vmem:[%s6692] ss:$9 sm:$0xff] %v6629
        %6840 = vst [vmem:[%s6694] ss:$9 sm:$0xff] %v6630
        %6841 = vst [vmem:[%s6696] ss:$9 sm:$0xff] %v6632
        %v6842 = vld [vmem:[#allocation1] sm:$0xff]
        %6843 = vst [vmem:[#allocation1] ss:$9 sm:$0xff] %v6633
        %6844 = vst [vmem:[%s6684] ss:$9 sm:$0xff] %v6634
        %6845 = vst [vmem:[%s6686] ss:$9 sm:$0xff] %v6637
        %6846 = vst [vmem:[%s6688] ss:$9 sm:$0xff] %v6638
        %6847 = vst [vmem:[%s6690] ss:$9 sm:$0xff] %v6639
        %6848 = vst [vmem:[%s6692] ss:$9 sm:$0xff] %v6640
        %6849 = vst [vmem:[%s6694] ss:$9 sm:$0xff] %v6641
        %6850 = vst [vmem:[%s6696] ss:$9 sm:$0xff] %v6642
        %v6851 = vld [vmem:[#allocation1] sm:$0xff]
        %6852 = vst [vmem:[#allocation1] ss:$9 sm:$0xff] %v6645
        %6853 = vst [vmem:[%s6684] ss:$9 sm:$0xff] %v6646
        %6854 = vst [vmem:[%s6686] ss:$9 sm:$0xff] %v6647
        %6855 = vst [vmem:[%s6688] ss:$9 sm:$0xff] %v6648
        %6856 = vst [vmem:[%s6690] ss:$9 sm:$0xff] %v6649
        %6857 = vst [vmem:[%s6692] ss:$9 sm:$0xff] %v6650
        %6858 = vst [vmem:[%s6694] ss:$9 sm:$0xff] %v6651
        %6859 = vst [vmem:[%s6696] ss:$9 sm:$0xff] %v6653
        %v6860 = vld [vmem:[#allocation1] sm:$0xff]
        %6861 = vst [vmem:[#allocation1] ss:$9 sm:$0xff] %v6654
        %6862 = vst [vmem:[%s6684] ss:$9 sm:$0xff] %v6656
        %6863 = vst [vmem:[%s6686] ss:$9 sm:$0xff] %v6657
        %6864 = vst [vmem:[%s6688] ss:$9 sm:$0xff] %v6658
        %6865 = vst [vmem:[%s6690] ss:$9 sm:$0xff] %v6661
        %6866 = vst [vmem:[%s6692] ss:$9 sm:$0xff] %v6662
        %6867 = vst [vmem:[%s6694] ss:$9 sm:$0xff] %v6663
        %6868 = vst [vmem:[%s6696] ss:$9 sm:$0xff] %v6664
        %v6869 = vld [vmem:[#allocation1] sm:$0xff]
        %6870 = vst [vmem:[#allocation1] ss:$9 sm:$0xff] %v6665
        %6871 = vst [vmem:[%s6684] ss:$9 sm:$0xff] %v6666
        %v6872 = vld [vmem:[#allocation1] sm:$0xff]
        %v6910 = vunpack.c.l.b16 %v6667
        %v6911 = vunpack.c.l.b16 %v6668
        %v6912 = vunpack.c.l.b16 %v6669
        %v6913 = vunpack.c.l.b16 %v6670
        %v6914 = vunpack.c.l.b16 %v6671
        %v6915 = vunpack.c.l.b16 %v6672
        %v6916 = vunpack.c.l.b16 %v6673
        %v6917 = vunpack.c.l.b16 %v6674
        %v6918 = vunpack.c.l.b16 %v6675
        %v6919 = vunpack.c.l.b16 %v6676
        %v6920 = vunpack.c.l.b16 %v6677
        %v6921 = vunpack.c.l.b16 %v6678
        %v6922 = vunpack.c.l.b16 %v6679
        %v6923 = vunpack.c.l.b16 %v6680
        %v6924 = vunpack.c.l.b16 %v6681
        %v6925 = vunpack.c.l.b16 %v6682
        %v6926 = vpack.c.b16 %v6911, %v6910
        %v6927 = vpack.c.b16 %v6913, %v6912
        %v6928 = vpack.c.b16 %v6915, %v6914
        %v6929 = vpack.c.b16 %v6917, %v6916
        %v6930 = vpack.c.b16 %v6919, %v6918
        %v6931 = vpack.c.b16 %v6921, %v6920
        %v6932 = vpack.c.b16 %v6923, %v6922
        %v6933 = vpack.c.b16 %v6925, %v6924
        %6942 = vmatpush.bf16.msra.mxu0 %v6933
        %6943 = vmatpush.bf16.msra.mxu0 %v6932
        %6944 = vmatpush.bf16.msra.mxu0 %v6931
        %6945 = vmatpush.bf16.msra.mxu0 %v6930
        %6946 = vmatpush.bf16.msra.mxu0 %v6929
        %6947 = vmatpush.bf16.msra.mxu0 %v6928
        %6948 = vmatpush.bf16.msra.mxu0 %v6927
        %6949 = vmatpush.bf16.msra.mxu0 %v6926
        %6950 = vmatmul.bf16.gmra.mxu0 %v6698
        %v6951 = vpop.f32.mrf.mxu0
        %v6952 = vadd.f32 0.0, %v6951
        %v6953 = vpop.f32.mrf.mxu0
        %v6954 = vadd.f32 0.0, %v6953
        %6955 = vmatmul.bf16.gmra.mxu0 %v6707
        %v6956 = vpop.f32.mrf.mxu0
        %v6957 = vadd.f32 0.0, %v6956
        %v6958 = vpop.f32.mrf.mxu0
        %v6959 = vadd.f32 0.0, %v6958
        %6960 = vmatmul.bf16.gmra.mxu0 %v6716
        %v6961 = vpop.f32.mrf.mxu0
        %v6962 = vadd.f32 0.0, %v6961
        %v6963 = vpop.f32.mrf.mxu0
        %v6964 = vadd.f32 0.0, %v6963
        %6965 = vmatmul.bf16.gmra.mxu0 %v6725
        %v6966 = vpop.f32.mrf.mxu0
        %v6967 = vadd.f32 0.0, %v6966
        %v6968 = vpop.f32.mrf.mxu0
        %v6969 = vadd.f32 0.0, %v6968
        %6970 = vmatmul.bf16.gmra.mxu0 %v6734
        %v6971 = vpop.f32.mrf.mxu0
        %v6972 = vadd.f32 0.0, %v6971
        %v6973 = vpop.f32.mrf.mxu0
        %v6974 = vadd.f32 0.0, %v6973
        %6975 = vmatmul.bf16.gmra.mxu0 %v6743
        %v6976 = vpop.f32.mrf.mxu0
        %v6977 = vadd.f32 0.0, %v6976
        %v6978 = vpop.f32.mrf.mxu0
        %v6979 = vadd.f32 0.0, %v6978
        %6980 = vmatmul.bf16.gmra.mxu0 %v6752
        %v6981 = vpop.f32.mrf.mxu0
        %v6982 = vadd.f32 0.0, %v6981
        %v6983 = vpop.f32.mrf.mxu0
        %v6984 = vadd.f32 0.0, %v6983
        %6985 = vmatmul.bf16.gmra.mxu0 %v6761
        %v6986 = vpop.f32.mrf.mxu0
        %v6987 = vadd.f32 0.0, %v6986
        %v6988 = vpop.f32.mrf.mxu0
        %v6989 = vadd.f32 0.0, %v6988
        %6990 = vmatmul.bf16.gmra.mxu0 %v6770
        %v6991 = vpop.f32.mrf.mxu0
        %v6992 = vadd.f32 0.0, %v6991
        %v6993 = vpop.f32.mrf.mxu0
        %v6994 = vadd.f32 0.0, %v6993
        %6995 = vmatmul.bf16.gmra.mxu0 %v6779
        %v6996 = vpop.f32.mrf.mxu0
        %v6997 = vadd.f32 0.0, %v6996
        %v6998 = vpop.f32.mrf.mxu0
        %v6999 = vadd.f32 0.0, %v6998
        %7000 = vmatmul.bf16.gmra.mxu0 %v6788
        %v7001 = vpop.f32.mrf.mxu0
        %v7002 = vadd.f32 0.0, %v7001
        %v7003 = vpop.f32.mrf.mxu0
        %v7004 = vadd.f32 0.0, %v7003
        %7005 = vmatmul.bf16.gmra.mxu0 %v6797
        %v7006 = vpop.f32.mrf.mxu0
        %v7007 = vadd.f32 0.0, %v7006
        %v7008 = vpop.f32.mrf.mxu0
        %v7009 = vadd.f32 0.0, %v7008
        %7010 = vmatmul.bf16.gmra.mxu0 %v6806
        %v7011 = vpop.f32.mrf.mxu0
        %v7012 = vadd.f32 0.0, %v7011
        %v7013 = vpop.f32.mrf.mxu0
        %v7014 = vadd.f32 0.0, %v7013
        %7015 = vmatmul.bf16.gmra.mxu0 %v6815
        %v7016 = vpop.f32.mrf.mxu0
        %v7017 = vadd.f32 0.0, %v7016
        %v7018 = vpop.f32.mrf.mxu0
        %v7019 = vadd.f32 0.0, %v7018
        %7020 = vmatmul.bf16.gmra.mxu0 %v6824
        %v7021 = vpop.f32.mrf.mxu0
        %v7022 = vadd.f32 0.0, %v7021
        %v7023 = vpop.f32.mrf.mxu0
        %v7024 = vadd.f32 0.0, %v7023
        %7025 = vmatmul.bf16.gmra.mxu0 %v6833
        %v7026 = vpop.f32.mrf.mxu0
        %v7027 = vadd.f32 0.0, %v7026
        %v7028 = vpop.f32.mrf.mxu0
        %v7029 = vadd.f32 0.0, %v7028
        %7030 = vmatmul.bf16.gmra.mxu0 %v6842
        %v7031 = vpop.f32.mrf.mxu0
        %v7032 = vadd.f32 0.0, %v7031
        %v7033 = vpop.f32.mrf.mxu0
        %v7034 = vadd.f32 0.0, %v7033
        %7035 = vmatmul.bf16.gmra.mxu0 %v6851
        %v7036 = vpop.f32.mrf.mxu0
        %v7037 = vadd.f32 0.0, %v7036
        %v7038 = vpop.f32.mrf.mxu0
        %v7039 = vadd.f32 0.0, %v7038
        %7040 = vmatmul.bf16.gmra.mxu0 %v6860
        %v7041 = vpop.f32.mrf.mxu0
        %v7042 = vadd.f32 0.0, %v7041
        %v7043 = vpop.f32.mrf.mxu0
        %v7044 = vadd.f32 0.0, %v7043
        %7045 = vmatmul.bf16.gmra.mxu0 %v6869
        %v7046 = vpop.f32.mrf.mxu0
        %v7047 = vadd.f32 0.0, %v7046
        %v7048 = vpop.f32.mrf.mxu0
        %v7049 = vadd.f32 0.0, %v7048
        %7050 = vmatmul.bf16.gmra.mxu0 %v6872
        %v7051 = vpop.f32.mrf.mxu0
        %v7052 = vadd.f32 0.0, %v7051
        %v7053 = vpop.f32.mrf.mxu0
        %7054 = vdwg.mxu0
        %v7055 = vadd.f32 %v6403, %v6952
        %v7056 = vadd.f32 %v6404, %v6954
        %v7057 = vadd.f32 %v6405, %v6957
        %v7058 = vadd.f32 %v6406, %v6959
        %v7059 = vadd.f32 %v6407, %v6962
        %v7060 = vadd.f32 %v6408, %v6964
        %v7061 = vadd.f32 %v6409, %v6967
        %v7062 = vadd.f32 %v6410, %v6969
        %v7063 = vadd.f32 %v6411, %v6972
        %v7064 = vadd.f32 %v6412, %v6974
        %v7065 = vadd.f32 %v6413, %v6977
        %v7066 = vadd.f32 %v6414, %v6979
        %v7067 = vadd.f32 %v6415, %v6982
        %v7068 = vadd.f32 %v6416, %v6984
        %v7069 = vadd.f32 %v6417, %v6987
        %v7070 = vadd.f32 %v6418, %v6989
        %v7071 = vadd.f32 %v6419, %v6992
        %v7072 = vadd.f32 %v6420, %v6994
        %v7073 = vadd.f32 %v6421, %v6997
        %v7074 = vadd.f32 %v6422, %v6999
        %v7075 = vadd.f32 %v6423, %v7002
        %v7076 = vadd.f32 %v6424, %v7004
        %v7077 = vadd.f32 %v6425, %v7007
        %v7078 = vadd.f32 %v6426, %v7009
        %v7079 = vadd.f32 %v6427, %v7012
        %v7080 = vadd.f32 %v6428, %v7014
        %v7081 = vadd.f32 %v6429, %v7017
        %v7082 = vadd.f32 %v6430, %v7019
        %v7083 = vadd.f32 %v6431, %v7022
        %v7084 = vadd.f32 %v6432, %v7024
        %v7085 = vadd.f32 %v6433, %v7027
        %v7086 = vadd.f32 %v6434, %v7029
        %v7087 = vadd.f32 %v6435, %v7032
        %v7088 = vadd.f32 %v6436, %v7034
        %v7089 = vadd.f32 %v6437, %v7037
        %v7090 = vadd.f32 %v6438, %v7039
        %v7091 = vadd.f32 %v6439, %v7042
        %v7092 = vadd.f32 %v6440, %v7044
        %v7093 = vadd.f32 %v6441, %v7047
        %v7094 = vadd.f32 %v6442, %v7049
        %v7095 = vadd.f32 %v6443, %v7052
        %v7096 = vld [vmem:[%s3] sm:$0x1]
        %v7098 = vperm.slane %v7096, 0
        %v7100 = vadd.f32 %v7055, %v7098
        %v7101 = vadd.f32 %v7056, %v7098
        %v7102 = vadd.f32 %v7057, %v7098
        %v7103 = vadd.f32 %v7058, %v7098
        %v7104 = vadd.f32 %v7059, %v7098
        %v7105 = vadd.f32 %v7060, %v7098
        %v7106 = vadd.f32 %v7061, %v7098
        %v7107 = vadd.f32 %v7062, %v7098
        %v7108 = vadd.f32 %v7063, %v7098
        %v7109 = vadd.f32 %v7064, %v7098
        %v7110 = vadd.f32 %v7065, %v7098
        %v7111 = vadd.f32 %v7066, %v7098
        %v7112 = vadd.f32 %v7067, %v7098
        %v7113 = vadd.f32 %v7068, %v7098
        %v7114 = vadd.f32 %v7069, %v7098
        %v7115 = vadd.f32 %v7070, %v7098
        %v7116 = vadd.f32 %v7071, %v7098
        %v7117 = vadd.f32 %v7072, %v7098
        %v7118 = vadd.f32 %v7073, %v7098
        %v7119 = vadd.f32 %v7074, %v7098
        %v7120 = vadd.f32 %v7075, %v7098
        %v7121 = vadd.f32 %v7076, %v7098
        %v7122 = vadd.f32 %v7077, %v7098
        %v7123 = vadd.f32 %v7078, %v7098
        %v7124 = vadd.f32 %v7079, %v7098
        %v7125 = vadd.f32 %v7080, %v7098
        %v7126 = vadd.f32 %v7081, %v7098
        %v7127 = vadd.f32 %v7082, %v7098
        %v7128 = vadd.f32 %v7083, %v7098
        %v7129 = vadd.f32 %v7084, %v7098
        %v7130 = vadd.f32 %v7085, %v7098
        %v7131 = vadd.f32 %v7086, %v7098
        %v7132 = vadd.f32 %v7087, %v7098
        %v7133 = vadd.f32 %v7088, %v7098
        %v7134 = vadd.f32 %v7089, %v7098
        %v7135 = vadd.f32 %v7090, %v7098
        %v7136 = vadd.f32 %v7091, %v7098
        %v7137 = vadd.f32 %v7092, %v7098
        %v7138 = vadd.f32 %v7093, %v7098
        %v7139 = vadd.f32 %v7094, %v7098
        %v7140 = vadd.f32 %v7095, %v7098
        %v7141 = vmax.f32 %v7100, 0.0
        %v7142 = vmax.f32 %v7101, 0.0
        %v7143 = vmax.f32 %v7102, 0.0
        %v7144 = vmax.f32 %v7103, 0.0
        %v7145 = vmax.f32 %v7104, 0.0
        %v7146 = vmax.f32 %v7105, 0.0
        %v7147 = vmax.f32 %v7106, 0.0
        %v7148 = vmax.f32 %v7107, 0.0
        %v7149 = vmax.f32 %v7108, 0.0
        %v7150 = vmax.f32 %v7109, 0.0
        %v7151 = vmax.f32 %v7110, 0.0
        %v7152 = vmax.f32 %v7111, 0.0
        %v7153 = vmax.f32 %v7112, 0.0
        %v7154 = vmax.f32 %v7113, 0.0
        %v7155 = vmax.f32 %v7114, 0.0
        %v7156 = vmax.f32 %v7115, 0.0
        %v7157 = vmax.f32 %v7116, 0.0
        %v7158 = vmax.f32 %v7117, 0.0
        %v7159 = vmax.f32 %v7118, 0.0
        %v7160 = vmax.f32 %v7119, 0.0
        %v7161 = vmax.f32 %v7120, 0.0
        %v7162 = vmax.f32 %v7121, 0.0
        %v7163 = vmax.f32 %v7122, 0.0
        %v7164 = vmax.f32 %v7123, 0.0
        %v7165 = vmax.f32 %v7124, 0.0
        %v7166 = vmax.f32 %v7125, 0.0
        %v7167 = vmax.f32 %v7126, 0.0
        %v7168 = vmax.f32 %v7127, 0.0
        %v7169 = vmax.f32 %v7128, 0.0
        %v7170 = vmax.f32 %v7129, 0.0
        %v7171 = vmax.f32 %v7130, 0.0
        %v7172 = vmax.f32 %v7131, 0.0
        %v7173 = vmax.f32 %v7132, 0.0
        %v7174 = vmax.f32 %v7133, 0.0
        %v7175 = vmax.f32 %v7134, 0.0
        %v7176 = vmax.f32 %v7135, 0.0
        %v7177 = vmax.f32 %v7136, 0.0
        %v7178 = vmax.f32 %v7137, 0.0
        %v7179 = vmax.f32 %v7138, 0.0
        %v7180 = vmax.f32 %v7139, 0.0
        %v7181 = vmax.f32 %v7140, 0.0
        %v7223 = vrot.slane %v7141, 2
        %v7224 = vrot.slane %v7141, 4
        %v7225 = vrot.slane %v7141, 6
        %v7226 = vrot.slane %v7142, 2
        %v7227 = vrot.slane %v7142, 4
        %v7228 = vrot.slane %v7142, 6
        %v7229 = vrot.slane %v7143, 2
        %v7230 = vrot.slane %v7143, 4
        %v7231 = vrot.slane %v7143, 6
        %v7232 = vrot.slane %v7144, 2
        %v7233 = vrot.slane %v7144, 4
        %v7234 = vrot.slane %v7144, 6
        %v7235 = vrot.slane %v7145, 2
        %v7236 = vrot.slane %v7145, 4
        %v7237 = vrot.slane %v7145, 6
        %v7238 = vrot.slane %v7146, 2
        %v7239 = vrot.slane %v7146, 4
        %v7240 = vrot.slane %v7146, 6
        %v7241 = vrot.slane %v7147, 2
        %v7242 = vrot.slane %v7147, 4
        %v7243 = vrot.slane %v7147, 6
        %v7244 = vrot.slane %v7148, 2
        %v7245 = vrot.slane %v7148, 4
        %v7246 = vrot.slane %v7148, 6
        %v7247 = vrot.slane %v7149, 2
        %v7248 = vrot.slane %v7149, 4
        %v7249 = vrot.slane %v7149, 6
        %v7250 = vrot.slane %v7150, 2
        %v7251 = vrot.slane %v7150, 4
        %v7252 = vrot.slane %v7150, 6
        %v7253 = vrot.slane %v7151, 2
        %v7254 = vrot.slane %v7151, 4
        %v7255 = vrot.slane %v7151, 6
        %v7256 = vrot.slane %v7152, 2
        %v7257 = vrot.slane %v7152, 4
        %v7258 = vrot.slane %v7152, 6
        %v7259 = vrot.slane %v7153, 2
        %v7260 = vrot.slane %v7153, 4
        %v7261 = vrot.slane %v7153, 6
        %v7262 = vrot.slane %v7154, 2
        %v7263 = vrot.slane %v7154, 4
        %v7264 = vrot.slane %v7154, 6
        %v7265 = vrot.slane %v7155, 2
        %v7266 = vrot.slane %v7155, 4
        %v7267 = vrot.slane %v7155, 6
        %v7268 = vrot.slane %v7156, 2
        %v7269 = vrot.slane %v7156, 4
        %v7270 = vrot.slane %v7156, 6
        %v7271 = vrot.slane %v7157, 2
        %v7272 = vrot.slane %v7157, 4
        %v7273 = vrot.slane %v7157, 6
        %v7274 = vrot.slane %v7158, 2
        %v7275 = vrot.slane %v7158, 4
        %v7276 = vrot.slane %v7158, 6
        %v7277 = vrot.slane %v7159, 2
        %v7278 = vrot.slane %v7159, 4
        %v7279 = vrot.slane %v7159, 6
        %v7280 = vrot.slane %v7160, 2
        %v7281 = vrot.slane %v7160, 4
        %v7282 = vrot.slane %v7160, 6
        %v7283 = vrot.slane %v7161, 2
        %v7284 = vrot.slane %v7161, 4
        %v7285 = vrot.slane %v7161, 6
        %v7286 = vrot.slane %v7162, 2
        %v7287 = vrot.slane %v7162, 4
        %v7288 = vrot.slane %v7162, 6
        %v7289 = vrot.slane %v7163, 2
        %v7290 = vrot.slane %v7163, 4
        %v7291 = vrot.slane %v7163, 6
        %v7292 = vrot.slane %v7164, 2
        %v7293 = vrot.slane %v7164, 4
        %v7294 = vrot.slane %v7164, 6
        %v7295 = vrot.slane %v7165, 2
        %v7296 = vrot.slane %v7165, 4
        %v7297 = vrot.slane %v7165, 6
        %v7298 = vrot.slane %v7166, 2
        %v7299 = vrot.slane %v7166, 4
        %v7300 = vrot.slane %v7166, 6
        %v7301 = vrot.slane %v7167, 2
        %v7302 = vrot.slane %v7167, 4
        %v7303 = vrot.slane %v7167, 6
        %v7304 = vrot.slane %v7168, 2
        %v7305 = vrot.slane %v7168, 4
        %v7306 = vrot.slane %v7168, 6
        %v7307 = vrot.slane %v7169, 2
        %v7308 = vrot.slane %v7169, 4
        %v7309 = vrot.slane %v7169, 6
        %v7310 = vrot.slane %v7170, 2
        %v7311 = vrot.slane %v7170, 4
        %v7312 = vrot.slane %v7170, 6
        %v7313 = vrot.slane %v7171, 2
        %v7314 = vrot.slane %v7171, 4
        %v7315 = vrot.slane %v7171, 6
        %v7316 = vrot.slane %v7172, 2
        %v7317 = vrot.slane %v7172, 4
        %v7318 = vrot.slane %v7172, 6
        %v7319 = vrot.slane %v7173, 2
        %v7320 = vrot.slane %v7173, 4
        %v7321 = vrot.slane %v7173, 6
        %v7322 = vrot.slane %v7174, 2
        %v7323 = vrot.slane %v7174, 4
        %v7324 = vrot.slane %v7174, 6
        %v7325 = vrot.slane %v7175, 2
        %v7326 = vrot.slane %v7175, 4
        %v7327 = vrot.slane %v7175, 6
        %v7328 = vrot.slane %v7176, 2
        %v7329 = vrot.slane %v7176, 4
        %v7330 = vrot.slane %v7176, 6
        %v7331 = vrot.slane %v7177, 2
        %v7332 = vrot.slane %v7177, 4
        %v7333 = vrot.slane %v7177, 6
        %v7334 = vrot.slane %v7178, 2
        %v7335 = vrot.slane %v7178, 4
        %v7336 = vrot.slane %v7178, 6
        %v7337 = vrot.slane %v7179, 2
        %v7338 = vrot.slane %v7179, 4
        %v7339 = vrot.slane %v7179, 6
        %v7340 = vrot.slane %v7180, 2
        %v7341 = vrot.slane %v7180, 4
        %v7342 = vrot.slane %v7180, 6
        %v7343 = vrot.slane %v7181, 2
        %v7344 = vlaneseq
        %v7345 = vshrl.u32 %v7344, 7
        %v7346 = vadd.s32 %v7345, 8
        %v7347 = vadd.s32 %v7345, 16
        %vm7348 = vcmp.ge.s32.totalorder %v7345, 1
        %vm7349 = vcmp.ge.s32.totalorder %v7346, 1
        %vm7350 = vcmp.ge.s32.totalorder %v7347, 1
        %vm7351 = vcmp.le.s32.totalorder %v7345, 16
        %vm7352 = vcmp.le.s32.totalorder %v7346, 16
        %vm7353 = vcmp.le.s32.totalorder %v7347, 16
        %vm7354 = vmand %vm7348, %vm7351
        %vm7355 = vmand %vm7349, %vm7352
        %vm7356 = vmand %vm7350, %vm7353
        %p7357 = scmp.ne.s32.totalorder %s25, 0
        %s7358 = scalar_select %p7357, 1, 0
        %v7359 = vstv %s7358
        %vm7360 = vcmp.eq.s32.totalorder %v7359, 1
        %vm7361 = vmand %vm7354, %vm7360
        %vm7362 = vmand %vm7355, %vm7360
        %vm7363 = vmand %vm7356, %vm7360
        %vm7364 = vmand %vm7354, 1
        %vm7365 = vmand %vm7355, 1
        %vm7366 = vmand %vm7356, 1
        %vm7367 = vmand %vm7361, 1
        %vm7368 = vmand %vm7362, 1
        %vm7369 = vmand %vm7363, 1
        %vm7370 = vmand %vm7364, %vm7360
        %vm7371 = vmand %vm7365, %vm7360
        %vm7372 = vmand %vm7366, %vm7360
        %v7373 = vsel %vm7367, 1, 0
        %v7374 = vsel %vm7368, 1, 0
        %v7375 = vsel %vm7369, 1, 0
        %v7376 = vsel %vm7364, 1, 0
        %v7377 = vsel %vm7365, 1, 0
        %v7378 = vsel %vm7366, 1, 0
        %v7379 = vsel %vm7370, 1, 0
        %v7380 = vsel %vm7371, 1, 0
        %v7381 = vsel %vm7372, 1, 0
        %vm7382 = vcmp.eq.s32.totalorder %v7373, 1
        %vm7383 = vcmp.eq.s32.totalorder %v7374, 1
        %vm7384 = vcmp.eq.s32.totalorder %v7375, 1
        %vm7385 = vcmp.eq.s32.totalorder %v7376, 1
        %vm7386 = vcmp.eq.s32.totalorder %v7377, 1
        %vm7387 = vcmp.eq.s32.totalorder %v7378, 1
        %vm7388 = vcmp.eq.s32.totalorder %v7379, 1
        %vm7389 = vcmp.eq.s32.totalorder %v7380, 1
        %vm7390 = vcmp.eq.s32.totalorder %v7381, 1
        %7391 = vst [vmem:[#allocation1] ss:$4 sm:$0xff] %v7141
        %s7392 = scalar_lea.vmem [#allocation1], 1
        %7393 = vst [vmem:[%s7392] ss:$4 sm:$0xff] %v7223
        %s7394 = scalar_lea.vmem [#allocation1], 2
        %7395 = vst [vmem:[%s7394] ss:$4 sm:$0xff] %v7224
        %s7396 = scalar_lea.vmem [#allocation1], 3
        %7397 = vst [vmem:[%s7396] ss:$4 sm:$0xff] %v7225
        %s7398 = scalar_lea.vmem [#allocation1], 32
        %7399 = vst [vmem:[%s7398] ss:$4 sm:$0xff] %v7142
        %s7400 = scalar_lea.vmem [#allocation1], 33
        %7401 = vst [vmem:[%s7400] ss:$4 sm:$0xff] %v7226
        %s7402 = scalar_lea.vmem [#allocation1], 34
        %7403 = vst [vmem:[%s7402] ss:$4 sm:$0xff] %v7227
        %s7404 = scalar_lea.vmem [#allocation1], 35
        %7405 = vst [vmem:[%s7404] ss:$4 sm:$0xff] %v7228
        %v7406 = vld.sshfl [vmem:[#allocation1] sm:$0xff pattern:$0x73625140]
        %v7407 = vld.sshfl [vmem:[#allocation1 + $0x20] sm:$0xff pattern:$0x73625140]
        %7408 = vst [vmem:[#allocation1] ss:$4 sm:$0xff] %v7143
        %v7409 = vld.sshfl [vmem:[#allocation1] sm:$0xff pattern:$0x73625140]
        %7410 = vst [vmem:[%s7398] ss:$4 sm:$0xff] %v7229
        %7411 = vst [vmem:[%s7400] ss:$4 sm:$0xff] %v7230
        %7412 = vst [vmem:[%s7402] ss:$4 sm:$0xff] %v7231
        %7413 = vst [vmem:[%s7404] ss:$4 sm:$0xff] %v7144
        %v7414 = vld.sshfl [vmem:[#allocation1 + $0x20] sm:$0xff pattern:$0x73625140]
        %7415 = vst [vmem:[#allocation1] ss:$4 sm:$0xff] %v7232
        %7416 = vst [vmem:[%s7392] ss:$4 sm:$0xff] %v7233
        %7417 = vst [vmem:[%s7394] ss:$4 sm:$0xff] %v7234
        %7418 = vst [vmem:[%s7396] ss:$4 sm:$0xff] %v7145
        %7419 = vst [vmem:[%s7398] ss:$4 sm:$0xff] %v7235
        %v7420 = vld.sshfl [vmem:[#allocation1] sm:$0xff pattern:$0x73625140]
        %v7421 = vld.sshfl [vmem:[#allocation1 + $0x20] sm:$0xff pattern:$0x73625140]
        %7422 = vst [vmem:[#allocation1] ss:$4 sm:$0xff] %v7236
        %7423 = vst [vmem:[%s7392] ss:$4 sm:$0xff] %v7237
        %7424 = vst [vmem:[%s7394] ss:$4 sm:$0xff] %v7146
        %7425 = vst [vmem:[%s7396] ss:$4 sm:$0xff] %v7238
        %7426 = vst [vmem:[%s7398] ss:$4 sm:$0xff] %v7239
        %7427 = vst [vmem:[%s7400] ss:$4 sm:$0xff] %v7240
        %7428 = vst [vmem:[%s7402] ss:$4 sm:$0xff] %v7147
        %7429 = vst [vmem:[%s7404] ss:$4 sm:$0xff] %v7241
        %v7430 = vld.sshfl [vmem:[#allocation1] sm:$0xff pattern:$0x73625140]
        %v7431 = vld.sshfl [vmem:[#allocation1 + $0x20] sm:$0xff pattern:$0x73625140]
        %7432 = vst [vmem:[#allocation1] ss:$4 sm:$0xff] %v7242
        %v7433 = vld.sshfl [vmem:[#allocation1] sm:$0xff pattern:$0x73625140]
        %7434 = vst [vmem:[%s7398] ss:$4 sm:$0xff] %v7243
        %7435 = vst [vmem:[%s7400] ss:$4 sm:$0xff] %v7148
        %7436 = vst [vmem:[%s7402] ss:$4 sm:$0xff] %v7244
        %7437 = vst [vmem:[%s7404] ss:$4 sm:$0xff] %v7245
        %v7438 = vld.sshfl [vmem:[#allocation1 + $0x20] sm:$0xff pattern:$0x73625140]
        %7439 = vst [vmem:[#allocation1] ss:$4 sm:$0xff] %v7246
        %7440 = vst [vmem:[%s7392] ss:$4 sm:$0xff] %v7149
        %7441 = vst [vmem:[%s7394] ss:$4 sm:$0xff] %v7247
        %7442 = vst [vmem:[%s7396] ss:$4 sm:$0xff] %v7248
        %7443 = vst [vmem:[%s7398] ss:$4 sm:$0xff] %v7249
        %v7444 = vld.sshfl [vmem:[#allocation1] sm:$0xff pattern:$0x73625140]
        %v7445 = vld.sshfl [vmem:[#allocation1 + $0x20] sm:$0xff pattern:$0x73625140]
        %7446 = vst [vmem:[#allocation1] ss:$4 sm:$0xff] %v7150
        %7447 = vst [vmem:[%s7392] ss:$4 sm:$0xff] %v7250
        %7448 = vst [vmem:[%s7394] ss:$4 sm:$0xff] %v7251
        %7449 = vst [vmem:[%s7396] ss:$4 sm:$0xff] %v7252
        %7450 = vst [vmem:[%s7398] ss:$4 sm:$0xff] %v7151
        %7451 = vst [vmem:[%s7400] ss:$4 sm:$0xff] %v7253
        %7452 = vst [vmem:[%s7402] ss:$4 sm:$0xff] %v7254
        %7453 = vst [vmem:[%s7404] ss:$4 sm:$0xff] %v7255
        %v7454 = vld.sshfl [vmem:[#allocation1] sm:$0xff pattern:$0x73625140]
        %v7455 = vld.sshfl [vmem:[#allocation1 + $0x20] sm:$0xff pattern:$0x73625140]
        %7456 = vst [vmem:[#allocation1] ss:$4 sm:$0xff] %v7152
        %v7457 = vld.sshfl [vmem:[#allocation1] sm:$0xff pattern:$0x73625140]
        %7458 = vst [vmem:[%s7398] ss:$4 sm:$0xff] %v7256
        %7459 = vst [vmem:[%s7400] ss:$4 sm:$0xff] %v7257
        %7460 = vst [vmem:[%s7402] ss:$4 sm:$0xff] %v7258
        %7461 = vst [vmem:[%s7404] ss:$4 sm:$0xff] %v7153
        %v7462 = vld.sshfl [vmem:[#allocation1 + $0x20] sm:$0xff pattern:$0x73625140]
        %7463 = vst [vmem:[#allocation1] ss:$4 sm:$0xff] %v7259
        %7464 = vst [vmem:[%s7392] ss:$4 sm:$0xff] %v7260
        %7465 = vst [vmem:[%s7394] ss:$4 sm:$0xff] %v7261
        %7466 = vst [vmem:[%s7396] ss:$4 sm:$0xff] %v7154
        %7467 = vst [vmem:[%s7398] ss:$4 sm:$0xff] %v7262
        %v7468 = vld.sshfl [vmem:[#allocation1] sm:$0xff pattern:$0x73625140]
        %v7469 = vld.sshfl [vmem:[#allocation1 + $0x20] sm:$0xff pattern:$0x73625140]
        %7470 = vst [vmem:[#allocation1] ss:$4 sm:$0xff] %v7263
        %7471 = vst [vmem:[%s7392] ss:$4 sm:$0xff] %v7264
        %7472 = vst [vmem:[%s7394] ss:$4 sm:$0xff] %v7155
        %7473 = vst [vmem:[%s7396] ss:$4 sm:$0xff] %v7265
        %7474 = vst [vmem:[%s7398] ss:$4 sm:$0xff] %v7266
        %7475 = vst [vmem:[%s7400] ss:$4 sm:$0xff] %v7267
        %7476 = vst [vmem:[%s7402] ss:$4 sm:$0xff] %v7156
        %7477 = vst [vmem:[%s7404] ss:$4 sm:$0xff] %v7268
        %v7478 = vld.sshfl [vmem:[#allocation1] sm:$0xff pattern:$0x73625140]
        %v7479 = vld.sshfl [vmem:[#allocation1 + $0x20] sm:$0xff pattern:$0x73625140]
        %7480 = vst [vmem:[#allocation1] ss:$4 sm:$0xff] %v7269
        %v7481 = vld.sshfl [vmem:[#allocation1] sm:$0xff pattern:$0x73625140]
        %7482 = vst [vmem:[%s7398] ss:$4 sm:$0xff] %v7270
        %7483 = vst [vmem:[%s7400] ss:$4 sm:$0xff] %v7157
        %7484 = vst [vmem:[%s7402] ss:$4 sm:$0xff] %v7271
        %7485 = vst [vmem:[%s7404] ss:$4 sm:$0xff] %v7272
        %v7486 = vld.sshfl [vmem:[#allocation1 + $0x20] sm:$0xff pattern:$0x73625140]
        %7487 = vst [vmem:[#allocation1] ss:$4 sm:$0xff] %v7273
        %7488 = vst [vmem:[%s7392] ss:$4 sm:$0xff] %v7158
        %7489 = vst [vmem:[%s7394] ss:$4 sm:$0xff] %v7274
        %7490 = vst [vmem:[%s7396] ss:$4 sm:$0xff] %v7275
        %7491 = vst [vmem:[%s7398] ss:$4 sm:$0xff] %v7276
        %v7492 = vld.sshfl [vmem:[#allocation1] sm:$0xff pattern:$0x73625140]
        %v7493 = vld.sshfl [vmem:[#allocation1 + $0x20] sm:$0xff pattern:$0x73625140]
        %7494 = vst [vmem:[#allocation1] ss:$4 sm:$0xff] %v7159
        %7495 = vst [vmem:[%s7392] ss:$4 sm:$0xff] %v7277
        %7496 = vst [vmem:[%s7394] ss:$4 sm:$0xff] %v7278
        %7497 = vst [vmem:[%s7396] ss:$4 sm:$0xff] %v7279
        %7498 = vst [vmem:[%s7398] ss:$4 sm:$0xff] %v7160
        %7499 = vst [vmem:[%s7400] ss:$4 sm:$0xff] %v7280
        %7500 = vst [vmem:[%s7402] ss:$4 sm:$0xff] %v7281
        %7501 = vst [vmem:[%s7404] ss:$4 sm:$0xff] %v7282
        %v7502 = vld.sshfl [vmem:[#allocation1] sm:$0xff pattern:$0x73625140]
        %v7503 = vld.sshfl [vmem:[#allocation1 + $0x20] sm:$0xff pattern:$0x73625140]
        %7504 = vst [vmem:[#allocation1] ss:$4 sm:$0xff] %v7161
        %v7505 = vld.sshfl [vmem:[#allocation1] sm:$0xff pattern:$0x73625140]
        %7506 = vst [vmem:[%s7398] ss:$4 sm:$0xff] %v7283
        %7507 = vst [vmem:[%s7400] ss:$4 sm:$0xff] %v7284
        %7508 = vst [vmem:[%s7402] ss:$4 sm:$0xff] %v7285
        %7509 = vst [vmem:[%s7404] ss:$4 sm:$0xff] %v7162
        %v7510 = vld.sshfl [vmem:[#allocation1 + $0x20] sm:$0xff pattern:$0x73625140]
        %7511 = vst [vmem:[#allocation1] ss:$4 sm:$0xff] %v7286
        %7512 = vst [vmem:[%s7392] ss:$4 sm:$0xff] %v7287
        %7513 = vst [vmem:[%s7394] ss:$4 sm:$0xff] %v7288
        %7514 = vst [vmem:[%s7396] ss:$4 sm:$0xff] %v7163
        %7515 = vst [vmem:[%s7398] ss:$4 sm:$0xff] %v7289
        %v7516 = vld.sshfl [vmem:[#allocation1] sm:$0xff pattern:$0x73625140]
        %v7517 = vld.sshfl [vmem:[#allocation1 + $0x20] sm:$0xff pattern:$0x73625140]
        %7518 = vst [vmem:[#allocation1] ss:$4 sm:$0xff] %v7290
        %7519 = vst [vmem:[%s7392] ss:$4 sm:$0xff] %v7291
        %7520 = vst [vmem:[%s7394] ss:$4 sm:$0xff] %v7164
        %7521 = vst [vmem:[%s7396] ss:$4 sm:$0xff] %v7292
        %7522 = vst [vmem:[%s7398] ss:$4 sm:$0xff] %v7293
        %7523 = vst [vmem:[%s7400] ss:$4 sm:$0xff] %v7294
        %7524 = vst [vmem:[%s7402] ss:$4 sm:$0xff] %v7165
        %7525 = vst [vmem:[%s7404] ss:$4 sm:$0xff] %v7295
        %v7526 = vld.sshfl [vmem:[#allocation1] sm:$0xff pattern:$0x73625140]
        %v7527 = vld.sshfl [vmem:[#allocation1 + $0x20] sm:$0xff pattern:$0x73625140]
        %7528 = vst [vmem:[#allocation1] ss:$4 sm:$0xff] %v7296
        %v7529 = vld.sshfl [vmem:[#allocation1] sm:$0xff pattern:$0x73625140]
        %7530 = vst [vmem:[%s7398] ss:$4 sm:$0xff] %v7297
        %7531 = vst [vmem:[%s7400] ss:$4 sm:$0xff] %v7166
        %7532 = vst [vmem:[%s7402] ss:$4 sm:$0xff] %v7298
        %7533 = vst [vmem:[%s7404] ss:$4 sm:$0xff] %v7299
        %v7534 = vld.sshfl [vmem:[#allocation1 + $0x20] sm:$0xff pattern:$0x73625140]
        %7535 = vst [vmem:[#allocation1] ss:$4 sm:$0xff] %v7300
        %7536 = vst [vmem:[%s7392] ss:$4 sm:$0xff] %v7167
        %7537 = vst [vmem:[%s7394] ss:$4 sm:$0xff] %v7301
        %7538 = vst [vmem:[%s7396] ss:$4 sm:$0xff] %v7302
        %7539 = vst [vmem:[%s7398] ss:$4 sm:$0xff] %v7303
        %v7540 = vld.sshfl [vmem:[#allocation1] sm:$0xff pattern:$0x73625140]
        %v7541 = vld.sshfl [vmem:[#allocation1 + $0x20] sm:$0xff pattern:$0x73625140]
        %7542 = vst [vmem:[#allocation1] ss:$4 sm:$0xff] %v7168
        %7543 = vst [vmem:[%s7392] ss:$4 sm:$0xff] %v7304
        %7544 = vst [vmem:[%s7394] ss:$4 sm:$0xff] %v7305
        %7545 = vst [vmem:[%s7396] ss:$4 sm:$0xff] %v7306
        %7546 = vst [vmem:[%s7398] ss:$4 sm:$0xff] %v7169
        %7547 = vst [vmem:[%s7400] ss:$4 sm:$0xff] %v7307
        %7548 = vst [vmem:[%s7402] ss:$4 sm:$0xff] %v7308
        %7549 = vst [vmem:[%s7404] ss:$4 sm:$0xff] %v7309
        %v7550 = vld.sshfl [vmem:[#allocation1] sm:$0xff pattern:$0x73625140]
        %v7551 = vld.sshfl [vmem:[#allocation1 + $0x20] sm:$0xff pattern:$0x73625140]
        %7552 = vst [vmem:[#allocation1] ss:$4 sm:$0xff] %v7170
        %v7553 = vld.sshfl [vmem:[#allocation1] sm:$0xff pattern:$0x73625140]
        %7554 = vst [vmem:[%s7398] ss:$4 sm:$0xff] %v7310
        %7555 = vst [vmem:[%s7400] ss:$4 sm:$0xff] %v7311
        %7556 = vst [vmem:[%s7402] ss:$4 sm:$0xff] %v7312
        %7557 = vst [vmem:[%s7404] ss:$4 sm:$0xff] %v7171
        %v7558 = vld.sshfl [vmem:[#allocation1 + $0x20] sm:$0xff pattern:$0x73625140]
        %7559 = vst [vmem:[#allocation1] ss:$4 sm:$0xff] %v7313
        %7560 = vst [vmem:[%s7392] ss:$4 sm:$0xff] %v7314
        %7561 = vst [vmem:[%s7394] ss:$4 sm:$0xff] %v7315
        %7562 = vst [vmem:[%s7396] ss:$4 sm:$0xff] %v7172
        %7563 = vst [vmem:[%s7398] ss:$4 sm:$0xff] %v7316
        %v7564 = vld.sshfl [vmem:[#allocation1] sm:$0xff pattern:$0x73625140]
        %v7565 = vld.sshfl [vmem:[#allocation1 + $0x20] sm:$0xff pattern:$0x73625140]
        %7566 = vst [vmem:[#allocation1] ss:$4 sm:$0xff] %v7317
        %7567 = vst [vmem:[%s7392] ss:$4 sm:$0xff] %v7318
        %7568 = vst [vmem:[%s7394] ss:$4 sm:$0xff] %v7173
        %7569 = vst [vmem:[%s7396] ss:$4 sm:$0xff] %v7319
        %7570 = vst [vmem:[%s7398] ss:$4 sm:$0xff] %v7320
        %7571 = vst [vmem:[%s7400] ss:$4 sm:$0xff] %v7321
        %7572 = vst [vmem:[%s7402] ss:$4 sm:$0xff] %v7174
        %7573 = vst [vmem:[%s7404] ss:$4 sm:$0xff] %v7322
        %v7574 = vld.sshfl [vmem:[#allocation1] sm:$0xff pattern:$0x73625140]
        %v7575 = vld.sshfl [vmem:[#allocation1 + $0x20] sm:$0xff pattern:$0x73625140]
        %7576 = vst [vmem:[#allocation1] ss:$4 sm:$0xff] %v7323
        %v7577 = vld.sshfl [vmem:[#allocation1] sm:$0xff pattern:$0x73625140]
        %7578 = vst [vmem:[%s7398] ss:$4 sm:$0xff] %v7324
        %7579 = vst [vmem:[%s7400] ss:$4 sm:$0xff] %v7175
        %7580 = vst [vmem:[%s7402] ss:$4 sm:$0xff] %v7325
        %7581 = vst [vmem:[%s7404] ss:$4 sm:$0xff] %v7326
        %v7582 = vld.sshfl [vmem:[#allocation1 + $0x20] sm:$0xff pattern:$0x73625140]
        %7583 = vst [vmem:[#allocation1] ss:$4 sm:$0xff] %v7327
        %7584 = vst [vmem:[%s7392] ss:$4 sm:$0xff] %v7176
        %7585 = vst [vmem:[%s7394] ss:$4 sm:$0xff] %v7328
        %7586 = vst [vmem:[%s7396] ss:$4 sm:$0xff] %v7329
        %7587 = vst [vmem:[%s7398] ss:$4 sm:$0xff] %v7330
        %v7588 = vld.sshfl [vmem:[#allocation1] sm:$0xff pattern:$0x73625140]
        %v7589 = vld.sshfl [vmem:[#allocation1 + $0x20] sm:$0xff pattern:$0x73625140]
        %7590 = vst [vmem:[#allocation1] ss:$4 sm:$0xff] %v7177
        %7591 = vst [vmem:[%s7392] ss:$4 sm:$0xff] %v7331
        %7592 = vst [vmem:[%s7394] ss:$4 sm:$0xff] %v7332
        %7593 = vst [vmem:[%s7396] ss:$4 sm:$0xff] %v7333
        %7594 = vst [vmem:[%s7398] ss:$4 sm:$0xff] %v7178
        %7595 = vst [vmem:[%s7400] ss:$4 sm:$0xff] %v7334
        %7596 = vst [vmem:[%s7402] ss:$4 sm:$0xff] %v7335
        %7597 = vst [vmem:[%s7404] ss:$4 sm:$0xff] %v7336
        %v7598 = vld.sshfl [vmem:[#allocation1] sm:$0xff pattern:$0x73625140]
        %v7599 = vld.sshfl [vmem:[#allocation1 + $0x20] sm:$0xff pattern:$0x73625140]
        %7600 = vst [vmem:[#allocation1] ss:$4 sm:$0xff] %v7179
        %v7601 = vld.sshfl [vmem:[#allocation1] sm:$0xff pattern:$0x73625140]
        %7602 = vst [vmem:[%s7398] ss:$4 sm:$0xff] %v7337
        %7603 = vst [vmem:[%s7400] ss:$4 sm:$0xff] %v7338
        %7604 = vst [vmem:[%s7402] ss:$4 sm:$0xff] %v7339
        %7605 = vst [vmem:[%s7404] ss:$4 sm:$0xff] %v7180
        %v7606 = vld.sshfl [vmem:[#allocation1 + $0x20] sm:$0xff pattern:$0x73625140]
        %7607 = vst [vmem:[#allocation1] ss:$4 sm:$0xff] %v7340
        %7608 = vst [vmem:[%s7392] ss:$4 sm:$0xff] %v7341
        %7609 = vst [vmem:[%s7394] ss:$4 sm:$0xff] %v7342
        %7610 = vst [vmem:[%s7396] ss:$4 sm:$0xff] %v7181
        %7611 = vst [vmem:[%s7398] ss:$4 sm:$0xff] %v7343
        %v7612 = vld.sshfl [vmem:[#allocation1] sm:$0xff pattern:$0x73625140]
        %v7613 = vld.sshfl [vmem:[#allocation1 + $0x20] sm:$0xff pattern:$0x73625140]
        %v7668 = vsel %vm7382, %v7406, 0.0
        %v7669 = vsel %vm7383, %v7407, 0.0
        %v7670 = vsel %vm7384, %v7409, 0.0
        %v7671 = vsel %vm7385, %v7414, 0.0
        %v7672 = vsel %vm7386, %v7420, 0.0
        %v7673 = vsel %vm7387, %v7421, 0.0
        %v7674 = vsel %vm7385, %v7430, 0.0
        %v7675 = vsel %vm7386, %v7431, 0.0
        %v7676 = vsel %vm7387, %v7433, 0.0
        %v7677 = vsel %vm7385, %v7438, 0.0
        %v7678 = vsel %vm7386, %v7444, 0.0
        %v7679 = vsel %vm7387, %v7445, 0.0
        %v7680 = vsel %vm7385, %v7454, 0.0
        %v7681 = vsel %vm7386, %v7455, 0.0
        %v7682 = vsel %vm7387, %v7457, 0.0
        %v7683 = vsel %vm7385, %v7462, 0.0
        %v7684 = vsel %vm7386, %v7468, 0.0
        %v7685 = vsel %vm7387, %v7469, 0.0
        %v7686 = vsel %vm7385, %v7478, 0.0
        %v7687 = vsel %vm7386, %v7479, 0.0
        %v7688 = vsel %vm7387, %v7481, 0.0
        %v7689 = vsel %vm7385, %v7486, 0.0
        %v7690 = vsel %vm7386, %v7492, 0.0
        %v7691 = vsel %vm7387, %v7493, 0.0
        %v7692 = vsel %vm7385, %v7502, 0.0
        %v7693 = vsel %vm7386, %v7503, 0.0
        %v7694 = vsel %vm7387, %v7505, 0.0
        %v7695 = vsel %vm7385, %v7510, 0.0
        %v7696 = vsel %vm7386, %v7516, 0.0
        %v7697 = vsel %vm7387, %v7517, 0.0
        %v7698 = vsel %vm7385, %v7526, 0.0
        %v7699 = vsel %vm7386, %v7527, 0.0
        %v7700 = vsel %vm7387, %v7529, 0.0
        %v7701 = vsel %vm7385, %v7534, 0.0
        %v7702 = vsel %vm7386, %v7540, 0.0
        %v7703 = vsel %vm7387, %v7541, 0.0
        %v7704 = vsel %vm7385, %v7550, 0.0
        %v7705 = vsel %vm7386, %v7551, 0.0
        %v7706 = vsel %vm7387, %v7553, 0.0
        %v7707 = vsel %vm7385, %v7558, 0.0
        %v7708 = vsel %vm7386, %v7564, 0.0
        %v7709 = vsel %vm7387, %v7565, 0.0
        %v7710 = vsel %vm7385, %v7574, 0.0
        %v7711 = vsel %vm7386, %v7575, 0.0
        %v7712 = vsel %vm7387, %v7577, 0.0
        %v7713 = vsel %vm7385, %v7582, 0.0
        %v7714 = vsel %vm7386, %v7588, 0.0
        %v7715 = vsel %vm7387, %v7589, 0.0
        %v7716 = vsel %vm7385, %v7598, 0.0
        %v7717 = vsel %vm7386, %v7599, 0.0
        %v7718 = vsel %vm7387, %v7601, 0.0
        %v7719 = vsel %vm7388, %v7606, 0.0
        %v7720 = vsel %vm7389, %v7612, 0.0
        %v7721 = vsel %vm7390, %v7613, 0.0
        %v7722 = vpack.c.bf16 %v7668, %v7668
        %v7723 = vpack.c.bf16 %v7669, %v7669
        %v7724 = vpack.c.bf16 %v7670, %v7670
        %v7725 = vpack.c.bf16 %v7671, %v7671
        %v7726 = vpack.c.bf16 %v7672, %v7672
        %v7727 = vpack.c.bf16 %v7673, %v7673
        %v7728 = vpack.c.bf16 %v7674, %v7674
        %v7729 = vpack.c.bf16 %v7675, %v7675
        %v7730 = vpack.c.bf16 %v7676, %v7676
        %v7731 = vpack.c.bf16 %v7677, %v7677
        %v7732 = vpack.c.bf16 %v7678, %v7678
        %v7733 = vpack.c.bf16 %v7679, %v7679
        %v7734 = vpack.c.bf16 %v7680, %v7680
        %v7735 = vpack.c.bf16 %v7681, %v7681
        %v7736 = vpack.c.bf16 %v7682, %v7682
        %v7737 = vpack.c.bf16 %v7683, %v7683
        %v7738 = vpack.c.bf16 %v7684, %v7684
        %v7739 = vpack.c.bf16 %v7685, %v7685
        %v7740 = vpack.c.bf16 %v7686, %v7686
        %v7741 = vpack.c.bf16 %v7687, %v7687
        %v7742 = vpack.c.bf16 %v7688, %v7688
        %v7743 = vpack.c.bf16 %v7689, %v7689
        %v7744 = vpack.c.bf16 %v7690, %v7690
        %v7745 = vpack.c.bf16 %v7691, %v7691
        %v7746 = vpack.c.bf16 %v7692, %v7692
        %v7747 = vpack.c.bf16 %v7693, %v7693
        %v7748 = vpack.c.bf16 %v7694, %v7694
        %v7749 = vpack.c.bf16 %v7695, %v7695
        %v7750 = vpack.c.bf16 %v7696, %v7696
        %v7751 = vpack.c.bf16 %v7697, %v7697
        %v7752 = vpack.c.bf16 %v7698, %v7698
        %v7753 = vpack.c.bf16 %v7699, %v7699
        %v7754 = vpack.c.bf16 %v7700, %v7700
        %v7755 = vpack.c.bf16 %v7701, %v7701
        %v7756 = vpack.c.bf16 %v7702, %v7702
        %v7757 = vpack.c.bf16 %v7703, %v7703
        %v7758 = vpack.c.bf16 %v7704, %v7704
        %v7759 = vpack.c.bf16 %v7705, %v7705
        %v7760 = vpack.c.bf16 %v7706, %v7706
        %v7761 = vpack.c.bf16 %v7707, %v7707
        %v7762 = vpack.c.bf16 %v7708, %v7708
        %v7763 = vpack.c.bf16 %v7709, %v7709
        %v7764 = vpack.c.bf16 %v7710, %v7710
        %v7765 = vpack.c.bf16 %v7711, %v7711
        %v7766 = vpack.c.bf16 %v7712, %v7712
        %v7767 = vpack.c.bf16 %v7713, %v7713
        %v7768 = vpack.c.bf16 %v7714, %v7714
        %v7769 = vpack.c.bf16 %v7715, %v7715
        %v7770 = vpack.c.bf16 %v7716, %v7716
        %v7771 = vpack.c.bf16 %v7717, %v7717
        %v7772 = vpack.c.bf16 %v7718, %v7718
        %v7773 = vpack.c.bf16 %v7719, %v7719
        %v7774 = vpack.c.bf16 %v7720, %v7720
        %v7775 = vpack.c.bf16 %v7721, %v7721
        %v7776 = vld [vmem:[#allocation2] sm:$0xf]
        %v7777 = vld [vmem:[#allocation2 + $0x4] sm:$0xf]
        %v7778 = vld [vmem:[#allocation2 + $0x8] sm:$0xf]
        %v7779 = vld [vmem:[#allocation2 + $0xc] sm:$0xf]
        %v7780 = vld [vmem:[#allocation2 + $0x10] sm:$0xf]
        %v7781 = vld [vmem:[#allocation2 + $0x14] sm:$0xf]
        %v7782 = vld [vmem:[#allocation2 + $0x18] sm:$0xf]
        %v7783 = vld [vmem:[#allocation2 + $0x1c] sm:$0xf]
        %v7784 = vld [vmem:[#allocation2 + $0x20] sm:$0xf]
        %v7785 = vld [vmem:[#allocation2 + $0x24] sm:$0xf]
        %v7786 = vld [vmem:[#allocation2 + $0x28] sm:$0xf]
        %v7787 = vld [vmem:[#allocation2 + $0x2c] sm:$0xf]
        %v7788 = vld [vmem:[#allocation2 + $0x30] sm:$0xf]
        %v7789 = vld [vmem:[#allocation2 + $0x34] sm:$0xf]
        %v7790 = vld [vmem:[#allocation2 + $0x38] sm:$0xf]
        %v7791 = vld [vmem:[#allocation2 + $0x3c] sm:$0xf]
        %vm7792 = vsmask.f32 3328
        %vm7793 = vsmask.f32 7440
        %vm7794 = vmor %vm7792, %vm7793
        %v7796 = vshrl.u32 %v7722, 16
        %v7798 = vrot.slane %v7796, 4
        %v7799 = vshll.u32 %v7722, 16
        %v7801 = vrot.slane %v7799, 5
        %v7802 = vor.u32 %v7798, %v7801
        %v7803 = vrot.slane %v7802, 4
        %v7805 = vshll.u32 %v7723, 16
        %v7807 = vrot.slane %v7805, 5
        %v7808 = vsel %vm7794, %v7803, %v7807
        %v7809 = vshrl.u32 %v7723, 16
        %v7811 = vrot.slane %v7809, 4
        %v7812 = vor.u32 %v7811, %v7807
        %v7813 = vrot.slane %v7812, 4
        %v7815 = vshll.u32 %v7724, 16
        %v7817 = vrot.slane %v7815, 5
        %v7818 = vsel %vm7794, %v7813, %v7817
        %v7820 = vshrl.u32 %v7725, 16
        %v7822 = vrot.slane %v7820, 4
        %v7823 = vshll.u32 %v7725, 16
        %v7825 = vrot.slane %v7823, 5
        %v7826 = vor.u32 %v7822, %v7825
        %v7827 = vrot.slane %v7826, 4
        %v7829 = vshll.u32 %v7726, 16
        %v7831 = vrot.slane %v7829, 5
        %v7832 = vsel %vm7794, %v7827, %v7831
        %v7833 = vshrl.u32 %v7726, 16
        %v7835 = vrot.slane %v7833, 4
        %v7836 = vor.u32 %v7835, %v7831
        %v7837 = vrot.slane %v7836, 4
        %v7839 = vshll.u32 %v7727, 16
        %v7841 = vrot.slane %v7839, 5
        %v7842 = vsel %vm7794, %v7837, %v7841
        %v7844 = vshrl.u32 %v7728, 16
        %v7846 = vrot.slane %v7844, 4
        %v7847 = vshll.u32 %v7728, 16
        %v7849 = vrot.slane %v7847, 5
        %v7850 = vor.u32 %v7846, %v7849
        %v7851 = vrot.slane %v7850, 4
        %v7853 = vshll.u32 %v7729, 16
        %v7855 = vrot.slane %v7853, 5
        %v7856 = vsel %vm7794, %v7851, %v7855
        %v7857 = vshrl.u32 %v7729, 16
        %v7859 = vrot.slane %v7857, 4
        %v7860 = vor.u32 %v7859, %v7855
        %v7861 = vrot.slane %v7860, 4
        %v7863 = vshll.u32 %v7730, 16
        %v7865 = vrot.slane %v7863, 5
        %v7866 = vsel %vm7794, %v7861, %v7865
        %v7868 = vshrl.u32 %v7731, 16
        %v7870 = vrot.slane %v7868, 4
        %v7871 = vshll.u32 %v7731, 16
        %v7873 = vrot.slane %v7871, 5
        %v7874 = vor.u32 %v7870, %v7873
        %v7875 = vrot.slane %v7874, 4
        %v7877 = vshll.u32 %v7732, 16
        %v7879 = vrot.slane %v7877, 5
        %v7880 = vsel %vm7794, %v7875, %v7879
        %v7881 = vshrl.u32 %v7732, 16
        %v7883 = vrot.slane %v7881, 4
        %v7884 = vor.u32 %v7883, %v7879
        %v7885 = vrot.slane %v7884, 4
        %v7887 = vshll.u32 %v7733, 16
        %v7889 = vrot.slane %v7887, 5
        %v7890 = vsel %vm7794, %v7885, %v7889
        %v7892 = vshrl.u32 %v7734, 16
        %v7894 = vrot.slane %v7892, 4
        %v7895 = vshll.u32 %v7734, 16
        %v7897 = vrot.slane %v7895, 5
        %v7898 = vor.u32 %v7894, %v7897
        %v7899 = vrot.slane %v7898, 4
        %v7901 = vshll.u32 %v7735, 16
        %v7903 = vrot.slane %v7901, 5
        %v7904 = vsel %vm7794, %v7899, %v7903
        %v7905 = vshrl.u32 %v7735, 16
        %v7907 = vrot.slane %v7905, 4
        %v7908 = vor.u32 %v7907, %v7903
        %v7909 = vrot.slane %v7908, 4
        %v7911 = vshll.u32 %v7736, 16
        %v7913 = vrot.slane %v7911, 5
        %v7914 = vsel %vm7794, %v7909, %v7913
        %v7916 = vshrl.u32 %v7737, 16
        %v7918 = vrot.slane %v7916, 4
        %v7919 = vshll.u32 %v7737, 16
        %v7921 = vrot.slane %v7919, 5
        %v7922 = vor.u32 %v7918, %v7921
        %v7923 = vrot.slane %v7922, 4
        %v7925 = vshll.u32 %v7738, 16
        %v7927 = vrot.slane %v7925, 5
        %v7928 = vsel %vm7794, %v7923, %v7927
        %v7929 = vshrl.u32 %v7738, 16
        %v7931 = vrot.slane %v7929, 4
        %v7932 = vor.u32 %v7931, %v7927
        %v7933 = vrot.slane %v7932, 4
        %v7935 = vshll.u32 %v7739, 16
        %v7937 = vrot.slane %v7935, 5
        %v7938 = vsel %vm7794, %v7933, %v7937
        %v7940 = vshrl.u32 %v7740, 16
        %v7942 = vrot.slane %v7940, 4
        %v7943 = vshll.u32 %v7740, 16
        %v7945 = vrot.slane %v7943, 5
        %v7946 = vor.u32 %v7942, %v7945
        %v7947 = vrot.slane %v7946, 4
        %v7949 = vshll.u32 %v7741, 16
        %v7951 = vrot.slane %v7949, 5
        %v7952 = vsel %vm7794, %v7947, %v7951
        %v7953 = vshrl.u32 %v7741, 16
        %v7955 = vrot.slane %v7953, 4
        %v7956 = vor.u32 %v7955, %v7951
        %v7957 = vrot.slane %v7956, 4
        %v7959 = vshll.u32 %v7742, 16
        %v7961 = vrot.slane %v7959, 5
        %v7962 = vsel %vm7794, %v7957, %v7961
        %v7964 = vshrl.u32 %v7743, 16
        %v7966 = vrot.slane %v7964, 4
        %v7967 = vshll.u32 %v7743, 16
        %v7969 = vrot.slane %v7967, 5
        %v7970 = vor.u32 %v7966, %v7969
        %v7971 = vrot.slane %v7970, 4
        %v7973 = vshll.u32 %v7744, 16
        %v7975 = vrot.slane %v7973, 5
        %v7976 = vsel %vm7794, %v7971, %v7975
        %v7977 = vshrl.u32 %v7744, 16
        %v7979 = vrot.slane %v7977, 4
        %v7980 = vor.u32 %v7979, %v7975
        %v7981 = vrot.slane %v7980, 4
        %v7983 = vshll.u32 %v7745, 16
        %v7985 = vrot.slane %v7983, 5
        %v7986 = vsel %vm7794, %v7981, %v7985
        %v7988 = vshrl.u32 %v7746, 16
        %v7990 = vrot.slane %v7988, 4
        %v7991 = vshll.u32 %v7746, 16
        %v7993 = vrot.slane %v7991, 5
        %v7994 = vor.u32 %v7990, %v7993
        %v7995 = vrot.slane %v7994, 4
        %v7997 = vshll.u32 %v7747, 16
        %v7999 = vrot.slane %v7997, 5
        %v8000 = vsel %vm7794, %v7995, %v7999
        %v8001 = vshrl.u32 %v7747, 16
        %v8003 = vrot.slane %v8001, 4
        %v8004 = vor.u32 %v8003, %v7999
        %v8005 = vrot.slane %v8004, 4
        %v8007 = vshll.u32 %v7748, 16
        %v8009 = vrot.slane %v8007, 5
        %v8010 = vsel %vm7794, %v8005, %v8009
        %v8012 = vshrl.u32 %v7749, 16
        %v8014 = vrot.slane %v8012, 4
        %v8015 = vshll.u32 %v7749, 16
        %v8017 = vrot.slane %v8015, 5
        %v8018 = vor.u32 %v8014, %v8017
        %v8019 = vrot.slane %v8018, 4
        %v8021 = vshll.u32 %v7750, 16
        %v8023 = vrot.slane %v8021, 5
        %v8024 = vsel %vm7794, %v8019, %v8023
        %v8025 = vshrl.u32 %v7750, 16
        %v8027 = vrot.slane %v8025, 4
        %v8028 = vor.u32 %v8027, %v8023
        %v8029 = vrot.slane %v8028, 4
        %v8031 = vshll.u32 %v7751, 16
        %v8033 = vrot.slane %v8031, 5
        %v8034 = vsel %vm7794, %v8029, %v8033
        %v8036 = vshrl.u32 %v7752, 16
        %v8038 = vrot.slane %v8036, 4
        %v8039 = vshll.u32 %v7752, 16
        %v8041 = vrot.slane %v8039, 5
        %v8042 = vor.u32 %v8038, %v8041
        %v8043 = vrot.slane %v8042, 4
        %v8045 = vshll.u32 %v7753, 16
        %v8047 = vrot.slane %v8045, 5
        %v8048 = vsel %vm7794, %v8043, %v8047
        %v8049 = vshrl.u32 %v7753, 16
        %v8051 = vrot.slane %v8049, 4
        %v8052 = vor.u32 %v8051, %v8047
        %v8053 = vrot.slane %v8052, 4
        %v8055 = vshll.u32 %v7754, 16
        %v8057 = vrot.slane %v8055, 5
        %v8058 = vsel %vm7794, %v8053, %v8057
        %v8060 = vshrl.u32 %v7755, 16
        %v8062 = vrot.slane %v8060, 4
        %v8063 = vshll.u32 %v7755, 16
        %v8065 = vrot.slane %v8063, 5
        %v8066 = vor.u32 %v8062, %v8065
        %v8067 = vrot.slane %v8066, 4
        %v8069 = vshll.u32 %v7756, 16
        %v8071 = vrot.slane %v8069, 5
        %v8072 = vsel %vm7794, %v8067, %v8071
        %v8073 = vshrl.u32 %v7756, 16
        %v8075 = vrot.slane %v8073, 4
        %v8076 = vor.u32 %v8075, %v8071
        %v8077 = vrot.slane %v8076, 4
        %v8079 = vshll.u32 %v7757, 16
        %v8081 = vrot.slane %v8079, 5
        %v8082 = vsel %vm7794, %v8077, %v8081
        %v8084 = vshrl.u32 %v7758, 16
        %v8086 = vrot.slane %v8084, 4
        %v8087 = vshll.u32 %v7758, 16
        %v8089 = vrot.slane %v8087, 5
        %v8090 = vor.u32 %v8086, %v8089
        %v8091 = vrot.slane %v8090, 4
        %v8093 = vshll.u32 %v7759, 16
        %v8095 = vrot.slane %v8093, 5
        %v8096 = vsel %vm7794, %v8091, %v8095
        %v8097 = vshrl.u32 %v7759, 16
        %v8099 = vrot.slane %v8097, 4
        %v8100 = vor.u32 %v8099, %v8095
        %v8101 = vrot.slane %v8100, 4
        %v8103 = vshll.u32 %v7760, 16
        %v8105 = vrot.slane %v8103, 5
        %v8106 = vsel %vm7794, %v8101, %v8105
        %v8108 = vshrl.u32 %v7761, 16
        %v8110 = vrot.slane %v8108, 4
        %v8111 = vshll.u32 %v7761, 16
        %v8113 = vrot.slane %v8111, 5
        %v8114 = vor.u32 %v8110, %v8113
        %v8115 = vrot.slane %v8114, 4
        %v8117 = vshll.u32 %v7762, 16
        %v8119 = vrot.slane %v8117, 5
        %v8120 = vsel %vm7794, %v8115, %v8119
        %v8121 = vshrl.u32 %v7762, 16
        %v8123 = vrot.slane %v8121, 4
        %v8124 = vor.u32 %v8123, %v8119
        %v8125 = vrot.slane %v8124, 4
        %v8127 = vshll.u32 %v7763, 16
        %v8129 = vrot.slane %v8127, 5
        %v8130 = vsel %vm7794, %v8125, %v8129
        %v8132 = vshrl.u32 %v7764, 16
        %v8134 = vrot.slane %v8132, 4
        %v8135 = vshll.u32 %v7764, 16
        %v8137 = vrot.slane %v8135, 5
        %v8138 = vor.u32 %v8134, %v8137
        %v8139 = vrot.slane %v8138, 4
        %v8141 = vshll.u32 %v7765, 16
        %v8143 = vrot.slane %v8141, 5
        %v8144 = vsel %vm7794, %v8139, %v8143
        %v8145 = vshrl.u32 %v7765, 16
        %v8147 = vrot.slane %v8145, 4
        %v8148 = vor.u32 %v8147, %v8143
        %v8149 = vrot.slane %v8148, 4
        %v8151 = vshll.u32 %v7766, 16
        %v8153 = vrot.slane %v8151, 5
        %v8154 = vsel %vm7794, %v8149, %v8153
        %v8156 = vshrl.u32 %v7767, 16
        %v8158 = vrot.slane %v8156, 4
        %v8159 = vshll.u32 %v7767, 16
        %v8161 = vrot.slane %v8159, 5
        %v8162 = vor.u32 %v8158, %v8161
        %v8163 = vrot.slane %v8162, 4
        %v8165 = vshll.u32 %v7768, 16
        %v8167 = vrot.slane %v8165, 5
        %v8168 = vsel %vm7794, %v8163, %v8167
        %v8169 = vshrl.u32 %v7768, 16
        %v8171 = vrot.slane %v8169, 4
        %v8172 = vor.u32 %v8171, %v8167
        %v8173 = vrot.slane %v8172, 4
        %v8175 = vshll.u32 %v7769, 16
        %v8177 = vrot.slane %v8175, 5
        %v8178 = vsel %vm7794, %v8173, %v8177
        %v8179 = vld [vmem:[#allocation2 + $0x40] sm:$0xf]
        %v8180 = vld [vmem:[#allocation2 + $0x44] sm:$0xf]
        %v8181 = vld [vmem:[#allocation2 + $0x48] sm:$0xf]
        %v8182 = vld [vmem:[#allocation2 + $0x4c] sm:$0xf]
        %v8183 = vld [vmem:[#allocation2 + $0x50] sm:$0xf]
        %v8184 = vld [vmem:[#allocation2 + $0x54] sm:$0xf]
        %v8185 = vld [vmem:[#allocation2 + $0x58] sm:$0xf]
        %v8186 = vld [vmem:[#allocation2 + $0x5c] sm:$0xf]
        %v8187 = vld [vmem:[#allocation2 + $0x60] sm:$0xf]
        %v8188 = vld [vmem:[#allocation2 + $0x64] sm:$0xf]
        %v8189 = vld [vmem:[#allocation2 + $0x68] sm:$0xf]
        %v8190 = vld [vmem:[#allocation2 + $0x6c] sm:$0xf]
        %v8191 = vld [vmem:[#allocation2 + $0x70] sm:$0xf]
        %v8192 = vld [vmem:[#allocation2 + $0x74] sm:$0xf]
        %v8193 = vld [vmem:[#allocation2 + $0x78] sm:$0xf]
        %v8194 = vld [vmem:[#allocation2 + $0x7c] sm:$0xf]
        %v8195 = vunpack.c.l.b16 %v7808
        %v8196 = vunpack.c.l.b16 %v7818
        %v8197 = vunpack.c.l.b16 %v7832
        %v8198 = vunpack.c.l.b16 %v7842
        %v8199 = vunpack.c.l.b16 %v7856
        %v8200 = vunpack.c.l.b16 %v7866
        %v8201 = vunpack.c.l.b16 %v7880
        %v8202 = vunpack.c.l.b16 %v7890
        %v8203 = vunpack.c.l.b16 %v7904
        %v8204 = vunpack.c.l.b16 %v7914
        %v8205 = vunpack.c.l.b16 %v7928
        %v8206 = vunpack.c.l.b16 %v7938
        %v8207 = vunpack.c.l.b16 %v7952
        %v8208 = vunpack.c.l.b16 %v7962
        %v8209 = vunpack.c.l.b16 %v7976
        %v8210 = vunpack.c.l.b16 %v7986
        %v8211 = vunpack.c.l.b16 %v8000
        %v8212 = vunpack.c.l.b16 %v8010
        %v8213 = vunpack.c.l.b16 %v8024
        %v8214 = vunpack.c.l.b16 %v8034
        %v8215 = vunpack.c.l.b16 %v8048
        %v8216 = vunpack.c.l.b16 %v8058
        %v8217 = vunpack.c.l.b16 %v8072
        %v8218 = vunpack.c.l.b16 %v8082
        %v8219 = vunpack.c.l.b16 %v8096
        %v8220 = vunpack.c.l.b16 %v8106
        %v8221 = vunpack.c.l.b16 %v8120
        %v8222 = vunpack.c.l.b16 %v8130
        %v8223 = vunpack.c.l.b16 %v8144
        %v8224 = vunpack.c.l.b16 %v8154
        %v8225 = vunpack.c.l.b16 %v8168
        %v8226 = vunpack.c.l.b16 %v8178
        %v8227 = vpack.c.b16 %v8196, %v8195
        %v8228 = vpack.c.b16 %v8198, %v8197
        %v8229 = vpack.c.b16 %v8200, %v8199
        %v8230 = vpack.c.b16 %v8202, %v8201
        %v8231 = vpack.c.b16 %v8204, %v8203
        %v8232 = vpack.c.b16 %v8206, %v8205
        %v8233 = vpack.c.b16 %v8208, %v8207
        %v8234 = vpack.c.b16 %v8210, %v8209
        %v8235 = vpack.c.b16 %v8212, %v8211
        %v8236 = vpack.c.b16 %v8214, %v8213
        %v8237 = vpack.c.b16 %v8216, %v8215
        %v8238 = vpack.c.b16 %v8218, %v8217
        %v8239 = vpack.c.b16 %v8220, %v8219
        %v8240 = vpack.c.b16 %v8222, %v8221
        %v8241 = vpack.c.b16 %v8224, %v8223
        %v8242 = vpack.c.b16 %v8226, %v8225
        %v8275 = vunpack.c.l.b16 %v8179
        %v8276 = vunpack.c.l.b16 %v8180
        %v8277 = vunpack.c.l.b16 %v8181
        %v8278 = vunpack.c.l.b16 %v8182
        %v8279 = vunpack.c.l.b16 %v8183
        %v8280 = vunpack.c.l.b16 %v8184
        %v8281 = vunpack.c.l.b16 %v8185
        %v8282 = vunpack.c.l.b16 %v8186
        %v8283 = vunpack.c.l.b16 %v8187
        %v8284 = vunpack.c.l.b16 %v8188
        %v8285 = vunpack.c.l.b16 %v8189
        %v8286 = vunpack.c.l.b16 %v8190
        %v8287 = vunpack.c.l.b16 %v8191
        %v8288 = vunpack.c.l.b16 %v8192
        %v8289 = vunpack.c.l.b16 %v8193
        %v8290 = vunpack.c.l.b16 %v8194
        %v8291 = vpack.c.b16 %v8276, %v8275
        %v8292 = vpack.c.b16 %v8278, %v8277
        %v8293 = vpack.c.b16 %v8280, %v8279
        %v8294 = vpack.c.b16 %v8282, %v8281
        %v8295 = vpack.c.b16 %v8284, %v8283
        %v8296 = vpack.c.b16 %v8286, %v8285
        %v8297 = vpack.c.b16 %v8288, %v8287
        %v8298 = vpack.c.b16 %v8290, %v8289
        %8307 = vmatpush.bf16.msra.mxu0 %v8298
        %8308 = vmatpush.bf16.msra.mxu0 %v8297
        %8309 = vmatpush.bf16.msra.mxu0 %v8296
        %8310 = vmatpush.bf16.msra.mxu0 %v8295
        %8311 = vmatpush.bf16.msra.mxu0 %v8294
        %8312 = vmatpush.bf16.msra.mxu0 %v8293
        %8313 = vmatpush.bf16.msra.mxu0 %v8292
        %8314 = vmatpush.bf16.msra.mxu0 %v8291
        %8315 = vmatmul.bf16.gmra.mxu0 %v8227
        %v8316 = vpop.f32.mrf.mxu0
        %v8317 = vadd.f32 0.0, %v8316
        %v8318 = vpop.f32.mrf.mxu0
        %v8319 = vadd.f32 0.0, %v8318
        %8320 = vmatmul.bf16.gmra.mxu0 %v8228
        %v8321 = vpop.f32.mrf.mxu0
        %v8322 = vadd.f32 0.0, %v8321
        %v8323 = vpop.f32.mrf.mxu0
        %v8324 = vadd.f32 0.0, %v8323
        %8325 = vmatmul.bf16.gmra.mxu0 %v8229
        %v8326 = vpop.f32.mrf.mxu0
        %v8327 = vadd.f32 0.0, %v8326
        %v8328 = vpop.f32.mrf.mxu0
        %v8329 = vadd.f32 0.0, %v8328
        %8330 = vmatmul.bf16.gmra.mxu0 %v8230
        %v8331 = vpop.f32.mrf.mxu0
        %v8332 = vadd.f32 0.0, %v8331
        %v8333 = vpop.f32.mrf.mxu0
        %v8334 = vadd.f32 0.0, %v8333
        %8335 = vmatmul.bf16.gmra.mxu0 %v8231
        %v8336 = vpop.f32.mrf.mxu0
        %v8337 = vadd.f32 0.0, %v8336
        %v8338 = vpop.f32.mrf.mxu0
        %v8339 = vadd.f32 0.0, %v8338
        %8340 = vmatmul.bf16.gmra.mxu0 %v8232
        %v8341 = vpop.f32.mrf.mxu0
        %v8342 = vadd.f32 0.0, %v8341
        %v8343 = vpop.f32.mrf.mxu0
        %v8344 = vadd.f32 0.0, %v8343
        %8345 = vmatmul.bf16.gmra.mxu0 %v8233
        %v8346 = vpop.f32.mrf.mxu0
        %v8347 = vadd.f32 0.0, %v8346
        %v8348 = vpop.f32.mrf.mxu0
        %v8349 = vadd.f32 0.0, %v8348
        %8350 = vmatmul.bf16.gmra.mxu0 %v8234
        %v8351 = vpop.f32.mrf.mxu0
        %v8352 = vadd.f32 0.0, %v8351
        %v8353 = vpop.f32.mrf.mxu0
        %v8354 = vadd.f32 0.0, %v8353
        %8355 = vmatmul.bf16.gmra.mxu0 %v8235
        %v8356 = vpop.f32.mrf.mxu0
        %v8357 = vadd.f32 0.0, %v8356
        %v8358 = vpop.f32.mrf.mxu0
        %v8359 = vadd.f32 0.0, %v8358
        %8360 = vmatmul.bf16.gmra.mxu0 %v8236
        %v8361 = vpop.f32.mrf.mxu0
        %v8362 = vadd.f32 0.0, %v8361
        %v8363 = vpop.f32.mrf.mxu0
        %v8364 = vadd.f32 0.0, %v8363
        %8365 = vmatmul.bf16.gmra.mxu0 %v8237
        %v8366 = vpop.f32.mrf.mxu0
        %v8367 = vadd.f32 0.0, %v8366
        %v8368 = vpop.f32.mrf.mxu0
        %v8369 = vadd.f32 0.0, %v8368
        %8370 = vmatmul.bf16.gmra.mxu0 %v8238
        %v8371 = vpop.f32.mrf.mxu0
        %v8372 = vadd.f32 0.0, %v8371
        %v8373 = vpop.f32.mrf.mxu0
        %v8374 = vadd.f32 0.0, %v8373
        %8375 = vmatmul.bf16.gmra.mxu0 %v8239
        %v8376 = vpop.f32.mrf.mxu0
        %v8377 = vadd.f32 0.0, %v8376
        %v8378 = vpop.f32.mrf.mxu0
        %v8379 = vadd.f32 0.0, %v8378
        %8380 = vmatmul.bf16.gmra.mxu0 %v8240
        %v8381 = vpop.f32.mrf.mxu0
        %v8382 = vadd.f32 0.0, %v8381
        %v8383 = vpop.f32.mrf.mxu0
        %v8384 = vadd.f32 0.0, %v8383
        %8385 = vmatmul.bf16.gmra.mxu0 %v8241
        %v8386 = vpop.f32.mrf.mxu0
        %v8387 = vadd.f32 0.0, %v8386
        %v8388 = vpop.f32.mrf.mxu0
        %v8389 = vadd.f32 0.0, %v8388
        %8390 = vmatmul.bf16.gmra.mxu0 %v8242
        %v8391 = vpop.f32.mrf.mxu0
        %v8392 = vadd.f32 0.0, %v8391
        %v8393 = vpop.f32.mrf.mxu0
        %v8394 = vadd.f32 0.0, %v8393
        %8395 = vdwg.mxu0
        %v8428 = vunpack.c.l.b16 %v7722
        %v8429 = vunpack.c.l.b16 %v7723
        %v8430 = vunpack.c.l.b16 %v7725
        %v8431 = vunpack.c.l.b16 %v7726
        %v8432 = vunpack.c.l.b16 %v7728
        %v8433 = vunpack.c.l.b16 %v7729
        %v8434 = vunpack.c.l.b16 %v7731
        %v8435 = vunpack.c.l.b16 %v7732
        %v8436 = vunpack.c.l.b16 %v7734
        %v8437 = vunpack.c.l.b16 %v7735
        %v8438 = vunpack.c.l.b16 %v7737
        %v8439 = vunpack.c.l.b16 %v7738
        %v8440 = vunpack.c.l.b16 %v7740
        %v8441 = vunpack.c.l.b16 %v7741
        %v8442 = vunpack.c.l.b16 %v7743
        %v8443 = vunpack.c.l.b16 %v7744
        %v8444 = vunpack.c.l.b16 %v7746
        %v8445 = vunpack.c.l.b16 %v7747
        %v8446 = vunpack.c.l.b16 %v7749
        %v8447 = vunpack.c.l.b16 %v7750
        %v8448 = vunpack.c.l.b16 %v7752
        %v8449 = vunpack.c.l.b16 %v7753
        %v8450 = vunpack.c.l.b16 %v7755
        %v8451 = vunpack.c.l.b16 %v7756
        %v8452 = vunpack.c.l.b16 %v7758
        %v8453 = vunpack.c.l.b16 %v7759
        %v8454 = vunpack.c.l.b16 %v7761
        %v8455 = vunpack.c.l.b16 %v7762
        %v8456 = vunpack.c.l.b16 %v7764
        %v8457 = vunpack.c.l.b16 %v7765
        %v8458 = vunpack.c.l.b16 %v7767
        %v8459 = vunpack.c.l.b16 %v7768
        %v8460 = vpack.c.b16 %v8429, %v8428
        %v8461 = vpack.c.b16 %v8431, %v8430
        %v8462 = vpack.c.b16 %v8433, %v8432
        %v8463 = vpack.c.b16 %v8435, %v8434
        %v8464 = vpack.c.b16 %v8437, %v8436
        %v8465 = vpack.c.b16 %v8439, %v8438
        %v8466 = vpack.c.b16 %v8441, %v8440
        %v8467 = vpack.c.b16 %v8443, %v8442
        %v8468 = vpack.c.b16 %v8445, %v8444
        %v8469 = vpack.c.b16 %v8447, %v8446
        %v8470 = vpack.c.b16 %v8449, %v8448
        %v8471 = vpack.c.b16 %v8451, %v8450
        %v8472 = vpack.c.b16 %v8453, %v8452
        %v8473 = vpack.c.b16 %v8455, %v8454
        %v8474 = vpack.c.b16 %v8457, %v8456
        %v8475 = vpack.c.b16 %v8459, %v8458
        %v8508 = vunpack.c.l.b16 %v7776
        %v8509 = vunpack.c.l.b16 %v7777
        %v8510 = vunpack.c.l.b16 %v7778
        %v8511 = vunpack.c.l.b16 %v7779
        %v8512 = vunpack.c.l.b16 %v7780
        %v8513 = vunpack.c.l.b16 %v7781
        %v8514 = vunpack.c.l.b16 %v7782
        %v8515 = vunpack.c.l.b16 %v7783
        %v8516 = vunpack.c.l.b16 %v7784
        %v8517 = vunpack.c.l.b16 %v7785
        %v8518 = vunpack.c.l.b16 %v7786
        %v8519 = vunpack.c.l.b16 %v7787
        %v8520 = vunpack.c.l.b16 %v7788
        %v8521 = vunpack.c.l.b16 %v7789
        %v8522 = vunpack.c.l.b16 %v7790
        %v8523 = vunpack.c.l.b16 %v7791
        %v8524 = vpack.c.b16 %v8509, %v8508
        %v8525 = vpack.c.b16 %v8511, %v8510
        %v8526 = vpack.c.b16 %v8513, %v8512
        %v8527 = vpack.c.b16 %v8515, %v8514
        %v8528 = vpack.c.b16 %v8517, %v8516
        %v8529 = vpack.c.b16 %v8519, %v8518
        %v8530 = vpack.c.b16 %v8521, %v8520
        %v8531 = vpack.c.b16 %v8523, %v8522
        %8540 = vmatpush.bf16.msra.mxu0 %v8531
        %8541 = vmatpush.bf16.msra.mxu0 %v8530
        %8542 = vmatpush.bf16.msra.mxu0 %v8529
        %8543 = vmatpush.bf16.msra.mxu0 %v8528
        %8544 = vmatpush.bf16.msra.mxu0 %v8527
        %8545 = vmatpush.bf16.msra.mxu0 %v8526
        %8546 = vmatpush.bf16.msra.mxu0 %v8525
        %8547 = vmatpush.bf16.msra.mxu0 %v8524
        %8548 = vmatmul.bf16.gmra.mxu0 %v8460
        %v8549 = vpop.f32.mrf.mxu0
        %v8550 = vadd.f32 %v8317, %v8549
        %v8551 = vpop.f32.mrf.mxu0
        %v8552 = vadd.f32 %v8319, %v8551
        %8553 = vmatmul.bf16.gmra.mxu0 %v8461
        %v8554 = vpop.f32.mrf.mxu0
        %v8555 = vadd.f32 %v8322, %v8554
        %v8556 = vpop.f32.mrf.mxu0
        %v8557 = vadd.f32 %v8324, %v8556
        %8558 = vmatmul.bf16.gmra.mxu0 %v8462
        %v8559 = vpop.f32.mrf.mxu0
        %v8560 = vadd.f32 %v8327, %v8559
        %v8561 = vpop.f32.mrf.mxu0
        %v8562 = vadd.f32 %v8329, %v8561
        %8563 = vmatmul.bf16.gmra.mxu0 %v8463
        %v8564 = vpop.f32.mrf.mxu0
        %v8565 = vadd.f32 %v8332, %v8564
        %v8566 = vpop.f32.mrf.mxu0
        %v8567 = vadd.f32 %v8334, %v8566
        %8568 = vmatmul.bf16.gmra.mxu0 %v8464
        %v8569 = vpop.f32.mrf.mxu0
        %v8570 = vadd.f32 %v8337, %v8569
        %v8571 = vpop.f32.mrf.mxu0
        %v8572 = vadd.f32 %v8339, %v8571
        %8573 = vmatmul.bf16.gmra.mxu0 %v8465
        %v8574 = vpop.f32.mrf.mxu0
        %v8575 = vadd.f32 %v8342, %v8574
        %v8576 = vpop.f32.mrf.mxu0
        %v8577 = vadd.f32 %v8344, %v8576
        %8578 = vmatmul.bf16.gmra.mxu0 %v8466
        %v8579 = vpop.f32.mrf.mxu0
        %v8580 = vadd.f32 %v8347, %v8579
        %v8581 = vpop.f32.mrf.mxu0
        %v8582 = vadd.f32 %v8349, %v8581
        %8583 = vmatmul.bf16.gmra.mxu0 %v8467
        %v8584 = vpop.f32.mrf.mxu0
        %v8585 = vadd.f32 %v8352, %v8584
        %v8586 = vpop.f32.mrf.mxu0
        %v8587 = vadd.f32 %v8354, %v8586
        %8588 = vmatmul.bf16.gmra.mxu0 %v8468
        %v8589 = vpop.f32.mrf.mxu0
        %v8590 = vadd.f32 %v8357, %v8589
        %v8591 = vpop.f32.mrf.mxu0
        %v8592 = vadd.f32 %v8359, %v8591
        %8593 = vmatmul.bf16.gmra.mxu0 %v8469
        %v8594 = vpop.f32.mrf.mxu0
        %v8595 = vadd.f32 %v8362, %v8594
        %v8596 = vpop.f32.mrf.mxu0
        %v8597 = vadd.f32 %v8364, %v8596
        %8598 = vmatmul.bf16.gmra.mxu0 %v8470
        %v8599 = vpop.f32.mrf.mxu0
        %v8600 = vadd.f32 %v8367, %v8599
        %v8601 = vpop.f32.mrf.mxu0
        %v8602 = vadd.f32 %v8369, %v8601
        %8603 = vmatmul.bf16.gmra.mxu0 %v8471
        %v8604 = vpop.f32.mrf.mxu0
        %v8605 = vadd.f32 %v8372, %v8604
        %v8606 = vpop.f32.mrf.mxu0
        %v8607 = vadd.f32 %v8374, %v8606
        %8608 = vmatmul.bf16.gmra.mxu0 %v8472
        %v8609 = vpop.f32.mrf.mxu0
        %v8610 = vadd.f32 %v8377, %v8609
        %v8611 = vpop.f32.mrf.mxu0
        %v8612 = vadd.f32 %v8379, %v8611
        %8613 = vmatmul.bf16.gmra.mxu0 %v8473
        %v8614 = vpop.f32.mrf.mxu0
        %v8615 = vadd.f32 %v8382, %v8614
        %v8616 = vpop.f32.mrf.mxu0
        %v8617 = vadd.f32 %v8384, %v8616
        %8618 = vmatmul.bf16.gmra.mxu0 %v8474
        %v8619 = vpop.f32.mrf.mxu0
        %v8620 = vadd.f32 %v8387, %v8619
        %v8621 = vpop.f32.mrf.mxu0
        %v8622 = vadd.f32 %v8389, %v8621
        %8623 = vmatmul.bf16.gmra.mxu0 %v8475
        %v8624 = vpop.f32.mrf.mxu0
        %v8625 = vadd.f32 %v8392, %v8624
        %v8626 = vpop.f32.mrf.mxu0
        %v8627 = vadd.f32 %v8394, %v8626
        %8628 = vdwg.mxu0
        %vm8645 = vcmask 1042432
        %vm8646 = vcmask 1046532
        %vm8647 = vmor %vm8645, %vm8646
        %v8648 = vrot.slane %v7722, 5
        %v8649 = vrot.slane %v8648, 4
        %v8650 = vrot.slane %v7723, 5
        %v8651 = vsel %vm8647, %v8649, %v8650
        %v8652 = vrot.slane %v8650, 4
        %v8653 = vrot.slane %v7724, 5
        %v8654 = vsel %vm8647, %v8652, %v8653
        %v8655 = vrot.slane %v7725, 5
        %v8656 = vrot.slane %v8655, 4
        %v8657 = vrot.slane %v7726, 5
        %v8658 = vsel %vm8647, %v8656, %v8657
        %v8659 = vrot.slane %v8657, 4
        %v8660 = vrot.slane %v7727, 5
        %v8661 = vsel %vm8647, %v8659, %v8660
        %v8662 = vrot.slane %v7728, 5
        %v8663 = vrot.slane %v8662, 4
        %v8664 = vrot.slane %v7729, 5
        %v8665 = vsel %vm8647, %v8663, %v8664
        %v8666 = vrot.slane %v8664, 4
        %v8667 = vrot.slane %v7730, 5
        %v8668 = vsel %vm8647, %v8666, %v8667
        %v8669 = vrot.slane %v7731, 5
        %v8670 = vrot.slane %v8669, 4
        %v8671 = vrot.slane %v7732, 5
        %v8672 = vsel %vm8647, %v8670, %v8671
        %v8673 = vrot.slane %v8671, 4
        %v8674 = vrot.slane %v7733, 5
        %v8675 = vsel %vm8647, %v8673, %v8674
        %v8676 = vrot.slane %v7734, 5
        %v8677 = vrot.slane %v8676, 4
        %v8678 = vrot.slane %v7735, 5
        %v8679 = vsel %vm8647, %v8677, %v8678
        %v8680 = vrot.slane %v8678, 4
        %v8681 = vrot.slane %v7736, 5
        %v8682 = vsel %vm8647, %v8680, %v8681
        %v8683 = vrot.slane %v7737, 5
        %v8684 = vrot.slane %v8683, 4
        %v8685 = vrot.slane %v7738, 5
        %v8686 = vsel %vm8647, %v8684, %v8685
        %v8687 = vrot.slane %v8685, 4
        %v8688 = vrot.slane %v7739, 5
        %v8689 = vsel %vm8647, %v8687, %v8688
        %v8690 = vrot.slane %v7740, 5
        %v8691 = vrot.slane %v8690, 4
        %v8692 = vrot.slane %v7741, 5
        %v8693 = vsel %vm8647, %v8691, %v8692
        %v8694 = vrot.slane %v8692, 4
        %v8695 = vrot.slane %v7742, 5
        %v8696 = vsel %vm8647, %v8694, %v8695
        %v8697 = vrot.slane %v7743, 5
        %v8698 = vrot.slane %v8697, 4
        %v8699 = vrot.slane %v7744, 5
        %v8700 = vsel %vm8647, %v8698, %v8699
        %v8701 = vrot.slane %v8699, 4
        %v8702 = vrot.slane %v7745, 5
        %v8703 = vsel %vm8647, %v8701, %v8702
        %v8704 = vrot.slane %v7746, 5
        %v8705 = vrot.slane %v8704, 4
        %v8706 = vrot.slane %v7747, 5
        %v8707 = vsel %vm8647, %v8705, %v8706
        %v8708 = vrot.slane %v8706, 4
        %v8709 = vrot.slane %v7748, 5
        %v8710 = vsel %vm8647, %v8708, %v8709
        %v8711 = vrot.slane %v7749, 5
        %v8712 = vrot.slane %v8711, 4
        %v8713 = vrot.slane %v7750, 5
        %v8714 = vsel %vm8647, %v8712, %v8713
        %v8715 = vrot.slane %v8713, 4
        %v8716 = vrot.slane %v7751, 5
        %v8717 = vsel %vm8647, %v8715, %v8716
        %v8718 = vrot.slane %v7752, 5
        %v8719 = vrot.slane %v8718, 4
        %v8720 = vrot.slane %v7753, 5
        %v8721 = vsel %vm8647, %v8719, %v8720
        %v8722 = vrot.slane %v8720, 4
        %v8723 = vrot.slane %v7754, 5
        %v8724 = vsel %vm8647, %v8722, %v8723
        %v8725 = vrot.slane %v7755, 5
        %v8726 = vrot.slane %v8725, 4
        %v8727 = vrot.slane %v7756, 5
        %v8728 = vsel %vm8647, %v8726, %v8727
        %v8729 = vrot.slane %v8727, 4
        %v8730 = vrot.slane %v7757, 5
        %v8731 = vsel %vm8647, %v8729, %v8730
        %v8732 = vrot.slane %v7758, 5
        %v8733 = vrot.slane %v8732, 4
        %v8734 = vrot.slane %v7759, 5
        %v8735 = vsel %vm8647, %v8733, %v8734
        %v8736 = vrot.slane %v8734, 4
        %v8737 = vrot.slane %v7760, 5
        %v8738 = vsel %vm8647, %v8736, %v8737
        %v8739 = vrot.slane %v7761, 5
        %v8740 = vrot.slane %v8739, 4
        %v8741 = vrot.slane %v7762, 5
        %v8742 = vsel %vm8647, %v8740, %v8741
        %v8743 = vrot.slane %v8741, 4
        %v8744 = vrot.slane %v7763, 5
        %v8745 = vsel %vm8647, %v8743, %v8744
        %v8746 = vrot.slane %v7764, 5
        %v8747 = vrot.slane %v8746, 4
        %v8748 = vrot.slane %v7765, 5
        %v8749 = vsel %vm8647, %v8747, %v8748
        %v8750 = vrot.slane %v8748, 4
        %v8751 = vrot.slane %v7766, 5
        %v8752 = vsel %vm8647, %v8750, %v8751
        %v8753 = vrot.slane %v7767, 5
        %v8754 = vrot.slane %v8753, 4
        %v8755 = vrot.slane %v7768, 5
        %v8756 = vsel %vm8647, %v8754, %v8755
        %v8757 = vrot.slane %v8755, 4
        %v8758 = vrot.slane %v7769, 5
        %v8759 = vsel %vm8647, %v8757, %v8758
        %v8760 = vld [vmem:[#allocation2 + $0x80] sm:$0xf]
        %v8761 = vld [vmem:[#allocation2 + $0x84] sm:$0xf]
        %v8762 = vld [vmem:[#allocation2 + $0x88] sm:$0xf]
        %v8763 = vld [vmem:[#allocation2 + $0x8c] sm:$0xf]
        %v8764 = vld [vmem:[#allocation2 + $0x90] sm:$0xf]
        %v8765 = vld [vmem:[#allocation2 + $0x94] sm:$0xf]
        %v8766 = vld [vmem:[#allocation2 + $0x98] sm:$0xf]
        %v8767 = vld [vmem:[#allocation2 + $0x9c] sm:$0xf]
        %v8768 = vld [vmem:[#allocation2 + $0xa0] sm:$0xf]
        %v8769 = vld [vmem:[#allocation2 + $0xa4] sm:$0xf]
        %v8770 = vld [vmem:[#allocation2 + $0xa8] sm:$0xf]
        %v8771 = vld [vmem:[#allocation2 + $0xac] sm:$0xf]
        %v8772 = vld [vmem:[#allocation2 + $0xb0] sm:$0xf]
        %v8773 = vld [vmem:[#allocation2 + $0xb4] sm:$0xf]
        %v8774 = vld [vmem:[#allocation2 + $0xb8] sm:$0xf]
        %v8775 = vld [vmem:[#allocation2 + $0xbc] sm:$0xf]
        %v8776 = vunpack.c.l.b16 %v8651
        %v8777 = vunpack.c.l.b16 %v8654
        %v8778 = vunpack.c.l.b16 %v8658
        %v8779 = vunpack.c.l.b16 %v8661
        %v8780 = vunpack.c.l.b16 %v8665
        %v8781 = vunpack.c.l.b16 %v8668
        %v8782 = vunpack.c.l.b16 %v8672
        %v8783 = vunpack.c.l.b16 %v8675
        %v8784 = vunpack.c.l.b16 %v8679
        %v8785 = vunpack.c.l.b16 %v8682
        %v8786 = vunpack.c.l.b16 %v8686
        %v8787 = vunpack.c.l.b16 %v8689
        %v8788 = vunpack.c.l.b16 %v8693
        %v8789 = vunpack.c.l.b16 %v8696
        %v8790 = vunpack.c.l.b16 %v8700
        %v8791 = vunpack.c.l.b16 %v8703
        %v8792 = vunpack.c.l.b16 %v8707
        %v8793 = vunpack.c.l.b16 %v8710
        %v8794 = vunpack.c.l.b16 %v8714
        %v8795 = vunpack.c.l.b16 %v8717
        %v8796 = vunpack.c.l.b16 %v8721
        %v8797 = vunpack.c.l.b16 %v8724
        %v8798 = vunpack.c.l.b16 %v8728
        %v8799 = vunpack.c.l.b16 %v8731
        %v8800 = vunpack.c.l.b16 %v8735
        %v8801 = vunpack.c.l.b16 %v8738
        %v8802 = vunpack.c.l.b16 %v8742
        %v8803 = vunpack.c.l.b16 %v8745
        %v8804 = vunpack.c.l.b16 %v8749
        %v8805 = vunpack.c.l.b16 %v8752
        %v8806 = vunpack.c.l.b16 %v8756
        %v8807 = vunpack.c.l.b16 %v8759
        %v8808 = vpack.c.b16 %v8777, %v8776
        %v8809 = vpack.c.b16 %v8779, %v8778
        %v8810 = vpack.c.b16 %v8781, %v8780
        %v8811 = vpack.c.b16 %v8783, %v8782
        %v8812 = vpack.c.b16 %v8785, %v8784
        %v8813 = vpack.c.b16 %v8787, %v8786
        %v8814 = vpack.c.b16 %v8789, %v8788
        %v8815 = vpack.c.b16 %v8791, %v8790
        %v8816 = vpack.c.b16 %v8793, %v8792
        %v8817 = vpack.c.b16 %v8795, %v8794
        %v8818 = vpack.c.b16 %v8797, %v8796
        %v8819 = vpack.c.b16 %v8799, %v8798
        %v8820 = vpack.c.b16 %v8801, %v8800
        %v8821 = vpack.c.b16 %v8803, %v8802
        %v8822 = vpack.c.b16 %v8805, %v8804
        %v8823 = vpack.c.b16 %v8807, %v8806
        %v8856 = vunpack.c.l.b16 %v8760
        %v8857 = vunpack.c.l.b16 %v8761
        %v8858 = vunpack.c.l.b16 %v8762
        %v8859 = vunpack.c.l.b16 %v8763
        %v8860 = vunpack.c.l.b16 %v8764
        %v8861 = vunpack.c.l.b16 %v8765
        %v8862 = vunpack.c.l.b16 %v8766
        %v8863 = vunpack.c.l.b16 %v8767
        %v8864 = vunpack.c.l.b16 %v8768
        %v8865 = vunpack.c.l.b16 %v8769
        %v8866 = vunpack.c.l.b16 %v8770
        %v8867 = vunpack.c.l.b16 %v8771
        %v8868 = vunpack.c.l.b16 %v8772
        %v8869 = vunpack.c.l.b16 %v8773
        %v8870 = vunpack.c.l.b16 %v8774
        %v8871 = vunpack.c.l.b16 %v8775
        %v8872 = vpack.c.b16 %v8857, %v8856
        %v8873 = vpack.c.b16 %v8859, %v8858
        %v8874 = vpack.c.b16 %v8861, %v8860
        %v8875 = vpack.c.b16 %v8863, %v8862
        %v8876 = vpack.c.b16 %v8865, %v8864
        %v8877 = vpack.c.b16 %v8867, %v8866
        %v8878 = vpack.c.b16 %v8869, %v8868
        %v8879 = vpack.c.b16 %v8871, %v8870
        %8888 = vmatpush.bf16.msra.mxu0 %v8879
        %8889 = vmatpush.bf16.msra.mxu0 %v8878
        %8890 = vmatpush.bf16.msra.mxu0 %v8877
        %8891 = vmatpush.bf16.msra.mxu0 %v8876
        %8892 = vmatpush.bf16.msra.mxu0 %v8875
        %8893 = vmatpush.bf16.msra.mxu0 %v8874
        %8894 = vmatpush.bf16.msra.mxu0 %v8873
        %8895 = vmatpush.bf16.msra.mxu0 %v8872
        %8896 = vmatmul.bf16.gmra.mxu0 %v8808
        %v8897 = vpop.f32.mrf.mxu0
        %v8898 = vadd.f32 0.0, %v8897
        %v8899 = vpop.f32.mrf.mxu0
        %v8900 = vadd.f32 0.0, %v8899
        %8901 = vmatmul.bf16.gmra.mxu0 %v8809
        %v8902 = vpop.f32.mrf.mxu0
        %v8903 = vadd.f32 0.0, %v8902
        %v8904 = vpop.f32.mrf.mxu0
        %v8905 = vadd.f32 0.0, %v8904
        %8906 = vmatmul.bf16.gmra.mxu0 %v8810
        %v8907 = vpop.f32.mrf.mxu0
        %v8908 = vadd.f32 0.0, %v8907
        %v8909 = vpop.f32.mrf.mxu0
        %v8910 = vadd.f32 0.0, %v8909
        %8911 = vmatmul.bf16.gmra.mxu0 %v8811
        %v8912 = vpop.f32.mrf.mxu0
        %v8913 = vadd.f32 0.0, %v8912
        %v8914 = vpop.f32.mrf.mxu0
        %v8915 = vadd.f32 0.0, %v8914
        %8916 = vmatmul.bf16.gmra.mxu0 %v8812
        %v8917 = vpop.f32.mrf.mxu0
        %v8918 = vadd.f32 0.0, %v8917
        %v8919 = vpop.f32.mrf.mxu0
        %v8920 = vadd.f32 0.0, %v8919
        %8921 = vmatmul.bf16.gmra.mxu0 %v8813
        %v8922 = vpop.f32.mrf.mxu0
        %v8923 = vadd.f32 0.0, %v8922
        %v8924 = vpop.f32.mrf.mxu0
        %v8925 = vadd.f32 0.0, %v8924
        %8926 = vmatmul.bf16.gmra.mxu0 %v8814
        %v8927 = vpop.f32.mrf.mxu0
        %v8928 = vadd.f32 0.0, %v8927
        %v8929 = vpop.f32.mrf.mxu0
        %v8930 = vadd.f32 0.0, %v8929
        %8931 = vmatmul.bf16.gmra.mxu0 %v8815
        %v8932 = vpop.f32.mrf.mxu0
        %v8933 = vadd.f32 0.0, %v8932
        %v8934 = vpop.f32.mrf.mxu0
        %v8935 = vadd.f32 0.0, %v8934
        %8936 = vmatmul.bf16.gmra.mxu0 %v8816
        %v8937 = vpop.f32.mrf.mxu0
        %v8938 = vadd.f32 0.0, %v8937
        %v8939 = vpop.f32.mrf.mxu0
        %v8940 = vadd.f32 0.0, %v8939
        %8941 = vmatmul.bf16.gmra.mxu0 %v8817
        %v8942 = vpop.f32.mrf.mxu0
        %v8943 = vadd.f32 0.0, %v8942
        %v8944 = vpop.f32.mrf.mxu0
        %v8945 = vadd.f32 0.0, %v8944
        %8946 = vmatmul.bf16.gmra.mxu0 %v8818
        %v8947 = vpop.f32.mrf.mxu0
        %v8948 = vadd.f32 0.0, %v8947
        %v8949 = vpop.f32.mrf.mxu0
        %v8950 = vadd.f32 0.0, %v8949
        %8951 = vmatmul.bf16.gmra.mxu0 %v8819
        %v8952 = vpop.f32.mrf.mxu0
        %v8953 = vadd.f32 0.0, %v8952
        %v8954 = vpop.f32.mrf.mxu0
        %v8955 = vadd.f32 0.0, %v8954
        %8956 = vmatmul.bf16.gmra.mxu0 %v8820
        %v8957 = vpop.f32.mrf.mxu0
        %v8958 = vadd.f32 0.0, %v8957
        %v8959 = vpop.f32.mrf.mxu0
        %v8960 = vadd.f32 0.0, %v8959
        %8961 = vmatmul.bf16.gmra.mxu0 %v8821
        %v8962 = vpop.f32.mrf.mxu0
        %v8963 = vadd.f32 0.0, %v8962
        %v8964 = vpop.f32.mrf.mxu0
        %v8965 = vadd.f32 0.0, %v8964
        %8966 = vmatmul.bf16.gmra.mxu0 %v8822
        %v8967 = vpop.f32.mrf.mxu0
        %v8968 = vadd.f32 0.0, %v8967
        %v8969 = vpop.f32.mrf.mxu0
        %v8970 = vadd.f32 0.0, %v8969
        %8971 = vmatmul.bf16.gmra.mxu0 %v8823
        %v8972 = vpop.f32.mrf.mxu0
        %v8973 = vadd.f32 0.0, %v8972
        %v8974 = vpop.f32.mrf.mxu0
        %v8975 = vadd.f32 0.0, %v8974
        %8976 = vdwg.mxu0
        %v8977 = vadd.f32 %v8550, %v8898
        %v8978 = vadd.f32 %v8552, %v8900
        %v8979 = vadd.f32 %v8555, %v8903
        %v8980 = vadd.f32 %v8557, %v8905
        %v8981 = vadd.f32 %v8560, %v8908
        %v8982 = vadd.f32 %v8562, %v8910
        %v8983 = vadd.f32 %v8565, %v8913
        %v8984 = vadd.f32 %v8567, %v8915
        %v8985 = vadd.f32 %v8570, %v8918
        %v8986 = vadd.f32 %v8572, %v8920
        %v8987 = vadd.f32 %v8575, %v8923
        %v8988 = vadd.f32 %v8577, %v8925
        %v8989 = vadd.f32 %v8580, %v8928
        %v8990 = vadd.f32 %v8582, %v8930
        %v8991 = vadd.f32 %v8585, %v8933
        %v8992 = vadd.f32 %v8587, %v8935
        %v8993 = vadd.f32 %v8590, %v8938
        %v8994 = vadd.f32 %v8592, %v8940
        %v8995 = vadd.f32 %v8595, %v8943
        %v8996 = vadd.f32 %v8597, %v8945
        %v8997 = vadd.f32 %v8600, %v8948
        %v8998 = vadd.f32 %v8602, %v8950
        %v8999 = vadd.f32 %v8605, %v8953
        %v9000 = vadd.f32 %v8607, %v8955
        %v9001 = vadd.f32 %v8610, %v8958
        %v9002 = vadd.f32 %v8612, %v8960
        %v9003 = vadd.f32 %v8615, %v8963
        %v9004 = vadd.f32 %v8617, %v8965
        %v9005 = vadd.f32 %v8620, %v8968
        %v9006 = vadd.f32 %v8622, %v8970
        %v9007 = vadd.f32 %v8625, %v8973
        %v9008 = vadd.f32 %v8627, %v8975
        %v9009 = vld [vmem:[#allocation2 + $0xc0] sm:$0xf]
        %v9010 = vld [vmem:[#allocation2 + $0xc4] sm:$0xf]
        %v9011 = vld [vmem:[#allocation2 + $0xc8] sm:$0xf]
        %v9012 = vld [vmem:[#allocation2 + $0xcc] sm:$0xf]
        %v9013 = vld [vmem:[#allocation2 + $0xd0] sm:$0xf]
        %v9014 = vld [vmem:[#allocation2 + $0xd4] sm:$0xf]
        %v9015 = vld [vmem:[#allocation2 + $0xd8] sm:$0xf]
        %v9016 = vld [vmem:[#allocation2 + $0xdc] sm:$0xf]
        %v9017 = vld [vmem:[#allocation2 + $0xe0] sm:$0xf]
        %v9018 = vld [vmem:[#allocation2 + $0xe4] sm:$0xf]
        %v9019 = vld [vmem:[#allocation2 + $0xe8] sm:$0xf]
        %v9020 = vld [vmem:[#allocation2 + $0xec] sm:$0xf]
        %v9021 = vld [vmem:[#allocation2 + $0xf0] sm:$0xf]
        %v9022 = vld [vmem:[#allocation2 + $0xf4] sm:$0xf]
        %v9023 = vld [vmem:[#allocation2 + $0xf8] sm:$0xf]
        %v9024 = vld [vmem:[#allocation2 + $0xfc] sm:$0xf]
        %v9027 = vunpack.c.l.b16 %v7770
        %v9028 = vunpack.c.l.b16 %v7771
        %v9029 = vpack.c.b16 %v9028, %v9027
        %v9047 = vunpack.c.l.b16 %v9009
        %v9048 = vunpack.c.l.b16 %v9010
        %v9049 = vunpack.c.l.b16 %v9011
        %v9050 = vunpack.c.l.b16 %v9012
        %v9051 = vunpack.c.l.b16 %v9013
        %v9052 = vunpack.c.l.b16 %v9014
        %v9053 = vunpack.c.l.b16 %v9015
        %v9054 = vunpack.c.l.b16 %v9016
        %v9055 = vunpack.c.l.b16 %v9017
        %v9056 = vunpack.c.l.b16 %v9018
        %v9057 = vunpack.c.l.b16 %v9019
        %v9058 = vunpack.c.l.b16 %v9020
        %v9059 = vunpack.c.l.b16 %v9021
        %v9060 = vunpack.c.l.b16 %v9022
        %v9061 = vunpack.c.l.b16 %v9023
        %v9062 = vunpack.c.l.b16 %v9024
        %v9063 = vpack.c.b16 %v9048, %v9047
        %v9064 = vpack.c.b16 %v9050, %v9049
        %v9065 = vpack.c.b16 %v9052, %v9051
        %v9066 = vpack.c.b16 %v9054, %v9053
        %v9067 = vpack.c.b16 %v9056, %v9055
        %v9068 = vpack.c.b16 %v9058, %v9057
        %v9069 = vpack.c.b16 %v9060, %v9059
        %v9070 = vpack.c.b16 %v9062, %v9061
        %9079 = vmatpush.bf16.msra.mxu0 %v9070
        %9080 = vmatpush.bf16.msra.mxu0 %v9069
        %9081 = vmatpush.bf16.msra.mxu0 %v9068
        %9082 = vmatpush.bf16.msra.mxu0 %v9067
        %9083 = vmatpush.bf16.msra.mxu0 %v9066
        %9084 = vmatpush.bf16.msra.mxu0 %v9065
        %9085 = vmatpush.bf16.msra.mxu0 %v9064
        %9086 = vmatpush.bf16.msra.mxu0 %v9063
        %9087 = vmatmul.bf16.gmra.mxu0 %v8461
        %v9088 = vpop.f32.mrf.mxu0
        %v9089 = vadd.f32 0.0, %v9088
        %v9090 = vpop.f32.mrf.mxu0
        %v9091 = vadd.f32 0.0, %v9090
        %9092 = vmatmul.bf16.gmra.mxu0 %v8462
        %v9093 = vpop.f32.mrf.mxu0
        %v9094 = vadd.f32 0.0, %v9093
        %v9095 = vpop.f32.mrf.mxu0
        %v9096 = vadd.f32 0.0, %v9095
        %9097 = vmatmul.bf16.gmra.mxu0 %v8463
        %v9098 = vpop.f32.mrf.mxu0
        %v9099 = vadd.f32 0.0, %v9098
        %v9100 = vpop.f32.mrf.mxu0
        %v9101 = vadd.f32 0.0, %v9100
        %9102 = vmatmul.bf16.gmra.mxu0 %v8464
        %v9103 = vpop.f32.mrf.mxu0
        %v9104 = vadd.f32 0.0, %v9103
        %v9105 = vpop.f32.mrf.mxu0
        %v9106 = vadd.f32 0.0, %v9105
        %9107 = vmatmul.bf16.gmra.mxu0 %v8465
        %v9108 = vpop.f32.mrf.mxu0
        %v9109 = vadd.f32 0.0, %v9108
        %v9110 = vpop.f32.mrf.mxu0
        %v9111 = vadd.f32 0.0, %v9110
        %9112 = vmatmul.bf16.gmra.mxu0 %v8466
        %v9113 = vpop.f32.mrf.mxu0
        %v9114 = vadd.f32 0.0, %v9113
        %v9115 = vpop.f32.mrf.mxu0
        %v9116 = vadd.f32 0.0, %v9115
        %9117 = vmatmul.bf16.gmra.mxu0 %v8467
        %v9118 = vpop.f32.mrf.mxu0
        %v9119 = vadd.f32 0.0, %v9118
        %v9120 = vpop.f32.mrf.mxu0
        %v9121 = vadd.f32 0.0, %v9120
        %9122 = vmatmul.bf16.gmra.mxu0 %v8468
        %v9123 = vpop.f32.mrf.mxu0
        %v9124 = vadd.f32 0.0, %v9123
        %v9125 = vpop.f32.mrf.mxu0
        %v9126 = vadd.f32 0.0, %v9125
        %9127 = vmatmul.bf16.gmra.mxu0 %v8469
        %v9128 = vpop.f32.mrf.mxu0
        %v9129 = vadd.f32 0.0, %v9128
        %v9130 = vpop.f32.mrf.mxu0
        %v9131 = vadd.f32 0.0, %v9130
        %9132 = vmatmul.bf16.gmra.mxu0 %v8470
        %v9133 = vpop.f32.mrf.mxu0
        %v9134 = vadd.f32 0.0, %v9133
        %v9135 = vpop.f32.mrf.mxu0
        %v9136 = vadd.f32 0.0, %v9135
        %9137 = vmatmul.bf16.gmra.mxu0 %v8471
        %v9138 = vpop.f32.mrf.mxu0
        %v9139 = vadd.f32 0.0, %v9138
        %v9140 = vpop.f32.mrf.mxu0
        %v9141 = vadd.f32 0.0, %v9140
        %9142 = vmatmul.bf16.gmra.mxu0 %v8472
        %v9143 = vpop.f32.mrf.mxu0
        %v9144 = vadd.f32 0.0, %v9143
        %v9145 = vpop.f32.mrf.mxu0
        %v9146 = vadd.f32 0.0, %v9145
        %9147 = vmatmul.bf16.gmra.mxu0 %v8473
        %v9148 = vpop.f32.mrf.mxu0
        %v9149 = vadd.f32 0.0, %v9148
        %v9150 = vpop.f32.mrf.mxu0
        %v9151 = vadd.f32 0.0, %v9150
        %9152 = vmatmul.bf16.gmra.mxu0 %v8474
        %v9153 = vpop.f32.mrf.mxu0
        %v9154 = vadd.f32 0.0, %v9153
        %v9155 = vpop.f32.mrf.mxu0
        %v9156 = vadd.f32 0.0, %v9155
        %9157 = vmatmul.bf16.gmra.mxu0 %v8475
        %v9158 = vpop.f32.mrf.mxu0
        %v9159 = vadd.f32 0.0, %v9158
        %v9160 = vpop.f32.mrf.mxu0
        %v9161 = vadd.f32 0.0, %v9160
        %9162 = vmatmul.bf16.gmra.mxu0 %v9029
        %v9163 = vpop.f32.mrf.mxu0
        %v9164 = vadd.f32 0.0, %v9163
        %v9165 = vpop.f32.mrf.mxu0
        %v9166 = vadd.f32 0.0, %v9165
        %9167 = vdwg.mxu0
        %v9168 = vadd.f32 %v8977, %v9089
        %v9169 = vadd.f32 %v8978, %v9091
        %v9170 = vadd.f32 %v8979, %v9094
        %v9171 = vadd.f32 %v8980, %v9096
        %v9172 = vadd.f32 %v8981, %v9099
        %v9173 = vadd.f32 %v8982, %v9101
        %v9174 = vadd.f32 %v8983, %v9104
        %v9175 = vadd.f32 %v8984, %v9106
        %v9176 = vadd.f32 %v8985, %v9109
        %v9177 = vadd.f32 %v8986, %v9111
        %v9178 = vadd.f32 %v8987, %v9114
        %v9179 = vadd.f32 %v8988, %v9116
        %v9180 = vadd.f32 %v8989, %v9119
        %v9181 = vadd.f32 %v8990, %v9121
        %v9182 = vadd.f32 %v8991, %v9124
        %v9183 = vadd.f32 %v8992, %v9126
        %v9184 = vadd.f32 %v8993, %v9129
        %v9185 = vadd.f32 %v8994, %v9131
        %v9186 = vadd.f32 %v8995, %v9134
        %v9187 = vadd.f32 %v8996, %v9136
        %v9188 = vadd.f32 %v8997, %v9139
        %v9189 = vadd.f32 %v8998, %v9141
        %v9190 = vadd.f32 %v8999, %v9144
        %v9191 = vadd.f32 %v9000, %v9146
        %v9192 = vadd.f32 %v9001, %v9149
        %v9193 = vadd.f32 %v9002, %v9151
        %v9194 = vadd.f32 %v9003, %v9154
        %v9195 = vadd.f32 %v9004, %v9156
        %v9196 = vadd.f32 %v9005, %v9159
        %v9197 = vadd.f32 %v9006, %v9161
        %v9198 = vadd.f32 %v9007, %v9164
        %v9199 = vadd.f32 %v9008, %v9166
        %v9201 = vshrl.u32 %v7770, 16
        %v9203 = vrot.slane %v9201, 4
        %v9204 = vshll.u32 %v7770, 16
        %v9206 = vrot.slane %v9204, 5
        %v9207 = vor.u32 %v9203, %v9206
        %v9208 = vrot.slane %v9207, 4
        %v9210 = vshll.u32 %v7771, 16
        %v9212 = vrot.slane %v9210, 5
        %v9213 = vsel %vm7794, %v9208, %v9212
        %v9214 = vshrl.u32 %v7771, 16
        %v9216 = vrot.slane %v9214, 4
        %v9217 = vor.u32 %v9216, %v9212
        %v9218 = vrot.slane %v9217, 4
        %v9220 = vshll.u32 %v7772, 16
        %v9222 = vrot.slane %v9220, 5
        %v9223 = vsel %vm7794, %v9218, %v9222
        %v9224 = vld [vmem:[#allocation2 + $0x100] sm:$0xf]
        %v9225 = vld [vmem:[#allocation2 + $0x104] sm:$0xf]
        %v9226 = vld [vmem:[#allocation2 + $0x108] sm:$0xf]
        %v9227 = vld [vmem:[#allocation2 + $0x10c] sm:$0xf]
        %v9228 = vld [vmem:[#allocation2 + $0x110] sm:$0xf]
        %v9229 = vld [vmem:[#allocation2 + $0x114] sm:$0xf]
        %v9230 = vld [vmem:[#allocation2 + $0x118] sm:$0xf]
        %v9231 = vld [vmem:[#allocation2 + $0x11c] sm:$0xf]
        %v9232 = vld [vmem:[#allocation2 + $0x120] sm:$0xf]
        %v9233 = vld [vmem:[#allocation2 + $0x124] sm:$0xf]
        %v9234 = vld [vmem:[#allocation2 + $0x128] sm:$0xf]
        %v9235 = vld [vmem:[#allocation2 + $0x12c] sm:$0xf]
        %v9236 = vld [vmem:[#allocation2 + $0x130] sm:$0xf]
        %v9237 = vld [vmem:[#allocation2 + $0x134] sm:$0xf]
        %v9238 = vld [vmem:[#allocation2 + $0x138] sm:$0xf]
        %v9239 = vld [vmem:[#allocation2 + $0x13c] sm:$0xf]
        %v9240 = vunpack.c.l.b16 %v9213
        %v9241 = vunpack.c.l.b16 %v9223
        %v9242 = vpack.c.b16 %v9241, %v9240
        %v9260 = vunpack.c.l.b16 %v9224
        %v9261 = vunpack.c.l.b16 %v9225
        %v9262 = vunpack.c.l.b16 %v9226
        %v9263 = vunpack.c.l.b16 %v9227
        %v9264 = vunpack.c.l.b16 %v9228
        %v9265 = vunpack.c.l.b16 %v9229
        %v9266 = vunpack.c.l.b16 %v9230
        %v9267 = vunpack.c.l.b16 %v9231
        %v9268 = vunpack.c.l.b16 %v9232
        %v9269 = vunpack.c.l.b16 %v9233
        %v9270 = vunpack.c.l.b16 %v9234
        %v9271 = vunpack.c.l.b16 %v9235
        %v9272 = vunpack.c.l.b16 %v9236
        %v9273 = vunpack.c.l.b16 %v9237
        %v9274 = vunpack.c.l.b16 %v9238
        %v9275 = vunpack.c.l.b16 %v9239
        %v9276 = vpack.c.b16 %v9261, %v9260
        %v9277 = vpack.c.b16 %v9263, %v9262
        %v9278 = vpack.c.b16 %v9265, %v9264
        %v9279 = vpack.c.b16 %v9267, %v9266
        %v9280 = vpack.c.b16 %v9269, %v9268
        %v9281 = vpack.c.b16 %v9271, %v9270
        %v9282 = vpack.c.b16 %v9273, %v9272
        %v9283 = vpack.c.b16 %v9275, %v9274
        %9292 = vmatpush.bf16.msra.mxu0 %v9283
        %9293 = vmatpush.bf16.msra.mxu0 %v9282
        %9294 = vmatpush.bf16.msra.mxu0 %v9281
        %9295 = vmatpush.bf16.msra.mxu0 %v9280
        %9296 = vmatpush.bf16.msra.mxu0 %v9279
        %9297 = vmatpush.bf16.msra.mxu0 %v9278
        %9298 = vmatpush.bf16.msra.mxu0 %v9277
        %9299 = vmatpush.bf16.msra.mxu0 %v9276
        %9300 = vmatmul.bf16.gmra.mxu0 %v8228
        %v9301 = vpop.f32.mrf.mxu0
        %v9302 = vadd.f32 0.0, %v9301
        %v9303 = vpop.f32.mrf.mxu0
        %v9304 = vadd.f32 0.0, %v9303
        %9305 = vmatmul.bf16.gmra.mxu0 %v8229
        %v9306 = vpop.f32.mrf.mxu0
        %v9307 = vadd.f32 0.0, %v9306
        %v9308 = vpop.f32.mrf.mxu0
        %v9309 = vadd.f32 0.0, %v9308
        %9310 = vmatmul.bf16.gmra.mxu0 %v8230
        %v9311 = vpop.f32.mrf.mxu0
        %v9312 = vadd.f32 0.0, %v9311
        %v9313 = vpop.f32.mrf.mxu0
        %v9314 = vadd.f32 0.0, %v9313
        %9315 = vmatmul.bf16.gmra.mxu0 %v8231
        %v9316 = vpop.f32.mrf.mxu0
        %v9317 = vadd.f32 0.0, %v9316
        %v9318 = vpop.f32.mrf.mxu0
        %v9319 = vadd.f32 0.0, %v9318
        %9320 = vmatmul.bf16.gmra.mxu0 %v8232
        %v9321 = vpop.f32.mrf.mxu0
        %v9322 = vadd.f32 0.0, %v9321
        %v9323 = vpop.f32.mrf.mxu0
        %v9324 = vadd.f32 0.0, %v9323
        %9325 = vmatmul.bf16.gmra.mxu0 %v8233
        %v9326 = vpop.f32.mrf.mxu0
        %v9327 = vadd.f32 0.0, %v9326
        %v9328 = vpop.f32.mrf.mxu0
        %v9329 = vadd.f32 0.0, %v9328
        %9330 = vmatmul.bf16.gmra.mxu0 %v8234
        %v9331 = vpop.f32.mrf.mxu0
        %v9332 = vadd.f32 0.0, %v9331
        %v9333 = vpop.f32.mrf.mxu0
        %v9334 = vadd.f32 0.0, %v9333
        %9335 = vmatmul.bf16.gmra.mxu0 %v8235
        %v9336 = vpop.f32.mrf.mxu0
        %v9337 = vadd.f32 0.0, %v9336
        %v9338 = vpop.f32.mrf.mxu0
        %v9339 = vadd.f32 0.0, %v9338
        %9340 = vmatmul.bf16.gmra.mxu0 %v8236
        %v9341 = vpop.f32.mrf.mxu0
        %v9342 = vadd.f32 0.0, %v9341
        %v9343 = vpop.f32.mrf.mxu0
        %v9344 = vadd.f32 0.0, %v9343
        %9345 = vmatmul.bf16.gmra.mxu0 %v8237
        %v9346 = vpop.f32.mrf.mxu0
        %v9347 = vadd.f32 0.0, %v9346
        %v9348 = vpop.f32.mrf.mxu0
        %v9349 = vadd.f32 0.0, %v9348
        %9350 = vmatmul.bf16.gmra.mxu0 %v8238
        %v9351 = vpop.f32.mrf.mxu0
        %v9352 = vadd.f32 0.0, %v9351
        %v9353 = vpop.f32.mrf.mxu0
        %v9354 = vadd.f32 0.0, %v9353
        %9355 = vmatmul.bf16.gmra.mxu0 %v8239
        %v9356 = vpop.f32.mrf.mxu0
        %v9357 = vadd.f32 0.0, %v9356
        %v9358 = vpop.f32.mrf.mxu0
        %v9359 = vadd.f32 0.0, %v9358
        %9360 = vmatmul.bf16.gmra.mxu0 %v8240
        %v9361 = vpop.f32.mrf.mxu0
        %v9362 = vadd.f32 0.0, %v9361
        %v9363 = vpop.f32.mrf.mxu0
        %v9364 = vadd.f32 0.0, %v9363
        %9365 = vmatmul.bf16.gmra.mxu0 %v8241
        %v9366 = vpop.f32.mrf.mxu0
        %v9367 = vadd.f32 0.0, %v9366
        %v9368 = vpop.f32.mrf.mxu0
        %v9369 = vadd.f32 0.0, %v9368
        %9370 = vmatmul.bf16.gmra.mxu0 %v8242
        %v9371 = vpop.f32.mrf.mxu0
        %v9372 = vadd.f32 0.0, %v9371
        %v9373 = vpop.f32.mrf.mxu0
        %v9374 = vadd.f32 0.0, %v9373
        %9375 = vmatmul.bf16.gmra.mxu0 %v9242
        %v9376 = vpop.f32.mrf.mxu0
        %v9377 = vadd.f32 0.0, %v9376
        %v9378 = vpop.f32.mrf.mxu0
        %v9379 = vadd.f32 0.0, %v9378
        %9380 = vdwg.mxu0
        %v9381 = vadd.f32 %v9168, %v9302
        %v9382 = vadd.f32 %v9169, %v9304
        %v9383 = vadd.f32 %v9170, %v9307
        %v9384 = vadd.f32 %v9171, %v9309
        %v9385 = vadd.f32 %v9172, %v9312
        %v9386 = vadd.f32 %v9173, %v9314
        %v9387 = vadd.f32 %v9174, %v9317
        %v9388 = vadd.f32 %v9175, %v9319
        %v9389 = vadd.f32 %v9176, %v9322
        %v9390 = vadd.f32 %v9177, %v9324
        %v9391 = vadd.f32 %v9178, %v9327
        %v9392 = vadd.f32 %v9179, %v9329
        %v9393 = vadd.f32 %v9180, %v9332
        %v9394 = vadd.f32 %v9181, %v9334
        %v9395 = vadd.f32 %v9182, %v9337
        %v9396 = vadd.f32 %v9183, %v9339
        %v9397 = vadd.f32 %v9184, %v9342
        %v9398 = vadd.f32 %v9185, %v9344
        %v9399 = vadd.f32 %v9186, %v9347
        %v9400 = vadd.f32 %v9187, %v9349
        %v9401 = vadd.f32 %v9188, %v9352
        %v9402 = vadd.f32 %v9189, %v9354
        %v9403 = vadd.f32 %v9190, %v9357
        %v9404 = vadd.f32 %v9191, %v9359
        %v9405 = vadd.f32 %v9192, %v9362
        %v9406 = vadd.f32 %v9193, %v9364
        %v9407 = vadd.f32 %v9194, %v9367
        %v9408 = vadd.f32 %v9195, %v9369
        %v9409 = vadd.f32 %v9196, %v9372
        %v9410 = vadd.f32 %v9197, %v9374
        %v9411 = vadd.f32 %v9198, %v9377
        %v9412 = vadd.f32 %v9199, %v9379
        %v9414 = vrot.slane %v7770, 5
        %v9415 = vrot.slane %v9414, 4
        %v9416 = vrot.slane %v7771, 5
        %v9417 = vsel %vm8647, %v9415, %v9416
        %v9418 = vrot.slane %v9416, 4
        %v9419 = vrot.slane %v7772, 5
        %v9420 = vsel %vm8647, %v9418, %v9419
        %v9421 = vld [vmem:[#allocation2 + $0x140] sm:$0xf]
        %v9422 = vld [vmem:[#allocation2 + $0x144] sm:$0xf]
        %v9423 = vld [vmem:[#allocation2 + $0x148] sm:$0xf]
        %v9424 = vld [vmem:[#allocation2 + $0x14c] sm:$0xf]
        %v9425 = vld [vmem:[#allocation2 + $0x150] sm:$0xf]
        %v9426 = vld [vmem:[#allocation2 + $0x154] sm:$0xf]
        %v9427 = vld [vmem:[#allocation2 + $0x158] sm:$0xf]
        %v9428 = vld [vmem:[#allocation2 + $0x15c] sm:$0xf]
        %v9429 = vld [vmem:[#allocation2 + $0x160] sm:$0xf]
        %v9430 = vld [vmem:[#allocation2 + $0x164] sm:$0xf]
        %v9431 = vld [vmem:[#allocation2 + $0x168] sm:$0xf]
        %v9432 = vld [vmem:[#allocation2 + $0x16c] sm:$0xf]
        %v9433 = vld [vmem:[#allocation2 + $0x170] sm:$0xf]
        %v9434 = vld [vmem:[#allocation2 + $0x174] sm:$0xf]
        %v9435 = vld [vmem:[#allocation2 + $0x178] sm:$0xf]
        %v9436 = vld [vmem:[#allocation2 + $0x17c] sm:$0xf]
        %v9437 = vunpack.c.l.b16 %v9417
        %v9438 = vunpack.c.l.b16 %v9420
        %v9439 = vpack.c.b16 %v9438, %v9437
        %v9457 = vunpack.c.l.b16 %v9421
        %v9458 = vunpack.c.l.b16 %v9422
        %v9459 = vunpack.c.l.b16 %v9423
        %v9460 = vunpack.c.l.b16 %v9424
        %v9461 = vunpack.c.l.b16 %v9425
        %v9462 = vunpack.c.l.b16 %v9426
        %v9463 = vunpack.c.l.b16 %v9427
        %v9464 = vunpack.c.l.b16 %v9428
        %v9465 = vunpack.c.l.b16 %v9429
        %v9466 = vunpack.c.l.b16 %v9430
        %v9467 = vunpack.c.l.b16 %v9431
        %v9468 = vunpack.c.l.b16 %v9432
        %v9469 = vunpack.c.l.b16 %v9433
        %v9470 = vunpack.c.l.b16 %v9434
        %v9471 = vunpack.c.l.b16 %v9435
        %v9472 = vunpack.c.l.b16 %v9436
        %v9473 = vpack.c.b16 %v9458, %v9457
        %v9474 = vpack.c.b16 %v9460, %v9459
        %v9475 = vpack.c.b16 %v9462, %v9461
        %v9476 = vpack.c.b16 %v9464, %v9463
        %v9477 = vpack.c.b16 %v9466, %v9465
        %v9478 = vpack.c.b16 %v9468, %v9467
        %v9479 = vpack.c.b16 %v9470, %v9469
        %v9480 = vpack.c.b16 %v9472, %v9471
        %9489 = vmatpush.bf16.msra.mxu0 %v9480
        %9490 = vmatpush.bf16.msra.mxu0 %v9479
        %9491 = vmatpush.bf16.msra.mxu0 %v9478
        %9492 = vmatpush.bf16.msra.mxu0 %v9477
        %9493 = vmatpush.bf16.msra.mxu0 %v9476
        %9494 = vmatpush.bf16.msra.mxu0 %v9475
        %9495 = vmatpush.bf16.msra.mxu0 %v9474
        %9496 = vmatpush.bf16.msra.mxu0 %v9473
        %9497 = vmatmul.bf16.gmra.mxu0 %v8809
        %v9498 = vpop.f32.mrf.mxu0
        %v9499 = vadd.f32 0.0, %v9498
        %v9500 = vpop.f32.mrf.mxu0
        %v9501 = vadd.f32 0.0, %v9500
        %9502 = vmatmul.bf16.gmra.mxu0 %v8810
        %v9503 = vpop.f32.mrf.mxu0
        %v9504 = vadd.f32 0.0, %v9503
        %v9505 = vpop.f32.mrf.mxu0
        %v9506 = vadd.f32 0.0, %v9505
        %9507 = vmatmul.bf16.gmra.mxu0 %v8811
        %v9508 = vpop.f32.mrf.mxu0
        %v9509 = vadd.f32 0.0, %v9508
        %v9510 = vpop.f32.mrf.mxu0
        %v9511 = vadd.f32 0.0, %v9510
        %9512 = vmatmul.bf16.gmra.mxu0 %v8812
        %v9513 = vpop.f32.mrf.mxu0
        %v9514 = vadd.f32 0.0, %v9513
        %v9515 = vpop.f32.mrf.mxu0
        %v9516 = vadd.f32 0.0, %v9515
        %9517 = vmatmul.bf16.gmra.mxu0 %v8813
        %v9518 = vpop.f32.mrf.mxu0
        %v9519 = vadd.f32 0.0, %v9518
        %v9520 = vpop.f32.mrf.mxu0
        %v9521 = vadd.f32 0.0, %v9520
        %9522 = vmatmul.bf16.gmra.mxu0 %v8814
        %v9523 = vpop.f32.mrf.mxu0
        %v9524 = vadd.f32 0.0, %v9523
        %v9525 = vpop.f32.mrf.mxu0
        %v9526 = vadd.f32 0.0, %v9525
        %9527 = vmatmul.bf16.gmra.mxu0 %v8815
        %v9528 = vpop.f32.mrf.mxu0
        %v9529 = vadd.f32 0.0, %v9528
        %v9530 = vpop.f32.mrf.mxu0
        %v9531 = vadd.f32 0.0, %v9530
        %9532 = vmatmul.bf16.gmra.mxu0 %v8816
        %v9533 = vpop.f32.mrf.mxu0
        %v9534 = vadd.f32 0.0, %v9533
        %v9535 = vpop.f32.mrf.mxu0
        %v9536 = vadd.f32 0.0, %v9535
        %9537 = vmatmul.bf16.gmra.mxu0 %v8817
        %v9538 = vpop.f32.mrf.mxu0
        %v9539 = vadd.f32 0.0, %v9538
        %v9540 = vpop.f32.mrf.mxu0
        %v9541 = vadd.f32 0.0, %v9540
        %9542 = vmatmul.bf16.gmra.mxu0 %v8818
        %v9543 = vpop.f32.mrf.mxu0
        %v9544 = vadd.f32 0.0, %v9543
        %v9545 = vpop.f32.mrf.mxu0
        %v9546 = vadd.f32 0.0, %v9545
        %9547 = vmatmul.bf16.gmra.mxu0 %v8819
        %v9548 = vpop.f32.mrf.mxu0
        %v9549 = vadd.f32 0.0, %v9548
        %v9550 = vpop.f32.mrf.mxu0
        %v9551 = vadd.f32 0.0, %v9550
        %9552 = vmatmul.bf16.gmra.mxu0 %v8820
        %v9553 = vpop.f32.mrf.mxu0
        %v9554 = vadd.f32 0.0, %v9553
        %v9555 = vpop.f32.mrf.mxu0
        %v9556 = vadd.f32 0.0, %v9555
        %9557 = vmatmul.bf16.gmra.mxu0 %v8821
        %v9558 = vpop.f32.mrf.mxu0
        %v9559 = vadd.f32 0.0, %v9558
        %v9560 = vpop.f32.mrf.mxu0
        %v9561 = vadd.f32 0.0, %v9560
        %9562 = vmatmul.bf16.gmra.mxu0 %v8822
        %v9563 = vpop.f32.mrf.mxu0
        %v9564 = vadd.f32 0.0, %v9563
        %v9565 = vpop.f32.mrf.mxu0
        %v9566 = vadd.f32 0.0, %v9565
        %9567 = vmatmul.bf16.gmra.mxu0 %v8823
        %v9568 = vpop.f32.mrf.mxu0
        %v9569 = vadd.f32 0.0, %v9568
        %v9570 = vpop.f32.mrf.mxu0
        %v9571 = vadd.f32 0.0, %v9570
        %9572 = vmatmul.bf16.gmra.mxu0 %v9439
        %v9573 = vpop.f32.mrf.mxu0
        %v9574 = vadd.f32 0.0, %v9573
        %v9575 = vpop.f32.mrf.mxu0
        %v9576 = vadd.f32 0.0, %v9575
        %9577 = vdwg.mxu0
        %v9578 = vadd.f32 %v9381, %v9499
        %v9579 = vadd.f32 %v9382, %v9501
        %v9580 = vadd.f32 %v9383, %v9504
        %v9581 = vadd.f32 %v9384, %v9506
        %v9582 = vadd.f32 %v9385, %v9509
        %v9583 = vadd.f32 %v9386, %v9511
        %v9584 = vadd.f32 %v9387, %v9514
        %v9585 = vadd.f32 %v9388, %v9516
        %v9586 = vadd.f32 %v9389, %v9519
        %v9587 = vadd.f32 %v9390, %v9521
        %v9588 = vadd.f32 %v9391, %v9524
        %v9589 = vadd.f32 %v9392, %v9526
        %v9590 = vadd.f32 %v9393, %v9529
        %v9591 = vadd.f32 %v9394, %v9531
        %v9592 = vadd.f32 %v9395, %v9534
        %v9593 = vadd.f32 %v9396, %v9536
        %v9594 = vadd.f32 %v9397, %v9539
        %v9595 = vadd.f32 %v9398, %v9541
        %v9596 = vadd.f32 %v9399, %v9544
        %v9597 = vadd.f32 %v9400, %v9546
        %v9598 = vadd.f32 %v9401, %v9549
        %v9599 = vadd.f32 %v9402, %v9551
        %v9600 = vadd.f32 %v9403, %v9554
        %v9601 = vadd.f32 %v9404, %v9556
        %v9602 = vadd.f32 %v9405, %v9559
        %v9603 = vadd.f32 %v9406, %v9561
        %v9604 = vadd.f32 %v9407, %v9564
        %v9605 = vadd.f32 %v9408, %v9566
        %v9606 = vadd.f32 %v9409, %v9569
        %v9607 = vadd.f32 %v9410, %v9571
        %v9608 = vadd.f32 %v9411, %v9574
        %v9609 = vadd.f32 %v9412, %v9576
        %v9610 = vld [vmem:[#allocation2 + $0x180] sm:$0xf]
        %v9611 = vld [vmem:[#allocation2 + $0x184] sm:$0xf]
        %v9612 = vld [vmem:[#allocation2 + $0x188] sm:$0xf]
        %v9613 = vld [vmem:[#allocation2 + $0x18c] sm:$0xf]
        %v9614 = vld [vmem:[#allocation2 + $0x190] sm:$0xf]
        %v9615 = vld [vmem:[#allocation2 + $0x194] sm:$0xf]
        %v9616 = vld [vmem:[#allocation2 + $0x198] sm:$0xf]
        %v9617 = vld [vmem:[#allocation2 + $0x19c] sm:$0xf]
        %v9618 = vld [vmem:[#allocation2 + $0x1a0] sm:$0xf]
        %v9619 = vld [vmem:[#allocation2 + $0x1a4] sm:$0xf]
        %v9620 = vld [vmem:[#allocation2 + $0x1a8] sm:$0xf]
        %v9621 = vld [vmem:[#allocation2 + $0x1ac] sm:$0xf]
        %v9622 = vld [vmem:[#allocation2 + $0x1b0] sm:$0xf]
        %v9623 = vld [vmem:[#allocation2 + $0x1b4] sm:$0xf]
        %v9624 = vld [vmem:[#allocation2 + $0x1b8] sm:$0xf]
        %v9625 = vld [vmem:[#allocation2 + $0x1bc] sm:$0xf]
        %v9628 = vunpack.c.l.b16 %v7773
        %v9629 = vunpack.c.l.b16 %v7774
        %v9630 = vpack.c.b16 %v9629, %v9628
        %v9648 = vunpack.c.l.b16 %v9610
        %v9649 = vunpack.c.l.b16 %v9611
        %v9650 = vunpack.c.l.b16 %v9612
        %v9651 = vunpack.c.l.b16 %v9613
        %v9652 = vunpack.c.l.b16 %v9614
        %v9653 = vunpack.c.l.b16 %v9615
        %v9654 = vunpack.c.l.b16 %v9616
        %v9655 = vunpack.c.l.b16 %v9617
        %v9656 = vunpack.c.l.b16 %v9618
        %v9657 = vunpack.c.l.b16 %v9619
        %v9658 = vunpack.c.l.b16 %v9620
        %v9659 = vunpack.c.l.b16 %v9621
        %v9660 = vunpack.c.l.b16 %v9622
        %v9661 = vunpack.c.l.b16 %v9623
        %v9662 = vunpack.c.l.b16 %v9624
        %v9663 = vunpack.c.l.b16 %v9625
        %v9664 = vpack.c.b16 %v9649, %v9648
        %v9665 = vpack.c.b16 %v9651, %v9650
        %v9666 = vpack.c.b16 %v9653, %v9652
        %v9667 = vpack.c.b16 %v9655, %v9654
        %v9668 = vpack.c.b16 %v9657, %v9656
        %v9669 = vpack.c.b16 %v9659, %v9658
        %v9670 = vpack.c.b16 %v9661, %v9660
        %v9671 = vpack.c.b16 %v9663, %v9662
        %9680 = vmatpush.bf16.msra.mxu0 %v9671
        %9681 = vmatpush.bf16.msra.mxu0 %v9670
        %9682 = vmatpush.bf16.msra.mxu0 %v9669
        %9683 = vmatpush.bf16.msra.mxu0 %v9668
        %9684 = vmatpush.bf16.msra.mxu0 %v9667
        %9685 = vmatpush.bf16.msra.mxu0 %v9666
        %9686 = vmatpush.bf16.msra.mxu0 %v9665
        %9687 = vmatpush.bf16.msra.mxu0 %v9664
        %9688 = vmatmul.bf16.gmra.mxu0 %v8462
        %v9689 = vpop.f32.mrf.mxu0
        %v9690 = vadd.f32 0.0, %v9689
        %v9691 = vpop.f32.mrf.mxu0
        %v9692 = vadd.f32 0.0, %v9691
        %9693 = vmatmul.bf16.gmra.mxu0 %v8463
        %v9694 = vpop.f32.mrf.mxu0
        %v9695 = vadd.f32 0.0, %v9694
        %v9696 = vpop.f32.mrf.mxu0
        %v9697 = vadd.f32 0.0, %v9696
        %9698 = vmatmul.bf16.gmra.mxu0 %v8464
        %v9699 = vpop.f32.mrf.mxu0
        %v9700 = vadd.f32 0.0, %v9699
        %v9701 = vpop.f32.mrf.mxu0
        %v9702 = vadd.f32 0.0, %v9701
        %9703 = vmatmul.bf16.gmra.mxu0 %v8465
        %v9704 = vpop.f32.mrf.mxu0
        %v9705 = vadd.f32 0.0, %v9704
        %v9706 = vpop.f32.mrf.mxu0
        %v9707 = vadd.f32 0.0, %v9706
        %9708 = vmatmul.bf16.gmra.mxu0 %v8466
        %v9709 = vpop.f32.mrf.mxu0
        %v9710 = vadd.f32 0.0, %v9709
        %v9711 = vpop.f32.mrf.mxu0
        %v9712 = vadd.f32 0.0, %v9711
        %9713 = vmatmul.bf16.gmra.mxu0 %v8467
        %v9714 = vpop.f32.mrf.mxu0
        %v9715 = vadd.f32 0.0, %v9714
        %v9716 = vpop.f32.mrf.mxu0
        %v9717 = vadd.f32 0.0, %v9716
        %9718 = vmatmul.bf16.gmra.mxu0 %v8468
        %v9719 = vpop.f32.mrf.mxu0
        %v9720 = vadd.f32 0.0, %v9719
        %v9721 = vpop.f32.mrf.mxu0
        %v9722 = vadd.f32 0.0, %v9721
        %9723 = vmatmul.bf16.gmra.mxu0 %v8469
        %v9724 = vpop.f32.mrf.mxu0
        %v9725 = vadd.f32 0.0, %v9724
        %v9726 = vpop.f32.mrf.mxu0
        %v9727 = vadd.f32 0.0, %v9726
        %9728 = vmatmul.bf16.gmra.mxu0 %v8470
        %v9729 = vpop.f32.mrf.mxu0
        %v9730 = vadd.f32 0.0, %v9729
        %v9731 = vpop.f32.mrf.mxu0
        %v9732 = vadd.f32 0.0, %v9731
        %9733 = vmatmul.bf16.gmra.mxu0 %v8471
        %v9734 = vpop.f32.mrf.mxu0
        %v9735 = vadd.f32 0.0, %v9734
        %v9736 = vpop.f32.mrf.mxu0
        %v9737 = vadd.f32 0.0, %v9736
        %9738 = vmatmul.bf16.gmra.mxu0 %v8472
        %v9739 = vpop.f32.mrf.mxu0
        %v9740 = vadd.f32 0.0, %v9739
        %v9741 = vpop.f32.mrf.mxu0
        %v9742 = vadd.f32 0.0, %v9741
        %9743 = vmatmul.bf16.gmra.mxu0 %v8473
        %v9744 = vpop.f32.mrf.mxu0
        %v9745 = vadd.f32 0.0, %v9744
        %v9746 = vpop.f32.mrf.mxu0
        %v9747 = vadd.f32 0.0, %v9746
        %9748 = vmatmul.bf16.gmra.mxu0 %v8474
        %v9749 = vpop.f32.mrf.mxu0
        %v9750 = vadd.f32 0.0, %v9749
        %v9751 = vpop.f32.mrf.mxu0
        %v9752 = vadd.f32 0.0, %v9751
        %9753 = vmatmul.bf16.gmra.mxu0 %v8475
        %v9754 = vpop.f32.mrf.mxu0
        %v9755 = vadd.f32 0.0, %v9754
        %v9756 = vpop.f32.mrf.mxu0
        %v9757 = vadd.f32 0.0, %v9756
        %9758 = vmatmul.bf16.gmra.mxu0 %v9029
        %v9759 = vpop.f32.mrf.mxu0
        %v9760 = vadd.f32 0.0, %v9759
        %v9761 = vpop.f32.mrf.mxu0
        %v9762 = vadd.f32 0.0, %v9761
        %9763 = vmatmul.bf16.gmra.mxu0 %v9630
        %v9764 = vpop.f32.mrf.mxu0
        %v9765 = vadd.f32 0.0, %v9764
        %v9766 = vpop.f32.mrf.mxu0
        %v9767 = vadd.f32 0.0, %v9766
        %9768 = vdwg.mxu0
        %v9769 = vadd.f32 %v9578, %v9690
        %v9770 = vadd.f32 %v9579, %v9692
        %v9771 = vadd.f32 %v9580, %v9695
        %v9772 = vadd.f32 %v9581, %v9697
        %v9773 = vadd.f32 %v9582, %v9700
        %v9774 = vadd.f32 %v9583, %v9702
        %v9775 = vadd.f32 %v9584, %v9705
        %v9776 = vadd.f32 %v9585, %v9707
        %v9777 = vadd.f32 %v9586, %v9710
        %v9778 = vadd.f32 %v9587, %v9712
        %v9779 = vadd.f32 %v9588, %v9715
        %v9780 = vadd.f32 %v9589, %v9717
        %v9781 = vadd.f32 %v9590, %v9720
        %v9782 = vadd.f32 %v9591, %v9722
        %v9783 = vadd.f32 %v9592, %v9725
        %v9784 = vadd.f32 %v9593, %v9727
        %v9785 = vadd.f32 %v9594, %v9730
        %v9786 = vadd.f32 %v9595, %v9732
        %v9787 = vadd.f32 %v9596, %v9735
        %v9788 = vadd.f32 %v9597, %v9737
        %v9789 = vadd.f32 %v9598, %v9740
        %v9790 = vadd.f32 %v9599, %v9742
        %v9791 = vadd.f32 %v9600, %v9745
        %v9792 = vadd.f32 %v9601, %v9747
        %v9793 = vadd.f32 %v9602, %v9750
        %v9794 = vadd.f32 %v9603, %v9752
        %v9795 = vadd.f32 %v9604, %v9755
        %v9796 = vadd.f32 %v9605, %v9757
        %v9797 = vadd.f32 %v9606, %v9760
        %v9798 = vadd.f32 %v9607, %v9762
        %v9799 = vadd.f32 %v9608, %v9765
        %v9800 = vadd.f32 %v9609, %v9767
        %v9802 = vshrl.u32 %v7773, 16
        %v9804 = vrot.slane %v9802, 4
        %v9805 = vshll.u32 %v7773, 16
        %v9807 = vrot.slane %v9805, 5
        %v9808 = vor.u32 %v9804, %v9807
        %v9809 = vrot.slane %v9808, 4
        %v9811 = vshll.u32 %v7774, 16
        %v9813 = vrot.slane %v9811, 5
        %v9814 = vsel %vm7794, %v9809, %v9813
        %v9815 = vshrl.u32 %v7774, 16
        %v9817 = vrot.slane %v9815, 4
        %v9818 = vor.u32 %v9817, %v9813
        %v9819 = vrot.slane %v9818, 4
        %v9821 = vshll.u32 %v7775, 16
        %v9823 = vrot.slane %v9821, 5
        %v9824 = vsel %vm7794, %v9819, %v9823
        %v9825 = vld [vmem:[#allocation2 + $0x1c0] sm:$0xf]
        %v9826 = vld [vmem:[#allocation2 + $0x1c4] sm:$0xf]
        %v9827 = vld [vmem:[#allocation2 + $0x1c8] sm:$0xf]
        %v9828 = vld [vmem:[#allocation2 + $0x1cc] sm:$0xf]
        %v9829 = vld [vmem:[#allocation2 + $0x1d0] sm:$0xf]
        %v9830 = vld [vmem:[#allocation2 + $0x1d4] sm:$0xf]
        %v9831 = vld [vmem:[#allocation2 + $0x1d8] sm:$0xf]
        %v9832 = vld [vmem:[#allocation2 + $0x1dc] sm:$0xf]
        %v9833 = vld [vmem:[#allocation2 + $0x1e0] sm:$0xf]
        %v9834 = vld [vmem:[#allocation2 + $0x1e4] sm:$0xf]
        %v9835 = vld [vmem:[#allocation2 + $0x1e8] sm:$0xf]
        %v9836 = vld [vmem:[#allocation2 + $0x1ec] sm:$0xf]
        %v9837 = vld [vmem:[#allocation2 + $0x1f0] sm:$0xf]
        %v9838 = vld [vmem:[#allocation2 + $0x1f4] sm:$0xf]
        %v9839 = vld [vmem:[#allocation2 + $0x1f8] sm:$0xf]
        %v9840 = vld [vmem:[#allocation2 + $0x1fc] sm:$0xf]
        %v9841 = vunpack.c.l.b16 %v9814
        %v9842 = vunpack.c.l.b16 %v9824
        %v9843 = vpack.c.b16 %v9842, %v9841
        %v9861 = vunpack.c.l.b16 %v9825
        %v9862 = vunpack.c.l.b16 %v9826
        %v9863 = vunpack.c.l.b16 %v9827
        %v9864 = vunpack.c.l.b16 %v9828
        %v9865 = vunpack.c.l.b16 %v9829
        %v9866 = vunpack.c.l.b16 %v9830
        %v9867 = vunpack.c.l.b16 %v9831
        %v9868 = vunpack.c.l.b16 %v9832
        %v9869 = vunpack.c.l.b16 %v9833
        %v9870 = vunpack.c.l.b16 %v9834
        %v9871 = vunpack.c.l.b16 %v9835
        %v9872 = vunpack.c.l.b16 %v9836
        %v9873 = vunpack.c.l.b16 %v9837
        %v9874 = vunpack.c.l.b16 %v9838
        %v9875 = vunpack.c.l.b16 %v9839
        %v9876 = vunpack.c.l.b16 %v9840
        %v9877 = vpack.c.b16 %v9862, %v9861
        %v9878 = vpack.c.b16 %v9864, %v9863
        %v9879 = vpack.c.b16 %v9866, %v9865
        %v9880 = vpack.c.b16 %v9868, %v9867
        %v9881 = vpack.c.b16 %v9870, %v9869
        %v9882 = vpack.c.b16 %v9872, %v9871
        %v9883 = vpack.c.b16 %v9874, %v9873
        %v9884 = vpack.c.b16 %v9876, %v9875
        %9893 = vmatpush.bf16.msra.mxu0 %v9884
        %9894 = vmatpush.bf16.msra.mxu0 %v9883
        %9895 = vmatpush.bf16.msra.mxu0 %v9882
        %9896 = vmatpush.bf16.msra.mxu0 %v9881
        %9897 = vmatpush.bf16.msra.mxu0 %v9880
        %9898 = vmatpush.bf16.msra.mxu0 %v9879
        %9899 = vmatpush.bf16.msra.mxu0 %v9878
        %9900 = vmatpush.bf16.msra.mxu0 %v9877
        %9901 = vmatmul.bf16.gmra.mxu0 %v8229
        %v9902 = vpop.f32.mrf.mxu0
        %v9903 = vadd.f32 0.0, %v9902
        %v9904 = vpop.f32.mrf.mxu0
        %v9905 = vadd.f32 0.0, %v9904
        %9906 = vmatmul.bf16.gmra.mxu0 %v8230
        %v9907 = vpop.f32.mrf.mxu0
        %v9908 = vadd.f32 0.0, %v9907
        %v9909 = vpop.f32.mrf.mxu0
        %v9910 = vadd.f32 0.0, %v9909
        %9911 = vmatmul.bf16.gmra.mxu0 %v8231
        %v9912 = vpop.f32.mrf.mxu0
        %v9913 = vadd.f32 0.0, %v9912
        %v9914 = vpop.f32.mrf.mxu0
        %v9915 = vadd.f32 0.0, %v9914
        %9916 = vmatmul.bf16.gmra.mxu0 %v8232
        %v9917 = vpop.f32.mrf.mxu0
        %v9918 = vadd.f32 0.0, %v9917
        %v9919 = vpop.f32.mrf.mxu0
        %v9920 = vadd.f32 0.0, %v9919
        %9921 = vmatmul.bf16.gmra.mxu0 %v8233
        %v9922 = vpop.f32.mrf.mxu0
        %v9923 = vadd.f32 0.0, %v9922
        %v9924 = vpop.f32.mrf.mxu0
        %v9925 = vadd.f32 0.0, %v9924
        %9926 = vmatmul.bf16.gmra.mxu0 %v8234
        %v9927 = vpop.f32.mrf.mxu0
        %v9928 = vadd.f32 0.0, %v9927
        %v9929 = vpop.f32.mrf.mxu0
        %v9930 = vadd.f32 0.0, %v9929
        %9931 = vmatmul.bf16.gmra.mxu0 %v8235
        %v9932 = vpop.f32.mrf.mxu0
        %v9933 = vadd.f32 0.0, %v9932
        %v9934 = vpop.f32.mrf.mxu0
        %v9935 = vadd.f32 0.0, %v9934
        %9936 = vmatmul.bf16.gmra.mxu0 %v8236
        %v9937 = vpop.f32.mrf.mxu0
        %v9938 = vadd.f32 0.0, %v9937
        %v9939 = vpop.f32.mrf.mxu0
        %v9940 = vadd.f32 0.0, %v9939
        %9941 = vmatmul.bf16.gmra.mxu0 %v8237
        %v9942 = vpop.f32.mrf.mxu0
        %v9943 = vadd.f32 0.0, %v9942
        %v9944 = vpop.f32.mrf.mxu0
        %v9945 = vadd.f32 0.0, %v9944
        %9946 = vmatmul.bf16.gmra.mxu0 %v8238
        %v9947 = vpop.f32.mrf.mxu0
        %v9948 = vadd.f32 0.0, %v9947
        %v9949 = vpop.f32.mrf.mxu0
        %v9950 = vadd.f32 0.0, %v9949
        %9951 = vmatmul.bf16.gmra.mxu0 %v8239
        %v9952 = vpop.f32.mrf.mxu0
        %v9953 = vadd.f32 0.0, %v9952
        %v9954 = vpop.f32.mrf.mxu0
        %v9955 = vadd.f32 0.0, %v9954
        %9956 = vmatmul.bf16.gmra.mxu0 %v8240
        %v9957 = vpop.f32.mrf.mxu0
        %v9958 = vadd.f32 0.0, %v9957
        %v9959 = vpop.f32.mrf.mxu0
        %v9960 = vadd.f32 0.0, %v9959
        %9961 = vmatmul.bf16.gmra.mxu0 %v8241
        %v9962 = vpop.f32.mrf.mxu0
        %v9963 = vadd.f32 0.0, %v9962
        %v9964 = vpop.f32.mrf.mxu0
        %v9965 = vadd.f32 0.0, %v9964
        %9966 = vmatmul.bf16.gmra.mxu0 %v8242
        %v9967 = vpop.f32.mrf.mxu0
        %v9968 = vadd.f32 0.0, %v9967
        %v9969 = vpop.f32.mrf.mxu0
        %v9970 = vadd.f32 0.0, %v9969
        %9971 = vmatmul.bf16.gmra.mxu0 %v9242
        %v9972 = vpop.f32.mrf.mxu0
        %v9973 = vadd.f32 0.0, %v9972
        %v9974 = vpop.f32.mrf.mxu0
        %v9975 = vadd.f32 0.0, %v9974
        %9976 = vmatmul.bf16.gmra.mxu0 %v9843
        %v9977 = vpop.f32.mrf.mxu0
        %v9978 = vadd.f32 0.0, %v9977
        %v9979 = vpop.f32.mrf.mxu0
        %v9980 = vadd.f32 0.0, %v9979
        %9981 = vdwg.mxu0
        %v9982 = vadd.f32 %v9769, %v9903
        %v9983 = vadd.f32 %v9770, %v9905
        %v9984 = vadd.f32 %v9771, %v9908
        %v9985 = vadd.f32 %v9772, %v9910
        %v9986 = vadd.f32 %v9773, %v9913
        %v9987 = vadd.f32 %v9774, %v9915
        %v9988 = vadd.f32 %v9775, %v9918
        %v9989 = vadd.f32 %v9776, %v9920
        %v9990 = vadd.f32 %v9777, %v9923
        %v9991 = vadd.f32 %v9778, %v9925
        %v9992 = vadd.f32 %v9779, %v9928
        %v9993 = vadd.f32 %v9780, %v9930
        %v9994 = vadd.f32 %v9781, %v9933
        %v9995 = vadd.f32 %v9782, %v9935
        %v9996 = vadd.f32 %v9783, %v9938
        %v9997 = vadd.f32 %v9784, %v9940
        %v9998 = vadd.f32 %v9785, %v9943
        %v9999 = vadd.f32 %v9786, %v9945
        %v10000 = vadd.f32 %v9787, %v9948
        %v10001 = vadd.f32 %v9788, %v9950
        %v10002 = vadd.f32 %v9789, %v9953
        %v10003 = vadd.f32 %v9790, %v9955
        %v10004 = vadd.f32 %v9791, %v9958
        %v10005 = vadd.f32 %v9792, %v9960
        %v10006 = vadd.f32 %v9793, %v9963
        %v10007 = vadd.f32 %v9794, %v9965
        %v10008 = vadd.f32 %v9795, %v9968
        %v10009 = vadd.f32 %v9796, %v9970
        %v10010 = vadd.f32 %v9797, %v9973
        %v10011 = vadd.f32 %v9798, %v9975
        %v10012 = vadd.f32 %v9799, %v9978
        %v10013 = vadd.f32 %v9800, %v9980
        %v10015 = vrot.slane %v7773, 5
        %v10016 = vrot.slane %v10015, 4
        %v10017 = vrot.slane %v7774, 5
        %v10018 = vsel %vm8647, %v10016, %v10017
        %v10019 = vrot.slane %v10017, 4
        %v10020 = vrot.slane %v7775, 5
        %v10021 = vsel %vm8647, %v10019, %v10020
        %v10022 = vld [vmem:[#allocation2 + $0x200] sm:$0xf]
        %v10023 = vld [vmem:[#allocation2 + $0x204] sm:$0xf]
        %v10024 = vld [vmem:[#allocation2 + $0x208] sm:$0xf]
        %v10025 = vld [vmem:[#allocation2 + $0x20c] sm:$0xf]
        %v10026 = vld [vmem:[#allocation2 + $0x210] sm:$0xf]
        %v10027 = vld [vmem:[#allocation2 + $0x214] sm:$0xf]
        %v10028 = vld [vmem:[#allocation2 + $0x218] sm:$0xf]
        %v10029 = vld [vmem:[#allocation2 + $0x21c] sm:$0xf]
        %v10030 = vld [vmem:[#allocation2 + $0x220] sm:$0xf]
        %v10031 = vld [vmem:[#allocation2 + $0x224] sm:$0xf]
        %v10032 = vld [vmem:[#allocation2 + $0x228] sm:$0xf]
        %v10033 = vld [vmem:[#allocation2 + $0x22c] sm:$0xf]
        %v10034 = vld [vmem:[#allocation2 + $0x230] sm:$0xf]
        %v10035 = vld [vmem:[#allocation2 + $0x234] sm:$0xf]
        %v10036 = vld [vmem:[#allocation2 + $0x238] sm:$0xf]
        %v10037 = vld [vmem:[#allocation2 + $0x23c] sm:$0xf]
        %v10038 = vunpack.c.l.b16 %v10018
        %v10039 = vunpack.c.l.b16 %v10021
        %v10040 = vpack.c.b16 %v10039, %v10038
        %v10058 = vunpack.c.l.b16 %v10022
        %v10059 = vunpack.c.l.b16 %v10023
        %v10060 = vunpack.c.l.b16 %v10024
        %v10061 = vunpack.c.l.b16 %v10025
        %v10062 = vunpack.c.l.b16 %v10026
        %v10063 = vunpack.c.l.b16 %v10027
        %v10064 = vunpack.c.l.b16 %v10028
        %v10065 = vunpack.c.l.b16 %v10029
        %v10066 = vunpack.c.l.b16 %v10030
        %v10067 = vunpack.c.l.b16 %v10031
        %v10068 = vunpack.c.l.b16 %v10032
        %v10069 = vunpack.c.l.b16 %v10033
        %v10070 = vunpack.c.l.b16 %v10034
        %v10071 = vunpack.c.l.b16 %v10035
        %v10072 = vunpack.c.l.b16 %v10036
        %v10073 = vunpack.c.l.b16 %v10037
        %v10074 = vpack.c.b16 %v10059, %v10058
        %v10075 = vpack.c.b16 %v10061, %v10060
        %v10076 = vpack.c.b16 %v10063, %v10062
        %v10077 = vpack.c.b16 %v10065, %v10064
        %v10078 = vpack.c.b16 %v10067, %v10066
        %v10079 = vpack.c.b16 %v10069, %v10068
        %v10080 = vpack.c.b16 %v10071, %v10070
        %v10081 = vpack.c.b16 %v10073, %v10072
        %10090 = vmatpush.bf16.msra.mxu0 %v10081
        %10091 = vmatpush.bf16.msra.mxu0 %v10080
        %10092 = vmatpush.bf16.msra.mxu0 %v10079
        %10093 = vmatpush.bf16.msra.mxu0 %v10078
        %10094 = vmatpush.bf16.msra.mxu0 %v10077
        %10095 = vmatpush.bf16.msra.mxu0 %v10076
        %10096 = vmatpush.bf16.msra.mxu0 %v10075
        %10097 = vmatpush.bf16.msra.mxu0 %v10074
        %10098 = vmatmul.bf16.gmra.mxu0 %v8810
        %v10099 = vpop.f32.mrf.mxu0
        %v10100 = vadd.f32 0.0, %v10099
        %v10101 = vpop.f32.mrf.mxu0
        %v10102 = vadd.f32 0.0, %v10101
        %10103 = vmatmul.bf16.gmra.mxu0 %v8811
        %v10104 = vpop.f32.mrf.mxu0
        %v10105 = vadd.f32 0.0, %v10104
        %v10106 = vpop.f32.mrf.mxu0
        %v10107 = vadd.f32 0.0, %v10106
        %10108 = vmatmul.bf16.gmra.mxu0 %v8812
        %v10109 = vpop.f32.mrf.mxu0
        %v10110 = vadd.f32 0.0, %v10109
        %v10111 = vpop.f32.mrf.mxu0
        %v10112 = vadd.f32 0.0, %v10111
        %10113 = vmatmul.bf16.gmra.mxu0 %v8813
        %v10114 = vpop.f32.mrf.mxu0
        %v10115 = vadd.f32 0.0, %v10114
        %v10116 = vpop.f32.mrf.mxu0
        %v10117 = vadd.f32 0.0, %v10116
        %10118 = vmatmul.bf16.gmra.mxu0 %v8814
        %v10119 = vpop.f32.mrf.mxu0
        %v10120 = vadd.f32 0.0, %v10119
        %v10121 = vpop.f32.mrf.mxu0
        %v10122 = vadd.f32 0.0, %v10121
        %10123 = vmatmul.bf16.gmra.mxu0 %v8815
        %v10124 = vpop.f32.mrf.mxu0
        %v10125 = vadd.f32 0.0, %v10124
        %v10126 = vpop.f32.mrf.mxu0
        %v10127 = vadd.f32 0.0, %v10126
        %10128 = vmatmul.bf16.gmra.mxu0 %v8816
        %v10129 = vpop.f32.mrf.mxu0
        %v10130 = vadd.f32 0.0, %v10129
        %v10131 = vpop.f32.mrf.mxu0
        %v10132 = vadd.f32 0.0, %v10131
        %10133 = vmatmul.bf16.gmra.mxu0 %v8817
        %v10134 = vpop.f32.mrf.mxu0
        %v10135 = vadd.f32 0.0, %v10134
        %v10136 = vpop.f32.mrf.mxu0
        %v10137 = vadd.f32 0.0, %v10136
        %10138 = vmatmul.bf16.gmra.mxu0 %v8818
        %v10139 = vpop.f32.mrf.mxu0
        %v10140 = vadd.f32 0.0, %v10139
        %v10141 = vpop.f32.mrf.mxu0
        %v10142 = vadd.f32 0.0, %v10141
        %10143 = vmatmul.bf16.gmra.mxu0 %v8819
        %v10144 = vpop.f32.mrf.mxu0
        %v10145 = vadd.f32 0.0, %v10144
        %v10146 = vpop.f32.mrf.mxu0
        %v10147 = vadd.f32 0.0, %v10146
        %10148 = vmatmul.bf16.gmra.mxu0 %v8820
        %v10149 = vpop.f32.mrf.mxu0
        %v10150 = vadd.f32 0.0, %v10149
        %v10151 = vpop.f32.mrf.mxu0
        %v10152 = vadd.f32 0.0, %v10151
        %10153 = vmatmul.bf16.gmra.mxu0 %v8821
        %v10154 = vpop.f32.mrf.mxu0
        %v10155 = vadd.f32 0.0, %v10154
        %v10156 = vpop.f32.mrf.mxu0
        %v10157 = vadd.f32 0.0, %v10156
        %10158 = vmatmul.bf16.gmra.mxu0 %v8822
        %v10159 = vpop.f32.mrf.mxu0
        %v10160 = vadd.f32 0.0, %v10159
        %v10161 = vpop.f32.mrf.mxu0
        %v10162 = vadd.f32 0.0, %v10161
        %10163 = vmatmul.bf16.gmra.mxu0 %v8823
        %v10164 = vpop.f32.mrf.mxu0
        %v10165 = vadd.f32 0.0, %v10164
        %v10166 = vpop.f32.mrf.mxu0
        %v10167 = vadd.f32 0.0, %v10166
        %10168 = vmatmul.bf16.gmra.mxu0 %v9439
        %v10169 = vpop.f32.mrf.mxu0
        %v10170 = vadd.f32 0.0, %v10169
        %v10171 = vpop.f32.mrf.mxu0
        %v10172 = vadd.f32 0.0, %v10171
        %10173 = vmatmul.bf16.gmra.mxu0 %v10040
        %v10174 = vpop.f32.mrf.mxu0
        %v10175 = vadd.f32 0.0, %v10174
        %v10176 = vpop.f32.mrf.mxu0
        %v10177 = vadd.f32 0.0, %v10176
        %10178 = vdwg.mxu0
        %v10179 = vadd.f32 %v9982, %v10100
        %v10180 = vadd.f32 %v9983, %v10102
        %v10181 = vadd.f32 %v9984, %v10105
        %v10182 = vadd.f32 %v9985, %v10107
        %v10183 = vadd.f32 %v9986, %v10110
        %v10184 = vadd.f32 %v9987, %v10112
        %v10185 = vadd.f32 %v9988, %v10115
        %v10186 = vadd.f32 %v9989, %v10117
        %v10187 = vadd.f32 %v9990, %v10120
        %v10188 = vadd.f32 %v9991, %v10122
        %v10189 = vadd.f32 %v9992, %v10125
        %v10190 = vadd.f32 %v9993, %v10127
        %v10191 = vadd.f32 %v9994, %v10130
        %v10192 = vadd.f32 %v9995, %v10132
        %v10193 = vadd.f32 %v9996, %v10135
        %v10194 = vadd.f32 %v9997, %v10137
        %v10195 = vadd.f32 %v9998, %v10140
        %v10196 = vadd.f32 %v9999, %v10142
        %v10197 = vadd.f32 %v10000, %v10145
        %v10198 = vadd.f32 %v10001, %v10147
        %v10199 = vadd.f32 %v10002, %v10150
        %v10200 = vadd.f32 %v10003, %v10152
        %v10201 = vadd.f32 %v10004, %v10155
        %v10202 = vadd.f32 %v10005, %v10157
        %v10203 = vadd.f32 %v10006, %v10160
        %v10204 = vadd.f32 %v10007, %v10162
        %v10205 = vadd.f32 %v10008, %v10165
        %v10206 = vadd.f32 %v10009, %v10167
        %v10207 = vadd.f32 %v10010, %v10170
        %v10208 = vadd.f32 %v10011, %v10172
        %v10209 = vadd.f32 %v10012, %v10175
        %v10210 = vadd.f32 %v10013, %v10177
        %v10211 = vunpack.c.l.bf16 %v275
        %v10212 = vunpack.c.l.bf16 %v276
        %v10213 = vunpack.c.l.bf16 %v277
        %v10214 = vunpack.c.l.bf16 %v278
        %v10215 = vunpack.c.l.bf16 %v279
        %v10216 = vunpack.c.l.bf16 %v280
        %v10217 = vunpack.c.l.bf16 %v281
        %v10218 = vunpack.c.l.bf16 %v282
        %v10219 = vunpack.c.l.bf16 %v283
        %v10220 = vunpack.c.l.bf16 %v284
        %v10221 = vunpack.c.l.bf16 %v285
        %v10222 = vunpack.c.l.bf16 %v286
        %v10223 = vunpack.c.l.bf16 %v287
        %v10224 = vunpack.c.l.bf16 %v288
        %v10225 = vunpack.c.l.bf16 %v289
        %v10226 = vunpack.c.l.bf16 %v290
        %v10227 = vunpack.c.l.bf16 %v291
        %v10228 = vunpack.c.l.bf16 %v292
        %v10229 = vunpack.c.l.bf16 %v293
        %v10230 = vunpack.c.l.bf16 %v294
        %v10231 = vunpack.c.l.bf16 %v295
        %v10232 = vunpack.c.l.bf16 %v296
        %v10233 = vunpack.c.l.bf16 %v297
        %v10234 = vunpack.c.l.bf16 %v298
        %v10235 = vunpack.c.l.bf16 %v299
        %v10236 = vunpack.c.l.bf16 %v300
        %v10237 = vunpack.c.l.bf16 %v301
        %v10238 = vunpack.c.l.bf16 %v302
        %v10239 = vunpack.c.l.bf16 %v303
        %v10240 = vunpack.c.l.bf16 %v304
        %v10241 = vunpack.c.l.bf16 %v305
        %v10242 = vunpack.c.l.bf16 %v306
        %v10243 = vunpack.c.l.bf16 %v307
        %v10244 = vunpack.c.l.bf16 %v308
        %v10245 = vunpack.c.l.bf16 %v309
        %v10246 = vunpack.c.l.bf16 %v310
        %v10247 = vunpack.c.l.bf16 %v311
        %v10248 = vunpack.c.l.bf16 %v312
        %v10249 = vunpack.c.l.bf16 %v313
        %v10250 = vunpack.c.l.bf16 %v314
        %v10251 = vunpack.c.l.bf16 %v315
        %v10252 = vunpack.c.l.bf16 %v316
        %v10253 = vunpack.c.l.bf16 %v317
        %v10254 = vunpack.c.l.bf16 %v318
        %v10255 = vunpack.c.l.bf16 %v319
        %v10256 = vunpack.c.l.bf16 %v320
        %v10257 = vunpack.c.l.bf16 %v321
        %v10258 = vunpack.c.l.bf16 %v322
        %vm10307 = vcmask 1045504
        %v10308 = vrot.slane %v10211, 2
        %v10309 = vrot.slane %v10212, 2
        %v10310 = vsel %vm10307, %v10308, %v10309
        %v10311 = vrot.slane %v10213, 2
        %v10312 = vsel %vm10307, %v10309, %v10311
        %v10313 = vrot.slane %v10214, 2
        %v10314 = vrot.slane %v10215, 2
        %v10315 = vsel %vm10307, %v10313, %v10314
        %v10316 = vrot.slane %v10216, 2
        %v10317 = vsel %vm10307, %v10314, %v10316
        %v10318 = vrot.slane %v10217, 2
        %v10319 = vrot.slane %v10218, 2
        %v10320 = vsel %vm10307, %v10318, %v10319
        %v10321 = vrot.slane %v10219, 2
        %v10322 = vsel %vm10307, %v10319, %v10321
        %v10323 = vrot.slane %v10220, 2
        %v10324 = vrot.slane %v10221, 2
        %v10325 = vsel %vm10307, %v10323, %v10324
        %v10326 = vrot.slane %v10222, 2
        %v10327 = vsel %vm10307, %v10324, %v10326
        %v10328 = vrot.slane %v10223, 2
        %v10329 = vrot.slane %v10224, 2
        %v10330 = vsel %vm10307, %v10328, %v10329
        %v10331 = vrot.slane %v10225, 2
        %v10332 = vsel %vm10307, %v10329, %v10331
        %v10333 = vrot.slane %v10226, 2
        %v10334 = vrot.slane %v10227, 2
        %v10335 = vsel %vm10307, %v10333, %v10334
        %v10336 = vrot.slane %v10228, 2
        %v10337 = vsel %vm10307, %v10334, %v10336
        %v10338 = vrot.slane %v10229, 2
        %v10339 = vrot.slane %v10230, 2
        %v10340 = vsel %vm10307, %v10338, %v10339
        %v10341 = vrot.slane %v10231, 2
        %v10342 = vsel %vm10307, %v10339, %v10341
        %v10343 = vrot.slane %v10232, 2
        %v10344 = vrot.slane %v10233, 2
        %v10345 = vsel %vm10307, %v10343, %v10344
        %v10346 = vrot.slane %v10234, 2
        %v10347 = vsel %vm10307, %v10344, %v10346
        %v10348 = vrot.slane %v10235, 2
        %v10349 = vrot.slane %v10236, 2
        %v10350 = vsel %vm10307, %v10348, %v10349
        %v10351 = vrot.slane %v10237, 2
        %v10352 = vsel %vm10307, %v10349, %v10351
        %v10353 = vrot.slane %v10238, 2
        %v10354 = vrot.slane %v10239, 2
        %v10355 = vsel %vm10307, %v10353, %v10354
        %v10356 = vrot.slane %v10240, 2
        %v10357 = vsel %vm10307, %v10354, %v10356
        %v10358 = vrot.slane %v10241, 2
        %v10359 = vrot.slane %v10242, 2
        %v10360 = vsel %vm10307, %v10358, %v10359
        %v10361 = vrot.slane %v10243, 2
        %v10362 = vsel %vm10307, %v10359, %v10361
        %v10363 = vrot.slane %v10244, 2
        %v10364 = vrot.slane %v10245, 2
        %v10365 = vsel %vm10307, %v10363, %v10364
        %v10366 = vrot.slane %v10246, 2
        %v10367 = vsel %vm10307, %v10364, %v10366
        %v10368 = vrot.slane %v10247, 2
        %v10369 = vrot.slane %v10248, 2
        %v10370 = vsel %vm10307, %v10368, %v10369
        %v10371 = vrot.slane %v10249, 2
        %v10372 = vsel %vm10307, %v10369, %v10371
        %v10373 = vrot.slane %v10250, 2
        %v10374 = vrot.slane %v10251, 2
        %v10375 = vsel %vm10307, %v10373, %v10374
        %v10376 = vrot.slane %v10252, 2
        %v10377 = vsel %vm10307, %v10374, %v10376
        %v10378 = vrot.slane %v10253, 2
        %v10379 = vrot.slane %v10254, 2
        %v10380 = vsel %vm10307, %v10378, %v10379
        %v10381 = vrot.slane %v10255, 2
        %v10382 = vsel %vm10307, %v10379, %v10381
        %v10383 = vrot.slane %v10256, 2
        %v10384 = vrot.slane %v10257, 2
        %v10385 = vsel %vm10307, %v10383, %v10384
        %v10386 = vrot.slane %v10258, 2
        %v10387 = vsel %vm10307, %v10384, %v10386
        %v10420 = vld [vmem:[%s4] sm:$0x1]
        %v10422 = vperm.slane %v10420, 0
        %v10424 = vadd.f32 %v10179, %v10422
        %v10425 = vadd.f32 %v10180, %v10422
        %v10426 = vadd.f32 %v10181, %v10422
        %v10427 = vadd.f32 %v10182, %v10422
        %v10428 = vadd.f32 %v10183, %v10422
        %v10429 = vadd.f32 %v10184, %v10422
        %v10430 = vadd.f32 %v10185, %v10422
        %v10431 = vadd.f32 %v10186, %v10422
        %v10432 = vadd.f32 %v10187, %v10422
        %v10433 = vadd.f32 %v10188, %v10422
        %v10434 = vadd.f32 %v10189, %v10422
        %v10435 = vadd.f32 %v10190, %v10422
        %v10436 = vadd.f32 %v10191, %v10422
        %v10437 = vadd.f32 %v10192, %v10422
        %v10438 = vadd.f32 %v10193, %v10422
        %v10439 = vadd.f32 %v10194, %v10422
        %v10440 = vadd.f32 %v10195, %v10422
        %v10441 = vadd.f32 %v10196, %v10422
        %v10442 = vadd.f32 %v10197, %v10422
        %v10443 = vadd.f32 %v10198, %v10422
        %v10444 = vadd.f32 %v10199, %v10422
        %v10445 = vadd.f32 %v10200, %v10422
        %v10446 = vadd.f32 %v10201, %v10422
        %v10447 = vadd.f32 %v10202, %v10422
        %v10448 = vadd.f32 %v10203, %v10422
        %v10449 = vadd.f32 %v10204, %v10422
        %v10450 = vadd.f32 %v10205, %v10422
        %v10451 = vadd.f32 %v10206, %v10422
        %v10452 = vadd.f32 %v10207, %v10422
        %v10453 = vadd.f32 %v10208, %v10422
        %v10454 = vadd.f32 %v10209, %v10422
        %v10455 = vadd.f32 %v10210, %v10422
        %v10456 = vadd.f32 %v10424, %v10310
        %v10457 = vadd.f32 %v10425, %v10312
        %v10458 = vadd.f32 %v10426, %v10315
        %v10459 = vadd.f32 %v10427, %v10317
        %v10460 = vadd.f32 %v10428, %v10320
        %v10461 = vadd.f32 %v10429, %v10322
        %v10462 = vadd.f32 %v10430, %v10325
        %v10463 = vadd.f32 %v10431, %v10327
        %v10464 = vadd.f32 %v10432, %v10330
        %v10465 = vadd.f32 %v10433, %v10332
        %v10466 = vadd.f32 %v10434, %v10335
        %v10467 = vadd.f32 %v10435, %v10337
        %v10468 = vadd.f32 %v10436, %v10340
        %v10469 = vadd.f32 %v10437, %v10342
        %v10470 = vadd.f32 %v10438, %v10345
        %v10471 = vadd.f32 %v10439, %v10347
        %v10472 = vadd.f32 %v10440, %v10350
        %v10473 = vadd.f32 %v10441, %v10352
        %v10474 = vadd.f32 %v10442, %v10355
        %v10475 = vadd.f32 %v10443, %v10357
        %v10476 = vadd.f32 %v10444, %v10360
        %v10477 = vadd.f32 %v10445, %v10362
        %v10478 = vadd.f32 %v10446, %v10365
        %v10479 = vadd.f32 %v10447, %v10367
        %v10480 = vadd.f32 %v10448, %v10370
        %v10481 = vadd.f32 %v10449, %v10372
        %v10482 = vadd.f32 %v10450, %v10375
        %v10483 = vadd.f32 %v10451, %v10377
        %v10484 = vadd.f32 %v10452, %v10380
        %v10485 = vadd.f32 %v10453, %v10382
        %v10486 = vadd.f32 %v10454, %v10385
        %v10487 = vadd.f32 %v10455, %v10387
        %v10488 = vmax.f32 %v10456, 0.0
        %v10489 = vmax.f32 %v10457, 0.0
        %v10490 = vmax.f32 %v10458, 0.0
        %v10491 = vmax.f32 %v10459, 0.0
        %v10492 = vmax.f32 %v10460, 0.0
        %v10493 = vmax.f32 %v10461, 0.0
        %v10494 = vmax.f32 %v10462, 0.0
        %v10495 = vmax.f32 %v10463, 0.0
        %v10496 = vmax.f32 %v10464, 0.0
        %v10497 = vmax.f32 %v10465, 0.0
        %v10498 = vmax.f32 %v10466, 0.0
        %v10499 = vmax.f32 %v10467, 0.0
        %v10500 = vmax.f32 %v10468, 0.0
        %v10501 = vmax.f32 %v10469, 0.0
        %v10502 = vmax.f32 %v10470, 0.0
        %v10503 = vmax.f32 %v10471, 0.0
        %v10504 = vmax.f32 %v10472, 0.0
        %v10505 = vmax.f32 %v10473, 0.0
        %v10506 = vmax.f32 %v10474, 0.0
        %v10507 = vmax.f32 %v10475, 0.0
        %v10508 = vmax.f32 %v10476, 0.0
        %v10509 = vmax.f32 %v10477, 0.0
        %v10510 = vmax.f32 %v10478, 0.0
        %v10511 = vmax.f32 %v10479, 0.0
        %v10512 = vmax.f32 %v10480, 0.0
        %v10513 = vmax.f32 %v10481, 0.0
        %v10514 = vmax.f32 %v10482, 0.0
        %v10515 = vmax.f32 %v10483, 0.0
        %v10516 = vmax.f32 %v10484, 0.0
        %v10517 = vmax.f32 %v10485, 0.0
        %v10518 = vmax.f32 %v10486, 0.0
        %v10519 = vmax.f32 %v10487, 0.0
        %v10520 = vpack.c.bf16 %v10488, %v10488
        %v10521 = vpack.c.bf16 %v10489, %v10489
        %v10522 = vpack.c.bf16 %v10490, %v10490
        %v10523 = vpack.c.bf16 %v10491, %v10491
        %v10524 = vpack.c.bf16 %v10492, %v10492
        %v10525 = vpack.c.bf16 %v10493, %v10493
        %v10526 = vpack.c.bf16 %v10494, %v10494
        %v10527 = vpack.c.bf16 %v10495, %v10495
        %v10528 = vpack.c.bf16 %v10496, %v10496
        %v10529 = vpack.c.bf16 %v10497, %v10497
        %v10530 = vpack.c.bf16 %v10498, %v10498
        %v10531 = vpack.c.bf16 %v10499, %v10499
        %v10532 = vpack.c.bf16 %v10500, %v10500
        %v10533 = vpack.c.bf16 %v10501, %v10501
        %v10534 = vpack.c.bf16 %v10502, %v10502
        %v10535 = vpack.c.bf16 %v10503, %v10503
        %v10536 = vpack.c.bf16 %v10504, %v10504
        %v10537 = vpack.c.bf16 %v10505, %v10505
        %v10538 = vpack.c.bf16 %v10506, %v10506
        %v10539 = vpack.c.bf16 %v10507, %v10507
        %v10540 = vpack.c.bf16 %v10508, %v10508
        %v10541 = vpack.c.bf16 %v10509, %v10509
        %v10542 = vpack.c.bf16 %v10510, %v10510
        %v10543 = vpack.c.bf16 %v10511, %v10511
        %v10544 = vpack.c.bf16 %v10512, %v10512
        %v10545 = vpack.c.bf16 %v10513, %v10513
        %v10546 = vpack.c.bf16 %v10514, %v10514
        %v10547 = vpack.c.bf16 %v10515, %v10515
        %v10548 = vpack.c.bf16 %v10516, %v10516
        %v10549 = vpack.c.bf16 %v10517, %v10517
        %v10550 = vpack.c.bf16 %v10518, %v10518
        %v10551 = vpack.c.bf16 %v10519, %v10519
        %10552 = vst [vmem:[%s258] sm:$0xf] %v10520
        %10553 = vst [vmem:[%s258 + $0x4] sm:$0xf] %v10521
        %10554 = vst [vmem:[%s258 + $0x8] sm:$0xf] %v10522
        %10555 = vst [vmem:[%s258 + $0xc] sm:$0xf] %v10523
        %10556 = vst [vmem:[%s258 + $0x10] sm:$0xf] %v10524
        %10557 = vst [vmem:[%s258 + $0x14] sm:$0xf] %v10525
        %10558 = vst [vmem:[%s258 + $0x18] sm:$0xf] %v10526
        %10559 = vst [vmem:[%s258 + $0x1c] sm:$0xf] %v10527
        %10560 = vst [vmem:[%s258 + $0x20] sm:$0xf] %v10528
        %10561 = vst [vmem:[%s258 + $0x24] sm:$0xf] %v10529
        %10562 = vst [vmem:[%s258 + $0x28] sm:$0xf] %v10530
        %10563 = vst [vmem:[%s258 + $0x2c] sm:$0xf] %v10531
        %10564 = vst [vmem:[%s258 + $0x30] sm:$0xf] %v10532
        %10565 = vst [vmem:[%s258 + $0x34] sm:$0xf] %v10533
        %10566 = vst [vmem:[%s258 + $0x38] sm:$0xf] %v10534
        %10567 = vst [vmem:[%s258 + $0x3c] sm:$0xf] %v10535
        %10568 = vst [vmem:[%s258 + $0x40] sm:$0xf] %v10536
        %10569 = vst [vmem:[%s258 + $0x44] sm:$0xf] %v10537
        %10570 = vst [vmem:[%s258 + $0x48] sm:$0xf] %v10538
        %10571 = vst [vmem:[%s258 + $0x4c] sm:$0xf] %v10539
        %10572 = vst [vmem:[%s258 + $0x50] sm:$0xf] %v10540
        %10573 = vst [vmem:[%s258 + $0x54] sm:$0xf] %v10541
        %10574 = vst [vmem:[%s258 + $0x58] sm:$0xf] %v10542
        %10575 = vst [vmem:[%s258 + $0x5c] sm:$0xf] %v10543
        %10576 = vst [vmem:[%s258 + $0x60] sm:$0xf] %v10544
        %10577 = vst [vmem:[%s258 + $0x64] sm:$0xf] %v10545
        %10578 = vst [vmem:[%s258 + $0x68] sm:$0xf] %v10546
        %10579 = vst [vmem:[%s258 + $0x6c] sm:$0xf] %v10547
        %10580 = vst [vmem:[%s258 + $0x70] sm:$0xf] %v10548
        %10581 = vst [vmem:[%s258 + $0x74] sm:$0xf] %v10549
        %10582 = vst [vmem:[%s258 + $0x78] sm:$0xf] %v10550
        %10583 = vst [vmem:[%s258 + $0x7c] sm:$0xf] %v10551
        %s10584 = sand.u32 %s154, 1
        %s10585 = scalar_lea.sflag [#allocation4], %s10584
        %s10586 = sand.u32 %s154, 1
        %s10587 = smul.addr %s10586, 128
        %s10588 = scalar_lea.vmem [#allocation5], %s10587
        // Predicated region
        $region45: #{tpu_custom_call.1} parent=39 // pred_check
          %p10589 = pneg %p164
        $region46: #{tpu_custom_call.1} parent=39 // pred_check_branch
          %10591 = sbr.rel (%p10589) target = $region48
        $region47: #{tpu_custom_call.1} parent=39 // pred_region
          %s10592 = smul.u32 16, %s25
          %10594 = vsyncadd %s10585, 0
          %s10595 = smul.addr %s10592, 2
          %s10596 = smul.addr %s24, 32
          %s10597 = sadd.s32 %s10595, %s10596
          %s10598 = smul.addr %s10597, 4
          %s10599 = scalar_lea.hbm %s5, %s10598
          %s10600 = sshll.u32 %s10588, 4
          %s10601 = int_to_ptr.vmem [resolvable:$true] %s10600
          %s10602 = sshll.u32 %s10599, 4
          %s10603 = int_to_ptr.hbm [resolvable:$true] %s10602
          %10608 = dma.vmem_to_hbm [thread:$0]  %s10601, 2048, %s10603, %s10585, 64, 64, 4
        $region48: #{tpu_custom_call.1} parent=39 // pred_fallthru
          _
      $region40: #{tpu_custom_call.1} parent=5 // pred_fallthru
        _
      %p10609 = scmp.le.s32.totalorder 2, %s15
      // Predicated region
      $region49: #{tpu_custom_call.1} parent=5 // pred_check
        %p10610 = pneg %p10609
      $region50: #{tpu_custom_call.1} parent=5 // pred_check_branch
        %10612 = sbr.rel (%p10610) target = $region52
      $region51: #{tpu_custom_call.1} parent=5 // pred_region
        %s10613 = ssub.s32 %s15, 2
        // Predicated region
        $region53: #{tpu_custom_call.1} parent=51 // pred_check
          %p10614 = pneg %p170
        $region54: #{tpu_custom_call.1} parent=51 // pred_check_branch
          %10616 = sbr.rel (%p10614) target = $region56
        $region55: #{tpu_custom_call.1} parent=51 // pred_region
          %s10617 = sand.u32 %s155, 1
          %s10618 = scalar_lea.sflag [#allocation4], %s10617
          %s10619 = sand.u32 %s155, 1
          %s10620 = smul.addr %s10619, 128
          %s10621 = scalar_lea.vmem [#allocation5], %s10620
          %10623 = dma.done %s10618, 2048
        $region56: #{tpu_custom_call.1} parent=51 // pred_fallthru
          _
      $region52: #{tpu_custom_call.1} parent=5 // pred_fallthru
        _
    $region6: #{tpu_custom_call.1} parent=1 // loop_footer
      %s19 = sadd.s32 1, %s15
    $region7: #{tpu_custom_call.1} parent=1 // loop_footer_branch
      %14 = sbr.rel target = $region3
    $region8: #{tpu_custom_call.1} parent=1 // loop_exit
      _
    %10624 = vsyncpa [#allocation3], 1
    %s10625 = scalar_lea.sflag [#allocation3], 1
    %10626 = vsyncpa %s10625, 1
    %10627 = vsyncpa [#allocation4], 1
    %s10628 = scalar_lea.sflag [#allocation4], 1
    %10629 = vsyncpa %s10628, 1

</llo_original>
